<compile_context>
chip_gen: v7x
topology: tpu7x:2x2x1
jax: 0.10.0
libtpu: 0.0.40
codegen_flags: <defaults>
</compile_context>

<pallas_src>
import functools

import jax
import jax.numpy as jnp
from jax.experimental import pallas as pl
from jax.experimental.pallas import tpu as pltpu

_SQRT1_2 = 0.7071067811865476
_LANE = 128


def _round_up(n, m):
    return (n + m - 1) // m * m


def _erf_approx(x):
    # Abramowitz & Stegun 7.1.26 (max abs error ~1.5e-7).  The divide uses the
    # EUP approximate reciprocal; exp is EUP as well, keeping the VALU free.
    a1, a2, a3, a4, a5 = 0.254829592, -0.284496736, 1.421413741, -1.453152027, 1.061405429
    p = 0.3275911
    s = jnp.where(x >= 0.0, 1.0, -1.0)
    ax = jnp.abs(x)
    t = pl.reciprocal(1.0 + p * ax, approx=True)
    poly = ((((a5 * t + a4) * t + a3) * t + a2) * t + a1) * t
    return s * (1.0 - poly * jnp.exp(-ax * ax))


def _gelu_exact(x):
    # nn.GELU() default = exact (erf) GELU.
    return 0.5 * x * (1.0 + _erf_approx(x * _SQRT1_2))


def _gdfn_kernel(x_ref, mask_ref, scale_ref, bias_ref, w1_ref, w3_ref, wr_ref,
                 o_ref, h_ref, acc_ref, *, n_out, Wpp, Chp):
    # x_ref:   (Rt, Cp)      bf16 zero-padded input window (TR+3 padded rows)
    # h_ref:   (Rt, 2*Chp)   bf16 fused hidden  [gate | info]
    # acc_ref: (n_out, 2*Chp) f32 3x3 accumulator
    x = x_ref[...].astype(jnp.float32)

    # BatchNorm2d (eval-mode affine) with the padding mask folded into the
    # bias term: padded pixels of x are zero, so xn is exactly zero there and
    # the 3x3 below sees true zero padding (Conv2d padding=1 semantics).
    xn = (x * scale_ref[...] + bias_ref[...] * mask_ref[...]).astype(jnp.bfloat16)

    # Fused 1x1 projections (gating | information) in a single bf16 matmul.
    h_ref[...] = jnp.dot(xn, w1_ref[...],
                         preferred_element_type=jnp.float32).astype(jnp.bfloat16)

    # Fused 3x3 convolutions: 9 shifted row-slices of the padded hidden map,
    # each contracted with a block-diagonal (gate (+) info) tap weight.
    for k in range(9):
        off = (k // 3) * Wpp + (k % 3)     # static; Wpp is a multiple of 8
        tap = jnp.dot(h_ref[pl.ds(off, n_out), :], w3_ref[k],
                      preferred_element_type=jnp.float32)
        if k == 0:
            acc_ref[...] = tap
        else:
            acc_ref[...] += tap

    # GELU gating, elementwise product, then 1x1 reconstruction.
    gate = acc_ref[:, :Chp]
    info = acc_ref[:, Chp:]
    gated = (_gelu_exact(gate) * info).astype(jnp.bfloat16)
    o_ref[...] = jnp.dot(gated, wr_ref[...], preferred_element_type=jnp.float32)


def gdfn_forward(x_nchw, params, *, tile_rows=None):
    """x_nchw: (B, C, H, W) float32.  Returns (B, C, H, W) float32."""
    B, C, H, W = x_nchw.shape
    Ch = params["w1g"].shape[1]

    Cp = _round_up(C, _LANE)           # lane-dense input / output channels
    Chp = _round_up(Ch, _LANE)         # lane-dense hidden channels (per branch)
    Hf = 2 * Chp                       # fused hidden width  [gate | info]
    Wpp = _round_up(W + 2, 8)          # padded width, sublane-aligned row stride

    if tile_rows is None:
        tile_rows = max(1, min(H, 512 // Wpp))   # ~512 flat padded rows / tile
    TR = int(tile_rows)
    T = -(-H // TR)                    # number of row tiles
    Hp = T * TR + 3                    # top pad 1, bottom pad >= 2 (+ tile slack)
    Rt = (TR + 3) * Wpp                # flat rows per halo'd input window
    n_out = TR * Wpp                   # flat output rows per tile

    # ---- glue: layout transform, padding, halo'd row-tile windows ----
    x_nhwc = jnp.transpose(x_nchw, (0, 2, 3, 1)).astype(jnp.float32)
    x_pad = jnp.zeros((B, Hp, Wpp, Cp), jnp.float32)
    x_pad = x_pad.at[:, 1:H + 1, 1:W + 1, :C].set(x_nhwc).astype(jnp.bfloat16)
    x_tiles = jnp.stack(
        [x_pad[:, t * TR:t * TR + TR + 3].reshape(B, Rt, Cp) for t in range(T)],
        axis=1)                                                   # (B, T, Rt, Cp)

    gr = jnp.arange(Hp)[:, None]
    gc = jnp.arange(Wpp)[None, :]
    mask_img = ((gr >= 1) & (gr <= H) & (gc >= 1) & (gc <= W)).astype(jnp.float32)
    m_tiles = jnp.stack(
        [mask_img[t * TR:t * TR + TR + 3].reshape(Rt, 1) for t in range(T)],
        axis=0)                                                   # (T, Rt, 1)

    # BatchNorm2d running stats folded to a per-channel affine (eval mode).
    eps = 1e-5
    scale = params["bn_gamma"] / jnp.sqrt(params["bn_var"] + eps)
    bias = params["bn_beta"] - params["bn_mean"] * scale
    scale_p = jnp.zeros((1, Cp), jnp.float32).at[0, :C].set(scale)
    bias_p = jnp.zeros((1, Cp), jnp.float32).at[0, :C].set(bias)

    # Fused / padded weights, cast to bf16 for the MXU.
    w1 = (jnp.zeros((Cp, Hf), jnp.float32)
          .at[:C, :Ch].set(params["w1g"])
          .at[:C, Chp:Chp + Ch].set(params["w1i"])).astype(jnp.bfloat16)
    w3 = (jnp.zeros((9, Hf, Hf), jnp.float32)
          .at[:, :Ch, :Ch].set(params["w3g"])
          .at[:, Chp:Chp + Ch, Chp:Chp + Ch].set(params["w3i"])).astype(jnp.bfloat16)
    wr = (jnp.zeros((Chp, Cp), jnp.float32)
          .at[:Ch, :C].set(params["wr"])).astype(jnp.bfloat16)

    # VMEM budget: double-buffered tiles + weights + scratch, with headroom.
    in_tile = Rt * Cp * 2 + Rt * _LANE * 4
    out_tile = n_out * Cp * 4
    weights = (Cp * Hf + 9 * Hf * Hf + Chp * Cp) * 2 + 2 * Cp * 4
    scratch = Rt * Hf * 2 + n_out * Hf * 4
    vmem_limit = int(min(max(2 * (in_tile + out_tile + weights) + scratch + (4 << 20),
                             32 << 20), 64 << 20))

    kernel = functools.partial(_gdfn_kernel, n_out=n_out, Wpp=Wpp, Chp=Chp)

    out_tiles = pl.pallas_call(
        kernel,
        out_shape=jax.ShapeDtypeStruct((B, T, n_out, Cp), jnp.float32),
        grid_spec=pltpu.PrefetchScalarGridSpec(
            num_scalar_prefetch=0,
            grid=(B, T),
            in_specs=[
                pl.BlockSpec((None, None, Rt, Cp), lambda b, t: (b, t, 0, 0)),  # x window
                pl.BlockSpec((None, Rt, 1), lambda b, t: (t, 0, 0)),            # pad mask
                pl.BlockSpec((1, Cp), lambda b, t: (0, 0)),                     # BN scale
                pl.BlockSpec((1, Cp), lambda b, t: (0, 0)),                     # BN bias
                pl.BlockSpec((Cp, Hf), lambda b, t: (0, 0)),                    # fused 1x1
                pl.BlockSpec((9, Hf, Hf), lambda b, t: (0, 0, 0)),              # fused 3x3 taps
                pl.BlockSpec((Chp, Cp), lambda b, t: (0, 0)),                   # reconstruction
            ],
            out_specs=pl.BlockSpec((None, None, n_out, Cp), lambda b, t: (b, t, 0, 0)),
            scratch_shapes=[
                pltpu.VMEM((Rt, Hf), jnp.bfloat16),     # fused hidden [gate | info]
                pltpu.VMEM((n_out, Hf), jnp.float32),   # 3x3 accumulator
            ],
        ),
        compiler_params=pltpu.CompilerParams(
            dimension_semantics=("parallel", "parallel"),
            vmem_limit_bytes=vmem_limit,
        ),
    )(x_tiles, m_tiles, scale_p, bias_p, w1, w3, wr)

    # ---- glue: un-tile, crop padding / padded channels, back to NCHW ----
    out = out_tiles.reshape(B, T * TR, Wpp, Cp)[:, :H, :W, :C]
    return jnp.transpose(out, (0, 3, 1, 2))


# ---------------- pure-JAX reference (for a sanity check only) ----------------
def _gdfn_reference(x, raw):
    eps = 1e-5
    g, b, m, v = (raw["bn_gamma"], raw["bn_beta"], raw["bn_mean"], raw["bn_var"])
    xn = (x - m[None, :, None, None]) / jnp.sqrt(v + eps)[None, :, None, None]
    xn = xn * g[None, :, None, None] + b[None, :, None, None]

    def conv(inp, w, pad):
        return jax.lax.conv_general_dilated(
            inp, w, (1, 1), [(pad, pad), (pad, pad)],
            dimension_numbers=("NCHW", "OIHW", "NCHW"))

    gate = conv(conv(xn, raw["w1g_t"], 0), raw["w3g_t"], 1)
    gate = 0.5 * gate * (1.0 + jax.lax.erf(gate * _SQRT1_2))
    info = conv(conv(xn, raw["w1i_t"], 0), raw["w3i_t"], 1)
    return conv(gate * info, raw["wr_t"], 0)


if __name__ == "__main__":
    B, C, E, H, W = 2, 4, 2, 16, 16
    Ch = C * E

    key = jax.random.PRNGKey(0)
    ks = jax.random.split(key, 11)

    x = jax.random.normal(ks[0], (B, C, H, W), jnp.float32)

    # Deterministic parameters, PyTorch shapes (OIHW for convs, bias=False).
    raw = {
        "bn_gamma": 1.0 + 0.1 * jax.random.normal(ks[1], (C,), jnp.float32),
        "bn_beta": 0.1 * jax.random.normal(ks[2], (C,), jnp.float32),
        "bn_mean": 0.1 * jax.random.normal(ks[3], (C,), jnp.float32),
        "bn_var": jax.random.uniform(ks[4], (C,), jnp.float32, 0.5, 1.5),
        "w1g_t": 0.2 * jax.random.normal(ks[5], (Ch, C, 1, 1), jnp.float32),
        "w3g_t": 0.1 * jax.random.normal(ks[6], (Ch, Ch, 3, 3), jnp.float32),
        "w1i_t": 0.2 * jax.random.normal(ks[7], (Ch, C, 1, 1), jnp.float32),
        "w3i_t": 0.1 * jax.random.normal(ks[8], (Ch, Ch, 3, 3), jnp.float32),
        "wr_t": 0.2 * jax.random.normal(ks[9], (C, Ch, 1, 1), jnp.float32),
    }

    # Kernel-layout parameters: (in, out) matrices / (tap, in, out) for 3x3.
    params = {
        "bn_gamma": raw["bn_gamma"], "bn_beta": raw["bn_beta"],
        "bn_mean": raw["bn_mean"], "bn_var": raw["bn_var"],
        "w1g": raw["w1g_t"][:, :, 0, 0].T,                                    # (C, Ch)
        "w1i": raw["w1i_t"][:, :, 0, 0].T,                                    # (C, Ch)
        "w3g": jnp.transpose(raw["w3g_t"], (2, 3, 1, 0)).reshape(9, Ch, Ch),  # (9, in, out)
        "w3i": jnp.transpose(raw["w3i_t"], (2, 3, 1, 0)).reshape(9, Ch, Ch),  # (9, in, out)
        "wr": raw["wr_t"][:, :, 0, 0].T,                                      # (Ch, C)
    }

    # tile_rows=10 exercises the 2-D (batch, row-tile) grid incl. the
    # non-divisible-H crop path (T=2 for H=16).
    out = gdfn_forward(x, params, tile_rows=10)
    out = jax.block_until_ready(out)

    ref = _gdfn_reference(x, raw)
    assert out.shape == (B, C, H, W) and out.dtype == jnp.float32
    max_err = float(jnp.max(jnp.abs(out - ref)))
    if not (max_err < 5e-2):
        raise AssertionError(f"Pallas GDFN deviates from reference, max_err={max_err}")

    print("KERNEL_OK")
</pallas_src>

<mosaic_0001>
module attributes {stable_mosaic.version = 11 : i64} {
  func.func @_gdfn_kernel(%arg0: i32, %arg1: i32, %arg2: memref<1x1x312x128xbf16, #tpu.memory_space<vmem>>, %arg3: memref<1x312x1xf32, #tpu.memory_space<vmem>>, %arg4: memref<1x128xf32, #tpu.memory_space<vmem>>, %arg5: memref<1x128xf32, #tpu.memory_space<vmem>>, %arg6: memref<128x256xbf16, #tpu.memory_space<vmem>>, %arg7: memref<9x256x256xbf16, #tpu.memory_space<vmem>>, %arg8: memref<128x128xbf16, #tpu.memory_space<vmem>>, %arg9: memref<1x1x240x128xf32, #tpu.memory_space<vmem>>, %arg10: memref<312x256xbf16, #tpu.memory_space<vmem>>, %arg11: memref<240x256xf32, #tpu.memory_space<vmem>>) attributes {dimension_semantics = [#tpu.dimension_semantics<parallel>, #tpu.dimension_semantics<parallel>], iteration_bounds = array<i64: 2, 2>, scalar_prefetch = 0 : i64, scratch_operands = 2 : i64, tpu.core_type = #tpu.core_type<tc>, window_params = [{transform_indices = @transform_0, window_bounds = array<i64: 1, 1, 312, 128>}, {transform_indices = @transform_1, window_bounds = array<i64: 1, 312, 1>}, {pipeline_mode = #tpu.pipeline_mode<synchronous>, transform_indices = @transform_2, window_bounds = array<i64: 1, 128>}, {pipeline_mode = #tpu.pipeline_mode<synchronous>, transform_indices = @transform_3, window_bounds = array<i64: 1, 128>}, {pipeline_mode = #tpu.pipeline_mode<synchronous>, transform_indices = @transform_4, window_bounds = array<i64: 128, 256>}, {pipeline_mode = #tpu.pipeline_mode<synchronous>, transform_indices = @transform_5, window_bounds = array<i64: 9, 256, 256>}, {pipeline_mode = #tpu.pipeline_mode<synchronous>, transform_indices = @transform_6, window_bounds = array<i64: 128, 128>}, {transform_indices = @transform_7, window_bounds = array<i64: 1, 1, 240, 128>}]} {
    %c0 = arith.constant 0 : index
    %c0_0 = arith.constant 0 : index
    %c0_1 = arith.constant 0 : index
    %c0_2 = arith.constant 0 : index
    %0 = vector.load %arg2[%c0, %c0_0, %c0_1, %c0_2] : memref<1x1x312x128xbf16, #tpu.memory_space<vmem>>, vector<1x1x312x128xbf16>
    %1 = vector.shape_cast %0 : vector<1x1x312x128xbf16> to vector<312x128xbf16>
    %2 = arith.extf %1 : vector<312x128xbf16> to vector<312x128xf32>
    %c0_3 = arith.constant 0 : index
    %c0_4 = arith.constant 0 : index
    %3 = vector.load %arg4[%c0_3, %c0_4] : memref<1x128xf32, #tpu.memory_space<vmem>>, vector<1x128xf32>
    %4 = vector.broadcast %3 : vector<1x128xf32> to vector<312x128xf32>
    %5 = arith.mulf %2, %4 : vector<312x128xf32>
    %c0_5 = arith.constant 0 : index
    %c0_6 = arith.constant 0 : index
    %6 = vector.load %arg5[%c0_5, %c0_6] : memref<1x128xf32, #tpu.memory_space<vmem>>, vector<1x128xf32>
    %c0_7 = arith.constant 0 : index
    %c0_8 = arith.constant 0 : index
    %c0_9 = arith.constant 0 : index
    %7 = vector.load %arg3[%c0_7, %c0_8, %c0_9] : memref<1x312x1xf32, #tpu.memory_space<vmem>>, vector<1x312x1xf32>
    %8 = vector.shape_cast %7 : vector<1x312x1xf32> to vector<312x1xf32>
    %9 = vector.broadcast %6 : vector<1x128xf32> to vector<312x128xf32>
    %10 = vector.broadcast %8 : vector<312x1xf32> to vector<312x128xf32>
    %11 = arith.mulf %9, %10 : vector<312x128xf32>
    %12 = arith.addf %5, %11 : vector<312x128xf32>
    %13 = arith.truncf %12 : vector<312x128xf32> to vector<312x128xbf16>
    %c0_10 = arith.constant 0 : index
    %c0_11 = arith.constant 0 : index
    %14 = vector.load %arg6[%c0_10, %c0_11] : memref<128x256xbf16, #tpu.memory_space<vmem>>, vector<128x256xbf16>
    %cst = arith.constant dense<0.000000e+00> : vector<312x256xf32>
    %15 = tpu.matmul %13, %14, %cst {dimension_numbers = #tpu.dot_dimension_numbers<[1], [0], [0], [1], [0, 0, 1, 1], [], []>} : vector<312x128xbf16>, vector<128x256xbf16>, vector<312x256xf32> -> vector<312x256xf32>
    %16 = arith.truncf %15 : vector<312x256xf32> to vector<312x256xbf16>
    %c0_12 = arith.constant 0 : index
    %c0_13 = arith.constant 0 : index
    %17 = vector.load %arg10[%c0_12, %c0_13] : memref<312x256xbf16, #tpu.memory_space<vmem>>, vector<312x256xbf16>
    tpu.vector_store %arg10[%c0_12, %c0_13], %16 {strides = array<i32>} : memref<312x256xbf16, #tpu.memory_space<vmem>>, vector<312x256xbf16>,
    %c0_14 = arith.constant 0 : index
    %c0_15 = arith.constant 0 : index
    %18 = vector.load %arg10[%c0_14, %c0_15] : memref<312x256xbf16, #tpu.memory_space<vmem>>, vector<240x256xbf16>
    %c0_16 = arith.constant 0 : index
    %c0_17 = arith.constant 0 : index
    %c0_18 = arith.constant 0 : index
    %19 = vector.load %arg7[%c0_16, %c0_17, %c0_18] : memref<9x256x256xbf16, #tpu.memory_space<vmem>>, vector<1x256x256xbf16>
    %20 = vector.shape_cast %19 : vector<1x256x256xbf16> to vector<256x256xbf16>
    %cst_19 = arith.constant dense<0.000000e+00> : vector<240x256xf32>
    %21 = tpu.matmul %18, %20, %cst_19 {dimension_numbers = #tpu.dot_dimension_numbers<[1], [0], [0], [1], [0, 0, 1, 1], [], []>} : vector<240x256xbf16>, vector<256x256xbf16>, vector<240x256xf32> -> vector<240x256xf32>
    %c0_20 = arith.constant 0 : index
    %c0_21 = arith.constant 0 : index
    %22 = vector.load %arg11[%c0_20, %c0_21] : memref<240x256xf32, #tpu.memory_space<vmem>>, vector<240x256xf32>
    tpu.vector_store %arg11[%c0_20, %c0_21], %21 {strides = array<i32>} : memref<240x256xf32, #tpu.memory_space<vmem>>, vector<240x256xf32>,
    %c1 = arith.constant 1 : index
    %c0_22 = arith.constant 0 : index
    %23 = vector.load %arg10[%c1, %c0_22] : memref<312x256xbf16, #tpu.memory_space<vmem>>, vector<240x256xbf16>
    %c1_23 = arith.constant 1 : index
    %c0_24 = arith.constant 0 : index
    %c0_25 = arith.constant 0 : index
    %24 = vector.load %arg7[%c1_23, %c0_24, %c0_25] : memref<9x256x256xbf16, #tpu.memory_space<vmem>>, vector<1x256x256xbf16>
    %25 = vector.shape_cast %24 : vector<1x256x256xbf16> to vector<256x256xbf16>
    %cst_26 = arith.constant dense<0.000000e+00> : vector<240x256xf32>
    %26 = tpu.matmul %23, %25, %cst_26 {dimension_numbers = #tpu.dot_dimension_numbers<[1], [0], [0], [1], [0, 0, 1, 1], [], []>} : vector<240x256xbf16>, vector<256x256xbf16>, vector<240x256xf32> -> vector<240x256xf32>
    %c0_27 = arith.constant 0 : index
    %c0_28 = arith.constant 0 : index
    %27 = vector.load %arg11[%c0_27, %c0_28] : memref<240x256xf32, #tpu.memory_space<vmem>>, vector<240x256xf32>
    %28 = arith.addf %27, %26 : vector<240x256xf32>
    %c0_29 = arith.constant 0 : index
    %c0_30 = arith.constant 0 : index
    %29 = vector.load %arg11[%c0_29, %c0_30] : memref<240x256xf32, #tpu.memory_space<vmem>>, vector<240x256xf32>
    tpu.vector_store %arg11[%c0_29, %c0_30], %28 {strides = array<i32>} : memref<240x256xf32, #tpu.memory_space<vmem>>, vector<240x256xf32>,
    %c2 = arith.constant 2 : index
    %c0_31 = arith.constant 0 : index
    %30 = vector.load %arg10[%c2, %c0_31] : memref<312x256xbf16, #tpu.memory_space<vmem>>, vector<240x256xbf16>
    %c2_32 = arith.constant 2 : index
    %c0_33 = arith.constant 0 : index
    %c0_34 = arith.constant 0 : index
    %31 = vector.load %arg7[%c2_32, %c0_33, %c0_34] : memref<9x256x256xbf16, #tpu.memory_space<vmem>>, vector<1x256x256xbf16>
    %32 = vector.shape_cast %31 : vector<1x256x256xbf16> to vector<256x256xbf16>
    %cst_35 = arith.constant dense<0.000000e+00> : vector<240x256xf32>
    %33 = tpu.matmul %30, %32, %cst_35 {dimension_numbers = #tpu.dot_dimension_numbers<[1], [0], [0], [1], [0, 0, 1, 1], [], []>} : vector<240x256xbf16>, vector<256x256xbf16>, vector<240x256xf32> -> vector<240x256xf32>
    %c0_36 = arith.constant 0 : index
    %c0_37 = arith.constant 0 : index
    %34 = vector.load %arg11[%c0_36, %c0_37] : memref<240x256xf32, #tpu.memory_space<vmem>>, vector<240x256xf32>
    %35 = arith.addf %34, %33 : vector<240x256xf32>
    %c0_38 = arith.constant 0 : index
    %c0_39 = arith.constant 0 : index
    %36 = vector.load %arg11[%c0_38, %c0_39] : memref<240x256xf32, #tpu.memory_space<vmem>>, vector<240x256xf32>
    tpu.vector_store %arg11[%c0_38, %c0_39], %35 {strides = array<i32>} : memref<240x256xf32, #tpu.memory_space<vmem>>, vector<240x256xf32>,
    %c24 = arith.constant 24 : index
    %c0_40 = arith.constant 0 : index
    %37 = vector.load %arg10[%c24, %c0_40] : memref<312x256xbf16, #tpu.memory_space<vmem>>, vector<240x256xbf16>
    %c3 = arith.constant 3 : index
    %c0_41 = arith.constant 0 : index
    %c0_42 = arith.constant 0 : index
    %38 = vector.load %arg7[%c3, %c0_41, %c0_42] : memref<9x256x256xbf16, #tpu.memory_space<vmem>>, vector<1x256x256xbf16>
    %39 = vector.shape_cast %38 : vector<1x256x256xbf16> to vector<256x256xbf16>
    %cst_43 = arith.constant dense<0.000000e+00> : vector<240x256xf32>
    %40 = tpu.matmul %37, %39, %cst_43 {dimension_numbers = #tpu.dot_dimension_numbers<[1], [0], [0], [1], [0, 0, 1, 1], [], []>} : vector<240x256xbf16>, vector<256x256xbf16>, vector<240x256xf32> -> vector<240x256xf32>
    %c0_44 = arith.constant 0 : index
    %c0_45 = arith.constant 0 : index
    %41 = vector.load %arg11[%c0_44, %c0_45] : memref<240x256xf32, #tpu.memory_space<vmem>>, vector<240x256xf32>
    %42 = arith.addf %41, %40 : vector<240x256xf32>
    %c0_46 = arith.constant 0 : index
    %c0_47 = arith.constant 0 : index
    %43 = vector.load %arg11[%c0_46, %c0_47] : memref<240x256xf32, #tpu.memory_space<vmem>>, vector<240x256xf32>
    tpu.vector_store %arg11[%c0_46, %c0_47], %42 {strides = array<i32>} : memref<240x256xf32, #tpu.memory_space<vmem>>, vector<240x256xf32>,
    %c25 = arith.constant 25 : index
    %c0_48 = arith.constant 0 : index
    %44 = vector.load %arg10[%c25, %c0_48] : memref<312x256xbf16, #tpu.memory_space<vmem>>, vector<240x256xbf16>
    %c4 = arith.constant 4 : index
    %c0_49 = arith.constant 0 : index
    %c0_50 = arith.constant 0 : index
    %45 = vector.load %arg7[%c4, %c0_49, %c0_50] : memref<9x256x256xbf16, #tpu.memory_space<vmem>>, vector<1x256x256xbf16>
    %46 = vector.shape_cast %45 : vector<1x256x256xbf16> to vector<256x256xbf16>
    %cst_51 = arith.constant dense<0.000000e+00> : vector<240x256xf32>
    %47 = tpu.matmul %44, %46, %cst_51 {dimension_numbers = #tpu.dot_dimension_numbers<[1], [0], [0], [1], [0, 0, 1, 1], [], []>} : vector<240x256xbf16>, vector<256x256xbf16>, vector<240x256xf32> -> vector<240x256xf32>
    %c0_52 = arith.constant 0 : index
    %c0_53 = arith.constant 0 : index
    %48 = vector.load %arg11[%c0_52, %c0_53] : memref<240x256xf32, #tpu.memory_space<vmem>>, vector<240x256xf32>
    %49 = arith.addf %48, %47 : vector<240x256xf32>
    %c0_54 = arith.constant 0 : index
    %c0_55 = arith.constant 0 : index
    %50 = vector.load %arg11[%c0_54, %c0_55] : memref<240x256xf32, #tpu.memory_space<vmem>>, vector<240x256xf32>
    tpu.vector_store %arg11[%c0_54, %c0_55], %49 {strides = array<i32>} : memref<240x256xf32, #tpu.memory_space<vmem>>, vector<240x256xf32>,
    %c26 = arith.constant 26 : index
    %c0_56 = arith.constant 0 : index
    %51 = vector.load %arg10[%c26, %c0_56] : memref<312x256xbf16, #tpu.memory_space<vmem>>, vector<240x256xbf16>
    %c5 = arith.constant 5 : index
    %c0_57 = arith.constant 0 : index
    %c0_58 = arith.constant 0 : index
    %52 = vector.load %arg7[%c5, %c0_57, %c0_58] : memref<9x256x256xbf16, #tpu.memory_space<vmem>>, vector<1x256x256xbf16>
    %53 = vector.shape_cast %52 : vector<1x256x256xbf16> to vector<256x256xbf16>
    %cst_59 = arith.constant dense<0.000000e+00> : vector<240x256xf32>
    %54 = tpu.matmul %51, %53, %cst_59 {dimension_numbers = #tpu.dot_dimension_numbers<[1], [0], [0], [1], [0, 0, 1, 1], [], []>} : vector<240x256xbf16>, vector<256x256xbf16>, vector<240x256xf32> -> vector<240x256xf32>
    %c0_60 = arith.constant 0 : index
    %c0_61 = arith.constant 0 : index
    %55 = vector.load %arg11[%c0_60, %c0_61] : memref<240x256xf32, #tpu.memory_space<vmem>>, vector<240x256xf32>
    %56 = arith.addf %55, %54 : vector<240x256xf32>
    %c0_62 = arith.constant 0 : index
    %c0_63 = arith.constant 0 : index
    %57 = vector.load %arg11[%c0_62, %c0_63] : memref<240x256xf32, #tpu.memory_space<vmem>>, vector<240x256xf32>
    tpu.vector_store %arg11[%c0_62, %c0_63], %56 {strides = array<i32>} : memref<240x256xf32, #tpu.memory_space<vmem>>, vector<240x256xf32>,
    %c48 = arith.constant 48 : index
    %c0_64 = arith.constant 0 : index
    %58 = vector.load %arg10[%c48, %c0_64] : memref<312x256xbf16, #tpu.memory_space<vmem>>, vector<240x256xbf16>
    %c6 = arith.constant 6 : index
    %c0_65 = arith.constant 0 : index
    %c0_66 = arith.constant 0 : index
    %59 = vector.load %arg7[%c6, %c0_65, %c0_66] : memref<9x256x256xbf16, #tpu.memory_space<vmem>>, vector<1x256x256xbf16>
    %60 = vector.shape_cast %59 : vector<1x256x256xbf16> to vector<256x256xbf16>
    %cst_67 = arith.constant dense<0.000000e+00> : vector<240x256xf32>
    %61 = tpu.matmul %58, %60, %cst_67 {dimension_numbers = #tpu.dot_dimension_numbers<[1], [0], [0], [1], [0, 0, 1, 1], [], []>} : vector<240x256xbf16>, vector<256x256xbf16>, vector<240x256xf32> -> vector<240x256xf32>
    %c0_68 = arith.constant 0 : index
    %c0_69 = arith.constant 0 : index
    %62 = vector.load %arg11[%c0_68, %c0_69] : memref<240x256xf32, #tpu.memory_space<vmem>>, vector<240x256xf32>
    %63 = arith.addf %62, %61 : vector<240x256xf32>
    %c0_70 = arith.constant 0 : index
    %c0_71 = arith.constant 0 : index
    %64 = vector.load %arg11[%c0_70, %c0_71] : memref<240x256xf32, #tpu.memory_space<vmem>>, vector<240x256xf32>
    tpu.vector_store %arg11[%c0_70, %c0_71], %63 {strides = array<i32>} : memref<240x256xf32, #tpu.memory_space<vmem>>, vector<240x256xf32>,
    %c49 = arith.constant 49 : index
    %c0_72 = arith.constant 0 : index
    %65 = vector.load %arg10[%c49, %c0_72] : memref<312x256xbf16, #tpu.memory_space<vmem>>, vector<240x256xbf16>
    %c7 = arith.constant 7 : index
    %c0_73 = arith.constant 0 : index
    %c0_74 = arith.constant 0 : index
    %66 = vector.load %arg7[%c7, %c0_73, %c0_74] : memref<9x256x256xbf16, #tpu.memory_space<vmem>>, vector<1x256x256xbf16>
    %67 = vector.shape_cast %66 : vector<1x256x256xbf16> to vector<256x256xbf16>
    %cst_75 = arith.constant dense<0.000000e+00> : vector<240x256xf32>
    %68 = tpu.matmul %65, %67, %cst_75 {dimension_numbers = #tpu.dot_dimension_numbers<[1], [0], [0], [1], [0, 0, 1, 1], [], []>} : vector<240x256xbf16>, vector<256x256xbf16>, vector<240x256xf32> -> vector<240x256xf32>
    %c0_76 = arith.constant 0 : index
    %c0_77 = arith.constant 0 : index
    %69 = vector.load %arg11[%c0_76, %c0_77] : memref<240x256xf32, #tpu.memory_space<vmem>>, vector<240x256xf32>
    %70 = arith.addf %69, %68 : vector<240x256xf32>
    %c0_78 = arith.constant 0 : index
    %c0_79 = arith.constant 0 : index
    %71 = vector.load %arg11[%c0_78, %c0_79] : memref<240x256xf32, #tpu.memory_space<vmem>>, vector<240x256xf32>
    tpu.vector_store %arg11[%c0_78, %c0_79], %70 {strides = array<i32>} : memref<240x256xf32, #tpu.memory_space<vmem>>, vector<240x256xf32>,
    %c50 = arith.constant 50 : index
    %c0_80 = arith.constant 0 : index
    %72 = vector.load %arg10[%c50, %c0_80] : memref<312x256xbf16, #tpu.memory_space<vmem>>, vector<240x256xbf16>
    %c8 = arith.constant 8 : index
    %c0_81 = arith.constant 0 : index
    %c0_82 = arith.constant 0 : index
    %73 = vector.load %arg7[%c8, %c0_81, %c0_82] : memref<9x256x256xbf16, #tpu.memory_space<vmem>>, vector<1x256x256xbf16>
    %74 = vector.shape_cast %73 : vector<1x256x256xbf16> to vector<256x256xbf16>
    %cst_83 = arith.constant dense<0.000000e+00> : vector<240x256xf32>
    %75 = tpu.matmul %72, %74, %cst_83 {dimension_numbers = #tpu.dot_dimension_numbers<[1], [0], [0], [1], [0, 0, 1, 1], [], []>} : vector<240x256xbf16>, vector<256x256xbf16>, vector<240x256xf32> -> vector<240x256xf32>
    %c0_84 = arith.constant 0 : index
    %c0_85 = arith.constant 0 : index
    %76 = vector.load %arg11[%c0_84, %c0_85] : memref<240x256xf32, #tpu.memory_space<vmem>>, vector<240x256xf32>
    %77 = arith.addf %76, %75 : vector<240x256xf32>
    %c0_86 = arith.constant 0 : index
    %c0_87 = arith.constant 0 : index
    %78 = vector.load %arg11[%c0_86, %c0_87] : memref<240x256xf32, #tpu.memory_space<vmem>>, vector<240x256xf32>
    tpu.vector_store %arg11[%c0_86, %c0_87], %77 {strides = array<i32>} : memref<240x256xf32, #tpu.memory_space<vmem>>, vector<240x256xf32>,
    %c0_88 = arith.constant 0 : index
    %c0_89 = arith.constant 0 : index
    %79 = vector.load %arg11[%c0_88, %c0_89] : memref<240x256xf32, #tpu.memory_space<vmem>>, vector<240x128xf32>
    %c0_90 = arith.constant 0 : index
    %c128 = arith.constant 128 : index
    %80 = vector.load %arg11[%c0_90, %c128] : memref<240x256xf32, #tpu.memory_space<vmem>>, vector<240x128xf32>
    %cst_91 = arith.constant 5.000000e-01 : f32
    %81 = vector.broadcast %cst_91 : f32 to vector<240x128xf32>
    %82 = arith.mulf %81, %79 : vector<240x128xf32>
    %cst_92 = arith.constant 0.707106769 : f32
    %83 = vector.broadcast %cst_92 : f32 to vector<240x128xf32>
    %84 = arith.mulf %79, %83 : vector<240x128xf32>
    %cst_93 = arith.constant 0.000000e+00 : f32
    %85 = vector.broadcast %cst_93 : f32 to vector<240x128xf32>
    %86 = arith.cmpf oge, %84, %85 : vector<240x128xf32>
    %cst_94 = arith.constant 1.000000e+00 : f32
    %cst_95 = arith.constant -1.000000e+00 : f32
    %87 = vector.broadcast %cst_94 : f32 to vector<240x128xf32>
    %88 = vector.broadcast %cst_95 : f32 to vector<240x128xf32>
    %89 = arith.select %86, %87, %88 : vector<240x128xi1>, vector<240x128xf32>
    %90 = math.absf %84 : vector<240x128xf32>
    %cst_96 = arith.constant 0.327591091 : f32
    %91 = vector.broadcast %cst_96 : f32 to vector<240x128xf32>
    %92 = arith.mulf %91, %90 : vector<240x128xf32>
    %cst_97 = arith.constant 1.000000e+00 : f32
    %93 = vector.broadcast %cst_97 : f32 to vector<240x128xf32>
    %94 = arith.addf %93, %92 : vector<240x128xf32>
    %95 = tpu.reciprocal %94 {approx = true} : vector<240x128xf32> -> vector<240x128xf32>
    %cst_98 = arith.constant 1.06140542 : f32
    %96 = vector.broadcast %cst_98 : f32 to vector<240x128xf32>
    %97 = arith.mulf %96, %95 : vector<240x128xf32>
    %cst_99 = arith.constant -1.45315206 : f32
    %98 = vector.broadcast %cst_99 : f32 to vector<240x128xf32>
    %99 = arith.addf %97, %98 : vector<240x128xf32>
    %100 = arith.mulf %99, %95 : vector<240x128xf32>
    %cst_100 = arith.constant 1.42141378 : f32
    %101 = vector.broadcast %cst_100 : f32 to vector<240x128xf32>
    %102 = arith.addf %100, %101 : vector<240x128xf32>
    %103 = arith.mulf %102, %95 : vector<240x128xf32>
    %cst_101 = arith.constant -0.284496725 : f32
    %104 = vector.broadcast %cst_101 : f32 to vector<240x128xf32>
    %105 = arith.addf %103, %104 : vector<240x128xf32>
    %106 = arith.mulf %105, %95 : vector<240x128xf32>
    %cst_102 = arith.constant 0.254829586 : f32
    %107 = vector.broadcast %cst_102 : f32 to vector<240x128xf32>
    %108 = arith.addf %106, %107 : vector<240x128xf32>
    %109 = arith.mulf %108, %95 : vector<240x128xf32>
    %cst_103 = arith.constant 0.000000e+00 : f32
    %110 = vector.broadcast %cst_103 : f32 to vector<240x128xf32>
    %111 = arith.subf %110, %90 : vector<240x128xf32>
    %112 = arith.mulf %111, %90 : vector<240x128xf32>
    %113 = math.exp %112 : vector<240x128xf32>
    %114 = arith.mulf %109, %113 : vector<240x128xf32>
    %cst_104 = arith.constant 1.000000e+00 : f32
    %115 = vector.broadcast %cst_104 : f32 to vector<240x128xf32>
    %116 = arith.subf %115, %114 : vector<240x128xf32>
    %117 = arith.mulf %89, %116 : vector<240x128xf32>
    %cst_105 = arith.constant 1.000000e+00 : f32
    %118 = vector.broadcast %cst_105 : f32 to vector<240x128xf32>
    %119 = arith.addf %118, %117 : vector<240x128xf32>
    %120 = arith.mulf %82, %119 : vector<240x128xf32>
    %121 = arith.mulf %120, %80 : vector<240x128xf32>
    %122 = arith.truncf %121 : vector<240x128xf32> to vector<240x128xbf16>
    %c0_106 = arith.constant 0 : index
    %c0_107 = arith.constant 0 : index
    %123 = vector.load %arg8[%c0_106, %c0_107] : memref<128x128xbf16, #tpu.memory_space<vmem>>, vector<128x128xbf16>
    %cst_108 = arith.constant dense<0.000000e+00> : vector<240x128xf32>
    %124 = tpu.matmul %122, %123, %cst_108 {dimension_numbers = #tpu.dot_dimension_numbers<[1], [0], [0], [1], [0, 0, 1, 1], [], []>} : vector<240x128xbf16>, vector<128x128xbf16>, vector<240x128xf32> -> vector<240x128xf32>
    %c0_109 = arith.constant 0 : index
    %c0_110 = arith.constant 0 : index
    %c0_111 = arith.constant 0 : index
    %c0_112 = arith.constant 0 : index
    %125 = vector.load %arg9[%c0_109, %c0_110, %c0_111, %c0_112] : memref<1x1x240x128xf32, #tpu.memory_space<vmem>>, vector<1x1x240x128xf32>
    %126 = vector.shape_cast %125 : vector<1x1x240x128xf32> to vector<240x128xf32>
    %127 = vector.shape_cast %124 : vector<240x128xf32> to vector<1x1x240x128xf32>
    tpu.vector_store %arg9[%c0_109, %c0_110, %c0_111, %c0_112], %127 {strides = array<i32>} : memref<1x1x240x128xf32, #tpu.memory_space<vmem>>, vector<1x1x240x128xf32>,
    return
  }
  func.func @transform_0(%arg0: i32, %arg1: i32) -> (i32, i32, i32, i32) {
    %c0_i32 = arith.constant 0 : i32
    %c0_i32_0 = arith.constant 0 : i32
    %c0_i32_1 = arith.constant 0 : i32
    return %arg0, %arg1, %c0_i32, %c0_i32_0 : i32, i32, i32, i32
  }
  func.func @transform_1(%arg0: i32, %arg1: i32) -> (i32, i32, i32) {
    %c0_i32 = arith.constant 0 : i32
    %c0_i32_0 = arith.constant 0 : i32
    %c0_i32_1 = arith.constant 0 : i32
    return %arg1, %c0_i32, %c0_i32_0 : i32, i32, i32
  }
  func.func @transform_2(%arg0: i32, %arg1: i32) -> (i32, i32) {
    %c0_i32 = arith.constant 0 : i32
    %c0_i32_0 = arith.constant 0 : i32
    %c0_i32_1 = arith.constant 0 : i32
    return %c0_i32, %c0_i32_0 : i32, i32
  }
  func.func @transform_3(%arg0: i32, %arg1: i32) -> (i32, i32) {
    %c0_i32 = arith.constant 0 : i32
    %c0_i32_0 = arith.constant 0 : i32
    %c0_i32_1 = arith.constant 0 : i32
    return %c0_i32, %c0_i32_0 : i32, i32
  }
  func.func @transform_4(%arg0: i32, %arg1: i32) -> (i32, i32) {
    %c0_i32 = arith.constant 0 : i32
    %c0_i32_0 = arith.constant 0 : i32
    %c0_i32_1 = arith.constant 0 : i32
    return %c0_i32, %c0_i32_0 : i32, i32
  }
  func.func @transform_5(%arg0: i32, %arg1: i32) -> (i32, i32, i32) {
    %c0_i32 = arith.constant 0 : i32
    %c0_i32_0 = arith.constant 0 : i32
    %c0_i32_1 = arith.constant 0 : i32
    %c0_i32_2 = arith.constant 0 : i32
    return %c0_i32, %c0_i32_0, %c0_i32_1 : i32, i32, i32
  }
  func.func @transform_6(%arg0: i32, %arg1: i32) -> (i32, i32) {
    %c0_i32 = arith.constant 0 : i32
    %c0_i32_0 = arith.constant 0 : i32
    %c0_i32_1 = arith.constant 0 : i32
    return %c0_i32, %c0_i32_0 : i32, i32
  }
  func.func @transform_7(%arg0: i32, %arg1: i32) -> (i32, i32, i32, i32) {
    %c0_i32 = arith.constant 0 : i32
    %c0_i32_0 = arith.constant 0 : i32
    %c0_i32_1 = arith.constant 0 : i32
    return %arg0, %arg1, %c0_i32, %c0_i32_0 : i32, i32, i32, i32
  }
}

</mosaic_0001>

<llo_original>
// kernel: tpu_custom_call.1
$region0: #{tpu_custom_call.1}
  #allocation0 [shape = 'u32[]', space=smem, size = 0x4, offset = 0x4, fixed_abs, tag = 'smem constant byte address 0x4 - core index']
  #allocation1 [shape = 'u32[144,128]{1,0:T(1,128)}', space=vmem, size = 0x12000, scoped, tag = 'internal scratch']
  #allocation2 [shape = 'bf16[312,256]{1,0:T(8,128)(2,1)}', space=vmem, size = 0x27000, scoped, tag = 'scratch operand']
  #allocation3 [shape = 'f32[240,256]{1,0:T(8,128)}', space=vmem, size = 0x3c000, scoped, tag = 'scratch operand']
  %s0 = inlined_call_operand.hbm [shape: bf16[2,2,312,128], index: 0, kind: input, shape index: {}]
  %s1 = inlined_call_operand.vmem [shape: f32[2,312,1], index: 1, kind: input, shape index: {}]
  %s2 = inlined_call_operand.hbm [shape: f32[1,128], index: 2, kind: input, shape index: {}]
  %s3 = inlined_call_operand.hbm [shape: f32[1,128], index: 3, kind: input, shape index: {}]
  %s4 = inlined_call_operand.hbm [shape: bf16[128,256], index: 4, kind: input, shape index: {}]
  %s5 = inlined_call_operand.hbm [shape: bf16[9,256,256], index: 5, kind: input, shape index: {}]
  %s6 = inlined_call_operand.hbm [shape: bf16[128,128], index: 6, kind: input, shape index: {}]
  %s7 = inlined_call_operand.hbm [shape: f32[2,2,240,128], index: 7, kind: output, shape index: {}]
  %s8 = sld [smem:[#allocation0]]
  $region85: #{tpu_custom_call.1} parent=0
    _
  %s10 = ssub.s32 1, %s8
  %s11 = scalar_select 0, %s10, %s8
  $region1: #{tpu_custom_call.1} parent=0
    #allocation4 [shape = 'u8[159744]{0}', space=vmem, size = 0x27000, scoped, tag = 'input window, operand 0']
    #allocation5 [shape = 's32[2]{0}', space=sflag, size = 0x8, scoped, tag = 'scoped memory for tpu_custom_call.1']
    #allocation6 [shape = 's32[2]{0}', space=sflag, size = 0x8, scoped, tag = 'scoped memory for tpu_custom_call.1']
    #allocation7 [shape = 'u8[512]{0}', space=vmem, size = 0x400, scoped, tag = 'input window, operand 2, single buffered']
    #allocation8 [shape = 's32[1]{0}', space=sflag, size = 0x4, scoped, tag = 'scoped memory for tpu_custom_call.1']
    #allocation9 [shape = 'u8[512]{0}', space=vmem, size = 0x400, scoped, tag = 'input window, operand 3, single buffered']
    #allocation10 [shape = 'u8[65536]{0}', space=vmem, size = 0x10000, scoped, tag = 'input window, operand 4, single buffered']
    #allocation11 [shape = 's32[1]{0}', space=sflag, size = 0x4, scoped, tag = 'scoped memory for tpu_custom_call.1']
    #allocation12 [shape = 'u8[1179648]{0}', space=vmem, size = 0x120000, scoped, tag = 'input window, operand 5, single buffered']
    #allocation13 [shape = 'u8[32768]{0}', space=vmem, size = 0x8000, scoped, tag = 'input window, operand 6, single buffered']
    #allocation14 [shape = 's32[1]{0}', space=sflag, size = 0x4, scoped, tag = 'scoped memory for tpu_custom_call.1']
    #allocation15 [shape = 'u8[245760]{0}', space=vmem, size = 0x3c000, scoped, tag = 'output window, operand 0']
    %12 = vsyncpa [#allocation5], 0
    %s13 = scalar_lea.sflag [#allocation5], 1
    %14 = vsyncpa %s13, 0
    %15 = vsyncpa [#allocation8], 0
    %16 = vsyncpa [#allocation11], 0
    %17 = vsyncpa [#allocation14], 0
    %18 = vsyncpa [#allocation6], 0
    %s19 = scalar_lea.sflag [#allocation6], 1
    %20 = vsyncpa %s19, 0
    loop: start=0, step=1, limit=6
    $region2: #{tpu_custom_call.1} parent=1 // loop_pre_header
      _
    $region3: #{tpu_custom_call.1} parent=1 // loop_header
      %s22 = sphi 0, %s26
      %p23 = scmp.ge.s32.totalorder %s22, 6
      %s29 = sphi 0, %s41
      %s30 = sphi 0, %s37
      %s31 = sphi 0, %s29
      %s32 = sphi 0, %s30
      %s33 = sphi 0, %s31
      %s34 = sphi 0, %s32
      %s46 = sphi 0, %s48
      %s49 = sphi 0, %s46
      %s50 = sphi 0, %s49
      %s66 = sphi 0, %s50
      %s72 = sphi 0, %s74
      %s75 = sphi 0, %s72
      %s76 = sphi 0, %s75
      %s92 = sphi 0, %s76
      %s96 = sphi 0, %s96
      %s98 = sphi 0, %s96
      %s99 = sphi 0, %s98
      %s113 = sphi 0, %s99
      %s117 = sphi 0, %s117
      %s119 = sphi 0, %s117
      %s120 = sphi 0, %s119
      %s134 = sphi 0, %s120
      %s138 = sphi 0, %s138
      %s140 = sphi 0, %s138
      %s141 = sphi 0, %s140
      %s155 = sphi 0, %s141
      %s159 = sphi 0, %s159
      %s161 = sphi 0, %s159
      %s162 = sphi 0, %s161
      %s176 = sphi 0, %s162
      %s180 = sphi 0, %s180
      %s182 = sphi 0, %s180
      %s183 = sphi 0, %s182
      %s197 = sphi 0, %s183
      %s205 = sphi 0, %s207
      %s208 = sphi 0, %s205
      %s209 = sphi 0, %s208
      %s225 = sphi 0, %s209
    $region4: #{tpu_custom_call.1} parent=1 // loop_header_branch
      %25 = sbr.rel (%p23) target = $region8
    $region5: #{tpu_custom_call.1} parent=1 // loop_body
      %s27 = ssub.s32 %s22, 1
      %s28 = ssub.s32 %s22, 2
      %s35 = sadd.s32 1, %s30
      %p36 = scmp.ge.s32.totalorder %s35, 2
      %s37 = scalar_select %p36, 0, %s35
      %s38 = sadd.s32 1, %s29
      %s39 = scalar_select %p36, %s38, %s29
      %p40 = scmp.ge.s32.totalorder %s39, 2
      %s41 = scalar_select %p40, 0, %s39
      %s42 = ssub.s32 %s29, %s41
      %s43 = ssub.s32 %s30, %s37
      %s44 = sor.u32 %s42, %s43
      %p45 = scmp.eq.s32.totalorder %s44, 0
      %s47 = sadd.s32 %s46, 1
      %s48 = scalar_select %p45, %s46, %s47
      %p51 = pneg %p45
      %p52 = scmp.eq.s32.totalorder %s22, 3
      %p53 = por %p51, %p52
      %p54 = scmp.ne.s32.totalorder %s46, %s49
      %p55 = scmp.eq.s32.totalorder %s22, 0
      %p56 = por %p54, %p55
      %p57 = scmp.ne.s32.totalorder %s46, %s49
      %p58 = scmp.eq.s32.totalorder %s27, 3
      %p59 = por %p57, %p58
      %p60 = scmp.ne.s32.totalorder %s49, %s50
      %p61 = scmp.eq.s32.totalorder %s27, 0
      %p62 = por %p60, %p61
      %p63 = scmp.ne.s32.totalorder %s49, %s50
      %p64 = scmp.eq.s32.totalorder %s28, 3
      %p65 = por %p63, %p64
      %p67 = scmp.ne.s32.totalorder %s50, %s66
      %p68 = scmp.eq.s32.totalorder %s28, 0
      %p69 = por %p67, %p68
      %s70 = ssub.s32 %s30, %s37
      %p71 = scmp.eq.s32.totalorder %s70, 0
      %s73 = sadd.s32 %s72, 1
      %s74 = scalar_select %p71, %s72, %s73
      %p77 = pneg %p71
      %p78 = scmp.eq.s32.totalorder %s22, 3
      %p79 = por %p77, %p78
      %p80 = scmp.ne.s32.totalorder %s72, %s75
      %p81 = scmp.eq.s32.totalorder %s22, 0
      %p82 = por %p80, %p81
      %p83 = scmp.ne.s32.totalorder %s72, %s75
      %p84 = scmp.eq.s32.totalorder %s27, 3
      %p85 = por %p83, %p84
      %p86 = scmp.ne.s32.totalorder %s75, %s76
      %p87 = scmp.eq.s32.totalorder %s27, 0
      %p88 = por %p86, %p87
      %p89 = scmp.ne.s32.totalorder %s75, %s76
      %p90 = scmp.eq.s32.totalorder %s28, 3
      %p91 = por %p89, %p90
      %p93 = scmp.ne.s32.totalorder %s76, %s92
      %p94 = scmp.eq.s32.totalorder %s28, 0
      %p95 = por %p93, %p94
      %s97 = sadd.s32 %s96, 1
      %p100 = scmp.eq.s32.totalorder %s22, 3
      %p101 = scmp.ne.s32.totalorder %s96, %s98
      %p102 = scmp.eq.s32.totalorder %s22, 0
      %p103 = por %p101, %p102
      %p104 = scmp.ne.s32.totalorder %s96, %s98
      %p105 = scmp.eq.s32.totalorder %s27, 3
      %p106 = por %p104, %p105
      %p107 = scmp.ne.s32.totalorder %s98, %s99
      %p108 = scmp.eq.s32.totalorder %s27, 0
      %p109 = por %p107, %p108
      %p110 = scmp.ne.s32.totalorder %s98, %s99
      %p111 = scmp.eq.s32.totalorder %s28, 3
      %p112 = por %p110, %p111
      %p114 = scmp.ne.s32.totalorder %s99, %s113
      %p115 = scmp.eq.s32.totalorder %s28, 0
      %p116 = por %p114, %p115
      %s118 = sadd.s32 %s117, 1
      %p121 = scmp.eq.s32.totalorder %s22, 3
      %p122 = scmp.ne.s32.totalorder %s117, %s119
      %p123 = scmp.eq.s32.totalorder %s22, 0
      %p124 = por %p122, %p123
      %p125 = scmp.ne.s32.totalorder %s117, %s119
      %p126 = scmp.eq.s32.totalorder %s27, 3
      %p127 = por %p125, %p126
      %p128 = scmp.ne.s32.totalorder %s119, %s120
      %p129 = scmp.eq.s32.totalorder %s27, 0
      %p130 = por %p128, %p129
      %p131 = scmp.ne.s32.totalorder %s119, %s120
      %p132 = scmp.eq.s32.totalorder %s28, 3
      %p133 = por %p131, %p132
      %p135 = scmp.ne.s32.totalorder %s120, %s134
      %p136 = scmp.eq.s32.totalorder %s28, 0
      %p137 = por %p135, %p136
      %s139 = sadd.s32 %s138, 1
      %p142 = scmp.eq.s32.totalorder %s22, 3
      %p143 = scmp.ne.s32.totalorder %s138, %s140
      %p144 = scmp.eq.s32.totalorder %s22, 0
      %p145 = por %p143, %p144
      %p146 = scmp.ne.s32.totalorder %s138, %s140
      %p147 = scmp.eq.s32.totalorder %s27, 3
      %p148 = por %p146, %p147
      %p149 = scmp.ne.s32.totalorder %s140, %s141
      %p150 = scmp.eq.s32.totalorder %s27, 0
      %p151 = por %p149, %p150
      %p152 = scmp.ne.s32.totalorder %s140, %s141
      %p153 = scmp.eq.s32.totalorder %s28, 3
      %p154 = por %p152, %p153
      %p156 = scmp.ne.s32.totalorder %s141, %s155
      %p157 = scmp.eq.s32.totalorder %s28, 0
      %p158 = por %p156, %p157
      %s160 = sadd.s32 %s159, 1
      %p163 = scmp.eq.s32.totalorder %s22, 3
      %p164 = scmp.ne.s32.totalorder %s159, %s161
      %p165 = scmp.eq.s32.totalorder %s22, 0
      %p166 = por %p164, %p165
      %p167 = scmp.ne.s32.totalorder %s159, %s161
      %p168 = scmp.eq.s32.totalorder %s27, 3
      %p169 = por %p167, %p168
      %p170 = scmp.ne.s32.totalorder %s161, %s162
      %p171 = scmp.eq.s32.totalorder %s27, 0
      %p172 = por %p170, %p171
      %p173 = scmp.ne.s32.totalorder %s161, %s162
      %p174 = scmp.eq.s32.totalorder %s28, 3
      %p175 = por %p173, %p174
      %p177 = scmp.ne.s32.totalorder %s162, %s176
      %p178 = scmp.eq.s32.totalorder %s28, 0
      %p179 = por %p177, %p178
      %s181 = sadd.s32 %s180, 1
      %p184 = scmp.eq.s32.totalorder %s22, 3
      %p185 = scmp.ne.s32.totalorder %s180, %s182
      %p186 = scmp.eq.s32.totalorder %s22, 0
      %p187 = por %p185, %p186
      %p188 = scmp.ne.s32.totalorder %s180, %s182
      %p189 = scmp.eq.s32.totalorder %s27, 3
      %p190 = por %p188, %p189
      %p191 = scmp.ne.s32.totalorder %s182, %s183
      %p192 = scmp.eq.s32.totalorder %s27, 0
      %p193 = por %p191, %p192
      %p194 = scmp.ne.s32.totalorder %s182, %s183
      %p195 = scmp.eq.s32.totalorder %s28, 3
      %p196 = por %p194, %p195
      %p198 = scmp.ne.s32.totalorder %s183, %s197
      %p199 = scmp.eq.s32.totalorder %s28, 0
      %p200 = por %p198, %p199
      %s201 = ssub.s32 %s29, %s41
      %s202 = ssub.s32 %s30, %s37
      %s203 = sor.u32 %s201, %s202
      %p204 = scmp.eq.s32.totalorder %s203, 0
      %s206 = sadd.s32 %s205, 1
      %s207 = scalar_select %p204, %s205, %s206
      %p210 = pneg %p204
      %p211 = scmp.eq.s32.totalorder %s22, 3
      %p212 = por %p210, %p211
      %p213 = scmp.ne.s32.totalorder %s205, %s208
      %p214 = scmp.eq.s32.totalorder %s22, 0
      %p215 = por %p213, %p214
      %p216 = scmp.ne.s32.totalorder %s205, %s208
      %p217 = scmp.eq.s32.totalorder %s27, 3
      %p218 = por %p216, %p217
      %p219 = scmp.ne.s32.totalorder %s208, %s209
      %p220 = scmp.eq.s32.totalorder %s27, 0
      %p221 = por %p219, %p220
      %p222 = scmp.ne.s32.totalorder %s208, %s209
      %p223 = scmp.eq.s32.totalorder %s28, 3
      %p224 = por %p222, %p223
      %p226 = scmp.ne.s32.totalorder %s209, %s225
      %p227 = scmp.eq.s32.totalorder %s28, 0
      %p228 = por %p226, %p227
      %p229 = scmp.le.s32.totalorder 1, %s22
      %p230 = scmp.lt.s32.totalorder %s22, 5
      %p231 = pnand %p229, %p230
      %p232 = pneg %p231
      // Predicated region
      $region9: #{tpu_custom_call.1} parent=5 // pred_check
        _
      $region10: #{tpu_custom_call.1} parent=5 // pred_check_branch
        %234 = sbr.rel (%p231) target = $region12
      $region11: #{tpu_custom_call.1} parent=5 // pred_region
        %s235 = ssub.s32 %s22, 1
        // Predicated region
        $region13: #{tpu_custom_call.1} parent=11 // pred_check
          %p236 = pneg %p109
        $region14: #{tpu_custom_call.1} parent=11 // pred_check_branch
          %238 = sbr.rel (%p236) target = $region16
        $region15: #{tpu_custom_call.1} parent=11 // pred_region
          %s240 = ssub.s32 16, 16
          %241 = vsyncadd [#allocation8], %s240
          %s243 = sshll.u32 [#allocation7], 4
          %s244 = int_to_ptr.vmem [resolvable:$true] %s243
          %246 = dma.hbm_to_vmem [thread:$0]  %s2, 16, %s244, [#allocation8]
        $region16: #{tpu_custom_call.1} parent=11 // pred_fallthru
          _
        // Predicated region
        $region17: #{tpu_custom_call.1} parent=11 // pred_check
          %p247 = pneg %p130
        $region18: #{tpu_custom_call.1} parent=11 // pred_check_branch
          %249 = sbr.rel (%p247) target = $region20
        $region19: #{tpu_custom_call.1} parent=11 // pred_region
          %s251 = ssub.s32 16, 16
          %252 = vsyncadd [#allocation8], %s251
          %s254 = sshll.u32 [#allocation9], 4
          %s255 = int_to_ptr.vmem [resolvable:$true] %s254
          %257 = dma.hbm_to_vmem [thread:$0]  %s3, 16, %s255, [#allocation8]
        $region20: #{tpu_custom_call.1} parent=11 // pred_fallthru
          _
        // Predicated region
        $region21: #{tpu_custom_call.1} parent=11 // pred_check
          %p258 = pneg %p151
        $region22: #{tpu_custom_call.1} parent=11 // pred_check_branch
          %260 = sbr.rel (%p258) target = $region24
        $region23: #{tpu_custom_call.1} parent=11 // pred_region
          %s262 = ssub.s32 2048, 2048
          %263 = vsyncadd [#allocation11], %s262
          %s264 = sshll.u32 [#allocation10], 4
          %s265 = int_to_ptr.vmem [resolvable:$true] %s264
          %270 = dma.hbm_to_vmem [thread:$0]  %s4, 2048, %s265, [#allocation11], 128, 128, 8
        $region24: #{tpu_custom_call.1} parent=11 // pred_fallthru
          _
        // Predicated region
        $region25: #{tpu_custom_call.1} parent=11 // pred_check
          %p271 = pneg %p172
        $region26: #{tpu_custom_call.1} parent=11 // pred_check_branch
          %273 = sbr.rel (%p271) target = $region28
        $region27: #{tpu_custom_call.1} parent=11 // pred_region
          %s275 = ssub.s32 36864, 36864
          %276 = vsyncadd [#allocation11], %s275
          %s277 = sshll.u32 [#allocation12], 4
          %s278 = int_to_ptr.vmem [resolvable:$true] %s277
          %283 = dma.hbm_to_vmem [thread:$0]  %s5, 36864, %s278, [#allocation11], 128, 128, 8
        $region28: #{tpu_custom_call.1} parent=11 // pred_fallthru
          _
        // Predicated region
        $region29: #{tpu_custom_call.1} parent=11 // pred_check
          %p284 = pneg %p193
        $region30: #{tpu_custom_call.1} parent=11 // pred_check_branch
          %286 = sbr.rel (%p284) target = $region32
        $region31: #{tpu_custom_call.1} parent=11 // pred_region
          %s288 = ssub.s32 1024, 1024
          %289 = vsyncadd [#allocation14], %s288
          %s290 = sshll.u32 [#allocation13], 4
          %s291 = int_to_ptr.vmem [resolvable:$true] %s290
          %296 = dma.hbm_to_vmem [thread:$0]  %s6, 1024, %s291, [#allocation14], 64, 64, 4
        $region32: #{tpu_custom_call.1} parent=11 // pred_fallthru
          _
      $region12: #{tpu_custom_call.1} parent=5 // pred_fallthru
        _
      %p297 = scmp.lt.s32.totalorder %s22, 4
      // Predicated region
      $region33: #{tpu_custom_call.1} parent=5 // pred_check
        %p298 = pneg %p297
      $region34: #{tpu_custom_call.1} parent=5 // pred_check_branch
        %300 = sbr.rel (%p298) target = $region36
      $region35: #{tpu_custom_call.1} parent=5 // pred_region
        // Predicated region
        $region37: #{tpu_custom_call.1} parent=35 // pred_check
          %p301 = pneg %p56
        $region38: #{tpu_custom_call.1} parent=35 // pred_check_branch
          %303 = sbr.rel (%p301) target = $region40
        $region39: #{tpu_custom_call.1} parent=35 // pred_region
          %s304 = sand.u32 %s46, 1
          %s305 = scalar_lea.sflag [#allocation5], %s304
          %s306 = sand.u32 %s46, 1
          %s307 = smul.addr %s306, 156
          %s308 = scalar_lea.vmem [#allocation4], %s307
          %s310 = ssub.s32 2496, 2496
          %311 = vsyncadd %s305, %s310
          %s312 = smul.addr %s30, 39
          %s313 = smul.addr %s29, 78
          %s314 = sadd.s32 %s312, %s313
          %s315 = smul.addr %s314, 64
          %s316 = scalar_lea.hbm %s0, %s315
          %s317 = sshll.u32 %s308, 4
          %s318 = int_to_ptr.vmem [resolvable:$true] %s317
          %323 = dma.hbm_to_vmem [thread:$0]  %s316, 2496, %s318, %s305, 64, 64, 4
        $region40: #{tpu_custom_call.1} parent=35 // pred_fallthru
          _
        // Predicated region
        $region41: #{tpu_custom_call.1} parent=35 // pred_check
          %p324 = pneg %p82
        $region42: #{tpu_custom_call.1} parent=35 // pred_check_branch
          %326 = sbr.rel (%p324) target = $region44
        $region43: #{tpu_custom_call.1} parent=35 // pred_region
          %p327 = scmp.lt.s32.totalorder %s30, 1
          %s328 = scalar_select %p327, %s30, 1
          %s329 = smul.addr %s328, 39
          %s330 = smul.addr %s329, 8
          %s331 = scalar_lea.vmem %s1, %s330
        $region44: #{tpu_custom_call.1} parent=35 // pred_fallthru
          _
      $region36: #{tpu_custom_call.1} parent=5 // pred_fallthru
        _
      %p332 = scmp.le.s32.totalorder 1, %s22
      %p333 = scmp.lt.s32.totalorder %s22, 5
      %p334 = pnand %p332, %p333
      %p335 = pneg %p334
      // Predicated region
      $region45: #{tpu_custom_call.1} parent=5 // pred_check
        _
      $region46: #{tpu_custom_call.1} parent=5 // pred_check_branch
        %337 = sbr.rel (%p334) target = $region48
      $region47: #{tpu_custom_call.1} parent=5 // pred_region
        %s338 = ssub.s32 %s22, 1
        %s339 = sand.u32 %s49, 1
        %s340 = scalar_lea.sflag [#allocation5], %s339
        %s341 = sand.u32 %s49, 1
        %s342 = smul.addr %s341, 156
        %s343 = scalar_lea.vmem [#allocation4], %s342
        // Predicated region
        $region49: #{tpu_custom_call.1} parent=47 // pred_check
          %p344 = pneg %p62
        $region50: #{tpu_custom_call.1} parent=47 // pred_check_branch
          %346 = sbr.rel (%p344) target = $region52
        $region51: #{tpu_custom_call.1} parent=47 // pred_region
          %347 = dma.done %s340, 2496
        $region52: #{tpu_custom_call.1} parent=47 // pred_fallthru
          _
        // Predicated region
        $region53: #{tpu_custom_call.1} parent=47 // pred_check
          %p348 = pneg %p109
        $region54: #{tpu_custom_call.1} parent=47 // pred_check_branch
          %350 = sbr.rel (%p348) target = $region56
        $region55: #{tpu_custom_call.1} parent=47 // pred_region
          %351 = dma.done [#allocation8], 16
        $region56: #{tpu_custom_call.1} parent=47 // pred_fallthru
          _
        // Predicated region
        $region57: #{tpu_custom_call.1} parent=47 // pred_check
          %p352 = pneg %p130
        $region58: #{tpu_custom_call.1} parent=47 // pred_check_branch
          %354 = sbr.rel (%p352) target = $region60
        $region59: #{tpu_custom_call.1} parent=47 // pred_region
          %355 = dma.done [#allocation8], 16
        $region60: #{tpu_custom_call.1} parent=47 // pred_fallthru
          _
        // Predicated region
        $region61: #{tpu_custom_call.1} parent=47 // pred_check
          %p356 = pneg %p151
        $region62: #{tpu_custom_call.1} parent=47 // pred_check_branch
          %358 = sbr.rel (%p356) target = $region64
        $region63: #{tpu_custom_call.1} parent=47 // pred_region
          %359 = dma.done [#allocation11], 2048
        $region64: #{tpu_custom_call.1} parent=47 // pred_fallthru
          _
        // Predicated region
        $region65: #{tpu_custom_call.1} parent=47 // pred_check
          %p360 = pneg %p172
        $region66: #{tpu_custom_call.1} parent=47 // pred_check_branch
          %362 = sbr.rel (%p360) target = $region68
        $region67: #{tpu_custom_call.1} parent=47 // pred_region
          %363 = dma.done [#allocation11], 36864
        $region68: #{tpu_custom_call.1} parent=47 // pred_fallthru
          _
        // Predicated region
        $region69: #{tpu_custom_call.1} parent=47 // pred_check
          %p364 = pneg %p193
        $region70: #{tpu_custom_call.1} parent=47 // pred_check_branch
          %366 = sbr.rel (%p364) target = $region72
        $region71: #{tpu_custom_call.1} parent=47 // pred_region
          %367 = dma.done [#allocation14], 1024
        $region72: #{tpu_custom_call.1} parent=47 // pred_fallthru
          _
        %s368 = sand.u32 %s49, 1
        %s369 = scalar_lea.sflag [#allocation5], %s368
        %s370 = sand.u32 %s49, 1
        %s371 = smul.addr %s370, 156
        %s372 = scalar_lea.vmem [#allocation4], %s371
        %p373 = pneg %p62
        %p374 = pneg %p59
        %p375 = scmp.lt.s32.totalorder %s32, 1
        %s376 = scalar_select %p375, %s32, 1
        %s377 = smul.addr %s376, 39
        %s378 = smul.addr %s377, 8
        %s379 = scalar_lea.vmem %s1, %s378
        %p380 = pneg %p88
        %p381 = pneg %p85
        %p382 = pneg %p109
        %p383 = pneg %p106
        %p384 = pneg %p130
        %p385 = pneg %p127
        %p386 = pneg %p151
        %p387 = pneg %p148
        %p388 = pneg %p172
        %p389 = pneg %p169
        %p390 = pneg %p193
        %p391 = pneg %p190
        %p392 = pneg %p221
        %p393 = pneg %p218
        %s394 = sand.u32 %s208, 1
        %s395 = scalar_lea.sflag [#allocation6], %s394
        %s396 = sand.u32 %s208, 1
        %s397 = smul.addr %s396, 240
        %s398 = scalar_lea.vmem [#allocation15], %s397
        %p399 = scmp.lt.s32.totalorder %s32, 1
        %s400 = scalar_select %p399, %s32, 1
        %s401 = smul.addr %s400, 39
        %s402 = smul.addr %s401, 8
        %s403 = scalar_lea.vmem %s1, %s402
        %v405 = vld [vmem:[%s343] sm:$0xf]
        %v406 = vld [vmem:[%s343 + $0x4] sm:$0xf]
        %v407 = vld [vmem:[%s343 + $0x8] sm:$0xf]
        %v408 = vld [vmem:[%s343 + $0xc] sm:$0xf]
        %v409 = vld [vmem:[%s343 + $0x10] sm:$0xf]
        %v410 = vld [vmem:[%s343 + $0x14] sm:$0xf]
        %v411 = vld [vmem:[%s343 + $0x18] sm:$0xf]
        %v412 = vld [vmem:[%s343 + $0x1c] sm:$0xf]
        %v413 = vld [vmem:[%s343 + $0x20] sm:$0xf]
        %v414 = vld [vmem:[%s343 + $0x24] sm:$0xf]
        %v415 = vld [vmem:[%s343 + $0x28] sm:$0xf]
        %v416 = vld [vmem:[%s343 + $0x2c] sm:$0xf]
        %v417 = vld [vmem:[%s343 + $0x30] sm:$0xf]
        %v418 = vld [vmem:[%s343 + $0x34] sm:$0xf]
        %v419 = vld [vmem:[%s343 + $0x38] sm:$0xf]
        %v420 = vld [vmem:[%s343 + $0x3c] sm:$0xf]
        %v421 = vld [vmem:[%s343 + $0x40] sm:$0xf]
        %v422 = vld [vmem:[%s343 + $0x44] sm:$0xf]
        %v423 = vld [vmem:[%s343 + $0x48] sm:$0xf]
        %v424 = vld [vmem:[%s343 + $0x4c] sm:$0xf]
        %v425 = vld [vmem:[%s343 + $0x50] sm:$0xf]
        %v426 = vld [vmem:[%s343 + $0x54] sm:$0xf]
        %v427 = vld [vmem:[%s343 + $0x58] sm:$0xf]
        %v428 = vld [vmem:[%s343 + $0x5c] sm:$0xf]
        %v429 = vld [vmem:[%s343 + $0x60] sm:$0xf]
        %v430 = vld [vmem:[%s343 + $0x64] sm:$0xf]
        %v431 = vld [vmem:[%s343 + $0x68] sm:$0xf]
        %v432 = vld [vmem:[%s343 + $0x6c] sm:$0xf]
        %v433 = vld [vmem:[%s343 + $0x70] sm:$0xf]
        %v434 = vld [vmem:[%s343 + $0x74] sm:$0xf]
        %v435 = vld [vmem:[%s343 + $0x78] sm:$0xf]
        %v436 = vld [vmem:[%s343 + $0x7c] sm:$0xf]
        %v437 = vld [vmem:[%s343 + $0x80] sm:$0xf]
        %v438 = vld [vmem:[%s343 + $0x84] sm:$0xf]
        %v439 = vld [vmem:[%s343 + $0x88] sm:$0xf]
        %v440 = vld [vmem:[%s343 + $0x8c] sm:$0xf]
        %v441 = vld [vmem:[%s343 + $0x90] sm:$0xf]
        %v442 = vld [vmem:[%s343 + $0x94] sm:$0xf]
        %v443 = vld [vmem:[%s343 + $0x98] sm:$0xf]
        %v444 = vunpack.c.l.bf16 %v405
        %v445 = vunpack.c.l.bf16 %v406
        %v446 = vunpack.c.l.bf16 %v407
        %v447 = vunpack.c.l.bf16 %v408
        %v448 = vunpack.c.l.bf16 %v409
        %v449 = vunpack.c.l.bf16 %v410
        %v450 = vunpack.c.l.bf16 %v411
        %v451 = vunpack.c.l.bf16 %v412
        %v452 = vunpack.c.l.bf16 %v413
        %v453 = vunpack.c.l.bf16 %v414
        %v454 = vunpack.c.l.bf16 %v415
        %v455 = vunpack.c.l.bf16 %v416
        %v456 = vunpack.c.l.bf16 %v417
        %v457 = vunpack.c.l.bf16 %v418
        %v458 = vunpack.c.l.bf16 %v419
        %v459 = vunpack.c.l.bf16 %v420
        %v460 = vunpack.c.l.bf16 %v421
        %v461 = vunpack.c.l.bf16 %v422
        %v462 = vunpack.c.l.bf16 %v423
        %v463 = vunpack.c.l.bf16 %v424
        %v464 = vunpack.c.l.bf16 %v425
        %v465 = vunpack.c.l.bf16 %v426
        %v466 = vunpack.c.l.bf16 %v427
        %v467 = vunpack.c.l.bf16 %v428
        %v468 = vunpack.c.l.bf16 %v429
        %v469 = vunpack.c.l.bf16 %v430
        %v470 = vunpack.c.l.bf16 %v431
        %v471 = vunpack.c.l.bf16 %v432
        %v472 = vunpack.c.l.bf16 %v433
        %v473 = vunpack.c.l.bf16 %v434
        %v474 = vunpack.c.l.bf16 %v435
        %v475 = vunpack.c.l.bf16 %v436
        %v476 = vunpack.c.l.bf16 %v437
        %v477 = vunpack.c.l.bf16 %v438
        %v478 = vunpack.c.l.bf16 %v439
        %v479 = vunpack.c.l.bf16 %v440
        %v480 = vunpack.c.l.bf16 %v441
        %v481 = vunpack.c.l.bf16 %v442
        %v482 = vunpack.c.l.bf16 %v443
        %v483 = vld [vmem:[#allocation7] sm:$0x1]
        %v485 = vlaneseq
        %v486 = vshrl.u32 %v485, 7
        %v487 = vsub.s32 0, %v486
        %v488 = vrot.slane %v483, %v487
        %v490 = vmul.f32 %v444, %v488
        %v491 = vmul.f32 %v445, %v488
        %v492 = vmul.f32 %v446, %v488
        %v493 = vmul.f32 %v447, %v488
        %v494 = vmul.f32 %v448, %v488
        %v495 = vmul.f32 %v449, %v488
        %v496 = vmul.f32 %v450, %v488
        %v497 = vmul.f32 %v451, %v488
        %v498 = vmul.f32 %v452, %v488
        %v499 = vmul.f32 %v453, %v488
        %v500 = vmul.f32 %v454, %v488
        %v501 = vmul.f32 %v455, %v488
        %v502 = vmul.f32 %v456, %v488
        %v503 = vmul.f32 %v457, %v488
        %v504 = vmul.f32 %v458, %v488
        %v505 = vmul.f32 %v459, %v488
        %v506 = vmul.f32 %v460, %v488
        %v507 = vmul.f32 %v461, %v488
        %v508 = vmul.f32 %v462, %v488
        %v509 = vmul.f32 %v463, %v488
        %v510 = vmul.f32 %v464, %v488
        %v511 = vmul.f32 %v465, %v488
        %v512 = vmul.f32 %v466, %v488
        %v513 = vmul.f32 %v467, %v488
        %v514 = vmul.f32 %v468, %v488
        %v515 = vmul.f32 %v469, %v488
        %v516 = vmul.f32 %v470, %v488
        %v517 = vmul.f32 %v471, %v488
        %v518 = vmul.f32 %v472, %v488
        %v519 = vmul.f32 %v473, %v488
        %v520 = vmul.f32 %v474, %v488
        %v521 = vmul.f32 %v475, %v488
        %v522 = vmul.f32 %v476, %v488
        %v523 = vmul.f32 %v477, %v488
        %v524 = vmul.f32 %v478, %v488
        %v525 = vmul.f32 %v479, %v488
        %v526 = vmul.f32 %v480, %v488
        %v527 = vmul.f32 %v481, %v488
        %v528 = vmul.f32 %v482, %v488
        %v529 = vld [vmem:[#allocation9] sm:$0x1]
        %v530 = vld [vmem:[%s403] sm:$0xff]
        %v531 = vld [vmem:[%s403 + $0x8] sm:$0xff]
        %v532 = vld [vmem:[%s403 + $0x10] sm:$0xff]
        %v533 = vld [vmem:[%s403 + $0x18] sm:$0xff]
        %v534 = vld [vmem:[%s403 + $0x20] sm:$0xff]
        %v535 = vld [vmem:[%s403 + $0x28] sm:$0xff]
        %v536 = vld [vmem:[%s403 + $0x30] sm:$0xff]
        %v537 = vld [vmem:[%s403 + $0x38] sm:$0xff]
        %v538 = vld [vmem:[%s403 + $0x40] sm:$0xff]
        %v539 = vld [vmem:[%s403 + $0x48] sm:$0xff]
        %v540 = vld [vmem:[%s403 + $0x50] sm:$0xff]
        %v541 = vld [vmem:[%s403 + $0x58] sm:$0xff]
        %v542 = vld [vmem:[%s403 + $0x60] sm:$0xff]
        %v543 = vld [vmem:[%s403 + $0x68] sm:$0xff]
        %v544 = vld [vmem:[%s403 + $0x70] sm:$0xff]
        %v545 = vld [vmem:[%s403 + $0x78] sm:$0xff]
        %v546 = vld [vmem:[%s403 + $0x80] sm:$0xff]
        %v547 = vld [vmem:[%s403 + $0x88] sm:$0xff]
        %v548 = vld [vmem:[%s403 + $0x90] sm:$0xff]
        %v549 = vld [vmem:[%s403 + $0x98] sm:$0xff]
        %v550 = vld [vmem:[%s403 + $0xa0] sm:$0xff]
        %v551 = vld [vmem:[%s403 + $0xa8] sm:$0xff]
        %v552 = vld [vmem:[%s403 + $0xb0] sm:$0xff]
        %v553 = vld [vmem:[%s403 + $0xb8] sm:$0xff]
        %v554 = vld [vmem:[%s403 + $0xc0] sm:$0xff]
        %v555 = vld [vmem:[%s403 + $0xc8] sm:$0xff]
        %v556 = vld [vmem:[%s403 + $0xd0] sm:$0xff]
        %v557 = vld [vmem:[%s403 + $0xd8] sm:$0xff]
        %v558 = vld [vmem:[%s403 + $0xe0] sm:$0xff]
        %v559 = vld [vmem:[%s403 + $0xe8] sm:$0xff]
        %v560 = vld [vmem:[%s403 + $0xf0] sm:$0xff]
        %v561 = vld [vmem:[%s403 + $0xf8] sm:$0xff]
        %v562 = vld [vmem:[%s403 + $0x100] sm:$0xff]
        %v563 = vld [vmem:[%s403 + $0x108] sm:$0xff]
        %v564 = vld [vmem:[%s403 + $0x110] sm:$0xff]
        %v565 = vld [vmem:[%s403 + $0x118] sm:$0xff]
        %v566 = vld [vmem:[%s403 + $0x120] sm:$0xff]
        %v567 = vld [vmem:[%s403 + $0x128] sm:$0xff]
        %v568 = vld [vmem:[%s403 + $0x130] sm:$0xff]
        %v570 = vlaneseq
        %v571 = vshrl.u32 %v570, 7
        %v572 = vsub.s32 0, %v571
        %v573 = vrot.slane %v529, %v572
        %576 = vset.pattern.permute.xlu0 0
        %577 = vperm.xlu0 %576, %v530
        %v578 = vpop.permute.xlu0 %577
        %581 = vset.pattern.permute.xlu0 0
        %582 = vperm.xlu0 %581, %v531
        %v583 = vpop.permute.xlu0 %582
        %586 = vset.pattern.permute.xlu0 0
        %587 = vperm.xlu0 %586, %v532
        %v588 = vpop.permute.xlu0 %587
        %591 = vset.pattern.permute.xlu0 0
        %592 = vperm.xlu0 %591, %v533
        %v593 = vpop.permute.xlu0 %592
        %596 = vset.pattern.permute.xlu0 0
        %597 = vperm.xlu0 %596, %v534
        %v598 = vpop.permute.xlu0 %597
        %601 = vset.pattern.permute.xlu0 0
        %602 = vperm.xlu0 %601, %v535
        %v603 = vpop.permute.xlu0 %602
        %606 = vset.pattern.permute.xlu0 0
        %607 = vperm.xlu0 %606, %v536
        %v608 = vpop.permute.xlu0 %607
        %611 = vset.pattern.permute.xlu0 0
        %612 = vperm.xlu0 %611, %v537
        %v613 = vpop.permute.xlu0 %612
        %616 = vset.pattern.permute.xlu0 0
        %617 = vperm.xlu0 %616, %v538
        %v618 = vpop.permute.xlu0 %617
        %621 = vset.pattern.permute.xlu0 0
        %622 = vperm.xlu0 %621, %v539
        %v623 = vpop.permute.xlu0 %622
        %626 = vset.pattern.permute.xlu0 0
        %627 = vperm.xlu0 %626, %v540
        %v628 = vpop.permute.xlu0 %627
        %631 = vset.pattern.permute.xlu0 0
        %632 = vperm.xlu0 %631, %v541
        %v633 = vpop.permute.xlu0 %632
        %636 = vset.pattern.permute.xlu0 0
        %637 = vperm.xlu0 %636, %v542
        %v638 = vpop.permute.xlu0 %637
        %641 = vset.pattern.permute.xlu0 0
        %642 = vperm.xlu0 %641, %v543
        %v643 = vpop.permute.xlu0 %642
        %646 = vset.pattern.permute.xlu0 0
        %647 = vperm.xlu0 %646, %v544
        %v648 = vpop.permute.xlu0 %647
        %651 = vset.pattern.permute.xlu0 0
        %652 = vperm.xlu0 %651, %v545
        %v653 = vpop.permute.xlu0 %652
        %656 = vset.pattern.permute.xlu0 0
        %657 = vperm.xlu0 %656, %v546
        %v658 = vpop.permute.xlu0 %657
        %661 = vset.pattern.permute.xlu0 0
        %662 = vperm.xlu0 %661, %v547
        %v663 = vpop.permute.xlu0 %662
        %666 = vset.pattern.permute.xlu0 0
        %667 = vperm.xlu0 %666, %v548
        %v668 = vpop.permute.xlu0 %667
        %671 = vset.pattern.permute.xlu0 0
        %672 = vperm.xlu0 %671, %v549
        %v673 = vpop.permute.xlu0 %672
        %676 = vset.pattern.permute.xlu0 0
        %677 = vperm.xlu0 %676, %v550
        %v678 = vpop.permute.xlu0 %677
        %681 = vset.pattern.permute.xlu0 0
        %682 = vperm.xlu0 %681, %v551
        %v683 = vpop.permute.xlu0 %682
        %686 = vset.pattern.permute.xlu0 0
        %687 = vperm.xlu0 %686, %v552
        %v688 = vpop.permute.xlu0 %687
        %691 = vset.pattern.permute.xlu0 0
        %692 = vperm.xlu0 %691, %v553
        %v693 = vpop.permute.xlu0 %692
        %696 = vset.pattern.permute.xlu0 0
        %697 = vperm.xlu0 %696, %v554
        %v698 = vpop.permute.xlu0 %697
        %701 = vset.pattern.permute.xlu0 0
        %702 = vperm.xlu0 %701, %v555
        %v703 = vpop.permute.xlu0 %702
        %706 = vset.pattern.permute.xlu0 0
        %707 = vperm.xlu0 %706, %v556
        %v708 = vpop.permute.xlu0 %707
        %711 = vset.pattern.permute.xlu0 0
        %712 = vperm.xlu0 %711, %v557
        %v713 = vpop.permute.xlu0 %712
        %716 = vset.pattern.permute.xlu0 0
        %717 = vperm.xlu0 %716, %v558
        %v718 = vpop.permute.xlu0 %717
        %721 = vset.pattern.permute.xlu0 0
        %722 = vperm.xlu0 %721, %v559
        %v723 = vpop.permute.xlu0 %722
        %726 = vset.pattern.permute.xlu0 0
        %727 = vperm.xlu0 %726, %v560
        %v728 = vpop.permute.xlu0 %727
        %731 = vset.pattern.permute.xlu0 0
        %732 = vperm.xlu0 %731, %v561
        %v733 = vpop.permute.xlu0 %732
        %736 = vset.pattern.permute.xlu0 0
        %737 = vperm.xlu0 %736, %v562
        %v738 = vpop.permute.xlu0 %737
        %741 = vset.pattern.permute.xlu0 0
        %742 = vperm.xlu0 %741, %v563
        %v743 = vpop.permute.xlu0 %742
        %746 = vset.pattern.permute.xlu0 0
        %747 = vperm.xlu0 %746, %v564
        %v748 = vpop.permute.xlu0 %747
        %751 = vset.pattern.permute.xlu0 0
        %752 = vperm.xlu0 %751, %v565
        %v753 = vpop.permute.xlu0 %752
        %756 = vset.pattern.permute.xlu0 0
        %757 = vperm.xlu0 %756, %v566
        %v758 = vpop.permute.xlu0 %757
        %761 = vset.pattern.permute.xlu0 0
        %762 = vperm.xlu0 %761, %v567
        %v763 = vpop.permute.xlu0 %762
        %766 = vset.pattern.permute.xlu0 0
        %767 = vperm.xlu0 %766, %v568
        %v768 = vpop.permute.xlu0 %767
        %v770 = vmul.f32 %v573, %v578
        %v771 = vmul.f32 %v573, %v583
        %v772 = vmul.f32 %v573, %v588
        %v773 = vmul.f32 %v573, %v593
        %v774 = vmul.f32 %v573, %v598
        %v775 = vmul.f32 %v573, %v603
        %v776 = vmul.f32 %v573, %v608
        %v777 = vmul.f32 %v573, %v613
        %v778 = vmul.f32 %v573, %v618
        %v779 = vmul.f32 %v573, %v623
        %v780 = vmul.f32 %v573, %v628
        %v781 = vmul.f32 %v573, %v633
        %v782 = vmul.f32 %v573, %v638
        %v783 = vmul.f32 %v573, %v643
        %v784 = vmul.f32 %v573, %v648
        %v785 = vmul.f32 %v573, %v653
        %v786 = vmul.f32 %v573, %v658
        %v787 = vmul.f32 %v573, %v663
        %v788 = vmul.f32 %v573, %v668
        %v789 = vmul.f32 %v573, %v673
        %v790 = vmul.f32 %v573, %v678
        %v791 = vmul.f32 %v573, %v683
        %v792 = vmul.f32 %v573, %v688
        %v793 = vmul.f32 %v573, %v693
        %v794 = vmul.f32 %v573, %v698
        %v795 = vmul.f32 %v573, %v703
        %v796 = vmul.f32 %v573, %v708
        %v797 = vmul.f32 %v573, %v713
        %v798 = vmul.f32 %v573, %v718
        %v799 = vmul.f32 %v573, %v723
        %v800 = vmul.f32 %v573, %v728
        %v801 = vmul.f32 %v573, %v733
        %v802 = vmul.f32 %v573, %v738
        %v803 = vmul.f32 %v573, %v743
        %v804 = vmul.f32 %v573, %v748
        %v805 = vmul.f32 %v573, %v753
        %v806 = vmul.f32 %v573, %v758
        %v807 = vmul.f32 %v573, %v763
        %v808 = vmul.f32 %v573, %v768
        %v809 = vadd.f32 %v490, %v770
        %v810 = vadd.f32 %v491, %v771
        %v811 = vadd.f32 %v492, %v772
        %v812 = vadd.f32 %v493, %v773
        %v813 = vadd.f32 %v494, %v774
        %v814 = vadd.f32 %v495, %v775
        %v815 = vadd.f32 %v496, %v776
        %v816 = vadd.f32 %v497, %v777
        %v817 = vadd.f32 %v498, %v778
        %v818 = vadd.f32 %v499, %v779
        %v819 = vadd.f32 %v500, %v780
        %v820 = vadd.f32 %v501, %v781
        %v821 = vadd.f32 %v502, %v782
        %v822 = vadd.f32 %v503, %v783
        %v823 = vadd.f32 %v504, %v784
        %v824 = vadd.f32 %v505, %v785
        %v825 = vadd.f32 %v506, %v786
        %v826 = vadd.f32 %v507, %v787
        %v827 = vadd.f32 %v508, %v788
        %v828 = vadd.f32 %v509, %v789
        %v829 = vadd.f32 %v510, %v790
        %v830 = vadd.f32 %v511, %v791
        %v831 = vadd.f32 %v512, %v792
        %v832 = vadd.f32 %v513, %v793
        %v833 = vadd.f32 %v514, %v794
        %v834 = vadd.f32 %v515, %v795
        %v835 = vadd.f32 %v516, %v796
        %v836 = vadd.f32 %v517, %v797
        %v837 = vadd.f32 %v518, %v798
        %v838 = vadd.f32 %v519, %v799
        %v839 = vadd.f32 %v520, %v800
        %v840 = vadd.f32 %v521, %v801
        %v841 = vadd.f32 %v522, %v802
        %v842 = vadd.f32 %v523, %v803
        %v843 = vadd.f32 %v524, %v804
        %v844 = vadd.f32 %v525, %v805
        %v845 = vadd.f32 %v526, %v806
        %v846 = vadd.f32 %v527, %v807
        %v847 = vadd.f32 %v528, %v808
        %v848 = vpack.c.bf16 %v810, %v809
        %v849 = vpack.c.bf16 %v812, %v811
        %v850 = vpack.c.bf16 %v814, %v813
        %v851 = vpack.c.bf16 %v816, %v815
        %v852 = vpack.c.bf16 %v818, %v817
        %v853 = vpack.c.bf16 %v820, %v819
        %v854 = vpack.c.bf16 %v822, %v821
        %v855 = vpack.c.bf16 %v824, %v823
        %v856 = vpack.c.bf16 %v826, %v825
        %v857 = vpack.c.bf16 %v828, %v827
        %v858 = vpack.c.bf16 %v830, %v829
        %v859 = vpack.c.bf16 %v832, %v831
        %v860 = vpack.c.bf16 %v834, %v833
        %v861 = vpack.c.bf16 %v836, %v835
        %v862 = vpack.c.bf16 %v838, %v837
        %v863 = vpack.c.bf16 %v840, %v839
        %v864 = vpack.c.bf16 %v842, %v841
        %v865 = vpack.c.bf16 %v844, %v843
        %v866 = vpack.c.bf16 %v846, %v845
        %v867 = vpack.c.bf16 %v847, %v847
        %v868 = vld [vmem:[#allocation10] sm:$0xff]
        %v869 = vld [vmem:[#allocation10 + $0x8] sm:$0xff]
        %v870 = vld [vmem:[#allocation10 + $0x10] sm:$0xff]
        %v871 = vld [vmem:[#allocation10 + $0x18] sm:$0xff]
        %v872 = vld [vmem:[#allocation10 + $0x20] sm:$0xff]
        %v873 = vld [vmem:[#allocation10 + $0x28] sm:$0xff]
        %v874 = vld [vmem:[#allocation10 + $0x30] sm:$0xff]
        %v875 = vld [vmem:[#allocation10 + $0x38] sm:$0xff]
        %v876 = vld [vmem:[#allocation10 + $0x40] sm:$0xff]
        %v877 = vld [vmem:[#allocation10 + $0x48] sm:$0xff]
        %v878 = vld [vmem:[#allocation10 + $0x50] sm:$0xff]
        %v879 = vld [vmem:[#allocation10 + $0x58] sm:$0xff]
        %v880 = vld [vmem:[#allocation10 + $0x60] sm:$0xff]
        %v881 = vld [vmem:[#allocation10 + $0x68] sm:$0xff]
        %v882 = vld [vmem:[#allocation10 + $0x70] sm:$0xff]
        %v883 = vld [vmem:[#allocation10 + $0x78] sm:$0xff]
        %v900 = vunpack.c.l.b16 %v868
        %v901 = vunpack.c.h.b16 %v868
        %v902 = vunpack.c.l.b16 %v869
        %v903 = vunpack.c.h.b16 %v869
        %v904 = vunpack.c.l.b16 %v870
        %v905 = vunpack.c.h.b16 %v870
        %v906 = vunpack.c.l.b16 %v871
        %v907 = vunpack.c.h.b16 %v871
        %v908 = vunpack.c.l.b16 %v872
        %v909 = vunpack.c.h.b16 %v872
        %v910 = vunpack.c.l.b16 %v873
        %v911 = vunpack.c.h.b16 %v873
        %v912 = vunpack.c.l.b16 %v874
        %v913 = vunpack.c.h.b16 %v874
        %v914 = vunpack.c.l.b16 %v875
        %v915 = vunpack.c.h.b16 %v875
        %v916 = vunpack.c.l.b16 %v876
        %v917 = vunpack.c.h.b16 %v876
        %v918 = vunpack.c.l.b16 %v877
        %v919 = vunpack.c.h.b16 %v877
        %v920 = vunpack.c.l.b16 %v878
        %v921 = vunpack.c.h.b16 %v878
        %v922 = vunpack.c.l.b16 %v879
        %v923 = vunpack.c.h.b16 %v879
        %v924 = vunpack.c.l.b16 %v880
        %v925 = vunpack.c.h.b16 %v880
        %v926 = vunpack.c.l.b16 %v881
        %v927 = vunpack.c.h.b16 %v881
        %v928 = vunpack.c.l.b16 %v882
        %v929 = vunpack.c.h.b16 %v882
        %v930 = vunpack.c.l.b16 %v883
        %v931 = vunpack.c.h.b16 %v883
        %v932 = vpack.c.b16 %v902, %v900
        %v933 = vpack.c.b16 %v903, %v901
        %v934 = vpack.c.b16 %v906, %v904
        %v935 = vpack.c.b16 %v907, %v905
        %v936 = vpack.c.b16 %v910, %v908
        %v937 = vpack.c.b16 %v911, %v909
        %v938 = vpack.c.b16 %v914, %v912
        %v939 = vpack.c.b16 %v915, %v913
        %v940 = vpack.c.b16 %v918, %v916
        %v941 = vpack.c.b16 %v919, %v917
        %v942 = vpack.c.b16 %v922, %v920
        %v943 = vpack.c.b16 %v923, %v921
        %v944 = vpack.c.b16 %v926, %v924
        %v945 = vpack.c.b16 %v927, %v925
        %v946 = vpack.c.b16 %v930, %v928
        %v947 = vpack.c.b16 %v931, %v929
        %964 = vmatprep.subr.bf16.mxu0 %v933
        %965 = vmatpush1.bf16.msra.mxu0 %v932
        %966 = vmatprep.subr.bf16.mxu0 %v935
        %967 = vmatpush1.bf16.msra.mxu0 %v934
        %968 = vmatprep.subr.bf16.mxu0 %v937
        %969 = vmatpush1.bf16.msra.mxu0 %v936
        %970 = vmatprep.subr.bf16.mxu0 %v939
        %971 = vmatpush1.bf16.msra.mxu0 %v938
        %972 = vmatprep.subr.bf16.mxu0 %v941
        %973 = vmatpush1.bf16.msra.mxu0 %v940
        %974 = vmatprep.subr.bf16.mxu0 %v943
        %975 = vmatpush1.bf16.msra.mxu0 %v942
        %976 = vmatprep.subr.bf16.mxu0 %v945
        %977 = vmatpush1.bf16.msra.mxu0 %v944
        %978 = vmatprep.subr.bf16.mxu0 %v947
        %979 = vmatpush1.bf16.msra.mxu0 %v946
        %980 = vmatprep.subr.bf16.mxu0 0
        %981 = vmatpush1.bf16.msra.mxu0 0
        %982 = vmatprep.subr.bf16.mxu0 0
        %983 = vmatpush1.bf16.msra.mxu0 0
        %984 = vmatprep.subr.bf16.mxu0 0
        %985 = vmatpush1.bf16.msra.mxu0 0
        %986 = vmatprep.subr.bf16.mxu0 0
        %987 = vmatpush1.bf16.msra.mxu0 0
        %988 = vmatprep.subr.bf16.mxu0 0
        %989 = vmatpush1.bf16.msra.mxu0 0
        %990 = vmatprep.subr.bf16.mxu0 0
        %991 = vmatpush1.bf16.msra.mxu0 0
        %992 = vmatprep.subr.bf16.mxu0 0
        %993 = vmatpush1.bf16.msra.mxu0 0
        %994 = vmatprep.subr.bf16.mxu0 0
        %995 = vmatpush1.bf16.msra.mxu0 0
        %996 = vmatprep.mubr.bf16.mxu0 0
        %997 = vmatmul.mubr.bf16.gmra.mrb[0].mxu0 %v848
        %v998 = vpop.f32.mrb[0].mxu0
        %v999 = vadd.f32 0.0, %v998
        %v1000 = vpop.f32.mrb[0].mxu0
        %v1001 = vadd.f32 0.0, %v1000
        %v1002 = vpop.f32.mrb[0].mxu0
        %v1003 = vadd.f32 0.0, %v1002
        %v1004 = vpop.f32.mrb[0].mxu0
        %v1005 = vadd.f32 0.0, %v1004
        %1006 = vmatprep.mubr.bf16.mxu0 0
        %1007 = vmatmul.mubr.bf16.gmra.mrb[0].mxu0 %v849
        %v1008 = vpop.f32.mrb[0].mxu0
        %v1009 = vadd.f32 0.0, %v1008
        %v1010 = vpop.f32.mrb[0].mxu0
        %v1011 = vadd.f32 0.0, %v1010
        %v1012 = vpop.f32.mrb[0].mxu0
        %v1013 = vadd.f32 0.0, %v1012
        %v1014 = vpop.f32.mrb[0].mxu0
        %v1015 = vadd.f32 0.0, %v1014
        %1016 = vmatprep.mubr.bf16.mxu0 0
        %1017 = vmatmul.mubr.bf16.gmra.mrb[0].mxu0 %v850
        %v1018 = vpop.f32.mrb[0].mxu0
        %v1019 = vadd.f32 0.0, %v1018
        %v1020 = vpop.f32.mrb[0].mxu0
        %v1021 = vadd.f32 0.0, %v1020
        %v1022 = vpop.f32.mrb[0].mxu0
        %v1023 = vadd.f32 0.0, %v1022
        %v1024 = vpop.f32.mrb[0].mxu0
        %v1025 = vadd.f32 0.0, %v1024
        %1026 = vmatprep.mubr.bf16.mxu0 0
        %1027 = vmatmul.mubr.bf16.gmra.mrb[0].mxu0 %v851
        %v1028 = vpop.f32.mrb[0].mxu0
        %v1029 = vadd.f32 0.0, %v1028
        %v1030 = vpop.f32.mrb[0].mxu0
        %v1031 = vadd.f32 0.0, %v1030
        %v1032 = vpop.f32.mrb[0].mxu0
        %v1033 = vadd.f32 0.0, %v1032
        %v1034 = vpop.f32.mrb[0].mxu0
        %v1035 = vadd.f32 0.0, %v1034
        %1036 = vmatprep.mubr.bf16.mxu0 0
        %1037 = vmatmul.mubr.bf16.gmra.mrb[0].mxu0 %v852
        %v1038 = vpop.f32.mrb[0].mxu0
        %v1039 = vadd.f32 0.0, %v1038
        %v1040 = vpop.f32.mrb[0].mxu0
        %v1041 = vadd.f32 0.0, %v1040
        %v1042 = vpop.f32.mrb[0].mxu0
        %v1043 = vadd.f32 0.0, %v1042
        %v1044 = vpop.f32.mrb[0].mxu0
        %v1045 = vadd.f32 0.0, %v1044
        %1046 = vmatprep.mubr.bf16.mxu0 0
        %1047 = vmatmul.mubr.bf16.gmra.mrb[0].mxu0 %v853
        %v1048 = vpop.f32.mrb[0].mxu0
        %v1049 = vadd.f32 0.0, %v1048
        %v1050 = vpop.f32.mrb[0].mxu0
        %v1051 = vadd.f32 0.0, %v1050
        %v1052 = vpop.f32.mrb[0].mxu0
        %v1053 = vadd.f32 0.0, %v1052
        %v1054 = vpop.f32.mrb[0].mxu0
        %v1055 = vadd.f32 0.0, %v1054
        %1056 = vmatprep.mubr.bf16.mxu0 0
        %1057 = vmatmul.mubr.bf16.gmra.mrb[0].mxu0 %v854
        %v1058 = vpop.f32.mrb[0].mxu0
        %v1059 = vadd.f32 0.0, %v1058
        %v1060 = vpop.f32.mrb[0].mxu0
        %v1061 = vadd.f32 0.0, %v1060
        %v1062 = vpop.f32.mrb[0].mxu0
        %v1063 = vadd.f32 0.0, %v1062
        %v1064 = vpop.f32.mrb[0].mxu0
        %v1065 = vadd.f32 0.0, %v1064
        %1066 = vmatprep.mubr.bf16.mxu0 0
        %1067 = vmatmul.mubr.bf16.gmra.mrb[0].mxu0 %v855
        %v1068 = vpop.f32.mrb[0].mxu0
        %v1069 = vadd.f32 0.0, %v1068
        %v1070 = vpop.f32.mrb[0].mxu0
        %v1071 = vadd.f32 0.0, %v1070
        %v1072 = vpop.f32.mrb[0].mxu0
        %v1073 = vadd.f32 0.0, %v1072
        %v1074 = vpop.f32.mrb[0].mxu0
        %v1075 = vadd.f32 0.0, %v1074
        %1076 = vmatprep.mubr.bf16.mxu0 0
        %1077 = vmatmul.mubr.bf16.gmra.mrb[0].mxu0 %v856
        %v1078 = vpop.f32.mrb[0].mxu0
        %v1079 = vadd.f32 0.0, %v1078
        %v1080 = vpop.f32.mrb[0].mxu0
        %v1081 = vadd.f32 0.0, %v1080
        %v1082 = vpop.f32.mrb[0].mxu0
        %v1083 = vadd.f32 0.0, %v1082
        %v1084 = vpop.f32.mrb[0].mxu0
        %v1085 = vadd.f32 0.0, %v1084
        %1086 = vmatprep.mubr.bf16.mxu0 0
        %1087 = vmatmul.mubr.bf16.gmra.mrb[0].mxu0 %v857
        %v1088 = vpop.f32.mrb[0].mxu0
        %v1089 = vadd.f32 0.0, %v1088
        %v1090 = vpop.f32.mrb[0].mxu0
        %v1091 = vadd.f32 0.0, %v1090
        %v1092 = vpop.f32.mrb[0].mxu0
        %v1093 = vadd.f32 0.0, %v1092
        %v1094 = vpop.f32.mrb[0].mxu0
        %v1095 = vadd.f32 0.0, %v1094
        %1096 = vmatprep.mubr.bf16.mxu0 0
        %1097 = vmatmul.mubr.bf16.gmra.mrb[0].mxu0 %v858
        %v1098 = vpop.f32.mrb[0].mxu0
        %v1099 = vadd.f32 0.0, %v1098
        %v1100 = vpop.f32.mrb[0].mxu0
        %v1101 = vadd.f32 0.0, %v1100
        %v1102 = vpop.f32.mrb[0].mxu0
        %v1103 = vadd.f32 0.0, %v1102
        %v1104 = vpop.f32.mrb[0].mxu0
        %v1105 = vadd.f32 0.0, %v1104
        %1106 = vmatprep.mubr.bf16.mxu0 0
        %1107 = vmatmul.mubr.bf16.gmra.mrb[0].mxu0 %v859
        %v1108 = vpop.f32.mrb[0].mxu0
        %v1109 = vadd.f32 0.0, %v1108
        %v1110 = vpop.f32.mrb[0].mxu0
        %v1111 = vadd.f32 0.0, %v1110
        %v1112 = vpop.f32.mrb[0].mxu0
        %v1113 = vadd.f32 0.0, %v1112
        %v1114 = vpop.f32.mrb[0].mxu0
        %v1115 = vadd.f32 0.0, %v1114
        %1116 = vmatprep.mubr.bf16.mxu0 0
        %1117 = vmatmul.mubr.bf16.gmra.mrb[0].mxu0 %v860
        %v1118 = vpop.f32.mrb[0].mxu0
        %v1119 = vadd.f32 0.0, %v1118
        %v1120 = vpop.f32.mrb[0].mxu0
        %v1121 = vadd.f32 0.0, %v1120
        %v1122 = vpop.f32.mrb[0].mxu0
        %v1123 = vadd.f32 0.0, %v1122
        %v1124 = vpop.f32.mrb[0].mxu0
        %v1125 = vadd.f32 0.0, %v1124
        %1126 = vmatprep.mubr.bf16.mxu0 0
        %1127 = vmatmul.mubr.bf16.gmra.mrb[0].mxu0 %v861
        %v1128 = vpop.f32.mrb[0].mxu0
        %v1129 = vadd.f32 0.0, %v1128
        %v1130 = vpop.f32.mrb[0].mxu0
        %v1131 = vadd.f32 0.0, %v1130
        %v1132 = vpop.f32.mrb[0].mxu0
        %v1133 = vadd.f32 0.0, %v1132
        %v1134 = vpop.f32.mrb[0].mxu0
        %v1135 = vadd.f32 0.0, %v1134
        %1136 = vmatprep.mubr.bf16.mxu0 0
        %1137 = vmatmul.mubr.bf16.gmra.mrb[0].mxu0 %v862
        %v1138 = vpop.f32.mrb[0].mxu0
        %v1139 = vadd.f32 0.0, %v1138
        %v1140 = vpop.f32.mrb[0].mxu0
        %v1141 = vadd.f32 0.0, %v1140
        %v1142 = vpop.f32.mrb[0].mxu0
        %v1143 = vadd.f32 0.0, %v1142
        %v1144 = vpop.f32.mrb[0].mxu0
        %v1145 = vadd.f32 0.0, %v1144
        %1146 = vmatprep.mubr.bf16.mxu0 0
        %1147 = vmatmul.mubr.bf16.gmra.mrb[0].mxu0 %v863
        %v1148 = vpop.f32.mrb[0].mxu0
        %v1149 = vadd.f32 0.0, %v1148
        %v1150 = vpop.f32.mrb[0].mxu0
        %v1151 = vadd.f32 0.0, %v1150
        %v1152 = vpop.f32.mrb[0].mxu0
        %v1153 = vadd.f32 0.0, %v1152
        %v1154 = vpop.f32.mrb[0].mxu0
        %v1155 = vadd.f32 0.0, %v1154
        %1156 = vmatprep.mubr.bf16.mxu0 0
        %1157 = vmatmul.mubr.bf16.gmra.mrb[0].mxu0 %v864
        %v1158 = vpop.f32.mrb[0].mxu0
        %v1159 = vadd.f32 0.0, %v1158
        %v1160 = vpop.f32.mrb[0].mxu0
        %v1161 = vadd.f32 0.0, %v1160
        %v1162 = vpop.f32.mrb[0].mxu0
        %v1163 = vadd.f32 0.0, %v1162
        %v1164 = vpop.f32.mrb[0].mxu0
        %v1165 = vadd.f32 0.0, %v1164
        %1166 = vmatprep.mubr.bf16.mxu0 0
        %1167 = vmatmul.mubr.bf16.gmra.mrb[0].mxu0 %v865
        %v1168 = vpop.f32.mrb[0].mxu0
        %v1169 = vadd.f32 0.0, %v1168
        %v1170 = vpop.f32.mrb[0].mxu0
        %v1171 = vadd.f32 0.0, %v1170
        %v1172 = vpop.f32.mrb[0].mxu0
        %v1173 = vadd.f32 0.0, %v1172
        %v1174 = vpop.f32.mrb[0].mxu0
        %v1175 = vadd.f32 0.0, %v1174
        %1176 = vmatprep.mubr.bf16.mxu0 0
        %1177 = vmatmul.mubr.bf16.gmra.mrb[0].mxu0 %v866
        %v1178 = vpop.f32.mrb[0].mxu0
        %v1179 = vadd.f32 0.0, %v1178
        %v1180 = vpop.f32.mrb[0].mxu0
        %v1181 = vadd.f32 0.0, %v1180
        %v1182 = vpop.f32.mrb[0].mxu0
        %v1183 = vadd.f32 0.0, %v1182
        %v1184 = vpop.f32.mrb[0].mxu0
        %v1185 = vadd.f32 0.0, %v1184
        %1186 = vmatprep.mubr.bf16.mxu0 0
        %1187 = vmatmul.mubr.bf16.gmra.mrb[0].mxu0 %v867
        %v1188 = vpop.f32.mrb[0].mxu0
        %v1189 = vadd.f32 0.0, %v1188
        %v1190 = vpop.f32.mrb[0].mxu0
        %v1191 = vadd.f32 0.0, %v1190
        %v1192 = vpop.f32.mrb[0].mxu0
        %v1193 = vpop.f32.mrb[0].mxu0
        %1194 = vdwg.mxu0
        %v1195 = vpack.c.bf16 %v1003, %v999
        %v1196 = vpack.c.bf16 %v1005, %v1001
        %v1197 = vpack.c.bf16 %v1013, %v1009
        %v1198 = vpack.c.bf16 %v1015, %v1011
        %v1199 = vpack.c.bf16 %v1023, %v1019
        %v1200 = vpack.c.bf16 %v1025, %v1021
        %v1201 = vpack.c.bf16 %v1033, %v1029
        %v1202 = vpack.c.bf16 %v1035, %v1031
        %v1203 = vpack.c.bf16 %v1043, %v1039
        %v1204 = vpack.c.bf16 %v1045, %v1041
        %v1205 = vpack.c.bf16 %v1053, %v1049
        %v1206 = vpack.c.bf16 %v1055, %v1051
        %v1207 = vpack.c.bf16 %v1063, %v1059
        %v1208 = vpack.c.bf16 %v1065, %v1061
        %v1209 = vpack.c.bf16 %v1073, %v1069
        %v1210 = vpack.c.bf16 %v1075, %v1071
        %v1211 = vpack.c.bf16 %v1083, %v1079
        %v1212 = vpack.c.bf16 %v1085, %v1081
        %v1213 = vpack.c.bf16 %v1093, %v1089
        %v1214 = vpack.c.bf16 %v1095, %v1091
        %v1215 = vpack.c.bf16 %v1103, %v1099
        %v1216 = vpack.c.bf16 %v1105, %v1101
        %v1217 = vpack.c.bf16 %v1113, %v1109
        %v1218 = vpack.c.bf16 %v1115, %v1111
        %v1219 = vpack.c.bf16 %v1123, %v1119
        %v1220 = vpack.c.bf16 %v1125, %v1121
        %v1221 = vpack.c.bf16 %v1133, %v1129
        %v1222 = vpack.c.bf16 %v1135, %v1131
        %v1223 = vpack.c.bf16 %v1143, %v1139
        %v1224 = vpack.c.bf16 %v1145, %v1141
        %v1225 = vpack.c.bf16 %v1153, %v1149
        %v1226 = vpack.c.bf16 %v1155, %v1151
        %v1227 = vpack.c.bf16 %v1163, %v1159
        %v1228 = vpack.c.bf16 %v1165, %v1161
        %v1229 = vpack.c.bf16 %v1173, %v1169
        %v1230 = vpack.c.bf16 %v1175, %v1171
        %v1231 = vpack.c.bf16 %v1183, %v1179
        %v1232 = vpack.c.bf16 %v1185, %v1181
        %v1233 = vpack.c.bf16 %v1189, %v1189
        %v1234 = vpack.c.bf16 %v1191, %v1191
        %v1275 = vunpack.c.l.b16 %v1195
        %v1276 = vunpack.c.l.b16 %v1196
        %v1277 = vunpack.c.h.b16 %v1195
        %v1278 = vunpack.c.h.b16 %v1196
        %v1279 = vunpack.c.l.b16 %v1197
        %v1280 = vunpack.c.l.b16 %v1198
        %v1281 = vunpack.c.h.b16 %v1197
        %v1282 = vunpack.c.h.b16 %v1198
        %v1283 = vunpack.c.l.b16 %v1199
        %v1284 = vunpack.c.l.b16 %v1200
        %v1285 = vunpack.c.h.b16 %v1199
        %v1286 = vunpack.c.h.b16 %v1200
        %v1287 = vunpack.c.l.b16 %v1201
        %v1288 = vunpack.c.l.b16 %v1202
        %v1289 = vunpack.c.h.b16 %v1201
        %v1290 = vunpack.c.h.b16 %v1202
        %v1291 = vunpack.c.l.b16 %v1203
        %v1292 = vunpack.c.l.b16 %v1204
        %v1293 = vunpack.c.h.b16 %v1203
        %v1294 = vunpack.c.h.b16 %v1204
        %v1295 = vunpack.c.l.b16 %v1205
        %v1296 = vunpack.c.l.b16 %v1206
        %v1297 = vunpack.c.h.b16 %v1205
        %v1298 = vunpack.c.h.b16 %v1206
        %v1299 = vunpack.c.l.b16 %v1207
        %v1300 = vunpack.c.l.b16 %v1208
        %v1301 = vunpack.c.h.b16 %v1207
        %v1302 = vunpack.c.h.b16 %v1208
        %v1303 = vunpack.c.l.b16 %v1209
        %v1304 = vunpack.c.l.b16 %v1210
        %v1305 = vunpack.c.h.b16 %v1209
        %v1306 = vunpack.c.h.b16 %v1210
        %v1307 = vunpack.c.l.b16 %v1211
        %v1308 = vunpack.c.l.b16 %v1212
        %v1309 = vunpack.c.h.b16 %v1211
        %v1310 = vunpack.c.h.b16 %v1212
        %v1311 = vunpack.c.l.b16 %v1213
        %v1312 = vunpack.c.l.b16 %v1214
        %v1313 = vunpack.c.h.b16 %v1213
        %v1314 = vunpack.c.h.b16 %v1214
        %v1315 = vunpack.c.l.b16 %v1215
        %v1316 = vunpack.c.l.b16 %v1216
        %v1317 = vunpack.c.h.b16 %v1215
        %v1318 = vunpack.c.h.b16 %v1216
        %v1319 = vunpack.c.l.b16 %v1217
        %v1320 = vunpack.c.l.b16 %v1218
        %v1321 = vunpack.c.h.b16 %v1217
        %v1322 = vunpack.c.h.b16 %v1218
        %v1323 = vunpack.c.l.b16 %v1219
        %v1324 = vunpack.c.l.b16 %v1220
        %v1325 = vunpack.c.h.b16 %v1219
        %v1326 = vunpack.c.h.b16 %v1220
        %v1327 = vunpack.c.l.b16 %v1221
        %v1328 = vunpack.c.l.b16 %v1222
        %v1329 = vunpack.c.h.b16 %v1221
        %v1330 = vunpack.c.h.b16 %v1222
        %v1331 = vunpack.c.l.b16 %v1223
        %v1332 = vunpack.c.l.b16 %v1224
        %v1333 = vunpack.c.h.b16 %v1223
        %v1334 = vunpack.c.h.b16 %v1224
        %v1335 = vunpack.c.l.b16 %v1225
        %v1336 = vunpack.c.l.b16 %v1226
        %v1337 = vunpack.c.h.b16 %v1225
        %v1338 = vunpack.c.h.b16 %v1226
        %v1339 = vunpack.c.l.b16 %v1227
        %v1340 = vunpack.c.l.b16 %v1228
        %v1341 = vunpack.c.h.b16 %v1227
        %v1342 = vunpack.c.h.b16 %v1228
        %v1343 = vunpack.c.l.b16 %v1229
        %v1344 = vunpack.c.l.b16 %v1230
        %v1345 = vunpack.c.h.b16 %v1229
        %v1346 = vunpack.c.h.b16 %v1230
        %v1347 = vunpack.c.l.b16 %v1231
        %v1348 = vunpack.c.l.b16 %v1232
        %v1349 = vunpack.c.h.b16 %v1231
        %v1350 = vunpack.c.h.b16 %v1232
        %v1351 = vunpack.c.l.b16 %v1233
        %v1352 = vunpack.c.l.b16 %v1234
        %v1353 = vpack.c.b16 %v1276, %v1275
        %v1354 = vpack.c.b16 %v1278, %v1277
        %v1355 = vpack.c.b16 %v1280, %v1279
        %v1356 = vpack.c.b16 %v1282, %v1281
        %v1357 = vpack.c.b16 %v1284, %v1283
        %v1358 = vpack.c.b16 %v1286, %v1285
        %v1359 = vpack.c.b16 %v1288, %v1287
        %v1360 = vpack.c.b16 %v1290, %v1289
        %v1361 = vpack.c.b16 %v1292, %v1291
        %v1362 = vpack.c.b16 %v1294, %v1293
        %v1363 = vpack.c.b16 %v1296, %v1295
        %v1364 = vpack.c.b16 %v1298, %v1297
        %v1365 = vpack.c.b16 %v1300, %v1299
        %v1366 = vpack.c.b16 %v1302, %v1301
        %v1367 = vpack.c.b16 %v1304, %v1303
        %v1368 = vpack.c.b16 %v1306, %v1305
        %v1369 = vpack.c.b16 %v1308, %v1307
        %v1370 = vpack.c.b16 %v1310, %v1309
        %v1371 = vpack.c.b16 %v1312, %v1311
        %v1372 = vpack.c.b16 %v1314, %v1313
        %v1373 = vpack.c.b16 %v1316, %v1315
        %v1374 = vpack.c.b16 %v1318, %v1317
        %v1375 = vpack.c.b16 %v1320, %v1319
        %v1376 = vpack.c.b16 %v1322, %v1321
        %v1377 = vpack.c.b16 %v1324, %v1323
        %v1378 = vpack.c.b16 %v1326, %v1325
        %v1379 = vpack.c.b16 %v1328, %v1327
        %v1380 = vpack.c.b16 %v1330, %v1329
        %v1381 = vpack.c.b16 %v1332, %v1331
        %v1382 = vpack.c.b16 %v1334, %v1333
        %v1383 = vpack.c.b16 %v1336, %v1335
        %v1384 = vpack.c.b16 %v1338, %v1337
        %v1385 = vpack.c.b16 %v1340, %v1339
        %v1386 = vpack.c.b16 %v1342, %v1341
        %v1387 = vpack.c.b16 %v1344, %v1343
        %v1388 = vpack.c.b16 %v1346, %v1345
        %v1389 = vpack.c.b16 %v1348, %v1347
        %v1390 = vpack.c.b16 %v1350, %v1349
        %v1391 = vpack.c.b16 %v1352, %v1351
        %1431 = vst [vmem:[#allocation2] sm:$0xff] %v1353
        %1432 = vst [vmem:[#allocation2 + $0x8] sm:$0xff] %v1354
        %1433 = vst [vmem:[#allocation2 + $0x10] sm:$0xff] %v1355
        %1434 = vst [vmem:[#allocation2 + $0x18] sm:$0xff] %v1356
        %1435 = vst [vmem:[#allocation2 + $0x20] sm:$0xff] %v1357
        %1436 = vst [vmem:[#allocation2 + $0x28] sm:$0xff] %v1358
        %1437 = vst [vmem:[#allocation2 + $0x30] sm:$0xff] %v1359
        %1438 = vst [vmem:[#allocation2 + $0x38] sm:$0xff] %v1360
        %1439 = vst [vmem:[#allocation2 + $0x40] sm:$0xff] %v1361
        %1440 = vst [vmem:[#allocation2 + $0x48] sm:$0xff] %v1362
        %1441 = vst [vmem:[#allocation2 + $0x50] sm:$0xff] %v1363
        %1442 = vst [vmem:[#allocation2 + $0x58] sm:$0xff] %v1364
        %1443 = vst [vmem:[#allocation2 + $0x60] sm:$0xff] %v1365
        %1444 = vst [vmem:[#allocation2 + $0x68] sm:$0xff] %v1366
        %1445 = vst [vmem:[#allocation2 + $0x70] sm:$0xff] %v1367
        %1446 = vst [vmem:[#allocation2 + $0x78] sm:$0xff] %v1368
        %1447 = vst [vmem:[#allocation2 + $0x80] sm:$0xff] %v1369
        %1448 = vst [vmem:[#allocation2 + $0x88] sm:$0xff] %v1370
        %1449 = vst [vmem:[#allocation2 + $0x90] sm:$0xff] %v1371
        %1450 = vst [vmem:[#allocation2 + $0x98] sm:$0xff] %v1372
        %1451 = vst [vmem:[#allocation2 + $0xa0] sm:$0xff] %v1373
        %1452 = vst [vmem:[#allocation2 + $0xa8] sm:$0xff] %v1374
        %1453 = vst [vmem:[#allocation2 + $0xb0] sm:$0xff] %v1375
        %1454 = vst [vmem:[#allocation2 + $0xb8] sm:$0xff] %v1376
        %1455 = vst [vmem:[#allocation2 + $0xc0] sm:$0xff] %v1377
        %1456 = vst [vmem:[#allocation2 + $0xc8] sm:$0xff] %v1378
        %1457 = vst [vmem:[#allocation2 + $0xd0] sm:$0xff] %v1379
        %1458 = vst [vmem:[#allocation2 + $0xd8] sm:$0xff] %v1380
        %1459 = vst [vmem:[#allocation2 + $0xe0] sm:$0xff] %v1381
        %1460 = vst [vmem:[#allocation2 + $0xe8] sm:$0xff] %v1382
        %1461 = vst [vmem:[#allocation2 + $0xf0] sm:$0xff] %v1383
        %1462 = vst [vmem:[#allocation2 + $0xf8] sm:$0xff] %v1384
        %1463 = vst [vmem:[#allocation2 + $0x100] sm:$0xff] %v1385
        %1464 = vst [vmem:[#allocation2 + $0x108] sm:$0xff] %v1386
        %1465 = vst [vmem:[#allocation2 + $0x110] sm:$0xff] %v1387
        %1466 = vst [vmem:[#allocation2 + $0x118] sm:$0xff] %v1388
        %1467 = vst [vmem:[#allocation2 + $0x120] sm:$0xff] %v1389
        %1468 = vst [vmem:[#allocation2 + $0x128] sm:$0xff] %v1390
        %1469 = vst [vmem:[#allocation2 + $0x130] sm:$0xff] %v1391
        %v1470 = vld [vmem:[#allocation2] sm:$0xff]
        %v1471 = vld [vmem:[#allocation2 + $0x8] sm:$0xff]
        %v1472 = vld [vmem:[#allocation2 + $0x10] sm:$0xff]
        %v1473 = vld [vmem:[#allocation2 + $0x18] sm:$0xff]
        %v1474 = vld [vmem:[#allocation2 + $0x20] sm:$0xff]
        %v1475 = vld [vmem:[#allocation2 + $0x28] sm:$0xff]
        %v1476 = vld [vmem:[#allocation2 + $0x30] sm:$0xff]
        %v1477 = vld [vmem:[#allocation2 + $0x38] sm:$0xff]
        %v1478 = vld [vmem:[#allocation2 + $0x40] sm:$0xff]
        %v1479 = vld [vmem:[#allocation2 + $0x48] sm:$0xff]
        %v1480 = vld [vmem:[#allocation2 + $0x50] sm:$0xff]
        %v1481 = vld [vmem:[#allocation2 + $0x58] sm:$0xff]
        %v1482 = vld [vmem:[#allocation2 + $0x60] sm:$0xff]
        %v1483 = vld [vmem:[#allocation2 + $0x68] sm:$0xff]
        %v1484 = vld [vmem:[#allocation2 + $0x70] sm:$0xff]
        %v1485 = vld [vmem:[#allocation2 + $0x78] sm:$0xff]
        %v1486 = vld [vmem:[#allocation2 + $0x80] sm:$0xff]
        %v1487 = vld [vmem:[#allocation2 + $0x88] sm:$0xff]
        %v1488 = vld [vmem:[#allocation2 + $0x90] sm:$0xff]
        %v1489 = vld [vmem:[#allocation2 + $0x98] sm:$0xff]
        %v1490 = vld [vmem:[#allocation2 + $0xa0] sm:$0xff]
        %v1491 = vld [vmem:[#allocation2 + $0xa8] sm:$0xff]
        %v1492 = vld [vmem:[#allocation2 + $0xb0] sm:$0xff]
        %v1493 = vld [vmem:[#allocation2 + $0xb8] sm:$0xff]
        %v1494 = vld [vmem:[#allocation2 + $0xc0] sm:$0xff]
        %v1495 = vld [vmem:[#allocation2 + $0xc8] sm:$0xff]
        %v1496 = vld [vmem:[#allocation2 + $0xd0] sm:$0xff]
        %v1497 = vld [vmem:[#allocation2 + $0xd8] sm:$0xff]
        %v1498 = vld [vmem:[#allocation2 + $0xe0] sm:$0xff]
        %v1499 = vld [vmem:[#allocation2 + $0xe8] sm:$0xff]
        %v1500 = vld [vmem:[#allocation12] sm:$0xff]
        %v1501 = vld [vmem:[#allocation12 + $0x8] sm:$0xff]
        %v1502 = vld [vmem:[#allocation12 + $0x10] sm:$0xff]
        %v1503 = vld [vmem:[#allocation12 + $0x18] sm:$0xff]
        %v1504 = vld [vmem:[#allocation12 + $0x20] sm:$0xff]
        %v1505 = vld [vmem:[#allocation12 + $0x28] sm:$0xff]
        %v1506 = vld [vmem:[#allocation12 + $0x30] sm:$0xff]
        %v1507 = vld [vmem:[#allocation12 + $0x38] sm:$0xff]
        %v1508 = vld [vmem:[#allocation12 + $0x40] sm:$0xff]
        %v1509 = vld [vmem:[#allocation12 + $0x48] sm:$0xff]
        %v1510 = vld [vmem:[#allocation12 + $0x50] sm:$0xff]
        %v1511 = vld [vmem:[#allocation12 + $0x58] sm:$0xff]
        %v1512 = vld [vmem:[#allocation12 + $0x60] sm:$0xff]
        %v1513 = vld [vmem:[#allocation12 + $0x68] sm:$0xff]
        %v1514 = vld [vmem:[#allocation12 + $0x70] sm:$0xff]
        %v1515 = vld [vmem:[#allocation12 + $0x78] sm:$0xff]
        %v1516 = vld [vmem:[#allocation12 + $0x80] sm:$0xff]
        %v1517 = vld [vmem:[#allocation12 + $0x88] sm:$0xff]
        %v1518 = vld [vmem:[#allocation12 + $0x90] sm:$0xff]
        %v1519 = vld [vmem:[#allocation12 + $0x98] sm:$0xff]
        %v1520 = vld [vmem:[#allocation12 + $0xa0] sm:$0xff]
        %v1521 = vld [vmem:[#allocation12 + $0xa8] sm:$0xff]
        %v1522 = vld [vmem:[#allocation12 + $0xb0] sm:$0xff]
        %v1523 = vld [vmem:[#allocation12 + $0xb8] sm:$0xff]
        %v1524 = vld [vmem:[#allocation12 + $0xc0] sm:$0xff]
        %v1525 = vld [vmem:[#allocation12 + $0xc8] sm:$0xff]
        %v1526 = vld [vmem:[#allocation12 + $0xd0] sm:$0xff]
        %v1527 = vld [vmem:[#allocation12 + $0xd8] sm:$0xff]
        %v1528 = vld [vmem:[#allocation12 + $0xe0] sm:$0xff]
        %v1529 = vld [vmem:[#allocation12 + $0xe8] sm:$0xff]
        %v1530 = vld [vmem:[#allocation12 + $0xf0] sm:$0xff]
        %v1531 = vld [vmem:[#allocation12 + $0xf8] sm:$0xff]
        %v1562 = vunpack.c.l.b16 %v1470
        %v1563 = vunpack.c.h.b16 %v1470
        %v1564 = vunpack.c.l.b16 %v1471
        %v1565 = vunpack.c.h.b16 %v1471
        %v1566 = vunpack.c.l.b16 %v1472
        %v1567 = vunpack.c.h.b16 %v1472
        %v1568 = vunpack.c.l.b16 %v1473
        %v1569 = vunpack.c.h.b16 %v1473
        %v1570 = vunpack.c.l.b16 %v1474
        %v1571 = vunpack.c.h.b16 %v1474
        %v1572 = vunpack.c.l.b16 %v1475
        %v1573 = vunpack.c.h.b16 %v1475
        %v1574 = vunpack.c.l.b16 %v1476
        %v1575 = vunpack.c.h.b16 %v1476
        %v1576 = vunpack.c.l.b16 %v1477
        %v1577 = vunpack.c.h.b16 %v1477
        %v1578 = vunpack.c.l.b16 %v1478
        %v1579 = vunpack.c.h.b16 %v1478
        %v1580 = vunpack.c.l.b16 %v1479
        %v1581 = vunpack.c.h.b16 %v1479
        %v1582 = vunpack.c.l.b16 %v1480
        %v1583 = vunpack.c.h.b16 %v1480
        %v1584 = vunpack.c.l.b16 %v1481
        %v1585 = vunpack.c.h.b16 %v1481
        %v1586 = vunpack.c.l.b16 %v1482
        %v1587 = vunpack.c.h.b16 %v1482
        %v1588 = vunpack.c.l.b16 %v1483
        %v1589 = vunpack.c.h.b16 %v1483
        %v1590 = vunpack.c.l.b16 %v1484
        %v1591 = vunpack.c.h.b16 %v1484
        %v1592 = vunpack.c.l.b16 %v1485
        %v1593 = vunpack.c.h.b16 %v1485
        %v1594 = vunpack.c.l.b16 %v1486
        %v1595 = vunpack.c.h.b16 %v1486
        %v1596 = vunpack.c.l.b16 %v1487
        %v1597 = vunpack.c.h.b16 %v1487
        %v1598 = vunpack.c.l.b16 %v1488
        %v1599 = vunpack.c.h.b16 %v1488
        %v1600 = vunpack.c.l.b16 %v1489
        %v1601 = vunpack.c.h.b16 %v1489
        %v1602 = vunpack.c.l.b16 %v1490
        %v1603 = vunpack.c.h.b16 %v1490
        %v1604 = vunpack.c.l.b16 %v1491
        %v1605 = vunpack.c.h.b16 %v1491
        %v1606 = vunpack.c.l.b16 %v1492
        %v1607 = vunpack.c.h.b16 %v1492
        %v1608 = vunpack.c.l.b16 %v1493
        %v1609 = vunpack.c.h.b16 %v1493
        %v1610 = vunpack.c.l.b16 %v1494
        %v1611 = vunpack.c.h.b16 %v1494
        %v1612 = vunpack.c.l.b16 %v1495
        %v1613 = vunpack.c.h.b16 %v1495
        %v1614 = vunpack.c.l.b16 %v1496
        %v1615 = vunpack.c.h.b16 %v1496
        %v1616 = vunpack.c.l.b16 %v1497
        %v1617 = vunpack.c.h.b16 %v1497
        %v1618 = vunpack.c.l.b16 %v1498
        %v1619 = vunpack.c.h.b16 %v1498
        %v1620 = vunpack.c.l.b16 %v1499
        %v1621 = vunpack.c.h.b16 %v1499
        %v1622 = vpack.c.b16 %v1564, %v1562
        %v1623 = vpack.c.b16 %v1565, %v1563
        %v1624 = vpack.c.b16 %v1568, %v1566
        %v1625 = vpack.c.b16 %v1569, %v1567
        %v1626 = vpack.c.b16 %v1572, %v1570
        %v1627 = vpack.c.b16 %v1573, %v1571
        %v1628 = vpack.c.b16 %v1576, %v1574
        %v1629 = vpack.c.b16 %v1577, %v1575
        %v1630 = vpack.c.b16 %v1580, %v1578
        %v1631 = vpack.c.b16 %v1581, %v1579
        %v1632 = vpack.c.b16 %v1584, %v1582
        %v1633 = vpack.c.b16 %v1585, %v1583
        %v1634 = vpack.c.b16 %v1588, %v1586
        %v1635 = vpack.c.b16 %v1589, %v1587
        %v1636 = vpack.c.b16 %v1592, %v1590
        %v1637 = vpack.c.b16 %v1593, %v1591
        %v1638 = vpack.c.b16 %v1596, %v1594
        %v1639 = vpack.c.b16 %v1597, %v1595
        %v1640 = vpack.c.b16 %v1600, %v1598
        %v1641 = vpack.c.b16 %v1601, %v1599
        %v1642 = vpack.c.b16 %v1604, %v1602
        %v1643 = vpack.c.b16 %v1605, %v1603
        %v1644 = vpack.c.b16 %v1608, %v1606
        %v1645 = vpack.c.b16 %v1609, %v1607
        %v1646 = vpack.c.b16 %v1612, %v1610
        %v1647 = vpack.c.b16 %v1613, %v1611
        %v1648 = vpack.c.b16 %v1616, %v1614
        %v1649 = vpack.c.b16 %v1617, %v1615
        %v1650 = vpack.c.b16 %v1620, %v1618
        %v1651 = vpack.c.b16 %v1621, %v1619
        %v1714 = vunpack.c.l.b16 %v1500
        %v1715 = vunpack.c.h.b16 %v1500
        %v1716 = vunpack.c.l.b16 %v1501
        %v1717 = vunpack.c.h.b16 %v1501
        %v1718 = vunpack.c.l.b16 %v1502
        %v1719 = vunpack.c.h.b16 %v1502
        %v1720 = vunpack.c.l.b16 %v1503
        %v1721 = vunpack.c.h.b16 %v1503
        %v1722 = vunpack.c.l.b16 %v1504
        %v1723 = vunpack.c.h.b16 %v1504
        %v1724 = vunpack.c.l.b16 %v1505
        %v1725 = vunpack.c.h.b16 %v1505
        %v1726 = vunpack.c.l.b16 %v1506
        %v1727 = vunpack.c.h.b16 %v1506
        %v1728 = vunpack.c.l.b16 %v1507
        %v1729 = vunpack.c.h.b16 %v1507
        %v1730 = vunpack.c.l.b16 %v1508
        %v1731 = vunpack.c.h.b16 %v1508
        %v1732 = vunpack.c.l.b16 %v1509
        %v1733 = vunpack.c.h.b16 %v1509
        %v1734 = vunpack.c.l.b16 %v1510
        %v1735 = vunpack.c.h.b16 %v1510
        %v1736 = vunpack.c.l.b16 %v1511
        %v1737 = vunpack.c.h.b16 %v1511
        %v1738 = vunpack.c.l.b16 %v1512
        %v1739 = vunpack.c.h.b16 %v1512
        %v1740 = vunpack.c.l.b16 %v1513
        %v1741 = vunpack.c.h.b16 %v1513
        %v1742 = vunpack.c.l.b16 %v1514
        %v1743 = vunpack.c.h.b16 %v1514
        %v1744 = vunpack.c.l.b16 %v1515
        %v1745 = vunpack.c.h.b16 %v1515
        %v1746 = vunpack.c.l.b16 %v1516
        %v1747 = vunpack.c.h.b16 %v1516
        %v1748 = vunpack.c.l.b16 %v1517
        %v1749 = vunpack.c.h.b16 %v1517
        %v1750 = vunpack.c.l.b16 %v1518
        %v1751 = vunpack.c.h.b16 %v1518
        %v1752 = vunpack.c.l.b16 %v1519
        %v1753 = vunpack.c.h.b16 %v1519
        %v1754 = vunpack.c.l.b16 %v1520
        %v1755 = vunpack.c.h.b16 %v1520
        %v1756 = vunpack.c.l.b16 %v1521
        %v1757 = vunpack.c.h.b16 %v1521
        %v1758 = vunpack.c.l.b16 %v1522
        %v1759 = vunpack.c.h.b16 %v1522
        %v1760 = vunpack.c.l.b16 %v1523
        %v1761 = vunpack.c.h.b16 %v1523
        %v1762 = vunpack.c.l.b16 %v1524
        %v1763 = vunpack.c.h.b16 %v1524
        %v1764 = vunpack.c.l.b16 %v1525
        %v1765 = vunpack.c.h.b16 %v1525
        %v1766 = vunpack.c.l.b16 %v1526
        %v1767 = vunpack.c.h.b16 %v1526
        %v1768 = vunpack.c.l.b16 %v1527
        %v1769 = vunpack.c.h.b16 %v1527
        %v1770 = vunpack.c.l.b16 %v1528
        %v1771 = vunpack.c.h.b16 %v1528
        %v1772 = vunpack.c.l.b16 %v1529
        %v1773 = vunpack.c.h.b16 %v1529
        %v1774 = vunpack.c.l.b16 %v1530
        %v1775 = vunpack.c.h.b16 %v1530
        %v1776 = vunpack.c.l.b16 %v1531
        %v1777 = vunpack.c.h.b16 %v1531
        %v1778 = vpack.c.b16 %v1716, %v1714
        %v1779 = vpack.c.b16 %v1717, %v1715
        %v1780 = vpack.c.b16 %v1720, %v1718
        %v1781 = vpack.c.b16 %v1721, %v1719
        %v1782 = vpack.c.b16 %v1724, %v1722
        %v1783 = vpack.c.b16 %v1725, %v1723
        %v1784 = vpack.c.b16 %v1728, %v1726
        %v1785 = vpack.c.b16 %v1729, %v1727
        %v1786 = vpack.c.b16 %v1732, %v1730
        %v1787 = vpack.c.b16 %v1733, %v1731
        %v1788 = vpack.c.b16 %v1736, %v1734
        %v1789 = vpack.c.b16 %v1737, %v1735
        %v1790 = vpack.c.b16 %v1740, %v1738
        %v1791 = vpack.c.b16 %v1741, %v1739
        %v1792 = vpack.c.b16 %v1744, %v1742
        %v1793 = vpack.c.b16 %v1745, %v1743
        %v1794 = vpack.c.b16 %v1748, %v1746
        %v1795 = vpack.c.b16 %v1749, %v1747
        %v1796 = vpack.c.b16 %v1752, %v1750
        %v1797 = vpack.c.b16 %v1753, %v1751
        %v1798 = vpack.c.b16 %v1756, %v1754
        %v1799 = vpack.c.b16 %v1757, %v1755
        %v1800 = vpack.c.b16 %v1760, %v1758
        %v1801 = vpack.c.b16 %v1761, %v1759
        %v1802 = vpack.c.b16 %v1764, %v1762
        %v1803 = vpack.c.b16 %v1765, %v1763
        %v1804 = vpack.c.b16 %v1768, %v1766
        %v1805 = vpack.c.b16 %v1769, %v1767
        %v1806 = vpack.c.b16 %v1772, %v1770
        %v1807 = vpack.c.b16 %v1773, %v1771
        %v1808 = vpack.c.b16 %v1776, %v1774
        %v1809 = vpack.c.b16 %v1777, %v1775
        %1842 = vmatprep.subr.bf16.mxu0 %v1779
        %1843 = vmatpush1.bf16.msra.mxu0 %v1778
        %1844 = vmatprep.subr.bf16.mxu0 %v1781
        %1845 = vmatpush1.bf16.msra.mxu0 %v1780
        %1846 = vmatprep.subr.bf16.mxu0 %v1783
        %1847 = vmatpush1.bf16.msra.mxu0 %v1782
        %1848 = vmatprep.subr.bf16.mxu0 %v1785
        %1849 = vmatpush1.bf16.msra.mxu0 %v1784
        %1850 = vmatprep.subr.bf16.mxu0 %v1787
        %1851 = vmatpush1.bf16.msra.mxu0 %v1786
        %1852 = vmatprep.subr.bf16.mxu0 %v1789
        %1853 = vmatpush1.bf16.msra.mxu0 %v1788
        %1854 = vmatprep.subr.bf16.mxu0 %v1791
        %1855 = vmatpush1.bf16.msra.mxu0 %v1790
        %1856 = vmatprep.subr.bf16.mxu0 %v1793
        %1857 = vmatpush1.bf16.msra.mxu0 %v1792
        %1858 = vmatprep.subr.bf16.mxu0 %v1795
        %1859 = vmatpush1.bf16.msra.mxu0 %v1794
        %1860 = vmatprep.subr.bf16.mxu0 %v1797
        %1861 = vmatpush1.bf16.msra.mxu0 %v1796
        %1862 = vmatprep.subr.bf16.mxu0 %v1799
        %1863 = vmatpush1.bf16.msra.mxu0 %v1798
        %1864 = vmatprep.subr.bf16.mxu0 %v1801
        %1865 = vmatpush1.bf16.msra.mxu0 %v1800
        %1866 = vmatprep.subr.bf16.mxu0 %v1803
        %1867 = vmatpush1.bf16.msra.mxu0 %v1802
        %1868 = vmatprep.subr.bf16.mxu0 %v1805
        %1869 = vmatpush1.bf16.msra.mxu0 %v1804
        %1870 = vmatprep.subr.bf16.mxu0 %v1807
        %1871 = vmatpush1.bf16.msra.mxu0 %v1806
        %1872 = vmatprep.subr.bf16.mxu0 %v1809
        %1873 = vmatpush1.bf16.msra.mxu0 %v1808
        %1874 = vmatprep.mubr.bf16.mxu0 %v1623
        %1875 = vmatmul.mubr.bf16.gmra.mrb[0].mxu0 %v1622
        %v1876 = vpop.f32.mrb[0].mxu0
        %v1877 = vadd.f32 0.0, %v1876
        %v1878 = vpop.f32.mrb[0].mxu0
        %v1879 = vadd.f32 0.0, %v1878
        %v1880 = vpop.f32.mrb[0].mxu0
        %v1881 = vadd.f32 0.0, %v1880
        %v1882 = vpop.f32.mrb[0].mxu0
        %v1883 = vadd.f32 0.0, %v1882
        %1884 = vmatprep.mubr.bf16.mxu0 %v1625
        %1885 = vmatmul.mubr.bf16.gmra.mrb[0].mxu0 %v1624
        %v1886 = vpop.f32.mrb[0].mxu0
        %v1887 = vadd.f32 0.0, %v1886
        %v1888 = vpop.f32.mrb[0].mxu0
        %v1889 = vadd.f32 0.0, %v1888
        %v1890 = vpop.f32.mrb[0].mxu0
        %v1891 = vadd.f32 0.0, %v1890
        %v1892 = vpop.f32.mrb[0].mxu0
        %v1893 = vadd.f32 0.0, %v1892
        %1894 = vmatprep.mubr.bf16.mxu0 %v1627
        %1895 = vmatmul.mubr.bf16.gmra.mrb[0].mxu0 %v1626
        %v1896 = vpop.f32.mrb[0].mxu0
        %v1897 = vadd.f32 0.0, %v1896
        %v1898 = vpop.f32.mrb[0].mxu0
        %v1899 = vadd.f32 0.0, %v1898
        %v1900 = vpop.f32.mrb[0].mxu0
        %v1901 = vadd.f32 0.0, %v1900
        %v1902 = vpop.f32.mrb[0].mxu0
        %v1903 = vadd.f32 0.0, %v1902
        %1904 = vmatprep.mubr.bf16.mxu0 %v1629
        %1905 = vmatmul.mubr.bf16.gmra.mrb[0].mxu0 %v1628
        %v1906 = vpop.f32.mrb[0].mxu0
        %v1907 = vadd.f32 0.0, %v1906
        %v1908 = vpop.f32.mrb[0].mxu0
        %v1909 = vadd.f32 0.0, %v1908
        %v1910 = vpop.f32.mrb[0].mxu0
        %v1911 = vadd.f32 0.0, %v1910
        %v1912 = vpop.f32.mrb[0].mxu0
        %v1913 = vadd.f32 0.0, %v1912
        %1914 = vmatprep.mubr.bf16.mxu0 %v1631
        %1915 = vmatmul.mubr.bf16.gmra.mrb[0].mxu0 %v1630
        %v1916 = vpop.f32.mrb[0].mxu0
        %v1917 = vadd.f32 0.0, %v1916
        %v1918 = vpop.f32.mrb[0].mxu0
        %v1919 = vadd.f32 0.0, %v1918
        %v1920 = vpop.f32.mrb[0].mxu0
        %v1921 = vadd.f32 0.0, %v1920
        %v1922 = vpop.f32.mrb[0].mxu0
        %v1923 = vadd.f32 0.0, %v1922
        %1924 = vmatprep.mubr.bf16.mxu0 %v1633
        %1925 = vmatmul.mubr.bf16.gmra.mrb[0].mxu0 %v1632
        %v1926 = vpop.f32.mrb[0].mxu0
        %v1927 = vadd.f32 0.0, %v1926
        %v1928 = vpop.f32.mrb[0].mxu0
        %v1929 = vadd.f32 0.0, %v1928
        %v1930 = vpop.f32.mrb[0].mxu0
        %v1931 = vadd.f32 0.0, %v1930
        %v1932 = vpop.f32.mrb[0].mxu0
        %v1933 = vadd.f32 0.0, %v1932
        %1934 = vmatprep.mubr.bf16.mxu0 %v1635
        %1935 = vmatmul.mubr.bf16.gmra.mrb[0].mxu0 %v1634
        %v1936 = vpop.f32.mrb[0].mxu0
        %v1937 = vadd.f32 0.0, %v1936
        %v1938 = vpop.f32.mrb[0].mxu0
        %v1939 = vadd.f32 0.0, %v1938
        %v1940 = vpop.f32.mrb[0].mxu0
        %v1941 = vadd.f32 0.0, %v1940
        %v1942 = vpop.f32.mrb[0].mxu0
        %v1943 = vadd.f32 0.0, %v1942
        %1944 = vmatprep.mubr.bf16.mxu0 %v1637
        %1945 = vmatmul.mubr.bf16.gmra.mrb[0].mxu0 %v1636
        %v1946 = vpop.f32.mrb[0].mxu0
        %v1947 = vadd.f32 0.0, %v1946
        %v1948 = vpop.f32.mrb[0].mxu0
        %v1949 = vadd.f32 0.0, %v1948
        %v1950 = vpop.f32.mrb[0].mxu0
        %v1951 = vadd.f32 0.0, %v1950
        %v1952 = vpop.f32.mrb[0].mxu0
        %v1953 = vadd.f32 0.0, %v1952
        %1954 = vmatprep.mubr.bf16.mxu0 %v1639
        %1955 = vmatmul.mubr.bf16.gmra.mrb[0].mxu0 %v1638
        %v1956 = vpop.f32.mrb[0].mxu0
        %v1957 = vadd.f32 0.0, %v1956
        %v1958 = vpop.f32.mrb[0].mxu0
        %v1959 = vadd.f32 0.0, %v1958
        %v1960 = vpop.f32.mrb[0].mxu0
        %v1961 = vadd.f32 0.0, %v1960
        %v1962 = vpop.f32.mrb[0].mxu0
        %v1963 = vadd.f32 0.0, %v1962
        %1964 = vmatprep.mubr.bf16.mxu0 %v1641
        %1965 = vmatmul.mubr.bf16.gmra.mrb[0].mxu0 %v1640
        %v1966 = vpop.f32.mrb[0].mxu0
        %v1967 = vadd.f32 0.0, %v1966
        %v1968 = vpop.f32.mrb[0].mxu0
        %v1969 = vadd.f32 0.0, %v1968
        %v1970 = vpop.f32.mrb[0].mxu0
        %v1971 = vadd.f32 0.0, %v1970
        %v1972 = vpop.f32.mrb[0].mxu0
        %v1973 = vadd.f32 0.0, %v1972
        %1974 = vmatprep.mubr.bf16.mxu0 %v1643
        %1975 = vmatmul.mubr.bf16.gmra.mrb[0].mxu0 %v1642
        %v1976 = vpop.f32.mrb[0].mxu0
        %v1977 = vadd.f32 0.0, %v1976
        %v1978 = vpop.f32.mrb[0].mxu0
        %v1979 = vadd.f32 0.0, %v1978
        %v1980 = vpop.f32.mrb[0].mxu0
        %v1981 = vadd.f32 0.0, %v1980
        %v1982 = vpop.f32.mrb[0].mxu0
        %v1983 = vadd.f32 0.0, %v1982
        %1984 = vmatprep.mubr.bf16.mxu0 %v1645
        %1985 = vmatmul.mubr.bf16.gmra.mrb[0].mxu0 %v1644
        %v1986 = vpop.f32.mrb[0].mxu0
        %v1987 = vadd.f32 0.0, %v1986
        %v1988 = vpop.f32.mrb[0].mxu0
        %v1989 = vadd.f32 0.0, %v1988
        %v1990 = vpop.f32.mrb[0].mxu0
        %v1991 = vadd.f32 0.0, %v1990
        %v1992 = vpop.f32.mrb[0].mxu0
        %v1993 = vadd.f32 0.0, %v1992
        %1994 = vmatprep.mubr.bf16.mxu0 %v1647
        %1995 = vmatmul.mubr.bf16.gmra.mrb[0].mxu0 %v1646
        %v1996 = vpop.f32.mrb[0].mxu0
        %v1997 = vadd.f32 0.0, %v1996
        %v1998 = vpop.f32.mrb[0].mxu0
        %v1999 = vadd.f32 0.0, %v1998
        %v2000 = vpop.f32.mrb[0].mxu0
        %v2001 = vadd.f32 0.0, %v2000
        %v2002 = vpop.f32.mrb[0].mxu0
        %v2003 = vadd.f32 0.0, %v2002
        %2004 = vmatprep.mubr.bf16.mxu0 %v1649
        %2005 = vmatmul.mubr.bf16.gmra.mrb[0].mxu0 %v1648
        %v2006 = vpop.f32.mrb[0].mxu0
        %v2007 = vadd.f32 0.0, %v2006
        %v2008 = vpop.f32.mrb[0].mxu0
        %v2009 = vadd.f32 0.0, %v2008
        %v2010 = vpop.f32.mrb[0].mxu0
        %v2011 = vadd.f32 0.0, %v2010
        %v2012 = vpop.f32.mrb[0].mxu0
        %v2013 = vadd.f32 0.0, %v2012
        %2014 = vmatprep.mubr.bf16.mxu0 %v1651
        %2015 = vmatmul.mubr.bf16.gmra.mrb[0].mxu0 %v1650
        %v2016 = vpop.f32.mrb[0].mxu0
        %v2017 = vadd.f32 0.0, %v2016
        %v2018 = vpop.f32.mrb[0].mxu0
        %v2019 = vadd.f32 0.0, %v2018
        %v2020 = vpop.f32.mrb[0].mxu0
        %v2021 = vadd.f32 0.0, %v2020
        %v2022 = vpop.f32.mrb[0].mxu0
        %v2023 = vadd.f32 0.0, %v2022
        %2024 = vdwg.mxu0
        %2025 = vst [vmem:[#allocation3] sm:$0xff] %v1877
        %2026 = vst [vmem:[#allocation3 + $0x8] sm:$0xff] %v1879
        %2027 = vst [vmem:[#allocation3 + $0x10] sm:$0xff] %v1881
        %2028 = vst [vmem:[#allocation3 + $0x18] sm:$0xff] %v1883
        %2029 = vst [vmem:[#allocation3 + $0x20] sm:$0xff] %v1887
        %2030 = vst [vmem:[#allocation3 + $0x28] sm:$0xff] %v1889
        %2031 = vst [vmem:[#allocation3 + $0x30] sm:$0xff] %v1891
        %2032 = vst [vmem:[#allocation3 + $0x38] sm:$0xff] %v1893
        %2033 = vst [vmem:[#allocation3 + $0x40] sm:$0xff] %v1897
        %2034 = vst [vmem:[#allocation3 + $0x48] sm:$0xff] %v1899
        %2035 = vst [vmem:[#allocation3 + $0x50] sm:$0xff] %v1901
        %2036 = vst [vmem:[#allocation3 + $0x58] sm:$0xff] %v1903
        %2037 = vst [vmem:[#allocation3 + $0x60] sm:$0xff] %v1907
        %2038 = vst [vmem:[#allocation3 + $0x68] sm:$0xff] %v1909
        %2039 = vst [vmem:[#allocation3 + $0x70] sm:$0xff] %v1911
        %2040 = vst [vmem:[#allocation3 + $0x78] sm:$0xff] %v1913
        %2041 = vst [vmem:[#allocation3 + $0x80] sm:$0xff] %v1917
        %2042 = vst [vmem:[#allocation3 + $0x88] sm:$0xff] %v1919
        %2043 = vst [vmem:[#allocation3 + $0x90] sm:$0xff] %v1921
        %2044 = vst [vmem:[#allocation3 + $0x98] sm:$0xff] %v1923
        %2045 = vst [vmem:[#allocation3 + $0xa0] sm:$0xff] %v1927
        %2046 = vst [vmem:[#allocation3 + $0xa8] sm:$0xff] %v1929
        %2047 = vst [vmem:[#allocation3 + $0xb0] sm:$0xff] %v1931
        %2048 = vst [vmem:[#allocation3 + $0xb8] sm:$0xff] %v1933
        %2049 = vst [vmem:[#allocation3 + $0xc0] sm:$0xff] %v1937
        %2050 = vst [vmem:[#allocation3 + $0xc8] sm:$0xff] %v1939
        %2051 = vst [vmem:[#allocation3 + $0xd0] sm:$0xff] %v1941
        %2052 = vst [vmem:[#allocation3 + $0xd8] sm:$0xff] %v1943
        %2053 = vst [vmem:[#allocation3 + $0xe0] sm:$0xff] %v1947
        %2054 = vst [vmem:[#allocation3 + $0xe8] sm:$0xff] %v1949
        %2055 = vst [vmem:[#allocation3 + $0xf0] sm:$0xff] %v1951
        %2056 = vst [vmem:[#allocation3 + $0xf8] sm:$0xff] %v1953
        %2057 = vst [vmem:[#allocation3 + $0x100] sm:$0xff] %v1957
        %2058 = vst [vmem:[#allocation3 + $0x108] sm:$0xff] %v1959
        %2059 = vst [vmem:[#allocation3 + $0x110] sm:$0xff] %v1961
        %2060 = vst [vmem:[#allocation3 + $0x118] sm:$0xff] %v1963
        %2061 = vst [vmem:[#allocation3 + $0x120] sm:$0xff] %v1967
        %2062 = vst [vmem:[#allocation3 + $0x128] sm:$0xff] %v1969
        %2063 = vst [vmem:[#allocation3 + $0x130] sm:$0xff] %v1971
        %2064 = vst [vmem:[#allocation3 + $0x138] sm:$0xff] %v1973
        %2065 = vst [vmem:[#allocation3 + $0x140] sm:$0xff] %v1977
        %2066 = vst [vmem:[#allocation3 + $0x148] sm:$0xff] %v1979
        %2067 = vst [vmem:[#allocation3 + $0x150] sm:$0xff] %v1981
        %2068 = vst [vmem:[#allocation3 + $0x158] sm:$0xff] %v1983
        %2069 = vst [vmem:[#allocation3 + $0x160] sm:$0xff] %v1987
        %2070 = vst [vmem:[#allocation3 + $0x168] sm:$0xff] %v1989
        %2071 = vst [vmem:[#allocation3 + $0x170] sm:$0xff] %v1991
        %2072 = vst [vmem:[#allocation3 + $0x178] sm:$0xff] %v1993
        %2073 = vst [vmem:[#allocation3 + $0x180] sm:$0xff] %v1997
        %2074 = vst [vmem:[#allocation3 + $0x188] sm:$0xff] %v1999
        %2075 = vst [vmem:[#allocation3 + $0x190] sm:$0xff] %v2001
        %2076 = vst [vmem:[#allocation3 + $0x198] sm:$0xff] %v2003
        %2077 = vst [vmem:[#allocation3 + $0x1a0] sm:$0xff] %v2007
        %2078 = vst [vmem:[#allocation3 + $0x1a8] sm:$0xff] %v2009
        %2079 = vst [vmem:[#allocation3 + $0x1b0] sm:$0xff] %v2011
        %2080 = vst [vmem:[#allocation3 + $0x1b8] sm:$0xff] %v2013
        %2081 = vst [vmem:[#allocation3 + $0x1c0] sm:$0xff] %v2017
        %2082 = vst [vmem:[#allocation3 + $0x1c8] sm:$0xff] %v2019
        %2083 = vst [vmem:[#allocation3 + $0x1d0] sm:$0xff] %v2021
        %2084 = vst [vmem:[#allocation3 + $0x1d8] sm:$0xff] %v2023
        %v2085 = vld [vmem:[#allocation2] sm:$0xff]
        %v2086 = vld [vmem:[#allocation2 + $0x8] sm:$0xff]
        %v2087 = vld [vmem:[#allocation2 + $0x10] sm:$0xff]
        %v2088 = vld [vmem:[#allocation2 + $0x18] sm:$0xff]
        %v2089 = vld [vmem:[#allocation2 + $0x20] sm:$0xff]
        %v2090 = vld [vmem:[#allocation2 + $0x28] sm:$0xff]
        %v2091 = vld [vmem:[#allocation2 + $0x30] sm:$0xff]
        %v2092 = vld [vmem:[#allocation2 + $0x38] sm:$0xff]
        %v2093 = vld [vmem:[#allocation2 + $0x40] sm:$0xff]
        %v2094 = vld [vmem:[#allocation2 + $0x48] sm:$0xff]
        %v2095 = vld [vmem:[#allocation2 + $0x50] sm:$0xff]
        %v2096 = vld [vmem:[#allocation2 + $0x58] sm:$0xff]
        %v2097 = vld [vmem:[#allocation2 + $0x60] sm:$0xff]
        %v2098 = vld [vmem:[#allocation2 + $0x68] sm:$0xff]
        %v2099 = vld [vmem:[#allocation2 + $0x70] sm:$0xff]
        %v2100 = vld [vmem:[#allocation2 + $0x78] sm:$0xff]
        %v2101 = vld [vmem:[#allocation2 + $0x80] sm:$0xff]
        %v2102 = vld [vmem:[#allocation2 + $0x88] sm:$0xff]
        %v2103 = vld [vmem:[#allocation2 + $0x90] sm:$0xff]
        %v2104 = vld [vmem:[#allocation2 + $0x98] sm:$0xff]
        %v2105 = vld [vmem:[#allocation2 + $0xa0] sm:$0xff]
        %v2106 = vld [vmem:[#allocation2 + $0xa8] sm:$0xff]
        %v2107 = vld [vmem:[#allocation2 + $0xb0] sm:$0xff]
        %v2108 = vld [vmem:[#allocation2 + $0xb8] sm:$0xff]
        %v2109 = vld [vmem:[#allocation2 + $0xc0] sm:$0xff]
        %v2110 = vld [vmem:[#allocation2 + $0xc8] sm:$0xff]
        %v2111 = vld [vmem:[#allocation2 + $0xd0] sm:$0xff]
        %v2112 = vld [vmem:[#allocation2 + $0xd8] sm:$0xff]
        %v2113 = vld [vmem:[#allocation2 + $0xe0] sm:$0xff]
        %v2114 = vld [vmem:[#allocation2 + $0xe8] sm:$0xff]
        %v2115 = vld [vmem:[#allocation2 + $0xf0] sm:$0x11]
        %s2116 = scalar_lea.vmem [#allocation12], 256
        %v2117 = vld [vmem:[%s2116] sm:$0xff]
        %v2118 = vld [vmem:[%s2116 + $0x8] sm:$0xff]
        %v2119 = vld [vmem:[%s2116 + $0x10] sm:$0xff]
        %v2120 = vld [vmem:[%s2116 + $0x18] sm:$0xff]
        %v2121 = vld [vmem:[%s2116 + $0x20] sm:$0xff]
        %v2122 = vld [vmem:[%s2116 + $0x28] sm:$0xff]
        %v2123 = vld [vmem:[%s2116 + $0x30] sm:$0xff]
        %v2124 = vld [vmem:[%s2116 + $0x38] sm:$0xff]
        %v2125 = vld [vmem:[%s2116 + $0x40] sm:$0xff]
        %v2126 = vld [vmem:[%s2116 + $0x48] sm:$0xff]
        %v2127 = vld [vmem:[%s2116 + $0x50] sm:$0xff]
        %v2128 = vld [vmem:[%s2116 + $0x58] sm:$0xff]
        %v2129 = vld [vmem:[%s2116 + $0x60] sm:$0xff]
        %v2130 = vld [vmem:[%s2116 + $0x68] sm:$0xff]
        %v2131 = vld [vmem:[%s2116 + $0x70] sm:$0xff]
        %v2132 = vld [vmem:[%s2116 + $0x78] sm:$0xff]
        %v2133 = vld [vmem:[%s2116 + $0x80] sm:$0xff]
        %v2134 = vld [vmem:[%s2116 + $0x88] sm:$0xff]
        %v2135 = vld [vmem:[%s2116 + $0x90] sm:$0xff]
        %v2136 = vld [vmem:[%s2116 + $0x98] sm:$0xff]
        %v2137 = vld [vmem:[%s2116 + $0xa0] sm:$0xff]
        %v2138 = vld [vmem:[%s2116 + $0xa8] sm:$0xff]
        %v2139 = vld [vmem:[%s2116 + $0xb0] sm:$0xff]
        %v2140 = vld [vmem:[%s2116 + $0xb8] sm:$0xff]
        %v2141 = vld [vmem:[%s2116 + $0xc0] sm:$0xff]
        %v2142 = vld [vmem:[%s2116 + $0xc8] sm:$0xff]
        %v2143 = vld [vmem:[%s2116 + $0xd0] sm:$0xff]
        %v2144 = vld [vmem:[%s2116 + $0xd8] sm:$0xff]
        %v2145 = vld [vmem:[%s2116 + $0xe0] sm:$0xff]
        %v2146 = vld [vmem:[%s2116 + $0xe8] sm:$0xff]
        %v2147 = vld [vmem:[%s2116 + $0xf0] sm:$0xff]
        %v2148 = vld [vmem:[%s2116 + $0xf8] sm:$0xff]
        %v2180 = vunpack.c.l.b16 %v2085
        %v2181 = vunpack.c.h.b16 %v2085
        %v2182 = vunpack.c.l.b16 %v2086
        %v2183 = vunpack.c.h.b16 %v2086
        %v2184 = vunpack.c.l.b16 %v2087
        %v2185 = vunpack.c.h.b16 %v2087
        %v2186 = vunpack.c.l.b16 %v2088
        %v2187 = vunpack.c.h.b16 %v2088
        %v2188 = vunpack.c.l.b16 %v2089
        %v2189 = vunpack.c.h.b16 %v2089
        %v2190 = vunpack.c.l.b16 %v2090
        %v2191 = vunpack.c.h.b16 %v2090
        %v2192 = vunpack.c.l.b16 %v2091
        %v2193 = vunpack.c.h.b16 %v2091
        %v2194 = vunpack.c.l.b16 %v2092
        %v2195 = vunpack.c.h.b16 %v2092
        %v2196 = vunpack.c.l.b16 %v2093
        %v2197 = vunpack.c.h.b16 %v2093
        %v2198 = vunpack.c.l.b16 %v2094
        %v2199 = vunpack.c.h.b16 %v2094
        %v2200 = vunpack.c.l.b16 %v2095
        %v2201 = vunpack.c.h.b16 %v2095
        %v2202 = vunpack.c.l.b16 %v2096
        %v2203 = vunpack.c.h.b16 %v2096
        %v2204 = vunpack.c.l.b16 %v2097
        %v2205 = vunpack.c.h.b16 %v2097
        %v2206 = vunpack.c.l.b16 %v2098
        %v2207 = vunpack.c.h.b16 %v2098
        %v2208 = vunpack.c.l.b16 %v2099
        %v2209 = vunpack.c.h.b16 %v2099
        %v2210 = vunpack.c.l.b16 %v2100
        %v2211 = vunpack.c.h.b16 %v2100
        %v2212 = vunpack.c.l.b16 %v2101
        %v2213 = vunpack.c.h.b16 %v2101
        %v2214 = vunpack.c.l.b16 %v2102
        %v2215 = vunpack.c.h.b16 %v2102
        %v2216 = vunpack.c.l.b16 %v2103
        %v2217 = vunpack.c.h.b16 %v2103
        %v2218 = vunpack.c.l.b16 %v2104
        %v2219 = vunpack.c.h.b16 %v2104
        %v2220 = vunpack.c.l.b16 %v2105
        %v2221 = vunpack.c.h.b16 %v2105
        %v2222 = vunpack.c.l.b16 %v2106
        %v2223 = vunpack.c.h.b16 %v2106
        %v2224 = vunpack.c.l.b16 %v2107
        %v2225 = vunpack.c.h.b16 %v2107
        %v2226 = vunpack.c.l.b16 %v2108
        %v2227 = vunpack.c.h.b16 %v2108
        %v2228 = vunpack.c.l.b16 %v2109
        %v2229 = vunpack.c.h.b16 %v2109
        %v2230 = vunpack.c.l.b16 %v2110
        %v2231 = vunpack.c.h.b16 %v2110
        %v2232 = vunpack.c.l.b16 %v2111
        %v2233 = vunpack.c.h.b16 %v2111
        %v2234 = vunpack.c.l.b16 %v2112
        %v2235 = vunpack.c.h.b16 %v2112
        %v2236 = vunpack.c.l.b16 %v2113
        %v2237 = vunpack.c.h.b16 %v2113
        %v2238 = vunpack.c.l.b16 %v2114
        %v2239 = vunpack.c.h.b16 %v2114
        %v2240 = vunpack.c.l.b16 %v2115
        %v2241 = vunpack.c.h.b16 %v2115
        %v2242 = vpack.c.b16 %v2182, %v2180
        %v2243 = vpack.c.b16 %v2183, %v2181
        %v2244 = vpack.c.b16 %v2186, %v2184
        %v2245 = vpack.c.b16 %v2187, %v2185
        %v2246 = vpack.c.b16 %v2190, %v2188
        %v2247 = vpack.c.b16 %v2191, %v2189
        %v2248 = vpack.c.b16 %v2194, %v2192
        %v2249 = vpack.c.b16 %v2195, %v2193
        %v2250 = vpack.c.b16 %v2198, %v2196
        %v2251 = vpack.c.b16 %v2199, %v2197
        %v2252 = vpack.c.b16 %v2202, %v2200
        %v2253 = vpack.c.b16 %v2203, %v2201
        %v2254 = vpack.c.b16 %v2206, %v2204
        %v2255 = vpack.c.b16 %v2207, %v2205
        %v2256 = vpack.c.b16 %v2210, %v2208
        %v2257 = vpack.c.b16 %v2211, %v2209
        %v2258 = vpack.c.b16 %v2214, %v2212
        %v2259 = vpack.c.b16 %v2215, %v2213
        %v2260 = vpack.c.b16 %v2218, %v2216
        %v2261 = vpack.c.b16 %v2219, %v2217
        %v2262 = vpack.c.b16 %v2222, %v2220
        %v2263 = vpack.c.b16 %v2223, %v2221
        %v2264 = vpack.c.b16 %v2226, %v2224
        %v2265 = vpack.c.b16 %v2227, %v2225
        %v2266 = vpack.c.b16 %v2230, %v2228
        %v2267 = vpack.c.b16 %v2231, %v2229
        %v2268 = vpack.c.b16 %v2234, %v2232
        %v2269 = vpack.c.b16 %v2235, %v2233
        %v2270 = vpack.c.b16 %v2238, %v2236
        %v2271 = vpack.c.b16 %v2239, %v2237
        %v2272 = vpack.c.b16 %v2240, %v2240
        %v2273 = vpack.c.b16 %v2241, %v2241
        %vm2274 = vsmask.f32 7424
        %v2276 = vshrl.u32 %v2242, 16
        %v2278 = vshll.u32 %v2242, 16
        %v2280 = vrot.slane %v2278, 1
        %v2281 = vor.u32 %v2276, %v2280
        %v2283 = vshll.u32 %v2244, 16
        %v2285 = vrot.slane %v2283, 1
        %v2286 = vsel %vm2274, %v2281, %v2285
        %v2288 = vshrl.u32 %v2243, 16
        %v2290 = vshll.u32 %v2243, 16
        %v2292 = vrot.slane %v2290, 1
        %v2293 = vor.u32 %v2288, %v2292
        %v2295 = vshll.u32 %v2245, 16
        %v2297 = vrot.slane %v2295, 1
        %v2298 = vsel %vm2274, %v2293, %v2297
        %v2299 = vshrl.u32 %v2244, 16
        %v2301 = vor.u32 %v2299, %v2285
        %v2303 = vshll.u32 %v2246, 16
        %v2305 = vrot.slane %v2303, 1
        %v2306 = vsel %vm2274, %v2301, %v2305
        %v2307 = vshrl.u32 %v2245, 16
        %v2309 = vor.u32 %v2307, %v2297
        %v2311 = vshll.u32 %v2247, 16
        %v2313 = vrot.slane %v2311, 1
        %v2314 = vsel %vm2274, %v2309, %v2313
        %v2315 = vshrl.u32 %v2246, 16
        %v2317 = vor.u32 %v2315, %v2305
        %v2319 = vshll.u32 %v2248, 16
        %v2321 = vrot.slane %v2319, 1
        %v2322 = vsel %vm2274, %v2317, %v2321
        %v2323 = vshrl.u32 %v2247, 16
        %v2325 = vor.u32 %v2323, %v2313
        %v2327 = vshll.u32 %v2249, 16
        %v2329 = vrot.slane %v2327, 1
        %v2330 = vsel %vm2274, %v2325, %v2329
        %v2331 = vshrl.u32 %v2248, 16
        %v2333 = vor.u32 %v2331, %v2321
        %v2335 = vshll.u32 %v2250, 16
        %v2337 = vrot.slane %v2335, 1
        %v2338 = vsel %vm2274, %v2333, %v2337
        %v2339 = vshrl.u32 %v2249, 16
        %v2341 = vor.u32 %v2339, %v2329
        %v2343 = vshll.u32 %v2251, 16
        %v2345 = vrot.slane %v2343, 1
        %v2346 = vsel %vm2274, %v2341, %v2345
        %v2347 = vshrl.u32 %v2250, 16
        %v2349 = vor.u32 %v2347, %v2337
        %v2351 = vshll.u32 %v2252, 16
        %v2353 = vrot.slane %v2351, 1
        %v2354 = vsel %vm2274, %v2349, %v2353
        %v2355 = vshrl.u32 %v2251, 16
        %v2357 = vor.u32 %v2355, %v2345
        %v2359 = vshll.u32 %v2253, 16
        %v2361 = vrot.slane %v2359, 1
        %v2362 = vsel %vm2274, %v2357, %v2361
        %v2363 = vshrl.u32 %v2252, 16
        %v2365 = vor.u32 %v2363, %v2353
        %v2367 = vshll.u32 %v2254, 16
        %v2369 = vrot.slane %v2367, 1
        %v2370 = vsel %vm2274, %v2365, %v2369
        %v2371 = vshrl.u32 %v2253, 16
        %v2373 = vor.u32 %v2371, %v2361
        %v2375 = vshll.u32 %v2255, 16
        %v2377 = vrot.slane %v2375, 1
        %v2378 = vsel %vm2274, %v2373, %v2377
        %v2379 = vshrl.u32 %v2254, 16
        %v2381 = vor.u32 %v2379, %v2369
        %v2383 = vshll.u32 %v2256, 16
        %v2385 = vrot.slane %v2383, 1
        %v2386 = vsel %vm2274, %v2381, %v2385
        %v2387 = vshrl.u32 %v2255, 16
        %v2389 = vor.u32 %v2387, %v2377
        %v2391 = vshll.u32 %v2257, 16
        %v2393 = vrot.slane %v2391, 1
        %v2394 = vsel %vm2274, %v2389, %v2393
        %v2395 = vshrl.u32 %v2256, 16
        %v2397 = vor.u32 %v2395, %v2385
        %v2399 = vshll.u32 %v2258, 16
        %v2401 = vrot.slane %v2399, 1
        %v2402 = vsel %vm2274, %v2397, %v2401
        %v2403 = vshrl.u32 %v2257, 16
        %v2405 = vor.u32 %v2403, %v2393
        %v2407 = vshll.u32 %v2259, 16
        %v2409 = vrot.slane %v2407, 1
        %v2410 = vsel %vm2274, %v2405, %v2409
        %v2411 = vshrl.u32 %v2258, 16
        %v2413 = vor.u32 %v2411, %v2401
        %v2415 = vshll.u32 %v2260, 16
        %v2417 = vrot.slane %v2415, 1
        %v2418 = vsel %vm2274, %v2413, %v2417
        %v2419 = vshrl.u32 %v2259, 16
        %v2421 = vor.u32 %v2419, %v2409
        %v2423 = vshll.u32 %v2261, 16
        %v2425 = vrot.slane %v2423, 1
        %v2426 = vsel %vm2274, %v2421, %v2425
        %v2427 = vshrl.u32 %v2260, 16
        %v2429 = vor.u32 %v2427, %v2417
        %v2431 = vshll.u32 %v2262, 16
        %v2433 = vrot.slane %v2431, 1
        %v2434 = vsel %vm2274, %v2429, %v2433
        %v2435 = vshrl.u32 %v2261, 16
        %v2437 = vor.u32 %v2435, %v2425
        %v2439 = vshll.u32 %v2263, 16
        %v2441 = vrot.slane %v2439, 1
        %v2442 = vsel %vm2274, %v2437, %v2441
        %v2443 = vshrl.u32 %v2262, 16
        %v2445 = vor.u32 %v2443, %v2433
        %v2447 = vshll.u32 %v2264, 16
        %v2449 = vrot.slane %v2447, 1
        %v2450 = vsel %vm2274, %v2445, %v2449
        %v2451 = vshrl.u32 %v2263, 16
        %v2453 = vor.u32 %v2451, %v2441
        %v2455 = vshll.u32 %v2265, 16
        %v2457 = vrot.slane %v2455, 1
        %v2458 = vsel %vm2274, %v2453, %v2457
        %v2459 = vshrl.u32 %v2264, 16
        %v2461 = vor.u32 %v2459, %v2449
        %v2463 = vshll.u32 %v2266, 16
        %v2465 = vrot.slane %v2463, 1
        %v2466 = vsel %vm2274, %v2461, %v2465
        %v2467 = vshrl.u32 %v2265, 16
        %v2469 = vor.u32 %v2467, %v2457
        %v2471 = vshll.u32 %v2267, 16
        %v2473 = vrot.slane %v2471, 1
        %v2474 = vsel %vm2274, %v2469, %v2473
        %v2475 = vshrl.u32 %v2266, 16
        %v2477 = vor.u32 %v2475, %v2465
        %v2479 = vshll.u32 %v2268, 16
        %v2481 = vrot.slane %v2479, 1
        %v2482 = vsel %vm2274, %v2477, %v2481
        %v2483 = vshrl.u32 %v2267, 16
        %v2485 = vor.u32 %v2483, %v2473
        %v2487 = vshll.u32 %v2269, 16
        %v2489 = vrot.slane %v2487, 1
        %v2490 = vsel %vm2274, %v2485, %v2489
        %v2491 = vshrl.u32 %v2268, 16
        %v2493 = vor.u32 %v2491, %v2481
        %v2495 = vshll.u32 %v2270, 16
        %v2497 = vrot.slane %v2495, 1
        %v2498 = vsel %vm2274, %v2493, %v2497
        %v2499 = vshrl.u32 %v2269, 16
        %v2501 = vor.u32 %v2499, %v2489
        %v2503 = vshll.u32 %v2271, 16
        %v2505 = vrot.slane %v2503, 1
        %v2506 = vsel %vm2274, %v2501, %v2505
        %v2507 = vshrl.u32 %v2270, 16
        %v2509 = vor.u32 %v2507, %v2497
        %v2511 = vshll.u32 %v2272, 16
        %v2513 = vrot.slane %v2511, 1
        %v2514 = vsel %vm2274, %v2509, %v2513
        %v2515 = vshrl.u32 %v2271, 16
        %v2517 = vor.u32 %v2515, %v2505
        %v2519 = vshll.u32 %v2273, 16
        %v2521 = vrot.slane %v2519, 1
        %v2522 = vsel %vm2274, %v2517, %v2521
        %v2585 = vunpack.c.l.b16 %v2117
        %v2586 = vunpack.c.h.b16 %v2117
        %v2587 = vunpack.c.l.b16 %v2118
        %v2588 = vunpack.c.h.b16 %v2118
        %v2589 = vunpack.c.l.b16 %v2119
        %v2590 = vunpack.c.h.b16 %v2119
        %v2591 = vunpack.c.l.b16 %v2120
        %v2592 = vunpack.c.h.b16 %v2120
        %v2593 = vunpack.c.l.b16 %v2121
        %v2594 = vunpack.c.h.b16 %v2121
        %v2595 = vunpack.c.l.b16 %v2122
        %v2596 = vunpack.c.h.b16 %v2122
        %v2597 = vunpack.c.l.b16 %v2123
        %v2598 = vunpack.c.h.b16 %v2123
        %v2599 = vunpack.c.l.b16 %v2124
        %v2600 = vunpack.c.h.b16 %v2124
        %v2601 = vunpack.c.l.b16 %v2125
        %v2602 = vunpack.c.h.b16 %v2125
        %v2603 = vunpack.c.l.b16 %v2126
        %v2604 = vunpack.c.h.b16 %v2126
        %v2605 = vunpack.c.l.b16 %v2127
        %v2606 = vunpack.c.h.b16 %v2127
        %v2607 = vunpack.c.l.b16 %v2128
        %v2608 = vunpack.c.h.b16 %v2128
        %v2609 = vunpack.c.l.b16 %v2129
        %v2610 = vunpack.c.h.b16 %v2129
        %v2611 = vunpack.c.l.b16 %v2130
        %v2612 = vunpack.c.h.b16 %v2130
        %v2613 = vunpack.c.l.b16 %v2131
        %v2614 = vunpack.c.h.b16 %v2131
        %v2615 = vunpack.c.l.b16 %v2132
        %v2616 = vunpack.c.h.b16 %v2132
        %v2617 = vunpack.c.l.b16 %v2133
        %v2618 = vunpack.c.h.b16 %v2133
        %v2619 = vunpack.c.l.b16 %v2134
        %v2620 = vunpack.c.h.b16 %v2134
        %v2621 = vunpack.c.l.b16 %v2135
        %v2622 = vunpack.c.h.b16 %v2135
        %v2623 = vunpack.c.l.b16 %v2136
        %v2624 = vunpack.c.h.b16 %v2136
        %v2625 = vunpack.c.l.b16 %v2137
        %v2626 = vunpack.c.h.b16 %v2137
        %v2627 = vunpack.c.l.b16 %v2138
        %v2628 = vunpack.c.h.b16 %v2138
        %v2629 = vunpack.c.l.b16 %v2139
        %v2630 = vunpack.c.h.b16 %v2139
        %v2631 = vunpack.c.l.b16 %v2140
        %v2632 = vunpack.c.h.b16 %v2140
        %v2633 = vunpack.c.l.b16 %v2141
        %v2634 = vunpack.c.h.b16 %v2141
        %v2635 = vunpack.c.l.b16 %v2142
        %v2636 = vunpack.c.h.b16 %v2142
        %v2637 = vunpack.c.l.b16 %v2143
        %v2638 = vunpack.c.h.b16 %v2143
        %v2639 = vunpack.c.l.b16 %v2144
        %v2640 = vunpack.c.h.b16 %v2144
        %v2641 = vunpack.c.l.b16 %v2145
        %v2642 = vunpack.c.h.b16 %v2145
        %v2643 = vunpack.c.l.b16 %v2146
        %v2644 = vunpack.c.h.b16 %v2146
        %v2645 = vunpack.c.l.b16 %v2147
        %v2646 = vunpack.c.h.b16 %v2147
        %v2647 = vunpack.c.l.b16 %v2148
        %v2648 = vunpack.c.h.b16 %v2148
        %v2649 = vpack.c.b16 %v2587, %v2585
        %v2650 = vpack.c.b16 %v2588, %v2586
        %v2651 = vpack.c.b16 %v2591, %v2589
        %v2652 = vpack.c.b16 %v2592, %v2590
        %v2653 = vpack.c.b16 %v2595, %v2593
        %v2654 = vpack.c.b16 %v2596, %v2594
        %v2655 = vpack.c.b16 %v2599, %v2597
        %v2656 = vpack.c.b16 %v2600, %v2598
        %v2657 = vpack.c.b16 %v2603, %v2601
        %v2658 = vpack.c.b16 %v2604, %v2602
        %v2659 = vpack.c.b16 %v2607, %v2605
        %v2660 = vpack.c.b16 %v2608, %v2606
        %v2661 = vpack.c.b16 %v2611, %v2609
        %v2662 = vpack.c.b16 %v2612, %v2610
        %v2663 = vpack.c.b16 %v2615, %v2613
        %v2664 = vpack.c.b16 %v2616, %v2614
        %v2665 = vpack.c.b16 %v2619, %v2617
        %v2666 = vpack.c.b16 %v2620, %v2618
        %v2667 = vpack.c.b16 %v2623, %v2621
        %v2668 = vpack.c.b16 %v2624, %v2622
        %v2669 = vpack.c.b16 %v2627, %v2625
        %v2670 = vpack.c.b16 %v2628, %v2626
        %v2671 = vpack.c.b16 %v2631, %v2629
        %v2672 = vpack.c.b16 %v2632, %v2630
        %v2673 = vpack.c.b16 %v2635, %v2633
        %v2674 = vpack.c.b16 %v2636, %v2634
        %v2675 = vpack.c.b16 %v2639, %v2637
        %v2676 = vpack.c.b16 %v2640, %v2638
        %v2677 = vpack.c.b16 %v2643, %v2641
        %v2678 = vpack.c.b16 %v2644, %v2642
        %v2679 = vpack.c.b16 %v2647, %v2645
        %v2680 = vpack.c.b16 %v2648, %v2646
        %2713 = vmatprep.subr.bf16.mxu0 %v2650
        %2714 = vmatpush1.bf16.msra.mxu0 %v2649
        %2715 = vmatprep.subr.bf16.mxu0 %v2652
        %2716 = vmatpush1.bf16.msra.mxu0 %v2651
        %2717 = vmatprep.subr.bf16.mxu0 %v2654
        %2718 = vmatpush1.bf16.msra.mxu0 %v2653
        %2719 = vmatprep.subr.bf16.mxu0 %v2656
        %2720 = vmatpush1.bf16.msra.mxu0 %v2655
        %2721 = vmatprep.subr.bf16.mxu0 %v2658
        %2722 = vmatpush1.bf16.msra.mxu0 %v2657
        %2723 = vmatprep.subr.bf16.mxu0 %v2660
        %2724 = vmatpush1.bf16.msra.mxu0 %v2659
        %2725 = vmatprep.subr.bf16.mxu0 %v2662
        %2726 = vmatpush1.bf16.msra.mxu0 %v2661
        %2727 = vmatprep.subr.bf16.mxu0 %v2664
        %2728 = vmatpush1.bf16.msra.mxu0 %v2663
        %2729 = vmatprep.subr.bf16.mxu0 %v2666
        %2730 = vmatpush1.bf16.msra.mxu0 %v2665
        %2731 = vmatprep.subr.bf16.mxu0 %v2668
        %2732 = vmatpush1.bf16.msra.mxu0 %v2667
        %2733 = vmatprep.subr.bf16.mxu0 %v2670
        %2734 = vmatpush1.bf16.msra.mxu0 %v2669
        %2735 = vmatprep.subr.bf16.mxu0 %v2672
        %2736 = vmatpush1.bf16.msra.mxu0 %v2671
        %2737 = vmatprep.subr.bf16.mxu0 %v2674
        %2738 = vmatpush1.bf16.msra.mxu0 %v2673
        %2739 = vmatprep.subr.bf16.mxu0 %v2676
        %2740 = vmatpush1.bf16.msra.mxu0 %v2675
        %2741 = vmatprep.subr.bf16.mxu0 %v2678
        %2742 = vmatpush1.bf16.msra.mxu0 %v2677
        %2743 = vmatprep.subr.bf16.mxu0 %v2680
        %2744 = vmatpush1.bf16.msra.mxu0 %v2679
        %2745 = vmatprep.mubr.bf16.mxu0 %v2298
        %2746 = vmatmul.mubr.bf16.gmra.mrb[0].mxu0 %v2286
        %v2747 = vpop.f32.mrb[0].mxu0
        %v2748 = vadd.f32 0.0, %v2747
        %v2749 = vpop.f32.mrb[0].mxu0
        %v2750 = vadd.f32 0.0, %v2749
        %v2751 = vpop.f32.mrb[0].mxu0
        %v2752 = vadd.f32 0.0, %v2751
        %v2753 = vpop.f32.mrb[0].mxu0
        %v2754 = vadd.f32 0.0, %v2753
        %2755 = vmatprep.mubr.bf16.mxu0 %v2314
        %2756 = vmatmul.mubr.bf16.gmra.mrb[0].mxu0 %v2306
        %v2757 = vpop.f32.mrb[0].mxu0
        %v2758 = vadd.f32 0.0, %v2757
        %v2759 = vpop.f32.mrb[0].mxu0
        %v2760 = vadd.f32 0.0, %v2759
        %v2761 = vpop.f32.mrb[0].mxu0
        %v2762 = vadd.f32 0.0, %v2761
        %v2763 = vpop.f32.mrb[0].mxu0
        %v2764 = vadd.f32 0.0, %v2763
        %2765 = vmatprep.mubr.bf16.mxu0 %v2330
        %2766 = vmatmul.mubr.bf16.gmra.mrb[0].mxu0 %v2322
        %v2767 = vpop.f32.mrb[0].mxu0
        %v2768 = vadd.f32 0.0, %v2767
        %v2769 = vpop.f32.mrb[0].mxu0
        %v2770 = vadd.f32 0.0, %v2769
        %v2771 = vpop.f32.mrb[0].mxu0
        %v2772 = vadd.f32 0.0, %v2771
        %v2773 = vpop.f32.mrb[0].mxu0
        %v2774 = vadd.f32 0.0, %v2773
        %2775 = vmatprep.mubr.bf16.mxu0 %v2346
        %2776 = vmatmul.mubr.bf16.gmra.mrb[0].mxu0 %v2338
        %v2777 = vpop.f32.mrb[0].mxu0
        %v2778 = vadd.f32 0.0, %v2777
        %v2779 = vpop.f32.mrb[0].mxu0
        %v2780 = vadd.f32 0.0, %v2779
        %v2781 = vpop.f32.mrb[0].mxu0
        %v2782 = vadd.f32 0.0, %v2781
        %v2783 = vpop.f32.mrb[0].mxu0
        %v2784 = vadd.f32 0.0, %v2783
        %2785 = vmatprep.mubr.bf16.mxu0 %v2362
        %2786 = vmatmul.mubr.bf16.gmra.mrb[0].mxu0 %v2354
        %v2787 = vpop.f32.mrb[0].mxu0
        %v2788 = vadd.f32 0.0, %v2787
        %v2789 = vpop.f32.mrb[0].mxu0
        %v2790 = vadd.f32 0.0, %v2789
        %v2791 = vpop.f32.mrb[0].mxu0
        %v2792 = vadd.f32 0.0, %v2791
        %v2793 = vpop.f32.mrb[0].mxu0
        %v2794 = vadd.f32 0.0, %v2793
        %2795 = vmatprep.mubr.bf16.mxu0 %v2378
        %2796 = vmatmul.mubr.bf16.gmra.mrb[0].mxu0 %v2370
        %v2797 = vpop.f32.mrb[0].mxu0
        %v2798 = vadd.f32 0.0, %v2797
        %v2799 = vpop.f32.mrb[0].mxu0
        %v2800 = vadd.f32 0.0, %v2799
        %v2801 = vpop.f32.mrb[0].mxu0
        %v2802 = vadd.f32 0.0, %v2801
        %v2803 = vpop.f32.mrb[0].mxu0
        %v2804 = vadd.f32 0.0, %v2803
        %2805 = vmatprep.mubr.bf16.mxu0 %v2394
        %2806 = vmatmul.mubr.bf16.gmra.mrb[0].mxu0 %v2386
        %v2807 = vpop.f32.mrb[0].mxu0
        %v2808 = vadd.f32 0.0, %v2807
        %v2809 = vpop.f32.mrb[0].mxu0
        %v2810 = vadd.f32 0.0, %v2809
        %v2811 = vpop.f32.mrb[0].mxu0
        %v2812 = vadd.f32 0.0, %v2811
        %v2813 = vpop.f32.mrb[0].mxu0
        %v2814 = vadd.f32 0.0, %v2813
        %2815 = vmatprep.mubr.bf16.mxu0 %v2410
        %2816 = vmatmul.mubr.bf16.gmra.mrb[0].mxu0 %v2402
        %v2817 = vpop.f32.mrb[0].mxu0
        %v2818 = vadd.f32 0.0, %v2817
        %v2819 = vpop.f32.mrb[0].mxu0
        %v2820 = vadd.f32 0.0, %v2819
        %v2821 = vpop.f32.mrb[0].mxu0
        %v2822 = vadd.f32 0.0, %v2821
        %v2823 = vpop.f32.mrb[0].mxu0
        %v2824 = vadd.f32 0.0, %v2823
        %2825 = vmatprep.mubr.bf16.mxu0 %v2426
        %2826 = vmatmul.mubr.bf16.gmra.mrb[0].mxu0 %v2418
        %v2827 = vpop.f32.mrb[0].mxu0
        %v2828 = vadd.f32 0.0, %v2827
        %v2829 = vpop.f32.mrb[0].mxu0
        %v2830 = vadd.f32 0.0, %v2829
        %v2831 = vpop.f32.mrb[0].mxu0
        %v2832 = vadd.f32 0.0, %v2831
        %v2833 = vpop.f32.mrb[0].mxu0
        %v2834 = vadd.f32 0.0, %v2833
        %2835 = vmatprep.mubr.bf16.mxu0 %v2442
        %2836 = vmatmul.mubr.bf16.gmra.mrb[0].mxu0 %v2434
        %v2837 = vpop.f32.mrb[0].mxu0
        %v2838 = vadd.f32 0.0, %v2837
        %v2839 = vpop.f32.mrb[0].mxu0
        %v2840 = vadd.f32 0.0, %v2839
        %v2841 = vpop.f32.mrb[0].mxu0
        %v2842 = vadd.f32 0.0, %v2841
        %v2843 = vpop.f32.mrb[0].mxu0
        %v2844 = vadd.f32 0.0, %v2843
        %2845 = vmatprep.mubr.bf16.mxu0 %v2458
        %2846 = vmatmul.mubr.bf16.gmra.mrb[0].mxu0 %v2450
        %v2847 = vpop.f32.mrb[0].mxu0
        %v2848 = vadd.f32 0.0, %v2847
        %v2849 = vpop.f32.mrb[0].mxu0
        %v2850 = vadd.f32 0.0, %v2849
        %v2851 = vpop.f32.mrb[0].mxu0
        %v2852 = vadd.f32 0.0, %v2851
        %v2853 = vpop.f32.mrb[0].mxu0
        %v2854 = vadd.f32 0.0, %v2853
        %2855 = vmatprep.mubr.bf16.mxu0 %v2474
        %2856 = vmatmul.mubr.bf16.gmra.mrb[0].mxu0 %v2466
        %v2857 = vpop.f32.mrb[0].mxu0
        %v2858 = vadd.f32 0.0, %v2857
        %v2859 = vpop.f32.mrb[0].mxu0
        %v2860 = vadd.f32 0.0, %v2859
        %v2861 = vpop.f32.mrb[0].mxu0
        %v2862 = vadd.f32 0.0, %v2861
        %v2863 = vpop.f32.mrb[0].mxu0
        %v2864 = vadd.f32 0.0, %v2863
        %2865 = vmatprep.mubr.bf16.mxu0 %v2490
        %2866 = vmatmul.mubr.bf16.gmra.mrb[0].mxu0 %v2482
        %v2867 = vpop.f32.mrb[0].mxu0
        %v2868 = vadd.f32 0.0, %v2867
        %v2869 = vpop.f32.mrb[0].mxu0
        %v2870 = vadd.f32 0.0, %v2869
        %v2871 = vpop.f32.mrb[0].mxu0
        %v2872 = vadd.f32 0.0, %v2871
        %v2873 = vpop.f32.mrb[0].mxu0
        %v2874 = vadd.f32 0.0, %v2873
        %2875 = vmatprep.mubr.bf16.mxu0 %v2506
        %2876 = vmatmul.mubr.bf16.gmra.mrb[0].mxu0 %v2498
        %v2877 = vpop.f32.mrb[0].mxu0
        %v2878 = vadd.f32 0.0, %v2877
        %v2879 = vpop.f32.mrb[0].mxu0
        %v2880 = vadd.f32 0.0, %v2879
        %v2881 = vpop.f32.mrb[0].mxu0
        %v2882 = vadd.f32 0.0, %v2881
        %v2883 = vpop.f32.mrb[0].mxu0
        %v2884 = vadd.f32 0.0, %v2883
        %2885 = vmatprep.mubr.bf16.mxu0 %v2522
        %2886 = vmatmul.mubr.bf16.gmra.mrb[0].mxu0 %v2514
        %v2887 = vpop.f32.mrb[0].mxu0
        %v2888 = vadd.f32 0.0, %v2887
        %v2889 = vpop.f32.mrb[0].mxu0
        %v2890 = vadd.f32 0.0, %v2889
        %v2891 = vpop.f32.mrb[0].mxu0
        %v2892 = vadd.f32 0.0, %v2891
        %v2893 = vpop.f32.mrb[0].mxu0
        %v2894 = vadd.f32 0.0, %v2893
        %2895 = vdwg.mxu0
        %v2896 = vld [vmem:[#allocation3] sm:$0xff]
        %v2897 = vld [vmem:[#allocation3 + $0x8] sm:$0xff]
        %v2898 = vld [vmem:[#allocation3 + $0x10] sm:$0xff]
        %v2899 = vld [vmem:[#allocation3 + $0x18] sm:$0xff]
        %v2900 = vld [vmem:[#allocation3 + $0x20] sm:$0xff]
        %v2901 = vld [vmem:[#allocation3 + $0x28] sm:$0xff]
        %v2902 = vld [vmem:[#allocation3 + $0x30] sm:$0xff]
        %v2903 = vld [vmem:[#allocation3 + $0x38] sm:$0xff]
        %v2904 = vld [vmem:[#allocation3 + $0x40] sm:$0xff]
        %v2905 = vld [vmem:[#allocation3 + $0x48] sm:$0xff]
        %v2906 = vld [vmem:[#allocation3 + $0x50] sm:$0xff]
        %v2907 = vld [vmem:[#allocation3 + $0x58] sm:$0xff]
        %v2908 = vld [vmem:[#allocation3 + $0x60] sm:$0xff]
        %v2909 = vld [vmem:[#allocation3 + $0x68] sm:$0xff]
        %v2910 = vld [vmem:[#allocation3 + $0x70] sm:$0xff]
        %v2911 = vld [vmem:[#allocation3 + $0x78] sm:$0xff]
        %v2912 = vld [vmem:[#allocation3 + $0x80] sm:$0xff]
        %v2913 = vld [vmem:[#allocation3 + $0x88] sm:$0xff]
        %v2914 = vld [vmem:[#allocation3 + $0x90] sm:$0xff]
        %v2915 = vld [vmem:[#allocation3 + $0x98] sm:$0xff]
        %v2916 = vld [vmem:[#allocation3 + $0xa0] sm:$0xff]
        %v2917 = vld [vmem:[#allocation3 + $0xa8] sm:$0xff]
        %v2918 = vld [vmem:[#allocation3 + $0xb0] sm:$0xff]
        %v2919 = vld [vmem:[#allocation3 + $0xb8] sm:$0xff]
        %v2920 = vld [vmem:[#allocation3 + $0xc0] sm:$0xff]
        %v2921 = vld [vmem:[#allocation3 + $0xc8] sm:$0xff]
        %v2922 = vld [vmem:[#allocation3 + $0xd0] sm:$0xff]
        %v2923 = vld [vmem:[#allocation3 + $0xd8] sm:$0xff]
        %v2924 = vld [vmem:[#allocation3 + $0xe0] sm:$0xff]
        %v2925 = vld [vmem:[#allocation3 + $0xe8] sm:$0xff]
        %v2926 = vld [vmem:[#allocation3 + $0xf0] sm:$0xff]
        %v2927 = vld [vmem:[#allocation3 + $0xf8] sm:$0xff]
        %v2928 = vld [vmem:[#allocation3 + $0x100] sm:$0xff]
        %v2929 = vld [vmem:[#allocation3 + $0x108] sm:$0xff]
        %v2930 = vld [vmem:[#allocation3 + $0x110] sm:$0xff]
        %v2931 = vld [vmem:[#allocation3 + $0x118] sm:$0xff]
        %v2932 = vld [vmem:[#allocation3 + $0x120] sm:$0xff]
        %v2933 = vld [vmem:[#allocation3 + $0x128] sm:$0xff]
        %v2934 = vld [vmem:[#allocation3 + $0x130] sm:$0xff]
        %v2935 = vld [vmem:[#allocation3 + $0x138] sm:$0xff]
        %v2936 = vld [vmem:[#allocation3 + $0x140] sm:$0xff]
        %v2937 = vld [vmem:[#allocation3 + $0x148] sm:$0xff]
        %v2938 = vld [vmem:[#allocation3 + $0x150] sm:$0xff]
        %v2939 = vld [vmem:[#allocation3 + $0x158] sm:$0xff]
        %v2940 = vld [vmem:[#allocation3 + $0x160] sm:$0xff]
        %v2941 = vld [vmem:[#allocation3 + $0x168] sm:$0xff]
        %v2942 = vld [vmem:[#allocation3 + $0x170] sm:$0xff]
        %v2943 = vld [vmem:[#allocation3 + $0x178] sm:$0xff]
        %v2944 = vld [vmem:[#allocation3 + $0x180] sm:$0xff]
        %v2945 = vld [vmem:[#allocation3 + $0x188] sm:$0xff]
        %v2946 = vld [vmem:[#allocation3 + $0x190] sm:$0xff]
        %v2947 = vld [vmem:[#allocation3 + $0x198] sm:$0xff]
        %v2948 = vld [vmem:[#allocation3 + $0x1a0] sm:$0xff]
        %v2949 = vld [vmem:[#allocation3 + $0x1a8] sm:$0xff]
        %v2950 = vld [vmem:[#allocation3 + $0x1b0] sm:$0xff]
        %v2951 = vld [vmem:[#allocation3 + $0x1b8] sm:$0xff]
        %v2952 = vld [vmem:[#allocation3 + $0x1c0] sm:$0xff]
        %v2953 = vld [vmem:[#allocation3 + $0x1c8] sm:$0xff]
        %v2954 = vld [vmem:[#allocation3 + $0x1d0] sm:$0xff]
        %v2955 = vld [vmem:[#allocation3 + $0x1d8] sm:$0xff]
        %v2956 = vadd.f32 %v2896, %v2748
        %v2957 = vadd.f32 %v2897, %v2750
        %v2958 = vadd.f32 %v2898, %v2752
        %v2959 = vadd.f32 %v2899, %v2754
        %v2960 = vadd.f32 %v2900, %v2758
        %v2961 = vadd.f32 %v2901, %v2760
        %v2962 = vadd.f32 %v2902, %v2762
        %v2963 = vadd.f32 %v2903, %v2764
        %v2964 = vadd.f32 %v2904, %v2768
        %v2965 = vadd.f32 %v2905, %v2770
        %v2966 = vadd.f32 %v2906, %v2772
        %v2967 = vadd.f32 %v2907, %v2774
        %v2968 = vadd.f32 %v2908, %v2778
        %v2969 = vadd.f32 %v2909, %v2780
        %v2970 = vadd.f32 %v2910, %v2782
        %v2971 = vadd.f32 %v2911, %v2784
        %v2972 = vadd.f32 %v2912, %v2788
        %v2973 = vadd.f32 %v2913, %v2790
        %v2974 = vadd.f32 %v2914, %v2792
        %v2975 = vadd.f32 %v2915, %v2794
        %v2976 = vadd.f32 %v2916, %v2798
        %v2977 = vadd.f32 %v2917, %v2800
        %v2978 = vadd.f32 %v2918, %v2802
        %v2979 = vadd.f32 %v2919, %v2804
        %v2980 = vadd.f32 %v2920, %v2808
        %v2981 = vadd.f32 %v2921, %v2810
        %v2982 = vadd.f32 %v2922, %v2812
        %v2983 = vadd.f32 %v2923, %v2814
        %v2984 = vadd.f32 %v2924, %v2818
        %v2985 = vadd.f32 %v2925, %v2820
        %v2986 = vadd.f32 %v2926, %v2822
        %v2987 = vadd.f32 %v2927, %v2824
        %v2988 = vadd.f32 %v2928, %v2828
        %v2989 = vadd.f32 %v2929, %v2830
        %v2990 = vadd.f32 %v2930, %v2832
        %v2991 = vadd.f32 %v2931, %v2834
        %v2992 = vadd.f32 %v2932, %v2838
        %v2993 = vadd.f32 %v2933, %v2840
        %v2994 = vadd.f32 %v2934, %v2842
        %v2995 = vadd.f32 %v2935, %v2844
        %v2996 = vadd.f32 %v2936, %v2848
        %v2997 = vadd.f32 %v2937, %v2850
        %v2998 = vadd.f32 %v2938, %v2852
        %v2999 = vadd.f32 %v2939, %v2854
        %v3000 = vadd.f32 %v2940, %v2858
        %v3001 = vadd.f32 %v2941, %v2860
        %v3002 = vadd.f32 %v2942, %v2862
        %v3003 = vadd.f32 %v2943, %v2864
        %v3004 = vadd.f32 %v2944, %v2868
        %v3005 = vadd.f32 %v2945, %v2870
        %v3006 = vadd.f32 %v2946, %v2872
        %v3007 = vadd.f32 %v2947, %v2874
        %v3008 = vadd.f32 %v2948, %v2878
        %v3009 = vadd.f32 %v2949, %v2880
        %v3010 = vadd.f32 %v2950, %v2882
        %v3011 = vadd.f32 %v2951, %v2884
        %v3012 = vadd.f32 %v2952, %v2888
        %v3013 = vadd.f32 %v2953, %v2890
        %v3014 = vadd.f32 %v2954, %v2892
        %v3015 = vadd.f32 %v2955, %v2894
        %3016 = vst [vmem:[#allocation3] sm:$0xff] %v2956
        %3017 = vst [vmem:[#allocation3 + $0x8] sm:$0xff] %v2957
        %3018 = vst [vmem:[#allocation3 + $0x10] sm:$0xff] %v2958
        %3019 = vst [vmem:[#allocation3 + $0x18] sm:$0xff] %v2959
        %3020 = vst [vmem:[#allocation3 + $0x20] sm:$0xff] %v2960
        %3021 = vst [vmem:[#allocation3 + $0x28] sm:$0xff] %v2961
        %3022 = vst [vmem:[#allocation3 + $0x30] sm:$0xff] %v2962
        %3023 = vst [vmem:[#allocation3 + $0x38] sm:$0xff] %v2963
        %3024 = vst [vmem:[#allocation3 + $0x40] sm:$0xff] %v2964
        %3025 = vst [vmem:[#allocation3 + $0x48] sm:$0xff] %v2965
        %3026 = vst [vmem:[#allocation3 + $0x50] sm:$0xff] %v2966
        %3027 = vst [vmem:[#allocation3 + $0x58] sm:$0xff] %v2967
        %3028 = vst [vmem:[#allocation3 + $0x60] sm:$0xff] %v2968
        %3029 = vst [vmem:[#allocation3 + $0x68] sm:$0xff] %v2969
        %3030 = vst [vmem:[#allocation3 + $0x70] sm:$0xff] %v2970
        %3031 = vst [vmem:[#allocation3 + $0x78] sm:$0xff] %v2971
        %3032 = vst [vmem:[#allocation3 + $0x80] sm:$0xff] %v2972
        %3033 = vst [vmem:[#allocation3 + $0x88] sm:$0xff] %v2973
        %3034 = vst [vmem:[#allocation3 + $0x90] sm:$0xff] %v2974
        %3035 = vst [vmem:[#allocation3 + $0x98] sm:$0xff] %v2975
        %3036 = vst [vmem:[#allocation3 + $0xa0] sm:$0xff] %v2976
        %3037 = vst [vmem:[#allocation3 + $0xa8] sm:$0xff] %v2977
        %3038 = vst [vmem:[#allocation3 + $0xb0] sm:$0xff] %v2978
        %3039 = vst [vmem:[#allocation3 + $0xb8] sm:$0xff] %v2979
        %3040 = vst [vmem:[#allocation3 + $0xc0] sm:$0xff] %v2980
        %3041 = vst [vmem:[#allocation3 + $0xc8] sm:$0xff] %v2981
        %3042 = vst [vmem:[#allocation3 + $0xd0] sm:$0xff] %v2982
        %3043 = vst [vmem:[#allocation3 + $0xd8] sm:$0xff] %v2983
        %3044 = vst [vmem:[#allocation3 + $0xe0] sm:$0xff] %v2984
        %3045 = vst [vmem:[#allocation3 + $0xe8] sm:$0xff] %v2985
        %3046 = vst [vmem:[#allocation3 + $0xf0] sm:$0xff] %v2986
        %3047 = vst [vmem:[#allocation3 + $0xf8] sm:$0xff] %v2987
        %3048 = vst [vmem:[#allocation3 + $0x100] sm:$0xff] %v2988
        %3049 = vst [vmem:[#allocation3 + $0x108] sm:$0xff] %v2989
        %3050 = vst [vmem:[#allocation3 + $0x110] sm:$0xff] %v2990
        %3051 = vst [vmem:[#allocation3 + $0x118] sm:$0xff] %v2991
        %3052 = vst [vmem:[#allocation3 + $0x120] sm:$0xff] %v2992
        %3053 = vst [vmem:[#allocation3 + $0x128] sm:$0xff] %v2993
        %3054 = vst [vmem:[#allocation3 + $0x130] sm:$0xff] %v2994
        %3055 = vst [vmem:[#allocation3 + $0x138] sm:$0xff] %v2995
        %3056 = vst [vmem:[#allocation3 + $0x140] sm:$0xff] %v2996
        %3057 = vst [vmem:[#allocation3 + $0x148] sm:$0xff] %v2997
        %3058 = vst [vmem:[#allocation3 + $0x150] sm:$0xff] %v2998
        %3059 = vst [vmem:[#allocation3 + $0x158] sm:$0xff] %v2999
        %3060 = vst [vmem:[#allocation3 + $0x160] sm:$0xff] %v3000
        %3061 = vst [vmem:[#allocation3 + $0x168] sm:$0xff] %v3001
        %3062 = vst [vmem:[#allocation3 + $0x170] sm:$0xff] %v3002
        %3063 = vst [vmem:[#allocation3 + $0x178] sm:$0xff] %v3003
        %3064 = vst [vmem:[#allocation3 + $0x180] sm:$0xff] %v3004
        %3065 = vst [vmem:[#allocation3 + $0x188] sm:$0xff] %v3005
        %3066 = vst [vmem:[#allocation3 + $0x190] sm:$0xff] %v3006
        %3067 = vst [vmem:[#allocation3 + $0x198] sm:$0xff] %v3007
        %3068 = vst [vmem:[#allocation3 + $0x1a0] sm:$0xff] %v3008
        %3069 = vst [vmem:[#allocation3 + $0x1a8] sm:$0xff] %v3009
        %3070 = vst [vmem:[#allocation3 + $0x1b0] sm:$0xff] %v3010
        %3071 = vst [vmem:[#allocation3 + $0x1b8] sm:$0xff] %v3011
        %3072 = vst [vmem:[#allocation3 + $0x1c0] sm:$0xff] %v3012
        %3073 = vst [vmem:[#allocation3 + $0x1c8] sm:$0xff] %v3013
        %3074 = vst [vmem:[#allocation3 + $0x1d0] sm:$0xff] %v3014
        %3075 = vst [vmem:[#allocation3 + $0x1d8] sm:$0xff] %v3015
        %v3076 = vld [vmem:[#allocation2] sm:$0xee]
        %v3077 = vld [vmem:[#allocation2 + $0x8] sm:$0xff]
        %v3078 = vld [vmem:[#allocation2 + $0x10] sm:$0xff]
        %v3079 = vld [vmem:[#allocation2 + $0x18] sm:$0xff]
        %v3080 = vld [vmem:[#allocation2 + $0x20] sm:$0xff]
        %v3081 = vld [vmem:[#allocation2 + $0x28] sm:$0xff]
        %v3082 = vld [vmem:[#allocation2 + $0x30] sm:$0xff]
        %v3083 = vld [vmem:[#allocation2 + $0x38] sm:$0xff]
        %v3084 = vld [vmem:[#allocation2 + $0x40] sm:$0xff]
        %v3085 = vld [vmem:[#allocation2 + $0x48] sm:$0xff]
        %v3086 = vld [vmem:[#allocation2 + $0x50] sm:$0xff]
        %v3087 = vld [vmem:[#allocation2 + $0x58] sm:$0xff]
        %v3088 = vld [vmem:[#allocation2 + $0x60] sm:$0xff]
        %v3089 = vld [vmem:[#allocation2 + $0x68] sm:$0xff]
        %v3090 = vld [vmem:[#allocation2 + $0x70] sm:$0xff]
        %v3091 = vld [vmem:[#allocation2 + $0x78] sm:$0xff]
        %v3092 = vld [vmem:[#allocation2 + $0x80] sm:$0xff]
        %v3093 = vld [vmem:[#allocation2 + $0x88] sm:$0xff]
        %v3094 = vld [vmem:[#allocation2 + $0x90] sm:$0xff]
        %v3095 = vld [vmem:[#allocation2 + $0x98] sm:$0xff]
        %v3096 = vld [vmem:[#allocation2 + $0xa0] sm:$0xff]
        %v3097 = vld [vmem:[#allocation2 + $0xa8] sm:$0xff]
        %v3098 = vld [vmem:[#allocation2 + $0xb0] sm:$0xff]
        %v3099 = vld [vmem:[#allocation2 + $0xb8] sm:$0xff]
        %v3100 = vld [vmem:[#allocation2 + $0xc0] sm:$0xff]
        %v3101 = vld [vmem:[#allocation2 + $0xc8] sm:$0xff]
        %v3102 = vld [vmem:[#allocation2 + $0xd0] sm:$0xff]
        %v3103 = vld [vmem:[#allocation2 + $0xd8] sm:$0xff]
        %v3104 = vld [vmem:[#allocation2 + $0xe0] sm:$0xff]
        %v3105 = vld [vmem:[#allocation2 + $0xe8] sm:$0xff]
        %v3106 = vld [vmem:[#allocation2 + $0xf0] sm:$0x11]
        %s3107 = scalar_lea.vmem [#allocation12], 512
        %v3108 = vld [vmem:[%s3107] sm:$0xff]
        %v3109 = vld [vmem:[%s3107 + $0x8] sm:$0xff]
        %v3110 = vld [vmem:[%s3107 + $0x10] sm:$0xff]
        %v3111 = vld [vmem:[%s3107 + $0x18] sm:$0xff]
        %v3112 = vld [vmem:[%s3107 + $0x20] sm:$0xff]
        %v3113 = vld [vmem:[%s3107 + $0x28] sm:$0xff]
        %v3114 = vld [vmem:[%s3107 + $0x30] sm:$0xff]
        %v3115 = vld [vmem:[%s3107 + $0x38] sm:$0xff]
        %v3116 = vld [vmem:[%s3107 + $0x40] sm:$0xff]
        %v3117 = vld [vmem:[%s3107 + $0x48] sm:$0xff]
        %v3118 = vld [vmem:[%s3107 + $0x50] sm:$0xff]
        %v3119 = vld [vmem:[%s3107 + $0x58] sm:$0xff]
        %v3120 = vld [vmem:[%s3107 + $0x60] sm:$0xff]
        %v3121 = vld [vmem:[%s3107 + $0x68] sm:$0xff]
        %v3122 = vld [vmem:[%s3107 + $0x70] sm:$0xff]
        %v3123 = vld [vmem:[%s3107 + $0x78] sm:$0xff]
        %v3124 = vld [vmem:[%s3107 + $0x80] sm:$0xff]
        %v3125 = vld [vmem:[%s3107 + $0x88] sm:$0xff]
        %v3126 = vld [vmem:[%s3107 + $0x90] sm:$0xff]
        %v3127 = vld [vmem:[%s3107 + $0x98] sm:$0xff]
        %v3128 = vld [vmem:[%s3107 + $0xa0] sm:$0xff]
        %v3129 = vld [vmem:[%s3107 + $0xa8] sm:$0xff]
        %v3130 = vld [vmem:[%s3107 + $0xb0] sm:$0xff]
        %v3131 = vld [vmem:[%s3107 + $0xb8] sm:$0xff]
        %v3132 = vld [vmem:[%s3107 + $0xc0] sm:$0xff]
        %v3133 = vld [vmem:[%s3107 + $0xc8] sm:$0xff]
        %v3134 = vld [vmem:[%s3107 + $0xd0] sm:$0xff]
        %v3135 = vld [vmem:[%s3107 + $0xd8] sm:$0xff]
        %v3136 = vld [vmem:[%s3107 + $0xe0] sm:$0xff]
        %v3137 = vld [vmem:[%s3107 + $0xe8] sm:$0xff]
        %v3138 = vld [vmem:[%s3107 + $0xf0] sm:$0xff]
        %v3139 = vld [vmem:[%s3107 + $0xf8] sm:$0xff]
        %v3171 = vunpack.c.l.b16 %v3076
        %v3172 = vunpack.c.h.b16 %v3076
        %v3173 = vunpack.c.l.b16 %v3077
        %v3174 = vunpack.c.h.b16 %v3077
        %v3175 = vunpack.c.l.b16 %v3078
        %v3176 = vunpack.c.h.b16 %v3078
        %v3177 = vunpack.c.l.b16 %v3079
        %v3178 = vunpack.c.h.b16 %v3079
        %v3179 = vunpack.c.l.b16 %v3080
        %v3180 = vunpack.c.h.b16 %v3080
        %v3181 = vunpack.c.l.b16 %v3081
        %v3182 = vunpack.c.h.b16 %v3081
        %v3183 = vunpack.c.l.b16 %v3082
        %v3184 = vunpack.c.h.b16 %v3082
        %v3185 = vunpack.c.l.b16 %v3083
        %v3186 = vunpack.c.h.b16 %v3083
        %v3187 = vunpack.c.l.b16 %v3084
        %v3188 = vunpack.c.h.b16 %v3084
        %v3189 = vunpack.c.l.b16 %v3085
        %v3190 = vunpack.c.h.b16 %v3085
        %v3191 = vunpack.c.l.b16 %v3086
        %v3192 = vunpack.c.h.b16 %v3086
        %v3193 = vunpack.c.l.b16 %v3087
        %v3194 = vunpack.c.h.b16 %v3087
        %v3195 = vunpack.c.l.b16 %v3088
        %v3196 = vunpack.c.h.b16 %v3088
        %v3197 = vunpack.c.l.b16 %v3089
        %v3198 = vunpack.c.h.b16 %v3089
        %v3199 = vunpack.c.l.b16 %v3090
        %v3200 = vunpack.c.h.b16 %v3090
        %v3201 = vunpack.c.l.b16 %v3091
        %v3202 = vunpack.c.h.b16 %v3091
        %v3203 = vunpack.c.l.b16 %v3092
        %v3204 = vunpack.c.h.b16 %v3092
        %v3205 = vunpack.c.l.b16 %v3093
        %v3206 = vunpack.c.h.b16 %v3093
        %v3207 = vunpack.c.l.b16 %v3094
        %v3208 = vunpack.c.h.b16 %v3094
        %v3209 = vunpack.c.l.b16 %v3095
        %v3210 = vunpack.c.h.b16 %v3095
        %v3211 = vunpack.c.l.b16 %v3096
        %v3212 = vunpack.c.h.b16 %v3096
        %v3213 = vunpack.c.l.b16 %v3097
        %v3214 = vunpack.c.h.b16 %v3097
        %v3215 = vunpack.c.l.b16 %v3098
        %v3216 = vunpack.c.h.b16 %v3098
        %v3217 = vunpack.c.l.b16 %v3099
        %v3218 = vunpack.c.h.b16 %v3099
        %v3219 = vunpack.c.l.b16 %v3100
        %v3220 = vunpack.c.h.b16 %v3100
        %v3221 = vunpack.c.l.b16 %v3101
        %v3222 = vunpack.c.h.b16 %v3101
        %v3223 = vunpack.c.l.b16 %v3102
        %v3224 = vunpack.c.h.b16 %v3102
        %v3225 = vunpack.c.l.b16 %v3103
        %v3226 = vunpack.c.h.b16 %v3103
        %v3227 = vunpack.c.l.b16 %v3104
        %v3228 = vunpack.c.h.b16 %v3104
        %v3229 = vunpack.c.l.b16 %v3105
        %v3230 = vunpack.c.h.b16 %v3105
        %v3231 = vunpack.c.l.b16 %v3106
        %v3232 = vunpack.c.h.b16 %v3106
        %v3233 = vpack.c.b16 %v3173, %v3171
        %v3234 = vpack.c.b16 %v3174, %v3172
        %v3235 = vpack.c.b16 %v3177, %v3175
        %v3236 = vpack.c.b16 %v3178, %v3176
        %v3237 = vpack.c.b16 %v3181, %v3179
        %v3238 = vpack.c.b16 %v3182, %v3180
        %v3239 = vpack.c.b16 %v3185, %v3183
        %v3240 = vpack.c.b16 %v3186, %v3184
        %v3241 = vpack.c.b16 %v3189, %v3187
        %v3242 = vpack.c.b16 %v3190, %v3188
        %v3243 = vpack.c.b16 %v3193, %v3191
        %v3244 = vpack.c.b16 %v3194, %v3192
        %v3245 = vpack.c.b16 %v3197, %v3195
        %v3246 = vpack.c.b16 %v3198, %v3196
        %v3247 = vpack.c.b16 %v3201, %v3199
        %v3248 = vpack.c.b16 %v3202, %v3200
        %v3249 = vpack.c.b16 %v3205, %v3203
        %v3250 = vpack.c.b16 %v3206, %v3204
        %v3251 = vpack.c.b16 %v3209, %v3207
        %v3252 = vpack.c.b16 %v3210, %v3208
        %v3253 = vpack.c.b16 %v3213, %v3211
        %v3254 = vpack.c.b16 %v3214, %v3212
        %v3255 = vpack.c.b16 %v3217, %v3215
        %v3256 = vpack.c.b16 %v3218, %v3216
        %v3257 = vpack.c.b16 %v3221, %v3219
        %v3258 = vpack.c.b16 %v3222, %v3220
        %v3259 = vpack.c.b16 %v3225, %v3223
        %v3260 = vpack.c.b16 %v3226, %v3224
        %v3261 = vpack.c.b16 %v3229, %v3227
        %v3262 = vpack.c.b16 %v3230, %v3228
        %v3263 = vpack.c.b16 %v3231, %v3231
        %v3264 = vpack.c.b16 %v3232, %v3232
        %vm3265 = vcmask 1046528
        %v3266 = vrot.slane %v3233, 1
        %v3267 = vrot.slane %v3235, 1
        %v3268 = vsel %vm3265, %v3266, %v3267
        %v3269 = vrot.slane %v3234, 1
        %v3270 = vrot.slane %v3236, 1
        %v3271 = vsel %vm3265, %v3269, %v3270
        %v3272 = vrot.slane %v3237, 1
        %v3273 = vsel %vm3265, %v3267, %v3272
        %v3274 = vrot.slane %v3238, 1
        %v3275 = vsel %vm3265, %v3270, %v3274
        %v3276 = vrot.slane %v3239, 1
        %v3277 = vsel %vm3265, %v3272, %v3276
        %v3278 = vrot.slane %v3240, 1
        %v3279 = vsel %vm3265, %v3274, %v3278
        %v3280 = vrot.slane %v3241, 1
        %v3281 = vsel %vm3265, %v3276, %v3280
        %v3282 = vrot.slane %v3242, 1
        %v3283 = vsel %vm3265, %v3278, %v3282
        %v3284 = vrot.slane %v3243, 1
        %v3285 = vsel %vm3265, %v3280, %v3284
        %v3286 = vrot.slane %v3244, 1
        %v3287 = vsel %vm3265, %v3282, %v3286
        %v3288 = vrot.slane %v3245, 1
        %v3289 = vsel %vm3265, %v3284, %v3288
        %v3290 = vrot.slane %v3246, 1
        %v3291 = vsel %vm3265, %v3286, %v3290
        %v3292 = vrot.slane %v3247, 1
        %v3293 = vsel %vm3265, %v3288, %v3292
        %v3294 = vrot.slane %v3248, 1
        %v3295 = vsel %vm3265, %v3290, %v3294
        %v3296 = vrot.slane %v3249, 1
        %v3297 = vsel %vm3265, %v3292, %v3296
        %v3298 = vrot.slane %v3250, 1
        %v3299 = vsel %vm3265, %v3294, %v3298
        %v3300 = vrot.slane %v3251, 1
        %v3301 = vsel %vm3265, %v3296, %v3300
        %v3302 = vrot.slane %v3252, 1
        %v3303 = vsel %vm3265, %v3298, %v3302
        %v3304 = vrot.slane %v3253, 1
        %v3305 = vsel %vm3265, %v3300, %v3304
        %v3306 = vrot.slane %v3254, 1
        %v3307 = vsel %vm3265, %v3302, %v3306
        %v3308 = vrot.slane %v3255, 1
        %v3309 = vsel %vm3265, %v3304, %v3308
        %v3310 = vrot.slane %v3256, 1
        %v3311 = vsel %vm3265, %v3306, %v3310
        %v3312 = vrot.slane %v3257, 1
        %v3313 = vsel %vm3265, %v3308, %v3312
        %v3314 = vrot.slane %v3258, 1
        %v3315 = vsel %vm3265, %v3310, %v3314
        %v3316 = vrot.slane %v3259, 1
        %v3317 = vsel %vm3265, %v3312, %v3316
        %v3318 = vrot.slane %v3260, 1
        %v3319 = vsel %vm3265, %v3314, %v3318
        %v3320 = vrot.slane %v3261, 1
        %v3321 = vsel %vm3265, %v3316, %v3320
        %v3322 = vrot.slane %v3262, 1
        %v3323 = vsel %vm3265, %v3318, %v3322
        %v3324 = vrot.slane %v3263, 1
        %v3325 = vsel %vm3265, %v3320, %v3324
        %v3326 = vrot.slane %v3264, 1
        %v3327 = vsel %vm3265, %v3322, %v3326
        %v3390 = vunpack.c.l.b16 %v3108
        %v3391 = vunpack.c.h.b16 %v3108
        %v3392 = vunpack.c.l.b16 %v3109
        %v3393 = vunpack.c.h.b16 %v3109
        %v3394 = vunpack.c.l.b16 %v3110
        %v3395 = vunpack.c.h.b16 %v3110
        %v3396 = vunpack.c.l.b16 %v3111
        %v3397 = vunpack.c.h.b16 %v3111
        %v3398 = vunpack.c.l.b16 %v3112
        %v3399 = vunpack.c.h.b16 %v3112
        %v3400 = vunpack.c.l.b16 %v3113
        %v3401 = vunpack.c.h.b16 %v3113
        %v3402 = vunpack.c.l.b16 %v3114
        %v3403 = vunpack.c.h.b16 %v3114
        %v3404 = vunpack.c.l.b16 %v3115
        %v3405 = vunpack.c.h.b16 %v3115
        %v3406 = vunpack.c.l.b16 %v3116
        %v3407 = vunpack.c.h.b16 %v3116
        %v3408 = vunpack.c.l.b16 %v3117
        %v3409 = vunpack.c.h.b16 %v3117
        %v3410 = vunpack.c.l.b16 %v3118
        %v3411 = vunpack.c.h.b16 %v3118
        %v3412 = vunpack.c.l.b16 %v3119
        %v3413 = vunpack.c.h.b16 %v3119
        %v3414 = vunpack.c.l.b16 %v3120
        %v3415 = vunpack.c.h.b16 %v3120
        %v3416 = vunpack.c.l.b16 %v3121
        %v3417 = vunpack.c.h.b16 %v3121
        %v3418 = vunpack.c.l.b16 %v3122
        %v3419 = vunpack.c.h.b16 %v3122
        %v3420 = vunpack.c.l.b16 %v3123
        %v3421 = vunpack.c.h.b16 %v3123
        %v3422 = vunpack.c.l.b16 %v3124
        %v3423 = vunpack.c.h.b16 %v3124
        %v3424 = vunpack.c.l.b16 %v3125
        %v3425 = vunpack.c.h.b16 %v3125
        %v3426 = vunpack.c.l.b16 %v3126
        %v3427 = vunpack.c.h.b16 %v3126
        %v3428 = vunpack.c.l.b16 %v3127
        %v3429 = vunpack.c.h.b16 %v3127
        %v3430 = vunpack.c.l.b16 %v3128
        %v3431 = vunpack.c.h.b16 %v3128
        %v3432 = vunpack.c.l.b16 %v3129
        %v3433 = vunpack.c.h.b16 %v3129
        %v3434 = vunpack.c.l.b16 %v3130
        %v3435 = vunpack.c.h.b16 %v3130
        %v3436 = vunpack.c.l.b16 %v3131
        %v3437 = vunpack.c.h.b16 %v3131
        %v3438 = vunpack.c.l.b16 %v3132
        %v3439 = vunpack.c.h.b16 %v3132
        %v3440 = vunpack.c.l.b16 %v3133
        %v3441 = vunpack.c.h.b16 %v3133
        %v3442 = vunpack.c.l.b16 %v3134
        %v3443 = vunpack.c.h.b16 %v3134
        %v3444 = vunpack.c.l.b16 %v3135
        %v3445 = vunpack.c.h.b16 %v3135
        %v3446 = vunpack.c.l.b16 %v3136
        %v3447 = vunpack.c.h.b16 %v3136
        %v3448 = vunpack.c.l.b16 %v3137
        %v3449 = vunpack.c.h.b16 %v3137
        %v3450 = vunpack.c.l.b16 %v3138
        %v3451 = vunpack.c.h.b16 %v3138
        %v3452 = vunpack.c.l.b16 %v3139
        %v3453 = vunpack.c.h.b16 %v3139
        %v3454 = vpack.c.b16 %v3392, %v3390
        %v3455 = vpack.c.b16 %v3393, %v3391
        %v3456 = vpack.c.b16 %v3396, %v3394
        %v3457 = vpack.c.b16 %v3397, %v3395
        %v3458 = vpack.c.b16 %v3400, %v3398
        %v3459 = vpack.c.b16 %v3401, %v3399
        %v3460 = vpack.c.b16 %v3404, %v3402
        %v3461 = vpack.c.b16 %v3405, %v3403
        %v3462 = vpack.c.b16 %v3408, %v3406
        %v3463 = vpack.c.b16 %v3409, %v3407
        %v3464 = vpack.c.b16 %v3412, %v3410
        %v3465 = vpack.c.b16 %v3413, %v3411
        %v3466 = vpack.c.b16 %v3416, %v3414
        %v3467 = vpack.c.b16 %v3417, %v3415
        %v3468 = vpack.c.b16 %v3420, %v3418
        %v3469 = vpack.c.b16 %v3421, %v3419
        %v3470 = vpack.c.b16 %v3424, %v3422
        %v3471 = vpack.c.b16 %v3425, %v3423
        %v3472 = vpack.c.b16 %v3428, %v3426
        %v3473 = vpack.c.b16 %v3429, %v3427
        %v3474 = vpack.c.b16 %v3432, %v3430
        %v3475 = vpack.c.b16 %v3433, %v3431
        %v3476 = vpack.c.b16 %v3436, %v3434
        %v3477 = vpack.c.b16 %v3437, %v3435
        %v3478 = vpack.c.b16 %v3440, %v3438
        %v3479 = vpack.c.b16 %v3441, %v3439
        %v3480 = vpack.c.b16 %v3444, %v3442
        %v3481 = vpack.c.b16 %v3445, %v3443
        %v3482 = vpack.c.b16 %v3448, %v3446
        %v3483 = vpack.c.b16 %v3449, %v3447
        %v3484 = vpack.c.b16 %v3452, %v3450
        %v3485 = vpack.c.b16 %v3453, %v3451
        %3518 = vmatprep.subr.bf16.mxu0 %v3455
        %3519 = vmatpush1.bf16.msra.mxu0 %v3454
        %3520 = vmatprep.subr.bf16.mxu0 %v3457
        %3521 = vmatpush1.bf16.msra.mxu0 %v3456
        %3522 = vmatprep.subr.bf16.mxu0 %v3459
        %3523 = vmatpush1.bf16.msra.mxu0 %v3458
        %3524 = vmatprep.subr.bf16.mxu0 %v3461
        %3525 = vmatpush1.bf16.msra.mxu0 %v3460
        %3526 = vmatprep.subr.bf16.mxu0 %v3463
        %3527 = vmatpush1.bf16.msra.mxu0 %v3462
        %3528 = vmatprep.subr.bf16.mxu0 %v3465
        %3529 = vmatpush1.bf16.msra.mxu0 %v3464
        %3530 = vmatprep.subr.bf16.mxu0 %v3467
        %3531 = vmatpush1.bf16.msra.mxu0 %v3466
        %3532 = vmatprep.subr.bf16.mxu0 %v3469
        %3533 = vmatpush1.bf16.msra.mxu0 %v3468
        %3534 = vmatprep.subr.bf16.mxu0 %v3471
        %3535 = vmatpush1.bf16.msra.mxu0 %v3470
        %3536 = vmatprep.subr.bf16.mxu0 %v3473
        %3537 = vmatpush1.bf16.msra.mxu0 %v3472
        %3538 = vmatprep.subr.bf16.mxu0 %v3475
        %3539 = vmatpush1.bf16.msra.mxu0 %v3474
        %3540 = vmatprep.subr.bf16.mxu0 %v3477
        %3541 = vmatpush1.bf16.msra.mxu0 %v3476
        %3542 = vmatprep.subr.bf16.mxu0 %v3479
        %3543 = vmatpush1.bf16.msra.mxu0 %v3478
        %3544 = vmatprep.subr.bf16.mxu0 %v3481
        %3545 = vmatpush1.bf16.msra.mxu0 %v3480
        %3546 = vmatprep.subr.bf16.mxu0 %v3483
        %3547 = vmatpush1.bf16.msra.mxu0 %v3482
        %3548 = vmatprep.subr.bf16.mxu0 %v3485
        %3549 = vmatpush1.bf16.msra.mxu0 %v3484
        %3550 = vmatprep.mubr.bf16.mxu0 %v3271
        %3551 = vmatmul.mubr.bf16.gmra.mrb[0].mxu0 %v3268
        %v3552 = vpop.f32.mrb[0].mxu0
        %v3553 = vadd.f32 0.0, %v3552
        %v3554 = vpop.f32.mrb[0].mxu0
        %v3555 = vadd.f32 0.0, %v3554
        %v3556 = vpop.f32.mrb[0].mxu0
        %v3557 = vadd.f32 0.0, %v3556
        %v3558 = vpop.f32.mrb[0].mxu0
        %v3559 = vadd.f32 0.0, %v3558
        %3560 = vmatprep.mubr.bf16.mxu0 %v3275
        %3561 = vmatmul.mubr.bf16.gmra.mrb[0].mxu0 %v3273
        %v3562 = vpop.f32.mrb[0].mxu0
        %v3563 = vadd.f32 0.0, %v3562
        %v3564 = vpop.f32.mrb[0].mxu0
        %v3565 = vadd.f32 0.0, %v3564
        %v3566 = vpop.f32.mrb[0].mxu0
        %v3567 = vadd.f32 0.0, %v3566
        %v3568 = vpop.f32.mrb[0].mxu0
        %v3569 = vadd.f32 0.0, %v3568
        %3570 = vmatprep.mubr.bf16.mxu0 %v3279
        %3571 = vmatmul.mubr.bf16.gmra.mrb[0].mxu0 %v3277
        %v3572 = vpop.f32.mrb[0].mxu0
        %v3573 = vadd.f32 0.0, %v3572
        %v3574 = vpop.f32.mrb[0].mxu0
        %v3575 = vadd.f32 0.0, %v3574
        %v3576 = vpop.f32.mrb[0].mxu0
        %v3577 = vadd.f32 0.0, %v3576
        %v3578 = vpop.f32.mrb[0].mxu0
        %v3579 = vadd.f32 0.0, %v3578
        %3580 = vmatprep.mubr.bf16.mxu0 %v3283
        %3581 = vmatmul.mubr.bf16.gmra.mrb[0].mxu0 %v3281
        %v3582 = vpop.f32.mrb[0].mxu0
        %v3583 = vadd.f32 0.0, %v3582
        %v3584 = vpop.f32.mrb[0].mxu0
        %v3585 = vadd.f32 0.0, %v3584
        %v3586 = vpop.f32.mrb[0].mxu0
        %v3587 = vadd.f32 0.0, %v3586
        %v3588 = vpop.f32.mrb[0].mxu0
        %v3589 = vadd.f32 0.0, %v3588
        %3590 = vmatprep.mubr.bf16.mxu0 %v3287
        %3591 = vmatmul.mubr.bf16.gmra.mrb[0].mxu0 %v3285
        %v3592 = vpop.f32.mrb[0].mxu0
        %v3593 = vadd.f32 0.0, %v3592
        %v3594 = vpop.f32.mrb[0].mxu0
        %v3595 = vadd.f32 0.0, %v3594
        %v3596 = vpop.f32.mrb[0].mxu0
        %v3597 = vadd.f32 0.0, %v3596
        %v3598 = vpop.f32.mrb[0].mxu0
        %v3599 = vadd.f32 0.0, %v3598
        %3600 = vmatprep.mubr.bf16.mxu0 %v3291
        %3601 = vmatmul.mubr.bf16.gmra.mrb[0].mxu0 %v3289
        %v3602 = vpop.f32.mrb[0].mxu0
        %v3603 = vadd.f32 0.0, %v3602
        %v3604 = vpop.f32.mrb[0].mxu0
        %v3605 = vadd.f32 0.0, %v3604
        %v3606 = vpop.f32.mrb[0].mxu0
        %v3607 = vadd.f32 0.0, %v3606
        %v3608 = vpop.f32.mrb[0].mxu0
        %v3609 = vadd.f32 0.0, %v3608
        %3610 = vmatprep.mubr.bf16.mxu0 %v3295
        %3611 = vmatmul.mubr.bf16.gmra.mrb[0].mxu0 %v3293
        %v3612 = vpop.f32.mrb[0].mxu0
        %v3613 = vadd.f32 0.0, %v3612
        %v3614 = vpop.f32.mrb[0].mxu0
        %v3615 = vadd.f32 0.0, %v3614
        %v3616 = vpop.f32.mrb[0].mxu0
        %v3617 = vadd.f32 0.0, %v3616
        %v3618 = vpop.f32.mrb[0].mxu0
        %v3619 = vadd.f32 0.0, %v3618
        %3620 = vmatprep.mubr.bf16.mxu0 %v3299
        %3621 = vmatmul.mubr.bf16.gmra.mrb[0].mxu0 %v3297
        %v3622 = vpop.f32.mrb[0].mxu0
        %v3623 = vadd.f32 0.0, %v3622
        %v3624 = vpop.f32.mrb[0].mxu0
        %v3625 = vadd.f32 0.0, %v3624
        %v3626 = vpop.f32.mrb[0].mxu0
        %v3627 = vadd.f32 0.0, %v3626
        %v3628 = vpop.f32.mrb[0].mxu0
        %v3629 = vadd.f32 0.0, %v3628
        %3630 = vmatprep.mubr.bf16.mxu0 %v3303
        %3631 = vmatmul.mubr.bf16.gmra.mrb[0].mxu0 %v3301
        %v3632 = vpop.f32.mrb[0].mxu0
        %v3633 = vadd.f32 0.0, %v3632
        %v3634 = vpop.f32.mrb[0].mxu0
        %v3635 = vadd.f32 0.0, %v3634
        %v3636 = vpop.f32.mrb[0].mxu0
        %v3637 = vadd.f32 0.0, %v3636
        %v3638 = vpop.f32.mrb[0].mxu0
        %v3639 = vadd.f32 0.0, %v3638
        %3640 = vmatprep.mubr.bf16.mxu0 %v3307
        %3641 = vmatmul.mubr.bf16.gmra.mrb[0].mxu0 %v3305
        %v3642 = vpop.f32.mrb[0].mxu0
        %v3643 = vadd.f32 0.0, %v3642
        %v3644 = vpop.f32.mrb[0].mxu0
        %v3645 = vadd.f32 0.0, %v3644
        %v3646 = vpop.f32.mrb[0].mxu0
        %v3647 = vadd.f32 0.0, %v3646
        %v3648 = vpop.f32.mrb[0].mxu0
        %v3649 = vadd.f32 0.0, %v3648
        %3650 = vmatprep.mubr.bf16.mxu0 %v3311
        %3651 = vmatmul.mubr.bf16.gmra.mrb[0].mxu0 %v3309
        %v3652 = vpop.f32.mrb[0].mxu0
        %v3653 = vadd.f32 0.0, %v3652
        %v3654 = vpop.f32.mrb[0].mxu0
        %v3655 = vadd.f32 0.0, %v3654
        %v3656 = vpop.f32.mrb[0].mxu0
        %v3657 = vadd.f32 0.0, %v3656
        %v3658 = vpop.f32.mrb[0].mxu0
        %v3659 = vadd.f32 0.0, %v3658
        %3660 = vmatprep.mubr.bf16.mxu0 %v3315
        %3661 = vmatmul.mubr.bf16.gmra.mrb[0].mxu0 %v3313
        %v3662 = vpop.f32.mrb[0].mxu0
        %v3663 = vadd.f32 0.0, %v3662
        %v3664 = vpop.f32.mrb[0].mxu0
        %v3665 = vadd.f32 0.0, %v3664
        %v3666 = vpop.f32.mrb[0].mxu0
        %v3667 = vadd.f32 0.0, %v3666
        %v3668 = vpop.f32.mrb[0].mxu0
        %v3669 = vadd.f32 0.0, %v3668
        %3670 = vmatprep.mubr.bf16.mxu0 %v3319
        %3671 = vmatmul.mubr.bf16.gmra.mrb[0].mxu0 %v3317
        %v3672 = vpop.f32.mrb[0].mxu0
        %v3673 = vadd.f32 0.0, %v3672
        %v3674 = vpop.f32.mrb[0].mxu0
        %v3675 = vadd.f32 0.0, %v3674
        %v3676 = vpop.f32.mrb[0].mxu0
        %v3677 = vadd.f32 0.0, %v3676
        %v3678 = vpop.f32.mrb[0].mxu0
        %v3679 = vadd.f32 0.0, %v3678
        %3680 = vmatprep.mubr.bf16.mxu0 %v3323
        %3681 = vmatmul.mubr.bf16.gmra.mrb[0].mxu0 %v3321
        %v3682 = vpop.f32.mrb[0].mxu0
        %v3683 = vadd.f32 0.0, %v3682
        %v3684 = vpop.f32.mrb[0].mxu0
        %v3685 = vadd.f32 0.0, %v3684
        %v3686 = vpop.f32.mrb[0].mxu0
        %v3687 = vadd.f32 0.0, %v3686
        %v3688 = vpop.f32.mrb[0].mxu0
        %v3689 = vadd.f32 0.0, %v3688
        %3690 = vmatprep.mubr.bf16.mxu0 %v3327
        %3691 = vmatmul.mubr.bf16.gmra.mrb[0].mxu0 %v3325
        %v3692 = vpop.f32.mrb[0].mxu0
        %v3693 = vadd.f32 0.0, %v3692
        %v3694 = vpop.f32.mrb[0].mxu0
        %v3695 = vadd.f32 0.0, %v3694
        %v3696 = vpop.f32.mrb[0].mxu0
        %v3697 = vadd.f32 0.0, %v3696
        %v3698 = vpop.f32.mrb[0].mxu0
        %v3699 = vadd.f32 0.0, %v3698
        %3700 = vdwg.mxu0
        %v3701 = vld [vmem:[#allocation3] sm:$0xff]
        %v3702 = vld [vmem:[#allocation3 + $0x8] sm:$0xff]
        %v3703 = vld [vmem:[#allocation3 + $0x10] sm:$0xff]
        %v3704 = vld [vmem:[#allocation3 + $0x18] sm:$0xff]
        %v3705 = vld [vmem:[#allocation3 + $0x20] sm:$0xff]
        %v3706 = vld [vmem:[#allocation3 + $0x28] sm:$0xff]
        %v3707 = vld [vmem:[#allocation3 + $0x30] sm:$0xff]
        %v3708 = vld [vmem:[#allocation3 + $0x38] sm:$0xff]
        %v3709 = vld [vmem:[#allocation3 + $0x40] sm:$0xff]
        %v3710 = vld [vmem:[#allocation3 + $0x48] sm:$0xff]
        %v3711 = vld [vmem:[#allocation3 + $0x50] sm:$0xff]
        %v3712 = vld [vmem:[#allocation3 + $0x58] sm:$0xff]
        %v3713 = vld [vmem:[#allocation3 + $0x60] sm:$0xff]
        %v3714 = vld [vmem:[#allocation3 + $0x68] sm:$0xff]
        %v3715 = vld [vmem:[#allocation3 + $0x70] sm:$0xff]
        %v3716 = vld [vmem:[#allocation3 + $0x78] sm:$0xff]
        %v3717 = vld [vmem:[#allocation3 + $0x80] sm:$0xff]
        %v3718 = vld [vmem:[#allocation3 + $0x88] sm:$0xff]
        %v3719 = vld [vmem:[#allocation3 + $0x90] sm:$0xff]
        %v3720 = vld [vmem:[#allocation3 + $0x98] sm:$0xff]
        %v3721 = vld [vmem:[#allocation3 + $0xa0] sm:$0xff]
        %v3722 = vld [vmem:[#allocation3 + $0xa8] sm:$0xff]
        %v3723 = vld [vmem:[#allocation3 + $0xb0] sm:$0xff]
        %v3724 = vld [vmem:[#allocation3 + $0xb8] sm:$0xff]
        %v3725 = vld [vmem:[#allocation3 + $0xc0] sm:$0xff]
        %v3726 = vld [vmem:[#allocation3 + $0xc8] sm:$0xff]
        %v3727 = vld [vmem:[#allocation3 + $0xd0] sm:$0xff]
        %v3728 = vld [vmem:[#allocation3 + $0xd8] sm:$0xff]
        %v3729 = vld [vmem:[#allocation3 + $0xe0] sm:$0xff]
        %v3730 = vld [vmem:[#allocation3 + $0xe8] sm:$0xff]
        %v3731 = vld [vmem:[#allocation3 + $0xf0] sm:$0xff]
        %v3732 = vld [vmem:[#allocation3 + $0xf8] sm:$0xff]
        %v3733 = vld [vmem:[#allocation3 + $0x100] sm:$0xff]
        %v3734 = vld [vmem:[#allocation3 + $0x108] sm:$0xff]
        %v3735 = vld [vmem:[#allocation3 + $0x110] sm:$0xff]
        %v3736 = vld [vmem:[#allocation3 + $0x118] sm:$0xff]
        %v3737 = vld [vmem:[#allocation3 + $0x120] sm:$0xff]
        %v3738 = vld [vmem:[#allocation3 + $0x128] sm:$0xff]
        %v3739 = vld [vmem:[#allocation3 + $0x130] sm:$0xff]
        %v3740 = vld [vmem:[#allocation3 + $0x138] sm:$0xff]
        %v3741 = vld [vmem:[#allocation3 + $0x140] sm:$0xff]
        %v3742 = vld [vmem:[#allocation3 + $0x148] sm:$0xff]
        %v3743 = vld [vmem:[#allocation3 + $0x150] sm:$0xff]
        %v3744 = vld [vmem:[#allocation3 + $0x158] sm:$0xff]
        %v3745 = vld [vmem:[#allocation3 + $0x160] sm:$0xff]
        %v3746 = vld [vmem:[#allocation3 + $0x168] sm:$0xff]
        %v3747 = vld [vmem:[#allocation3 + $0x170] sm:$0xff]
        %v3748 = vld [vmem:[#allocation3 + $0x178] sm:$0xff]
        %v3749 = vld [vmem:[#allocation3 + $0x180] sm:$0xff]
        %v3750 = vld [vmem:[#allocation3 + $0x188] sm:$0xff]
        %v3751 = vld [vmem:[#allocation3 + $0x190] sm:$0xff]
        %v3752 = vld [vmem:[#allocation3 + $0x198] sm:$0xff]
        %v3753 = vld [vmem:[#allocation3 + $0x1a0] sm:$0xff]
        %v3754 = vld [vmem:[#allocation3 + $0x1a8] sm:$0xff]
        %v3755 = vld [vmem:[#allocation3 + $0x1b0] sm:$0xff]
        %v3756 = vld [vmem:[#allocation3 + $0x1b8] sm:$0xff]
        %v3757 = vld [vmem:[#allocation3 + $0x1c0] sm:$0xff]
        %v3758 = vld [vmem:[#allocation3 + $0x1c8] sm:$0xff]
        %v3759 = vld [vmem:[#allocation3 + $0x1d0] sm:$0xff]
        %v3760 = vld [vmem:[#allocation3 + $0x1d8] sm:$0xff]
        %v3761 = vadd.f32 %v3701, %v3553
        %v3762 = vadd.f32 %v3702, %v3555
        %v3763 = vadd.f32 %v3703, %v3557
        %v3764 = vadd.f32 %v3704, %v3559
        %v3765 = vadd.f32 %v3705, %v3563
        %v3766 = vadd.f32 %v3706, %v3565
        %v3767 = vadd.f32 %v3707, %v3567
        %v3768 = vadd.f32 %v3708, %v3569
        %v3769 = vadd.f32 %v3709, %v3573
        %v3770 = vadd.f32 %v3710, %v3575
        %v3771 = vadd.f32 %v3711, %v3577
        %v3772 = vadd.f32 %v3712, %v3579
        %v3773 = vadd.f32 %v3713, %v3583
        %v3774 = vadd.f32 %v3714, %v3585
        %v3775 = vadd.f32 %v3715, %v3587
        %v3776 = vadd.f32 %v3716, %v3589
        %v3777 = vadd.f32 %v3717, %v3593
        %v3778 = vadd.f32 %v3718, %v3595
        %v3779 = vadd.f32 %v3719, %v3597
        %v3780 = vadd.f32 %v3720, %v3599
        %v3781 = vadd.f32 %v3721, %v3603
        %v3782 = vadd.f32 %v3722, %v3605
        %v3783 = vadd.f32 %v3723, %v3607
        %v3784 = vadd.f32 %v3724, %v3609
        %v3785 = vadd.f32 %v3725, %v3613
        %v3786 = vadd.f32 %v3726, %v3615
        %v3787 = vadd.f32 %v3727, %v3617
        %v3788 = vadd.f32 %v3728, %v3619
        %v3789 = vadd.f32 %v3729, %v3623
        %v3790 = vadd.f32 %v3730, %v3625
        %v3791 = vadd.f32 %v3731, %v3627
        %v3792 = vadd.f32 %v3732, %v3629
        %v3793 = vadd.f32 %v3733, %v3633
        %v3794 = vadd.f32 %v3734, %v3635
        %v3795 = vadd.f32 %v3735, %v3637
        %v3796 = vadd.f32 %v3736, %v3639
        %v3797 = vadd.f32 %v3737, %v3643
        %v3798 = vadd.f32 %v3738, %v3645
        %v3799 = vadd.f32 %v3739, %v3647
        %v3800 = vadd.f32 %v3740, %v3649
        %v3801 = vadd.f32 %v3741, %v3653
        %v3802 = vadd.f32 %v3742, %v3655
        %v3803 = vadd.f32 %v3743, %v3657
        %v3804 = vadd.f32 %v3744, %v3659
        %v3805 = vadd.f32 %v3745, %v3663
        %v3806 = vadd.f32 %v3746, %v3665
        %v3807 = vadd.f32 %v3747, %v3667
        %v3808 = vadd.f32 %v3748, %v3669
        %v3809 = vadd.f32 %v3749, %v3673
        %v3810 = vadd.f32 %v3750, %v3675
        %v3811 = vadd.f32 %v3751, %v3677
        %v3812 = vadd.f32 %v3752, %v3679
        %v3813 = vadd.f32 %v3753, %v3683
        %v3814 = vadd.f32 %v3754, %v3685
        %v3815 = vadd.f32 %v3755, %v3687
        %v3816 = vadd.f32 %v3756, %v3689
        %v3817 = vadd.f32 %v3757, %v3693
        %v3818 = vadd.f32 %v3758, %v3695
        %v3819 = vadd.f32 %v3759, %v3697
        %v3820 = vadd.f32 %v3760, %v3699
        %3821 = vst [vmem:[#allocation3] sm:$0xff] %v3761
        %3822 = vst [vmem:[#allocation3 + $0x8] sm:$0xff] %v3762
        %3823 = vst [vmem:[#allocation3 + $0x10] sm:$0xff] %v3763
        %3824 = vst [vmem:[#allocation3 + $0x18] sm:$0xff] %v3764
        %3825 = vst [vmem:[#allocation3 + $0x20] sm:$0xff] %v3765
        %3826 = vst [vmem:[#allocation3 + $0x28] sm:$0xff] %v3766
        %3827 = vst [vmem:[#allocation3 + $0x30] sm:$0xff] %v3767
        %3828 = vst [vmem:[#allocation3 + $0x38] sm:$0xff] %v3768
        %3829 = vst [vmem:[#allocation3 + $0x40] sm:$0xff] %v3769
        %3830 = vst [vmem:[#allocation3 + $0x48] sm:$0xff] %v3770
        %3831 = vst [vmem:[#allocation3 + $0x50] sm:$0xff] %v3771
        %3832 = vst [vmem:[#allocation3 + $0x58] sm:$0xff] %v3772
        %3833 = vst [vmem:[#allocation3 + $0x60] sm:$0xff] %v3773
        %3834 = vst [vmem:[#allocation3 + $0x68] sm:$0xff] %v3774
        %3835 = vst [vmem:[#allocation3 + $0x70] sm:$0xff] %v3775
        %3836 = vst [vmem:[#allocation3 + $0x78] sm:$0xff] %v3776
        %3837 = vst [vmem:[#allocation3 + $0x80] sm:$0xff] %v3777
        %3838 = vst [vmem:[#allocation3 + $0x88] sm:$0xff] %v3778
        %3839 = vst [vmem:[#allocation3 + $0x90] sm:$0xff] %v3779
        %3840 = vst [vmem:[#allocation3 + $0x98] sm:$0xff] %v3780
        %3841 = vst [vmem:[#allocation3 + $0xa0] sm:$0xff] %v3781
        %3842 = vst [vmem:[#allocation3 + $0xa8] sm:$0xff] %v3782
        %3843 = vst [vmem:[#allocation3 + $0xb0] sm:$0xff] %v3783
        %3844 = vst [vmem:[#allocation3 + $0xb8] sm:$0xff] %v3784
        %3845 = vst [vmem:[#allocation3 + $0xc0] sm:$0xff] %v3785
        %3846 = vst [vmem:[#allocation3 + $0xc8] sm:$0xff] %v3786
        %3847 = vst [vmem:[#allocation3 + $0xd0] sm:$0xff] %v3787
        %3848 = vst [vmem:[#allocation3 + $0xd8] sm:$0xff] %v3788
        %3849 = vst [vmem:[#allocation3 + $0xe0] sm:$0xff] %v3789
        %3850 = vst [vmem:[#allocation3 + $0xe8] sm:$0xff] %v3790
        %3851 = vst [vmem:[#allocation3 + $0xf0] sm:$0xff] %v3791
        %3852 = vst [vmem:[#allocation3 + $0xf8] sm:$0xff] %v3792
        %3853 = vst [vmem:[#allocation3 + $0x100] sm:$0xff] %v3793
        %3854 = vst [vmem:[#allocation3 + $0x108] sm:$0xff] %v3794
        %3855 = vst [vmem:[#allocation3 + $0x110] sm:$0xff] %v3795
        %3856 = vst [vmem:[#allocation3 + $0x118] sm:$0xff] %v3796
        %3857 = vst [vmem:[#allocation3 + $0x120] sm:$0xff] %v3797
        %3858 = vst [vmem:[#allocation3 + $0x128] sm:$0xff] %v3798
        %3859 = vst [vmem:[#allocation3 + $0x130] sm:$0xff] %v3799
        %3860 = vst [vmem:[#allocation3 + $0x138] sm:$0xff] %v3800
        %3861 = vst [vmem:[#allocation3 + $0x140] sm:$0xff] %v3801
        %3862 = vst [vmem:[#allocation3 + $0x148] sm:$0xff] %v3802
        %3863 = vst [vmem:[#allocation3 + $0x150] sm:$0xff] %v3803
        %3864 = vst [vmem:[#allocation3 + $0x158] sm:$0xff] %v3804
        %3865 = vst [vmem:[#allocation3 + $0x160] sm:$0xff] %v3805
        %3866 = vst [vmem:[#allocation3 + $0x168] sm:$0xff] %v3806
        %3867 = vst [vmem:[#allocation3 + $0x170] sm:$0xff] %v3807
        %3868 = vst [vmem:[#allocation3 + $0x178] sm:$0xff] %v3808
        %3869 = vst [vmem:[#allocation3 + $0x180] sm:$0xff] %v3809
        %3870 = vst [vmem:[#allocation3 + $0x188] sm:$0xff] %v3810
        %3871 = vst [vmem:[#allocation3 + $0x190] sm:$0xff] %v3811
        %3872 = vst [vmem:[#allocation3 + $0x198] sm:$0xff] %v3812
        %3873 = vst [vmem:[#allocation3 + $0x1a0] sm:$0xff] %v3813
        %3874 = vst [vmem:[#allocation3 + $0x1a8] sm:$0xff] %v3814
        %3875 = vst [vmem:[#allocation3 + $0x1b0] sm:$0xff] %v3815
        %3876 = vst [vmem:[#allocation3 + $0x1b8] sm:$0xff] %v3816
        %3877 = vst [vmem:[#allocation3 + $0x1c0] sm:$0xff] %v3817
        %3878 = vst [vmem:[#allocation3 + $0x1c8] sm:$0xff] %v3818
        %3879 = vst [vmem:[#allocation3 + $0x1d0] sm:$0xff] %v3819
        %3880 = vst [vmem:[#allocation3 + $0x1d8] sm:$0xff] %v3820
        %v3881 = vld [vmem:[#allocation2 + $0x18] sm:$0xff]
        %v3882 = vld [vmem:[#allocation2 + $0x20] sm:$0xff]
        %v3883 = vld [vmem:[#allocation2 + $0x28] sm:$0xff]
        %v3884 = vld [vmem:[#allocation2 + $0x30] sm:$0xff]
        %v3885 = vld [vmem:[#allocation2 + $0x38] sm:$0xff]
        %v3886 = vld [vmem:[#allocation2 + $0x40] sm:$0xff]
        %v3887 = vld [vmem:[#allocation2 + $0x48] sm:$0xff]
        %v3888 = vld [vmem:[#allocation2 + $0x50] sm:$0xff]
        %v3889 = vld [vmem:[#allocation2 + $0x58] sm:$0xff]
        %v3890 = vld [vmem:[#allocation2 + $0x60] sm:$0xff]
        %v3891 = vld [vmem:[#allocation2 + $0x68] sm:$0xff]
        %v3892 = vld [vmem:[#allocation2 + $0x70] sm:$0xff]
        %v3893 = vld [vmem:[#allocation2 + $0x78] sm:$0xff]
        %v3894 = vld [vmem:[#allocation2 + $0x80] sm:$0xff]
        %v3895 = vld [vmem:[#allocation2 + $0x88] sm:$0xff]
        %v3896 = vld [vmem:[#allocation2 + $0x90] sm:$0xff]
        %v3897 = vld [vmem:[#allocation2 + $0x98] sm:$0xff]
        %v3898 = vld [vmem:[#allocation2 + $0xa0] sm:$0xff]
        %v3899 = vld [vmem:[#allocation2 + $0xa8] sm:$0xff]
        %v3900 = vld [vmem:[#allocation2 + $0xb0] sm:$0xff]
        %v3901 = vld [vmem:[#allocation2 + $0xb8] sm:$0xff]
        %v3902 = vld [vmem:[#allocation2 + $0xc0] sm:$0xff]
        %v3903 = vld [vmem:[#allocation2 + $0xc8] sm:$0xff]
        %v3904 = vld [vmem:[#allocation2 + $0xd0] sm:$0xff]
        %v3905 = vld [vmem:[#allocation2 + $0xd8] sm:$0xff]
        %v3906 = vld [vmem:[#allocation2 + $0xe0] sm:$0xff]
        %v3907 = vld [vmem:[#allocation2 + $0xe8] sm:$0xff]
        %v3908 = vld [vmem:[#allocation2 + $0xf0] sm:$0xff]
        %v3909 = vld [vmem:[#allocation2 + $0xf8] sm:$0xff]
        %v3910 = vld [vmem:[#allocation2 + $0x100] sm:$0xff]
        %s3911 = scalar_lea.vmem [#allocation12], 768
        %v3912 = vld [vmem:[%s3911] sm:$0xff]
        %v3913 = vld [vmem:[%s3911 + $0x8] sm:$0xff]
        %v3914 = vld [vmem:[%s3911 + $0x10] sm:$0xff]
        %v3915 = vld [vmem:[%s3911 + $0x18] sm:$0xff]
        %v3916 = vld [vmem:[%s3911 + $0x20] sm:$0xff]
        %v3917 = vld [vmem:[%s3911 + $0x28] sm:$0xff]
        %v3918 = vld [vmem:[%s3911 + $0x30] sm:$0xff]
        %v3919 = vld [vmem:[%s3911 + $0x38] sm:$0xff]
        %v3920 = vld [vmem:[%s3911 + $0x40] sm:$0xff]
        %v3921 = vld [vmem:[%s3911 + $0x48] sm:$0xff]
        %v3922 = vld [vmem:[%s3911 + $0x50] sm:$0xff]
        %v3923 = vld [vmem:[%s3911 + $0x58] sm:$0xff]
        %v3924 = vld [vmem:[%s3911 + $0x60] sm:$0xff]
        %v3925 = vld [vmem:[%s3911 + $0x68] sm:$0xff]
        %v3926 = vld [vmem:[%s3911 + $0x70] sm:$0xff]
        %v3927 = vld [vmem:[%s3911 + $0x78] sm:$0xff]
        %v3928 = vld [vmem:[%s3911 + $0x80] sm:$0xff]
        %v3929 = vld [vmem:[%s3911 + $0x88] sm:$0xff]
        %v3930 = vld [vmem:[%s3911 + $0x90] sm:$0xff]
        %v3931 = vld [vmem:[%s3911 + $0x98] sm:$0xff]
        %v3932 = vld [vmem:[%s3911 + $0xa0] sm:$0xff]
        %v3933 = vld [vmem:[%s3911 + $0xa8] sm:$0xff]
        %v3934 = vld [vmem:[%s3911 + $0xb0] sm:$0xff]
        %v3935 = vld [vmem:[%s3911 + $0xb8] sm:$0xff]
        %v3936 = vld [vmem:[%s3911 + $0xc0] sm:$0xff]
        %v3937 = vld [vmem:[%s3911 + $0xc8] sm:$0xff]
        %v3938 = vld [vmem:[%s3911 + $0xd0] sm:$0xff]
        %v3939 = vld [vmem:[%s3911 + $0xd8] sm:$0xff]
        %v3940 = vld [vmem:[%s3911 + $0xe0] sm:$0xff]
        %v3941 = vld [vmem:[%s3911 + $0xe8] sm:$0xff]
        %v3942 = vld [vmem:[%s3911 + $0xf0] sm:$0xff]
        %v3943 = vld [vmem:[%s3911 + $0xf8] sm:$0xff]
        %v3974 = vunpack.c.l.b16 %v3881
        %v3975 = vunpack.c.h.b16 %v3881
        %v3976 = vunpack.c.l.b16 %v3882
        %v3977 = vunpack.c.h.b16 %v3882
        %v3978 = vunpack.c.l.b16 %v3883
        %v3979 = vunpack.c.h.b16 %v3883
        %v3980 = vunpack.c.l.b16 %v3884
        %v3981 = vunpack.c.h.b16 %v3884
        %v3982 = vunpack.c.l.b16 %v3885
        %v3983 = vunpack.c.h.b16 %v3885
        %v3984 = vunpack.c.l.b16 %v3886
        %v3985 = vunpack.c.h.b16 %v3886
        %v3986 = vunpack.c.l.b16 %v3887
        %v3987 = vunpack.c.h.b16 %v3887
        %v3988 = vunpack.c.l.b16 %v3888
        %v3989 = vunpack.c.h.b16 %v3888
        %v3990 = vunpack.c.l.b16 %v3889
        %v3991 = vunpack.c.h.b16 %v3889
        %v3992 = vunpack.c.l.b16 %v3890
        %v3993 = vunpack.c.h.b16 %v3890
        %v3994 = vunpack.c.l.b16 %v3891
        %v3995 = vunpack.c.h.b16 %v3891
        %v3996 = vunpack.c.l.b16 %v3892
        %v3997 = vunpack.c.h.b16 %v3892
        %v3998 = vunpack.c.l.b16 %v3893
        %v3999 = vunpack.c.h.b16 %v3893
        %v4000 = vunpack.c.l.b16 %v3894
        %v4001 = vunpack.c.h.b16 %v3894
        %v4002 = vunpack.c.l.b16 %v3895
        %v4003 = vunpack.c.h.b16 %v3895
        %v4004 = vunpack.c.l.b16 %v3896
        %v4005 = vunpack.c.h.b16 %v3896
        %v4006 = vunpack.c.l.b16 %v3897
        %v4007 = vunpack.c.h.b16 %v3897
        %v4008 = vunpack.c.l.b16 %v3898
        %v4009 = vunpack.c.h.b16 %v3898
        %v4010 = vunpack.c.l.b16 %v3899
        %v4011 = vunpack.c.h.b16 %v3899
        %v4012 = vunpack.c.l.b16 %v3900
        %v4013 = vunpack.c.h.b16 %v3900
        %v4014 = vunpack.c.l.b16 %v3901
        %v4015 = vunpack.c.h.b16 %v3901
        %v4016 = vunpack.c.l.b16 %v3902
        %v4017 = vunpack.c.h.b16 %v3902
        %v4018 = vunpack.c.l.b16 %v3903
        %v4019 = vunpack.c.h.b16 %v3903
        %v4020 = vunpack.c.l.b16 %v3904
        %v4021 = vunpack.c.h.b16 %v3904
        %v4022 = vunpack.c.l.b16 %v3905
        %v4023 = vunpack.c.h.b16 %v3905
        %v4024 = vunpack.c.l.b16 %v3906
        %v4025 = vunpack.c.h.b16 %v3906
        %v4026 = vunpack.c.l.b16 %v3907
        %v4027 = vunpack.c.h.b16 %v3907
        %v4028 = vunpack.c.l.b16 %v3908
        %v4029 = vunpack.c.h.b16 %v3908
        %v4030 = vunpack.c.l.b16 %v3909
        %v4031 = vunpack.c.h.b16 %v3909
        %v4032 = vunpack.c.l.b16 %v3910
        %v4033 = vunpack.c.h.b16 %v3910
        %v4034 = vpack.c.b16 %v3976, %v3974
        %v4035 = vpack.c.b16 %v3977, %v3975
        %v4036 = vpack.c.b16 %v3980, %v3978
        %v4037 = vpack.c.b16 %v3981, %v3979
        %v4038 = vpack.c.b16 %v3984, %v3982
        %v4039 = vpack.c.b16 %v3985, %v3983
        %v4040 = vpack.c.b16 %v3988, %v3986
        %v4041 = vpack.c.b16 %v3989, %v3987
        %v4042 = vpack.c.b16 %v3992, %v3990
        %v4043 = vpack.c.b16 %v3993, %v3991
        %v4044 = vpack.c.b16 %v3996, %v3994
        %v4045 = vpack.c.b16 %v3997, %v3995
        %v4046 = vpack.c.b16 %v4000, %v3998
        %v4047 = vpack.c.b16 %v4001, %v3999
        %v4048 = vpack.c.b16 %v4004, %v4002
        %v4049 = vpack.c.b16 %v4005, %v4003
        %v4050 = vpack.c.b16 %v4008, %v4006
        %v4051 = vpack.c.b16 %v4009, %v4007
        %v4052 = vpack.c.b16 %v4012, %v4010
        %v4053 = vpack.c.b16 %v4013, %v4011
        %v4054 = vpack.c.b16 %v4016, %v4014
        %v4055 = vpack.c.b16 %v4017, %v4015
        %v4056 = vpack.c.b16 %v4020, %v4018
        %v4057 = vpack.c.b16 %v4021, %v4019
        %v4058 = vpack.c.b16 %v4024, %v4022
        %v4059 = vpack.c.b16 %v4025, %v4023
        %v4060 = vpack.c.b16 %v4028, %v4026
        %v4061 = vpack.c.b16 %v4029, %v4027
        %v4062 = vpack.c.b16 %v4032, %v4030
        %v4063 = vpack.c.b16 %v4033, %v4031
        %v4126 = vunpack.c.l.b16 %v3912
        %v4127 = vunpack.c.h.b16 %v3912
        %v4128 = vunpack.c.l.b16 %v3913
        %v4129 = vunpack.c.h.b16 %v3913
        %v4130 = vunpack.c.l.b16 %v3914
        %v4131 = vunpack.c.h.b16 %v3914
        %v4132 = vunpack.c.l.b16 %v3915
        %v4133 = vunpack.c.h.b16 %v3915
        %v4134 = vunpack.c.l.b16 %v3916
        %v4135 = vunpack.c.h.b16 %v3916
        %v4136 = vunpack.c.l.b16 %v3917
        %v4137 = vunpack.c.h.b16 %v3917
        %v4138 = vunpack.c.l.b16 %v3918
        %v4139 = vunpack.c.h.b16 %v3918
        %v4140 = vunpack.c.l.b16 %v3919
        %v4141 = vunpack.c.h.b16 %v3919
        %v4142 = vunpack.c.l.b16 %v3920
        %v4143 = vunpack.c.h.b16 %v3920
        %v4144 = vunpack.c.l.b16 %v3921
        %v4145 = vunpack.c.h.b16 %v3921
        %v4146 = vunpack.c.l.b16 %v3922
        %v4147 = vunpack.c.h.b16 %v3922
        %v4148 = vunpack.c.l.b16 %v3923
        %v4149 = vunpack.c.h.b16 %v3923
        %v4150 = vunpack.c.l.b16 %v3924
        %v4151 = vunpack.c.h.b16 %v3924
        %v4152 = vunpack.c.l.b16 %v3925
        %v4153 = vunpack.c.h.b16 %v3925
        %v4154 = vunpack.c.l.b16 %v3926
        %v4155 = vunpack.c.h.b16 %v3926
        %v4156 = vunpack.c.l.b16 %v3927
        %v4157 = vunpack.c.h.b16 %v3927
        %v4158 = vunpack.c.l.b16 %v3928
        %v4159 = vunpack.c.h.b16 %v3928
        %v4160 = vunpack.c.l.b16 %v3929
        %v4161 = vunpack.c.h.b16 %v3929
        %v4162 = vunpack.c.l.b16 %v3930
        %v4163 = vunpack.c.h.b16 %v3930
        %v4164 = vunpack.c.l.b16 %v3931
        %v4165 = vunpack.c.h.b16 %v3931
        %v4166 = vunpack.c.l.b16 %v3932
        %v4167 = vunpack.c.h.b16 %v3932
        %v4168 = vunpack.c.l.b16 %v3933
        %v4169 = vunpack.c.h.b16 %v3933
        %v4170 = vunpack.c.l.b16 %v3934
        %v4171 = vunpack.c.h.b16 %v3934
        %v4172 = vunpack.c.l.b16 %v3935
        %v4173 = vunpack.c.h.b16 %v3935
        %v4174 = vunpack.c.l.b16 %v3936
        %v4175 = vunpack.c.h.b16 %v3936
        %v4176 = vunpack.c.l.b16 %v3937
        %v4177 = vunpack.c.h.b16 %v3937
        %v4178 = vunpack.c.l.b16 %v3938
        %v4179 = vunpack.c.h.b16 %v3938
        %v4180 = vunpack.c.l.b16 %v3939
        %v4181 = vunpack.c.h.b16 %v3939
        %v4182 = vunpack.c.l.b16 %v3940
        %v4183 = vunpack.c.h.b16 %v3940
        %v4184 = vunpack.c.l.b16 %v3941
        %v4185 = vunpack.c.h.b16 %v3941
        %v4186 = vunpack.c.l.b16 %v3942
        %v4187 = vunpack.c.h.b16 %v3942
        %v4188 = vunpack.c.l.b16 %v3943
        %v4189 = vunpack.c.h.b16 %v3943
        %v4190 = vpack.c.b16 %v4128, %v4126
        %v4191 = vpack.c.b16 %v4129, %v4127
        %v4192 = vpack.c.b16 %v4132, %v4130
        %v4193 = vpack.c.b16 %v4133, %v4131
        %v4194 = vpack.c.b16 %v4136, %v4134
        %v4195 = vpack.c.b16 %v4137, %v4135
        %v4196 = vpack.c.b16 %v4140, %v4138
        %v4197 = vpack.c.b16 %v4141, %v4139
        %v4198 = vpack.c.b16 %v4144, %v4142
        %v4199 = vpack.c.b16 %v4145, %v4143
        %v4200 = vpack.c.b16 %v4148, %v4146
        %v4201 = vpack.c.b16 %v4149, %v4147
        %v4202 = vpack.c.b16 %v4152, %v4150
        %v4203 = vpack.c.b16 %v4153, %v4151
        %v4204 = vpack.c.b16 %v4156, %v4154
        %v4205 = vpack.c.b16 %v4157, %v4155
        %v4206 = vpack.c.b16 %v4160, %v4158
        %v4207 = vpack.c.b16 %v4161, %v4159
        %v4208 = vpack.c.b16 %v4164, %v4162
        %v4209 = vpack.c.b16 %v4165, %v4163
        %v4210 = vpack.c.b16 %v4168, %v4166
        %v4211 = vpack.c.b16 %v4169, %v4167
        %v4212 = vpack.c.b16 %v4172, %v4170
        %v4213 = vpack.c.b16 %v4173, %v4171
        %v4214 = vpack.c.b16 %v4176, %v4174
        %v4215 = vpack.c.b16 %v4177, %v4175
        %v4216 = vpack.c.b16 %v4180, %v4178
        %v4217 = vpack.c.b16 %v4181, %v4179
        %v4218 = vpack.c.b16 %v4184, %v4182
        %v4219 = vpack.c.b16 %v4185, %v4183
        %v4220 = vpack.c.b16 %v4188, %v4186
        %v4221 = vpack.c.b16 %v4189, %v4187
        %4254 = vmatprep.subr.bf16.mxu0 %v4191
        %4255 = vmatpush1.bf16.msra.mxu0 %v4190
        %4256 = vmatprep.subr.bf16.mxu0 %v4193
        %4257 = vmatpush1.bf16.msra.mxu0 %v4192
        %4258 = vmatprep.subr.bf16.mxu0 %v4195
        %4259 = vmatpush1.bf16.msra.mxu0 %v4194
        %4260 = vmatprep.subr.bf16.mxu0 %v4197
        %4261 = vmatpush1.bf16.msra.mxu0 %v4196
        %4262 = vmatprep.subr.bf16.mxu0 %v4199
        %4263 = vmatpush1.bf16.msra.mxu0 %v4198
        %4264 = vmatprep.subr.bf16.mxu0 %v4201
        %4265 = vmatpush1.bf16.msra.mxu0 %v4200
        %4266 = vmatprep.subr.bf16.mxu0 %v4203
        %4267 = vmatpush1.bf16.msra.mxu0 %v4202
        %4268 = vmatprep.subr.bf16.mxu0 %v4205
        %4269 = vmatpush1.bf16.msra.mxu0 %v4204
        %4270 = vmatprep.subr.bf16.mxu0 %v4207
        %4271 = vmatpush1.bf16.msra.mxu0 %v4206
        %4272 = vmatprep.subr.bf16.mxu0 %v4209
        %4273 = vmatpush1.bf16.msra.mxu0 %v4208
        %4274 = vmatprep.subr.bf16.mxu0 %v4211
        %4275 = vmatpush1.bf16.msra.mxu0 %v4210
        %4276 = vmatprep.subr.bf16.mxu0 %v4213
        %4277 = vmatpush1.bf16.msra.mxu0 %v4212
        %4278 = vmatprep.subr.bf16.mxu0 %v4215
        %4279 = vmatpush1.bf16.msra.mxu0 %v4214
        %4280 = vmatprep.subr.bf16.mxu0 %v4217
        %4281 = vmatpush1.bf16.msra.mxu0 %v4216
        %4282 = vmatprep.subr.bf16.mxu0 %v4219
        %4283 = vmatpush1.bf16.msra.mxu0 %v4218
        %4284 = vmatprep.subr.bf16.mxu0 %v4221
        %4285 = vmatpush1.bf16.msra.mxu0 %v4220
        %4286 = vmatprep.mubr.bf16.mxu0 %v4035
        %4287 = vmatmul.mubr.bf16.gmra.mrb[0].mxu0 %v4034
        %v4288 = vpop.f32.mrb[0].mxu0
        %v4289 = vadd.f32 0.0, %v4288
        %v4290 = vpop.f32.mrb[0].mxu0
        %v4291 = vadd.f32 0.0, %v4290
        %v4292 = vpop.f32.mrb[0].mxu0
        %v4293 = vadd.f32 0.0, %v4292
        %v4294 = vpop.f32.mrb[0].mxu0
        %v4295 = vadd.f32 0.0, %v4294
        %4296 = vmatprep.mubr.bf16.mxu0 %v4037
        %4297 = vmatmul.mubr.bf16.gmra.mrb[0].mxu0 %v4036
        %v4298 = vpop.f32.mrb[0].mxu0
        %v4299 = vadd.f32 0.0, %v4298
        %v4300 = vpop.f32.mrb[0].mxu0
        %v4301 = vadd.f32 0.0, %v4300
        %v4302 = vpop.f32.mrb[0].mxu0
        %v4303 = vadd.f32 0.0, %v4302
        %v4304 = vpop.f32.mrb[0].mxu0
        %v4305 = vadd.f32 0.0, %v4304
        %4306 = vmatprep.mubr.bf16.mxu0 %v4039
        %4307 = vmatmul.mubr.bf16.gmra.mrb[0].mxu0 %v4038
        %v4308 = vpop.f32.mrb[0].mxu0
        %v4309 = vadd.f32 0.0, %v4308
        %v4310 = vpop.f32.mrb[0].mxu0
        %v4311 = vadd.f32 0.0, %v4310
        %v4312 = vpop.f32.mrb[0].mxu0
        %v4313 = vadd.f32 0.0, %v4312
        %v4314 = vpop.f32.mrb[0].mxu0
        %v4315 = vadd.f32 0.0, %v4314
        %4316 = vmatprep.mubr.bf16.mxu0 %v4041
        %4317 = vmatmul.mubr.bf16.gmra.mrb[0].mxu0 %v4040
        %v4318 = vpop.f32.mrb[0].mxu0
        %v4319 = vadd.f32 0.0, %v4318
        %v4320 = vpop.f32.mrb[0].mxu0
        %v4321 = vadd.f32 0.0, %v4320
        %v4322 = vpop.f32.mrb[0].mxu0
        %v4323 = vadd.f32 0.0, %v4322
        %v4324 = vpop.f32.mrb[0].mxu0
        %v4325 = vadd.f32 0.0, %v4324
        %4326 = vmatprep.mubr.bf16.mxu0 %v4043
        %4327 = vmatmul.mubr.bf16.gmra.mrb[0].mxu0 %v4042
        %v4328 = vpop.f32.mrb[0].mxu0
        %v4329 = vadd.f32 0.0, %v4328
        %v4330 = vpop.f32.mrb[0].mxu0
        %v4331 = vadd.f32 0.0, %v4330
        %v4332 = vpop.f32.mrb[0].mxu0
        %v4333 = vadd.f32 0.0, %v4332
        %v4334 = vpop.f32.mrb[0].mxu0
        %v4335 = vadd.f32 0.0, %v4334
        %4336 = vmatprep.mubr.bf16.mxu0 %v4045
        %4337 = vmatmul.mubr.bf16.gmra.mrb[0].mxu0 %v4044
        %v4338 = vpop.f32.mrb[0].mxu0
        %v4339 = vadd.f32 0.0, %v4338
        %v4340 = vpop.f32.mrb[0].mxu0
        %v4341 = vadd.f32 0.0, %v4340
        %v4342 = vpop.f32.mrb[0].mxu0
        %v4343 = vadd.f32 0.0, %v4342
        %v4344 = vpop.f32.mrb[0].mxu0
        %v4345 = vadd.f32 0.0, %v4344
        %4346 = vmatprep.mubr.bf16.mxu0 %v4047
        %4347 = vmatmul.mubr.bf16.gmra.mrb[0].mxu0 %v4046
        %v4348 = vpop.f32.mrb[0].mxu0
        %v4349 = vadd.f32 0.0, %v4348
        %v4350 = vpop.f32.mrb[0].mxu0
        %v4351 = vadd.f32 0.0, %v4350
        %v4352 = vpop.f32.mrb[0].mxu0
        %v4353 = vadd.f32 0.0, %v4352
        %v4354 = vpop.f32.mrb[0].mxu0
        %v4355 = vadd.f32 0.0, %v4354
        %4356 = vmatprep.mubr.bf16.mxu0 %v4049
        %4357 = vmatmul.mubr.bf16.gmra.mrb[0].mxu0 %v4048
        %v4358 = vpop.f32.mrb[0].mxu0
        %v4359 = vadd.f32 0.0, %v4358
        %v4360 = vpop.f32.mrb[0].mxu0
        %v4361 = vadd.f32 0.0, %v4360
        %v4362 = vpop.f32.mrb[0].mxu0
        %v4363 = vadd.f32 0.0, %v4362
        %v4364 = vpop.f32.mrb[0].mxu0
        %v4365 = vadd.f32 0.0, %v4364
        %4366 = vmatprep.mubr.bf16.mxu0 %v4051
        %4367 = vmatmul.mubr.bf16.gmra.mrb[0].mxu0 %v4050
        %v4368 = vpop.f32.mrb[0].mxu0
        %v4369 = vadd.f32 0.0, %v4368
        %v4370 = vpop.f32.mrb[0].mxu0
        %v4371 = vadd.f32 0.0, %v4370
        %v4372 = vpop.f32.mrb[0].mxu0
        %v4373 = vadd.f32 0.0, %v4372
        %v4374 = vpop.f32.mrb[0].mxu0
        %v4375 = vadd.f32 0.0, %v4374
        %4376 = vmatprep.mubr.bf16.mxu0 %v4053
        %4377 = vmatmul.mubr.bf16.gmra.mrb[0].mxu0 %v4052
        %v4378 = vpop.f32.mrb[0].mxu0
        %v4379 = vadd.f32 0.0, %v4378
        %v4380 = vpop.f32.mrb[0].mxu0
        %v4381 = vadd.f32 0.0, %v4380
        %v4382 = vpop.f32.mrb[0].mxu0
        %v4383 = vadd.f32 0.0, %v4382
        %v4384 = vpop.f32.mrb[0].mxu0
        %v4385 = vadd.f32 0.0, %v4384
        %4386 = vmatprep.mubr.bf16.mxu0 %v4055
        %4387 = vmatmul.mubr.bf16.gmra.mrb[0].mxu0 %v4054
        %v4388 = vpop.f32.mrb[0].mxu0
        %v4389 = vadd.f32 0.0, %v4388
        %v4390 = vpop.f32.mrb[0].mxu0
        %v4391 = vadd.f32 0.0, %v4390
        %v4392 = vpop.f32.mrb[0].mxu0
        %v4393 = vadd.f32 0.0, %v4392
        %v4394 = vpop.f32.mrb[0].mxu0
        %v4395 = vadd.f32 0.0, %v4394
        %4396 = vmatprep.mubr.bf16.mxu0 %v4057
        %4397 = vmatmul.mubr.bf16.gmra.mrb[0].mxu0 %v4056
        %v4398 = vpop.f32.mrb[0].mxu0
        %v4399 = vadd.f32 0.0, %v4398
        %v4400 = vpop.f32.mrb[0].mxu0
        %v4401 = vadd.f32 0.0, %v4400
        %v4402 = vpop.f32.mrb[0].mxu0
        %v4403 = vadd.f32 0.0, %v4402
        %v4404 = vpop.f32.mrb[0].mxu0
        %v4405 = vadd.f32 0.0, %v4404
        %4406 = vmatprep.mubr.bf16.mxu0 %v4059
        %4407 = vmatmul.mubr.bf16.gmra.mrb[0].mxu0 %v4058
        %v4408 = vpop.f32.mrb[0].mxu0
        %v4409 = vadd.f32 0.0, %v4408
        %v4410 = vpop.f32.mrb[0].mxu0
        %v4411 = vadd.f32 0.0, %v4410
        %v4412 = vpop.f32.mrb[0].mxu0
        %v4413 = vadd.f32 0.0, %v4412
        %v4414 = vpop.f32.mrb[0].mxu0
        %v4415 = vadd.f32 0.0, %v4414
        %4416 = vmatprep.mubr.bf16.mxu0 %v4061
        %4417 = vmatmul.mubr.bf16.gmra.mrb[0].mxu0 %v4060
        %v4418 = vpop.f32.mrb[0].mxu0
        %v4419 = vadd.f32 0.0, %v4418
        %v4420 = vpop.f32.mrb[0].mxu0
        %v4421 = vadd.f32 0.0, %v4420
        %v4422 = vpop.f32.mrb[0].mxu0
        %v4423 = vadd.f32 0.0, %v4422
        %v4424 = vpop.f32.mrb[0].mxu0
        %v4425 = vadd.f32 0.0, %v4424
        %4426 = vmatprep.mubr.bf16.mxu0 %v4063
        %4427 = vmatmul.mubr.bf16.gmra.mrb[0].mxu0 %v4062
        %v4428 = vpop.f32.mrb[0].mxu0
        %v4429 = vadd.f32 0.0, %v4428
        %v4430 = vpop.f32.mrb[0].mxu0
        %v4431 = vadd.f32 0.0, %v4430
        %v4432 = vpop.f32.mrb[0].mxu0
        %v4433 = vadd.f32 0.0, %v4432
        %v4434 = vpop.f32.mrb[0].mxu0
        %v4435 = vadd.f32 0.0, %v4434
        %4436 = vdwg.mxu0
        %v4437 = vld [vmem:[#allocation3] sm:$0xff]
        %v4438 = vld [vmem:[#allocation3 + $0x8] sm:$0xff]
        %v4439 = vld [vmem:[#allocation3 + $0x10] sm:$0xff]
        %v4440 = vld [vmem:[#allocation3 + $0x18] sm:$0xff]
        %v4441 = vld [vmem:[#allocation3 + $0x20] sm:$0xff]
        %v4442 = vld [vmem:[#allocation3 + $0x28] sm:$0xff]
        %v4443 = vld [vmem:[#allocation3 + $0x30] sm:$0xff]
        %v4444 = vld [vmem:[#allocation3 + $0x38] sm:$0xff]
        %v4445 = vld [vmem:[#allocation3 + $0x40] sm:$0xff]
        %v4446 = vld [vmem:[#allocation3 + $0x48] sm:$0xff]
        %v4447 = vld [vmem:[#allocation3 + $0x50] sm:$0xff]
        %v4448 = vld [vmem:[#allocation3 + $0x58] sm:$0xff]
        %v4449 = vld [vmem:[#allocation3 + $0x60] sm:$0xff]
        %v4450 = vld [vmem:[#allocation3 + $0x68] sm:$0xff]
        %v4451 = vld [vmem:[#allocation3 + $0x70] sm:$0xff]
        %v4452 = vld [vmem:[#allocation3 + $0x78] sm:$0xff]
        %v4453 = vld [vmem:[#allocation3 + $0x80] sm:$0xff]
        %v4454 = vld [vmem:[#allocation3 + $0x88] sm:$0xff]
        %v4455 = vld [vmem:[#allocation3 + $0x90] sm:$0xff]
        %v4456 = vld [vmem:[#allocation3 + $0x98] sm:$0xff]
        %v4457 = vld [vmem:[#allocation3 + $0xa0] sm:$0xff]
        %v4458 = vld [vmem:[#allocation3 + $0xa8] sm:$0xff]
        %v4459 = vld [vmem:[#allocation3 + $0xb0] sm:$0xff]
        %v4460 = vld [vmem:[#allocation3 + $0xb8] sm:$0xff]
        %v4461 = vld [vmem:[#allocation3 + $0xc0] sm:$0xff]
        %v4462 = vld [vmem:[#allocation3 + $0xc8] sm:$0xff]
        %v4463 = vld [vmem:[#allocation3 + $0xd0] sm:$0xff]
        %v4464 = vld [vmem:[#allocation3 + $0xd8] sm:$0xff]
        %v4465 = vld [vmem:[#allocation3 + $0xe0] sm:$0xff]
        %v4466 = vld [vmem:[#allocation3 + $0xe8] sm:$0xff]
        %v4467 = vld [vmem:[#allocation3 + $0xf0] sm:$0xff]
        %v4468 = vld [vmem:[#allocation3 + $0xf8] sm:$0xff]
        %v4469 = vld [vmem:[#allocation3 + $0x100] sm:$0xff]
        %v4470 = vld [vmem:[#allocation3 + $0x108] sm:$0xff]
        %v4471 = vld [vmem:[#allocation3 + $0x110] sm:$0xff]
        %v4472 = vld [vmem:[#allocation3 + $0x118] sm:$0xff]
        %v4473 = vld [vmem:[#allocation3 + $0x120] sm:$0xff]
        %v4474 = vld [vmem:[#allocation3 + $0x128] sm:$0xff]
        %v4475 = vld [vmem:[#allocation3 + $0x130] sm:$0xff]
        %v4476 = vld [vmem:[#allocation3 + $0x138] sm:$0xff]
        %v4477 = vld [vmem:[#allocation3 + $0x140] sm:$0xff]
        %v4478 = vld [vmem:[#allocation3 + $0x148] sm:$0xff]
        %v4479 = vld [vmem:[#allocation3 + $0x150] sm:$0xff]
        %v4480 = vld [vmem:[#allocation3 + $0x158] sm:$0xff]
        %v4481 = vld [vmem:[#allocation3 + $0x160] sm:$0xff]
        %v4482 = vld [vmem:[#allocation3 + $0x168] sm:$0xff]
        %v4483 = vld [vmem:[#allocation3 + $0x170] sm:$0xff]
        %v4484 = vld [vmem:[#allocation3 + $0x178] sm:$0xff]
        %v4485 = vld [vmem:[#allocation3 + $0x180] sm:$0xff]
        %v4486 = vld [vmem:[#allocation3 + $0x188] sm:$0xff]
        %v4487 = vld [vmem:[#allocation3 + $0x190] sm:$0xff]
        %v4488 = vld [vmem:[#allocation3 + $0x198] sm:$0xff]
        %v4489 = vld [vmem:[#allocation3 + $0x1a0] sm:$0xff]
        %v4490 = vld [vmem:[#allocation3 + $0x1a8] sm:$0xff]
        %v4491 = vld [vmem:[#allocation3 + $0x1b0] sm:$0xff]
        %v4492 = vld [vmem:[#allocation3 + $0x1b8] sm:$0xff]
        %v4493 = vld [vmem:[#allocation3 + $0x1c0] sm:$0xff]
        %v4494 = vld [vmem:[#allocation3 + $0x1c8] sm:$0xff]
        %v4495 = vld [vmem:[#allocation3 + $0x1d0] sm:$0xff]
        %v4496 = vld [vmem:[#allocation3 + $0x1d8] sm:$0xff]
        %v4497 = vadd.f32 %v4437, %v4289
        %v4498 = vadd.f32 %v4438, %v4291
        %v4499 = vadd.f32 %v4439, %v4293
        %v4500 = vadd.f32 %v4440, %v4295
        %v4501 = vadd.f32 %v4441, %v4299
        %v4502 = vadd.f32 %v4442, %v4301
        %v4503 = vadd.f32 %v4443, %v4303
        %v4504 = vadd.f32 %v4444, %v4305
        %v4505 = vadd.f32 %v4445, %v4309
        %v4506 = vadd.f32 %v4446, %v4311
        %v4507 = vadd.f32 %v4447, %v4313
        %v4508 = vadd.f32 %v4448, %v4315
        %v4509 = vadd.f32 %v4449, %v4319
        %v4510 = vadd.f32 %v4450, %v4321
        %v4511 = vadd.f32 %v4451, %v4323
        %v4512 = vadd.f32 %v4452, %v4325
        %v4513 = vadd.f32 %v4453, %v4329
        %v4514 = vadd.f32 %v4454, %v4331
        %v4515 = vadd.f32 %v4455, %v4333
        %v4516 = vadd.f32 %v4456, %v4335
        %v4517 = vadd.f32 %v4457, %v4339
        %v4518 = vadd.f32 %v4458, %v4341
        %v4519 = vadd.f32 %v4459, %v4343
        %v4520 = vadd.f32 %v4460, %v4345
        %v4521 = vadd.f32 %v4461, %v4349
        %v4522 = vadd.f32 %v4462, %v4351
        %v4523 = vadd.f32 %v4463, %v4353
        %v4524 = vadd.f32 %v4464, %v4355
        %v4525 = vadd.f32 %v4465, %v4359
        %v4526 = vadd.f32 %v4466, %v4361
        %v4527 = vadd.f32 %v4467, %v4363
        %v4528 = vadd.f32 %v4468, %v4365
        %v4529 = vadd.f32 %v4469, %v4369
        %v4530 = vadd.f32 %v4470, %v4371
        %v4531 = vadd.f32 %v4471, %v4373
        %v4532 = vadd.f32 %v4472, %v4375
        %v4533 = vadd.f32 %v4473, %v4379
        %v4534 = vadd.f32 %v4474, %v4381
        %v4535 = vadd.f32 %v4475, %v4383
        %v4536 = vadd.f32 %v4476, %v4385
        %v4537 = vadd.f32 %v4477, %v4389
        %v4538 = vadd.f32 %v4478, %v4391
        %v4539 = vadd.f32 %v4479, %v4393
        %v4540 = vadd.f32 %v4480, %v4395
        %v4541 = vadd.f32 %v4481, %v4399
        %v4542 = vadd.f32 %v4482, %v4401
        %v4543 = vadd.f32 %v4483, %v4403
        %v4544 = vadd.f32 %v4484, %v4405
        %v4545 = vadd.f32 %v4485, %v4409
        %v4546 = vadd.f32 %v4486, %v4411
        %v4547 = vadd.f32 %v4487, %v4413
        %v4548 = vadd.f32 %v4488, %v4415
        %v4549 = vadd.f32 %v4489, %v4419
        %v4550 = vadd.f32 %v4490, %v4421
        %v4551 = vadd.f32 %v4491, %v4423
        %v4552 = vadd.f32 %v4492, %v4425
        %v4553 = vadd.f32 %v4493, %v4429
        %v4554 = vadd.f32 %v4494, %v4431
        %v4555 = vadd.f32 %v4495, %v4433
        %v4556 = vadd.f32 %v4496, %v4435
        %4557 = vst [vmem:[#allocation3] sm:$0xff] %v4497
        %4558 = vst [vmem:[#allocation3 + $0x8] sm:$0xff] %v4498
        %4559 = vst [vmem:[#allocation3 + $0x10] sm:$0xff] %v4499
        %4560 = vst [vmem:[#allocation3 + $0x18] sm:$0xff] %v4500
        %4561 = vst [vmem:[#allocation3 + $0x20] sm:$0xff] %v4501
        %4562 = vst [vmem:[#allocation3 + $0x28] sm:$0xff] %v4502
        %4563 = vst [vmem:[#allocation3 + $0x30] sm:$0xff] %v4503
        %4564 = vst [vmem:[#allocation3 + $0x38] sm:$0xff] %v4504
        %4565 = vst [vmem:[#allocation3 + $0x40] sm:$0xff] %v4505
        %4566 = vst [vmem:[#allocation3 + $0x48] sm:$0xff] %v4506
        %4567 = vst [vmem:[#allocation3 + $0x50] sm:$0xff] %v4507
        %4568 = vst [vmem:[#allocation3 + $0x58] sm:$0xff] %v4508
        %4569 = vst [vmem:[#allocation3 + $0x60] sm:$0xff] %v4509
        %4570 = vst [vmem:[#allocation3 + $0x68] sm:$0xff] %v4510
        %4571 = vst [vmem:[#allocation3 + $0x70] sm:$0xff] %v4511
        %4572 = vst [vmem:[#allocation3 + $0x78] sm:$0xff] %v4512
        %4573 = vst [vmem:[#allocation3 + $0x80] sm:$0xff] %v4513
        %4574 = vst [vmem:[#allocation3 + $0x88] sm:$0xff] %v4514
        %4575 = vst [vmem:[#allocation3 + $0x90] sm:$0xff] %v4515
        %4576 = vst [vmem:[#allocation3 + $0x98] sm:$0xff] %v4516
        %4577 = vst [vmem:[#allocation3 + $0xa0] sm:$0xff] %v4517
        %4578 = vst [vmem:[#allocation3 + $0xa8] sm:$0xff] %v4518
        %4579 = vst [vmem:[#allocation3 + $0xb0] sm:$0xff] %v4519
        %4580 = vst [vmem:[#allocation3 + $0xb8] sm:$0xff] %v4520
        %4581 = vst [vmem:[#allocation3 + $0xc0] sm:$0xff] %v4521
        %4582 = vst [vmem:[#allocation3 + $0xc8] sm:$0xff] %v4522
        %4583 = vst [vmem:[#allocation3 + $0xd0] sm:$0xff] %v4523
        %4584 = vst [vmem:[#allocation3 + $0xd8] sm:$0xff] %v4524
        %4585 = vst [vmem:[#allocation3 + $0xe0] sm:$0xff] %v4525
        %4586 = vst [vmem:[#allocation3 + $0xe8] sm:$0xff] %v4526
        %4587 = vst [vmem:[#allocation3 + $0xf0] sm:$0xff] %v4527
        %4588 = vst [vmem:[#allocation3 + $0xf8] sm:$0xff] %v4528
        %4589 = vst [vmem:[#allocation3 + $0x100] sm:$0xff] %v4529
        %4590 = vst [vmem:[#allocation3 + $0x108] sm:$0xff] %v4530
        %4591 = vst [vmem:[#allocation3 + $0x110] sm:$0xff] %v4531
        %4592 = vst [vmem:[#allocation3 + $0x118] sm:$0xff] %v4532
        %4593 = vst [vmem:[#allocation3 + $0x120] sm:$0xff] %v4533
        %4594 = vst [vmem:[#allocation3 + $0x128] sm:$0xff] %v4534
        %4595 = vst [vmem:[#allocation3 + $0x130] sm:$0xff] %v4535
        %4596 = vst [vmem:[#allocation3 + $0x138] sm:$0xff] %v4536
        %4597 = vst [vmem:[#allocation3 + $0x140] sm:$0xff] %v4537
        %4598 = vst [vmem:[#allocation3 + $0x148] sm:$0xff] %v4538
        %4599 = vst [vmem:[#allocation3 + $0x150] sm:$0xff] %v4539
        %4600 = vst [vmem:[#allocation3 + $0x158] sm:$0xff] %v4540
        %4601 = vst [vmem:[#allocation3 + $0x160] sm:$0xff] %v4541
        %4602 = vst [vmem:[#allocation3 + $0x168] sm:$0xff] %v4542
        %4603 = vst [vmem:[#allocation3 + $0x170] sm:$0xff] %v4543
        %4604 = vst [vmem:[#allocation3 + $0x178] sm:$0xff] %v4544
        %4605 = vst [vmem:[#allocation3 + $0x180] sm:$0xff] %v4545
        %4606 = vst [vmem:[#allocation3 + $0x188] sm:$0xff] %v4546
        %4607 = vst [vmem:[#allocation3 + $0x190] sm:$0xff] %v4547
        %4608 = vst [vmem:[#allocation3 + $0x198] sm:$0xff] %v4548
        %4609 = vst [vmem:[#allocation3 + $0x1a0] sm:$0xff] %v4549
        %4610 = vst [vmem:[#allocation3 + $0x1a8] sm:$0xff] %v4550
        %4611 = vst [vmem:[#allocation3 + $0x1b0] sm:$0xff] %v4551
        %4612 = vst [vmem:[#allocation3 + $0x1b8] sm:$0xff] %v4552
        %4613 = vst [vmem:[#allocation3 + $0x1c0] sm:$0xff] %v4553
        %4614 = vst [vmem:[#allocation3 + $0x1c8] sm:$0xff] %v4554
        %4615 = vst [vmem:[#allocation3 + $0x1d0] sm:$0xff] %v4555
        %4616 = vst [vmem:[#allocation3 + $0x1d8] sm:$0xff] %v4556
        %v4617 = vld [vmem:[#allocation2 + $0x18] sm:$0xff]
        %v4618 = vld [vmem:[#allocation2 + $0x20] sm:$0xff]
        %v4619 = vld [vmem:[#allocation2 + $0x28] sm:$0xff]
        %v4620 = vld [vmem:[#allocation2 + $0x30] sm:$0xff]
        %v4621 = vld [vmem:[#allocation2 + $0x38] sm:$0xff]
        %v4622 = vld [vmem:[#allocation2 + $0x40] sm:$0xff]
        %v4623 = vld [vmem:[#allocation2 + $0x48] sm:$0xff]
        %v4624 = vld [vmem:[#allocation2 + $0x50] sm:$0xff]
        %v4625 = vld [vmem:[#allocation2 + $0x58] sm:$0xff]
        %v4626 = vld [vmem:[#allocation2 + $0x60] sm:$0xff]
        %v4627 = vld [vmem:[#allocation2 + $0x68] sm:$0xff]
        %v4628 = vld [vmem:[#allocation2 + $0x70] sm:$0xff]
        %v4629 = vld [vmem:[#allocation2 + $0x78] sm:$0xff]
        %v4630 = vld [vmem:[#allocation2 + $0x80] sm:$0xff]
        %v4631 = vld [vmem:[#allocation2 + $0x88] sm:$0xff]
        %v4632 = vld [vmem:[#allocation2 + $0x90] sm:$0xff]
        %v4633 = vld [vmem:[#allocation2 + $0x98] sm:$0xff]
        %v4634 = vld [vmem:[#allocation2 + $0xa0] sm:$0xff]
        %v4635 = vld [vmem:[#allocation2 + $0xa8] sm:$0xff]
        %v4636 = vld [vmem:[#allocation2 + $0xb0] sm:$0xff]
        %v4637 = vld [vmem:[#allocation2 + $0xb8] sm:$0xff]
        %v4638 = vld [vmem:[#allocation2 + $0xc0] sm:$0xff]
        %v4639 = vld [vmem:[#allocation2 + $0xc8] sm:$0xff]
        %v4640 = vld [vmem:[#allocation2 + $0xd0] sm:$0xff]
        %v4641 = vld [vmem:[#allocation2 + $0xd8] sm:$0xff]
        %v4642 = vld [vmem:[#allocation2 + $0xe0] sm:$0xff]
        %v4643 = vld [vmem:[#allocation2 + $0xe8] sm:$0xff]
        %v4644 = vld [vmem:[#allocation2 + $0xf0] sm:$0xff]
        %v4645 = vld [vmem:[#allocation2 + $0xf8] sm:$0xff]
        %v4646 = vld [vmem:[#allocation2 + $0x100] sm:$0xff]
        %v4647 = vld [vmem:[#allocation2 + $0x108] sm:$0x11]
        %s4648 = scalar_lea.vmem [#allocation12], 1024
        %v4649 = vld [vmem:[%s4648] sm:$0xff]
        %v4650 = vld [vmem:[%s4648 + $0x8] sm:$0xff]
        %v4651 = vld [vmem:[%s4648 + $0x10] sm:$0xff]
        %v4652 = vld [vmem:[%s4648 + $0x18] sm:$0xff]
        %v4653 = vld [vmem:[%s4648 + $0x20] sm:$0xff]
        %v4654 = vld [vmem:[%s4648 + $0x28] sm:$0xff]
        %v4655 = vld [vmem:[%s4648 + $0x30] sm:$0xff]
        %v4656 = vld [vmem:[%s4648 + $0x38] sm:$0xff]
        %v4657 = vld [vmem:[%s4648 + $0x40] sm:$0xff]
        %v4658 = vld [vmem:[%s4648 + $0x48] sm:$0xff]
        %v4659 = vld [vmem:[%s4648 + $0x50] sm:$0xff]
        %v4660 = vld [vmem:[%s4648 + $0x58] sm:$0xff]
        %v4661 = vld [vmem:[%s4648 + $0x60] sm:$0xff]
        %v4662 = vld [vmem:[%s4648 + $0x68] sm:$0xff]
        %v4663 = vld [vmem:[%s4648 + $0x70] sm:$0xff]
        %v4664 = vld [vmem:[%s4648 + $0x78] sm:$0xff]
        %v4665 = vld [vmem:[%s4648 + $0x80] sm:$0xff]
        %v4666 = vld [vmem:[%s4648 + $0x88] sm:$0xff]
        %v4667 = vld [vmem:[%s4648 + $0x90] sm:$0xff]
        %v4668 = vld [vmem:[%s4648 + $0x98] sm:$0xff]
        %v4669 = vld [vmem:[%s4648 + $0xa0] sm:$0xff]
        %v4670 = vld [vmem:[%s4648 + $0xa8] sm:$0xff]
        %v4671 = vld [vmem:[%s4648 + $0xb0] sm:$0xff]
        %v4672 = vld [vmem:[%s4648 + $0xb8] sm:$0xff]
        %v4673 = vld [vmem:[%s4648 + $0xc0] sm:$0xff]
        %v4674 = vld [vmem:[%s4648 + $0xc8] sm:$0xff]
        %v4675 = vld [vmem:[%s4648 + $0xd0] sm:$0xff]
        %v4676 = vld [vmem:[%s4648 + $0xd8] sm:$0xff]
        %v4677 = vld [vmem:[%s4648 + $0xe0] sm:$0xff]
        %v4678 = vld [vmem:[%s4648 + $0xe8] sm:$0xff]
        %v4679 = vld [vmem:[%s4648 + $0xf0] sm:$0xff]
        %v4680 = vld [vmem:[%s4648 + $0xf8] sm:$0xff]
        %v4712 = vunpack.c.l.b16 %v4617
        %v4713 = vunpack.c.h.b16 %v4617
        %v4714 = vunpack.c.l.b16 %v4618
        %v4715 = vunpack.c.h.b16 %v4618
        %v4716 = vunpack.c.l.b16 %v4619
        %v4717 = vunpack.c.h.b16 %v4619
        %v4718 = vunpack.c.l.b16 %v4620
        %v4719 = vunpack.c.h.b16 %v4620
        %v4720 = vunpack.c.l.b16 %v4621
        %v4721 = vunpack.c.h.b16 %v4621
        %v4722 = vunpack.c.l.b16 %v4622
        %v4723 = vunpack.c.h.b16 %v4622
        %v4724 = vunpack.c.l.b16 %v4623
        %v4725 = vunpack.c.h.b16 %v4623
        %v4726 = vunpack.c.l.b16 %v4624
        %v4727 = vunpack.c.h.b16 %v4624
        %v4728 = vunpack.c.l.b16 %v4625
        %v4729 = vunpack.c.h.b16 %v4625
        %v4730 = vunpack.c.l.b16 %v4626
        %v4731 = vunpack.c.h.b16 %v4626
        %v4732 = vunpack.c.l.b16 %v4627
        %v4733 = vunpack.c.h.b16 %v4627
        %v4734 = vunpack.c.l.b16 %v4628
        %v4735 = vunpack.c.h.b16 %v4628
        %v4736 = vunpack.c.l.b16 %v4629
        %v4737 = vunpack.c.h.b16 %v4629
        %v4738 = vunpack.c.l.b16 %v4630
        %v4739 = vunpack.c.h.b16 %v4630
        %v4740 = vunpack.c.l.b16 %v4631
        %v4741 = vunpack.c.h.b16 %v4631
        %v4742 = vunpack.c.l.b16 %v4632
        %v4743 = vunpack.c.h.b16 %v4632
        %v4744 = vunpack.c.l.b16 %v4633
        %v4745 = vunpack.c.h.b16 %v4633
        %v4746 = vunpack.c.l.b16 %v4634
        %v4747 = vunpack.c.h.b16 %v4634
        %v4748 = vunpack.c.l.b16 %v4635
        %v4749 = vunpack.c.h.b16 %v4635
        %v4750 = vunpack.c.l.b16 %v4636
        %v4751 = vunpack.c.h.b16 %v4636
        %v4752 = vunpack.c.l.b16 %v4637
        %v4753 = vunpack.c.h.b16 %v4637
        %v4754 = vunpack.c.l.b16 %v4638
        %v4755 = vunpack.c.h.b16 %v4638
        %v4756 = vunpack.c.l.b16 %v4639
        %v4757 = vunpack.c.h.b16 %v4639
        %v4758 = vunpack.c.l.b16 %v4640
        %v4759 = vunpack.c.h.b16 %v4640
        %v4760 = vunpack.c.l.b16 %v4641
        %v4761 = vunpack.c.h.b16 %v4641
        %v4762 = vunpack.c.l.b16 %v4642
        %v4763 = vunpack.c.h.b16 %v4642
        %v4764 = vunpack.c.l.b16 %v4643
        %v4765 = vunpack.c.h.b16 %v4643
        %v4766 = vunpack.c.l.b16 %v4644
        %v4767 = vunpack.c.h.b16 %v4644
        %v4768 = vunpack.c.l.b16 %v4645
        %v4769 = vunpack.c.h.b16 %v4645
        %v4770 = vunpack.c.l.b16 %v4646
        %v4771 = vunpack.c.h.b16 %v4646
        %v4772 = vunpack.c.l.b16 %v4647
        %v4773 = vunpack.c.h.b16 %v4647
        %v4774 = vpack.c.b16 %v4714, %v4712
        %v4775 = vpack.c.b16 %v4715, %v4713
        %v4776 = vpack.c.b16 %v4718, %v4716
        %v4777 = vpack.c.b16 %v4719, %v4717
        %v4778 = vpack.c.b16 %v4722, %v4720
        %v4779 = vpack.c.b16 %v4723, %v4721
        %v4780 = vpack.c.b16 %v4726, %v4724
        %v4781 = vpack.c.b16 %v4727, %v4725
        %v4782 = vpack.c.b16 %v4730, %v4728
        %v4783 = vpack.c.b16 %v4731, %v4729
        %v4784 = vpack.c.b16 %v4734, %v4732
        %v4785 = vpack.c.b16 %v4735, %v4733
        %v4786 = vpack.c.b16 %v4738, %v4736
        %v4787 = vpack.c.b16 %v4739, %v4737
        %v4788 = vpack.c.b16 %v4742, %v4740
        %v4789 = vpack.c.b16 %v4743, %v4741
        %v4790 = vpack.c.b16 %v4746, %v4744
        %v4791 = vpack.c.b16 %v4747, %v4745
        %v4792 = vpack.c.b16 %v4750, %v4748
        %v4793 = vpack.c.b16 %v4751, %v4749
        %v4794 = vpack.c.b16 %v4754, %v4752
        %v4795 = vpack.c.b16 %v4755, %v4753
        %v4796 = vpack.c.b16 %v4758, %v4756
        %v4797 = vpack.c.b16 %v4759, %v4757
        %v4798 = vpack.c.b16 %v4762, %v4760
        %v4799 = vpack.c.b16 %v4763, %v4761
        %v4800 = vpack.c.b16 %v4766, %v4764
        %v4801 = vpack.c.b16 %v4767, %v4765
        %v4802 = vpack.c.b16 %v4770, %v4768
        %v4803 = vpack.c.b16 %v4771, %v4769
        %v4804 = vpack.c.b16 %v4772, %v4772
        %v4805 = vpack.c.b16 %v4773, %v4773
        %v4807 = vshrl.u32 %v4774, 16
        %v4809 = vshll.u32 %v4774, 16
        %v4811 = vrot.slane %v4809, 1
        %v4812 = vor.u32 %v4807, %v4811
        %v4814 = vshll.u32 %v4776, 16
        %v4816 = vrot.slane %v4814, 1
        %v4817 = vsel %vm2274, %v4812, %v4816
        %v4819 = vshrl.u32 %v4775, 16
        %v4821 = vshll.u32 %v4775, 16
        %v4823 = vrot.slane %v4821, 1
        %v4824 = vor.u32 %v4819, %v4823
        %v4826 = vshll.u32 %v4777, 16
        %v4828 = vrot.slane %v4826, 1
        %v4829 = vsel %vm2274, %v4824, %v4828
        %v4830 = vshrl.u32 %v4776, 16
        %v4832 = vor.u32 %v4830, %v4816
        %v4834 = vshll.u32 %v4778, 16
        %v4836 = vrot.slane %v4834, 1
        %v4837 = vsel %vm2274, %v4832, %v4836
        %v4838 = vshrl.u32 %v4777, 16
        %v4840 = vor.u32 %v4838, %v4828
        %v4842 = vshll.u32 %v4779, 16
        %v4844 = vrot.slane %v4842, 1
        %v4845 = vsel %vm2274, %v4840, %v4844
        %v4846 = vshrl.u32 %v4778, 16
        %v4848 = vor.u32 %v4846, %v4836
        %v4850 = vshll.u32 %v4780, 16
        %v4852 = vrot.slane %v4850, 1
        %v4853 = vsel %vm2274, %v4848, %v4852
        %v4854 = vshrl.u32 %v4779, 16
        %v4856 = vor.u32 %v4854, %v4844
        %v4858 = vshll.u32 %v4781, 16
        %v4860 = vrot.slane %v4858, 1
        %v4861 = vsel %vm2274, %v4856, %v4860
        %v4862 = vshrl.u32 %v4780, 16
        %v4864 = vor.u32 %v4862, %v4852
        %v4866 = vshll.u32 %v4782, 16
        %v4868 = vrot.slane %v4866, 1
        %v4869 = vsel %vm2274, %v4864, %v4868
        %v4870 = vshrl.u32 %v4781, 16
        %v4872 = vor.u32 %v4870, %v4860
        %v4874 = vshll.u32 %v4783, 16
        %v4876 = vrot.slane %v4874, 1
        %v4877 = vsel %vm2274, %v4872, %v4876
        %v4878 = vshrl.u32 %v4782, 16
        %v4880 = vor.u32 %v4878, %v4868
        %v4882 = vshll.u32 %v4784, 16
        %v4884 = vrot.slane %v4882, 1
        %v4885 = vsel %vm2274, %v4880, %v4884
        %v4886 = vshrl.u32 %v4783, 16
        %v4888 = vor.u32 %v4886, %v4876
        %v4890 = vshll.u32 %v4785, 16
        %v4892 = vrot.slane %v4890, 1
        %v4893 = vsel %vm2274, %v4888, %v4892
        %v4894 = vshrl.u32 %v4784, 16
        %v4896 = vor.u32 %v4894, %v4884
        %v4898 = vshll.u32 %v4786, 16
        %v4900 = vrot.slane %v4898, 1
        %v4901 = vsel %vm2274, %v4896, %v4900
        %v4902 = vshrl.u32 %v4785, 16
        %v4904 = vor.u32 %v4902, %v4892
        %v4906 = vshll.u32 %v4787, 16
        %v4908 = vrot.slane %v4906, 1
        %v4909 = vsel %vm2274, %v4904, %v4908
        %v4910 = vshrl.u32 %v4786, 16
        %v4912 = vor.u32 %v4910, %v4900
        %v4914 = vshll.u32 %v4788, 16
        %v4916 = vrot.slane %v4914, 1
        %v4917 = vsel %vm2274, %v4912, %v4916
        %v4918 = vshrl.u32 %v4787, 16
        %v4920 = vor.u32 %v4918, %v4908
        %v4922 = vshll.u32 %v4789, 16
        %v4924 = vrot.slane %v4922, 1
        %v4925 = vsel %vm2274, %v4920, %v4924
        %v4926 = vshrl.u32 %v4788, 16
        %v4928 = vor.u32 %v4926, %v4916
        %v4930 = vshll.u32 %v4790, 16
        %v4932 = vrot.slane %v4930, 1
        %v4933 = vsel %vm2274, %v4928, %v4932
        %v4934 = vshrl.u32 %v4789, 16
        %v4936 = vor.u32 %v4934, %v4924
        %v4938 = vshll.u32 %v4791, 16
        %v4940 = vrot.slane %v4938, 1
        %v4941 = vsel %vm2274, %v4936, %v4940
        %v4942 = vshrl.u32 %v4790, 16
        %v4944 = vor.u32 %v4942, %v4932
        %v4946 = vshll.u32 %v4792, 16
        %v4948 = vrot.slane %v4946, 1
        %v4949 = vsel %vm2274, %v4944, %v4948
        %v4950 = vshrl.u32 %v4791, 16
        %v4952 = vor.u32 %v4950, %v4940
        %v4954 = vshll.u32 %v4793, 16
        %v4956 = vrot.slane %v4954, 1
        %v4957 = vsel %vm2274, %v4952, %v4956
        %v4958 = vshrl.u32 %v4792, 16
        %v4960 = vor.u32 %v4958, %v4948
        %v4962 = vshll.u32 %v4794, 16
        %v4964 = vrot.slane %v4962, 1
        %v4965 = vsel %vm2274, %v4960, %v4964
        %v4966 = vshrl.u32 %v4793, 16
        %v4968 = vor.u32 %v4966, %v4956
        %v4970 = vshll.u32 %v4795, 16
        %v4972 = vrot.slane %v4970, 1
        %v4973 = vsel %vm2274, %v4968, %v4972
        %v4974 = vshrl.u32 %v4794, 16
        %v4976 = vor.u32 %v4974, %v4964
        %v4978 = vshll.u32 %v4796, 16
        %v4980 = vrot.slane %v4978, 1
        %v4981 = vsel %vm2274, %v4976, %v4980
        %v4982 = vshrl.u32 %v4795, 16
        %v4984 = vor.u32 %v4982, %v4972
        %v4986 = vshll.u32 %v4797, 16
        %v4988 = vrot.slane %v4986, 1
        %v4989 = vsel %vm2274, %v4984, %v4988
        %v4990 = vshrl.u32 %v4796, 16
        %v4992 = vor.u32 %v4990, %v4980
        %v4994 = vshll.u32 %v4798, 16
        %v4996 = vrot.slane %v4994, 1
        %v4997 = vsel %vm2274, %v4992, %v4996
        %v4998 = vshrl.u32 %v4797, 16
        %v5000 = vor.u32 %v4998, %v4988
        %v5002 = vshll.u32 %v4799, 16
        %v5004 = vrot.slane %v5002, 1
        %v5005 = vsel %vm2274, %v5000, %v5004
        %v5006 = vshrl.u32 %v4798, 16
        %v5008 = vor.u32 %v5006, %v4996
        %v5010 = vshll.u32 %v4800, 16
        %v5012 = vrot.slane %v5010, 1
        %v5013 = vsel %vm2274, %v5008, %v5012
        %v5014 = vshrl.u32 %v4799, 16
        %v5016 = vor.u32 %v5014, %v5004
        %v5018 = vshll.u32 %v4801, 16
        %v5020 = vrot.slane %v5018, 1
        %v5021 = vsel %vm2274, %v5016, %v5020
        %v5022 = vshrl.u32 %v4800, 16
        %v5024 = vor.u32 %v5022, %v5012
        %v5026 = vshll.u32 %v4802, 16
        %v5028 = vrot.slane %v5026, 1
        %v5029 = vsel %vm2274, %v5024, %v5028
        %v5030 = vshrl.u32 %v4801, 16
        %v5032 = vor.u32 %v5030, %v5020
        %v5034 = vshll.u32 %v4803, 16
        %v5036 = vrot.slane %v5034, 1
        %v5037 = vsel %vm2274, %v5032, %v5036
        %v5038 = vshrl.u32 %v4802, 16
        %v5040 = vor.u32 %v5038, %v5028
        %v5042 = vshll.u32 %v4804, 16
        %v5044 = vrot.slane %v5042, 1
        %v5045 = vsel %vm2274, %v5040, %v5044
        %v5046 = vshrl.u32 %v4803, 16
        %v5048 = vor.u32 %v5046, %v5036
        %v5050 = vshll.u32 %v4805, 16
        %v5052 = vrot.slane %v5050, 1
        %v5053 = vsel %vm2274, %v5048, %v5052
        %v5116 = vunpack.c.l.b16 %v4649
        %v5117 = vunpack.c.h.b16 %v4649
        %v5118 = vunpack.c.l.b16 %v4650
        %v5119 = vunpack.c.h.b16 %v4650
        %v5120 = vunpack.c.l.b16 %v4651
        %v5121 = vunpack.c.h.b16 %v4651
        %v5122 = vunpack.c.l.b16 %v4652
        %v5123 = vunpack.c.h.b16 %v4652
        %v5124 = vunpack.c.l.b16 %v4653
        %v5125 = vunpack.c.h.b16 %v4653
        %v5126 = vunpack.c.l.b16 %v4654
        %v5127 = vunpack.c.h.b16 %v4654
        %v5128 = vunpack.c.l.b16 %v4655
        %v5129 = vunpack.c.h.b16 %v4655
        %v5130 = vunpack.c.l.b16 %v4656
        %v5131 = vunpack.c.h.b16 %v4656
        %v5132 = vunpack.c.l.b16 %v4657
        %v5133 = vunpack.c.h.b16 %v4657
        %v5134 = vunpack.c.l.b16 %v4658
        %v5135 = vunpack.c.h.b16 %v4658
        %v5136 = vunpack.c.l.b16 %v4659
        %v5137 = vunpack.c.h.b16 %v4659
        %v5138 = vunpack.c.l.b16 %v4660
        %v5139 = vunpack.c.h.b16 %v4660
        %v5140 = vunpack.c.l.b16 %v4661
        %v5141 = vunpack.c.h.b16 %v4661
        %v5142 = vunpack.c.l.b16 %v4662
        %v5143 = vunpack.c.h.b16 %v4662
        %v5144 = vunpack.c.l.b16 %v4663
        %v5145 = vunpack.c.h.b16 %v4663
        %v5146 = vunpack.c.l.b16 %v4664
        %v5147 = vunpack.c.h.b16 %v4664
        %v5148 = vunpack.c.l.b16 %v4665
        %v5149 = vunpack.c.h.b16 %v4665
        %v5150 = vunpack.c.l.b16 %v4666
        %v5151 = vunpack.c.h.b16 %v4666
        %v5152 = vunpack.c.l.b16 %v4667
        %v5153 = vunpack.c.h.b16 %v4667
        %v5154 = vunpack.c.l.b16 %v4668
        %v5155 = vunpack.c.h.b16 %v4668
        %v5156 = vunpack.c.l.b16 %v4669
        %v5157 = vunpack.c.h.b16 %v4669
        %v5158 = vunpack.c.l.b16 %v4670
        %v5159 = vunpack.c.h.b16 %v4670
        %v5160 = vunpack.c.l.b16 %v4671
        %v5161 = vunpack.c.h.b16 %v4671
        %v5162 = vunpack.c.l.b16 %v4672
        %v5163 = vunpack.c.h.b16 %v4672
        %v5164 = vunpack.c.l.b16 %v4673
        %v5165 = vunpack.c.h.b16 %v4673
        %v5166 = vunpack.c.l.b16 %v4674
        %v5167 = vunpack.c.h.b16 %v4674
        %v5168 = vunpack.c.l.b16 %v4675
        %v5169 = vunpack.c.h.b16 %v4675
        %v5170 = vunpack.c.l.b16 %v4676
        %v5171 = vunpack.c.h.b16 %v4676
        %v5172 = vunpack.c.l.b16 %v4677
        %v5173 = vunpack.c.h.b16 %v4677
        %v5174 = vunpack.c.l.b16 %v4678
        %v5175 = vunpack.c.h.b16 %v4678
        %v5176 = vunpack.c.l.b16 %v4679
        %v5177 = vunpack.c.h.b16 %v4679
        %v5178 = vunpack.c.l.b16 %v4680
        %v5179 = vunpack.c.h.b16 %v4680
        %v5180 = vpack.c.b16 %v5118, %v5116
        %v5181 = vpack.c.b16 %v5119, %v5117
        %v5182 = vpack.c.b16 %v5122, %v5120
        %v5183 = vpack.c.b16 %v5123, %v5121
        %v5184 = vpack.c.b16 %v5126, %v5124
        %v5185 = vpack.c.b16 %v5127, %v5125
        %v5186 = vpack.c.b16 %v5130, %v5128
        %v5187 = vpack.c.b16 %v5131, %v5129
        %v5188 = vpack.c.b16 %v5134, %v5132
        %v5189 = vpack.c.b16 %v5135, %v5133
        %v5190 = vpack.c.b16 %v5138, %v5136
        %v5191 = vpack.c.b16 %v5139, %v5137
        %v5192 = vpack.c.b16 %v5142, %v5140
        %v5193 = vpack.c.b16 %v5143, %v5141
        %v5194 = vpack.c.b16 %v5146, %v5144
        %v5195 = vpack.c.b16 %v5147, %v5145
        %v5196 = vpack.c.b16 %v5150, %v5148
        %v5197 = vpack.c.b16 %v5151, %v5149
        %v5198 = vpack.c.b16 %v5154, %v5152
        %v5199 = vpack.c.b16 %v5155, %v5153
        %v5200 = vpack.c.b16 %v5158, %v5156
        %v5201 = vpack.c.b16 %v5159, %v5157
        %v5202 = vpack.c.b16 %v5162, %v5160
        %v5203 = vpack.c.b16 %v5163, %v5161
        %v5204 = vpack.c.b16 %v5166, %v5164
        %v5205 = vpack.c.b16 %v5167, %v5165
        %v5206 = vpack.c.b16 %v5170, %v5168
        %v5207 = vpack.c.b16 %v5171, %v5169
        %v5208 = vpack.c.b16 %v5174, %v5172
        %v5209 = vpack.c.b16 %v5175, %v5173
        %v5210 = vpack.c.b16 %v5178, %v5176
        %v5211 = vpack.c.b16 %v5179, %v5177
        %5244 = vmatprep.subr.bf16.mxu0 %v5181
        %5245 = vmatpush1.bf16.msra.mxu0 %v5180
        %5246 = vmatprep.subr.bf16.mxu0 %v5183
        %5247 = vmatpush1.bf16.msra.mxu0 %v5182
        %5248 = vmatprep.subr.bf16.mxu0 %v5185
        %5249 = vmatpush1.bf16.msra.mxu0 %v5184
        %5250 = vmatprep.subr.bf16.mxu0 %v5187
        %5251 = vmatpush1.bf16.msra.mxu0 %v5186
        %5252 = vmatprep.subr.bf16.mxu0 %v5189
        %5253 = vmatpush1.bf16.msra.mxu0 %v5188
        %5254 = vmatprep.subr.bf16.mxu0 %v5191
        %5255 = vmatpush1.bf16.msra.mxu0 %v5190
        %5256 = vmatprep.subr.bf16.mxu0 %v5193
        %5257 = vmatpush1.bf16.msra.mxu0 %v5192
        %5258 = vmatprep.subr.bf16.mxu0 %v5195
        %5259 = vmatpush1.bf16.msra.mxu0 %v5194
        %5260 = vmatprep.subr.bf16.mxu0 %v5197
        %5261 = vmatpush1.bf16.msra.mxu0 %v5196
        %5262 = vmatprep.subr.bf16.mxu0 %v5199
        %5263 = vmatpush1.bf16.msra.mxu0 %v5198
        %5264 = vmatprep.subr.bf16.mxu0 %v5201
        %5265 = vmatpush1.bf16.msra.mxu0 %v5200
        %5266 = vmatprep.subr.bf16.mxu0 %v5203
        %5267 = vmatpush1.bf16.msra.mxu0 %v5202
        %5268 = vmatprep.subr.bf16.mxu0 %v5205
        %5269 = vmatpush1.bf16.msra.mxu0 %v5204
        %5270 = vmatprep.subr.bf16.mxu0 %v5207
        %5271 = vmatpush1.bf16.msra.mxu0 %v5206
        %5272 = vmatprep.subr.bf16.mxu0 %v5209
        %5273 = vmatpush1.bf16.msra.mxu0 %v5208
        %5274 = vmatprep.subr.bf16.mxu0 %v5211
        %5275 = vmatpush1.bf16.msra.mxu0 %v5210
        %5276 = vmatprep.mubr.bf16.mxu0 %v4829
        %5277 = vmatmul.mubr.bf16.gmra.mrb[0].mxu0 %v4817
        %v5278 = vpop.f32.mrb[0].mxu0
        %v5279 = vadd.f32 0.0, %v5278
        %v5280 = vpop.f32.mrb[0].mxu0
        %v5281 = vadd.f32 0.0, %v5280
        %v5282 = vpop.f32.mrb[0].mxu0
        %v5283 = vadd.f32 0.0, %v5282
        %v5284 = vpop.f32.mrb[0].mxu0
        %v5285 = vadd.f32 0.0, %v5284
        %5286 = vmatprep.mubr.bf16.mxu0 %v4845
        %5287 = vmatmul.mubr.bf16.gmra.mrb[0].mxu0 %v4837
        %v5288 = vpop.f32.mrb[0].mxu0
        %v5289 = vadd.f32 0.0, %v5288
        %v5290 = vpop.f32.mrb[0].mxu0
        %v5291 = vadd.f32 0.0, %v5290
        %v5292 = vpop.f32.mrb[0].mxu0
        %v5293 = vadd.f32 0.0, %v5292
        %v5294 = vpop.f32.mrb[0].mxu0
        %v5295 = vadd.f32 0.0, %v5294
        %5296 = vmatprep.mubr.bf16.mxu0 %v4861
        %5297 = vmatmul.mubr.bf16.gmra.mrb[0].mxu0 %v4853
        %v5298 = vpop.f32.mrb[0].mxu0
        %v5299 = vadd.f32 0.0, %v5298
        %v5300 = vpop.f32.mrb[0].mxu0
        %v5301 = vadd.f32 0.0, %v5300
        %v5302 = vpop.f32.mrb[0].mxu0
        %v5303 = vadd.f32 0.0, %v5302
        %v5304 = vpop.f32.mrb[0].mxu0
        %v5305 = vadd.f32 0.0, %v5304
        %5306 = vmatprep.mubr.bf16.mxu0 %v4877
        %5307 = vmatmul.mubr.bf16.gmra.mrb[0].mxu0 %v4869
        %v5308 = vpop.f32.mrb[0].mxu0
        %v5309 = vadd.f32 0.0, %v5308
        %v5310 = vpop.f32.mrb[0].mxu0
        %v5311 = vadd.f32 0.0, %v5310
        %v5312 = vpop.f32.mrb[0].mxu0
        %v5313 = vadd.f32 0.0, %v5312
        %v5314 = vpop.f32.mrb[0].mxu0
        %v5315 = vadd.f32 0.0, %v5314
        %5316 = vmatprep.mubr.bf16.mxu0 %v4893
        %5317 = vmatmul.mubr.bf16.gmra.mrb[0].mxu0 %v4885
        %v5318 = vpop.f32.mrb[0].mxu0
        %v5319 = vadd.f32 0.0, %v5318
        %v5320 = vpop.f32.mrb[0].mxu0
        %v5321 = vadd.f32 0.0, %v5320
        %v5322 = vpop.f32.mrb[0].mxu0
        %v5323 = vadd.f32 0.0, %v5322
        %v5324 = vpop.f32.mrb[0].mxu0
        %v5325 = vadd.f32 0.0, %v5324
        %5326 = vmatprep.mubr.bf16.mxu0 %v4909
        %5327 = vmatmul.mubr.bf16.gmra.mrb[0].mxu0 %v4901
        %v5328 = vpop.f32.mrb[0].mxu0
        %v5329 = vadd.f32 0.0, %v5328
        %v5330 = vpop.f32.mrb[0].mxu0
        %v5331 = vadd.f32 0.0, %v5330
        %v5332 = vpop.f32.mrb[0].mxu0
        %v5333 = vadd.f32 0.0, %v5332
        %v5334 = vpop.f32.mrb[0].mxu0
        %v5335 = vadd.f32 0.0, %v5334
        %5336 = vmatprep.mubr.bf16.mxu0 %v4925
        %5337 = vmatmul.mubr.bf16.gmra.mrb[0].mxu0 %v4917
        %v5338 = vpop.f32.mrb[0].mxu0
        %v5339 = vadd.f32 0.0, %v5338
        %v5340 = vpop.f32.mrb[0].mxu0
        %v5341 = vadd.f32 0.0, %v5340
        %v5342 = vpop.f32.mrb[0].mxu0
        %v5343 = vadd.f32 0.0, %v5342
        %v5344 = vpop.f32.mrb[0].mxu0
        %v5345 = vadd.f32 0.0, %v5344
        %5346 = vmatprep.mubr.bf16.mxu0 %v4941
        %5347 = vmatmul.mubr.bf16.gmra.mrb[0].mxu0 %v4933
        %v5348 = vpop.f32.mrb[0].mxu0
        %v5349 = vadd.f32 0.0, %v5348
        %v5350 = vpop.f32.mrb[0].mxu0
        %v5351 = vadd.f32 0.0, %v5350
        %v5352 = vpop.f32.mrb[0].mxu0
        %v5353 = vadd.f32 0.0, %v5352
        %v5354 = vpop.f32.mrb[0].mxu0
        %v5355 = vadd.f32 0.0, %v5354
        %5356 = vmatprep.mubr.bf16.mxu0 %v4957
        %5357 = vmatmul.mubr.bf16.gmra.mrb[0].mxu0 %v4949
        %v5358 = vpop.f32.mrb[0].mxu0
        %v5359 = vadd.f32 0.0, %v5358
        %v5360 = vpop.f32.mrb[0].mxu0
        %v5361 = vadd.f32 0.0, %v5360
        %v5362 = vpop.f32.mrb[0].mxu0
        %v5363 = vadd.f32 0.0, %v5362
        %v5364 = vpop.f32.mrb[0].mxu0
        %v5365 = vadd.f32 0.0, %v5364
        %5366 = vmatprep.mubr.bf16.mxu0 %v4973
        %5367 = vmatmul.mubr.bf16.gmra.mrb[0].mxu0 %v4965
        %v5368 = vpop.f32.mrb[0].mxu0
        %v5369 = vadd.f32 0.0, %v5368
        %v5370 = vpop.f32.mrb[0].mxu0
        %v5371 = vadd.f32 0.0, %v5370
        %v5372 = vpop.f32.mrb[0].mxu0
        %v5373 = vadd.f32 0.0, %v5372
        %v5374 = vpop.f32.mrb[0].mxu0
        %v5375 = vadd.f32 0.0, %v5374
        %5376 = vmatprep.mubr.bf16.mxu0 %v4989
        %5377 = vmatmul.mubr.bf16.gmra.mrb[0].mxu0 %v4981
        %v5378 = vpop.f32.mrb[0].mxu0
        %v5379 = vadd.f32 0.0, %v5378
        %v5380 = vpop.f32.mrb[0].mxu0
        %v5381 = vadd.f32 0.0, %v5380
        %v5382 = vpop.f32.mrb[0].mxu0
        %v5383 = vadd.f32 0.0, %v5382
        %v5384 = vpop.f32.mrb[0].mxu0
        %v5385 = vadd.f32 0.0, %v5384
        %5386 = vmatprep.mubr.bf16.mxu0 %v5005
        %5387 = vmatmul.mubr.bf16.gmra.mrb[0].mxu0 %v4997
        %v5388 = vpop.f32.mrb[0].mxu0
        %v5389 = vadd.f32 0.0, %v5388
        %v5390 = vpop.f32.mrb[0].mxu0
        %v5391 = vadd.f32 0.0, %v5390
        %v5392 = vpop.f32.mrb[0].mxu0
        %v5393 = vadd.f32 0.0, %v5392
        %v5394 = vpop.f32.mrb[0].mxu0
        %v5395 = vadd.f32 0.0, %v5394
        %5396 = vmatprep.mubr.bf16.mxu0 %v5021
        %5397 = vmatmul.mubr.bf16.gmra.mrb[0].mxu0 %v5013
        %v5398 = vpop.f32.mrb[0].mxu0
        %v5399 = vadd.f32 0.0, %v5398
        %v5400 = vpop.f32.mrb[0].mxu0
        %v5401 = vadd.f32 0.0, %v5400
        %v5402 = vpop.f32.mrb[0].mxu0
        %v5403 = vadd.f32 0.0, %v5402
        %v5404 = vpop.f32.mrb[0].mxu0
        %v5405 = vadd.f32 0.0, %v5404
        %5406 = vmatprep.mubr.bf16.mxu0 %v5037
        %5407 = vmatmul.mubr.bf16.gmra.mrb[0].mxu0 %v5029
        %v5408 = vpop.f32.mrb[0].mxu0
        %v5409 = vadd.f32 0.0, %v5408
        %v5410 = vpop.f32.mrb[0].mxu0
        %v5411 = vadd.f32 0.0, %v5410
        %v5412 = vpop.f32.mrb[0].mxu0
        %v5413 = vadd.f32 0.0, %v5412
        %v5414 = vpop.f32.mrb[0].mxu0
        %v5415 = vadd.f32 0.0, %v5414
        %5416 = vmatprep.mubr.bf16.mxu0 %v5053
        %5417 = vmatmul.mubr.bf16.gmra.mrb[0].mxu0 %v5045
        %v5418 = vpop.f32.mrb[0].mxu0
        %v5419 = vadd.f32 0.0, %v5418
        %v5420 = vpop.f32.mrb[0].mxu0
        %v5421 = vadd.f32 0.0, %v5420
        %v5422 = vpop.f32.mrb[0].mxu0
        %v5423 = vadd.f32 0.0, %v5422
        %v5424 = vpop.f32.mrb[0].mxu0
        %v5425 = vadd.f32 0.0, %v5424
        %5426 = vdwg.mxu0
        %v5427 = vld [vmem:[#allocation3] sm:$0xff]
        %v5428 = vld [vmem:[#allocation3 + $0x8] sm:$0xff]
        %v5429 = vld [vmem:[#allocation3 + $0x10] sm:$0xff]
        %v5430 = vld [vmem:[#allocation3 + $0x18] sm:$0xff]
        %v5431 = vld [vmem:[#allocation3 + $0x20] sm:$0xff]
        %v5432 = vld [vmem:[#allocation3 + $0x28] sm:$0xff]
        %v5433 = vld [vmem:[#allocation3 + $0x30] sm:$0xff]
        %v5434 = vld [vmem:[#allocation3 + $0x38] sm:$0xff]
        %v5435 = vld [vmem:[#allocation3 + $0x40] sm:$0xff]
        %v5436 = vld [vmem:[#allocation3 + $0x48] sm:$0xff]
        %v5437 = vld [vmem:[#allocation3 + $0x50] sm:$0xff]
        %v5438 = vld [vmem:[#allocation3 + $0x58] sm:$0xff]
        %v5439 = vld [vmem:[#allocation3 + $0x60] sm:$0xff]
        %v5440 = vld [vmem:[#allocation3 + $0x68] sm:$0xff]
        %v5441 = vld [vmem:[#allocation3 + $0x70] sm:$0xff]
        %v5442 = vld [vmem:[#allocation3 + $0x78] sm:$0xff]
        %v5443 = vld [vmem:[#allocation3 + $0x80] sm:$0xff]
        %v5444 = vld [vmem:[#allocation3 + $0x88] sm:$0xff]
        %v5445 = vld [vmem:[#allocation3 + $0x90] sm:$0xff]
        %v5446 = vld [vmem:[#allocation3 + $0x98] sm:$0xff]
        %v5447 = vld [vmem:[#allocation3 + $0xa0] sm:$0xff]
        %v5448 = vld [vmem:[#allocation3 + $0xa8] sm:$0xff]
        %v5449 = vld [vmem:[#allocation3 + $0xb0] sm:$0xff]
        %v5450 = vld [vmem:[#allocation3 + $0xb8] sm:$0xff]
        %v5451 = vld [vmem:[#allocation3 + $0xc0] sm:$0xff]
        %v5452 = vld [vmem:[#allocation3 + $0xc8] sm:$0xff]
        %v5453 = vld [vmem:[#allocation3 + $0xd0] sm:$0xff]
        %v5454 = vld [vmem:[#allocation3 + $0xd8] sm:$0xff]
        %v5455 = vld [vmem:[#allocation3 + $0xe0] sm:$0xff]
        %v5456 = vld [vmem:[#allocation3 + $0xe8] sm:$0xff]
        %v5457 = vld [vmem:[#allocation3 + $0xf0] sm:$0xff]
        %v5458 = vld [vmem:[#allocation3 + $0xf8] sm:$0xff]
        %v5459 = vld [vmem:[#allocation3 + $0x100] sm:$0xff]
        %v5460 = vld [vmem:[#allocation3 + $0x108] sm:$0xff]
        %v5461 = vld [vmem:[#allocation3 + $0x110] sm:$0xff]
        %v5462 = vld [vmem:[#allocation3 + $0x118] sm:$0xff]
        %v5463 = vld [vmem:[#allocation3 + $0x120] sm:$0xff]
        %v5464 = vld [vmem:[#allocation3 + $0x128] sm:$0xff]
        %v5465 = vld [vmem:[#allocation3 + $0x130] sm:$0xff]
        %v5466 = vld [vmem:[#allocation3 + $0x138] sm:$0xff]
        %v5467 = vld [vmem:[#allocation3 + $0x140] sm:$0xff]
        %v5468 = vld [vmem:[#allocation3 + $0x148] sm:$0xff]
        %v5469 = vld [vmem:[#allocation3 + $0x150] sm:$0xff]
        %v5470 = vld [vmem:[#allocation3 + $0x158] sm:$0xff]
        %v5471 = vld [vmem:[#allocation3 + $0x160] sm:$0xff]
        %v5472 = vld [vmem:[#allocation3 + $0x168] sm:$0xff]
        %v5473 = vld [vmem:[#allocation3 + $0x170] sm:$0xff]
        %v5474 = vld [vmem:[#allocation3 + $0x178] sm:$0xff]
        %v5475 = vld [vmem:[#allocation3 + $0x180] sm:$0xff]
        %v5476 = vld [vmem:[#allocation3 + $0x188] sm:$0xff]
        %v5477 = vld [vmem:[#allocation3 + $0x190] sm:$0xff]
        %v5478 = vld [vmem:[#allocation3 + $0x198] sm:$0xff]
        %v5479 = vld [vmem:[#allocation3 + $0x1a0] sm:$0xff]
        %v5480 = vld [vmem:[#allocation3 + $0x1a8] sm:$0xff]
        %v5481 = vld [vmem:[#allocation3 + $0x1b0] sm:$0xff]
        %v5482 = vld [vmem:[#allocation3 + $0x1b8] sm:$0xff]
        %v5483 = vld [vmem:[#allocation3 + $0x1c0] sm:$0xff]
        %v5484 = vld [vmem:[#allocation3 + $0x1c8] sm:$0xff]
        %v5485 = vld [vmem:[#allocation3 + $0x1d0] sm:$0xff]
        %v5486 = vld [vmem:[#allocation3 + $0x1d8] sm:$0xff]
        %v5487 = vadd.f32 %v5427, %v5279
        %v5488 = vadd.f32 %v5428, %v5281
        %v5489 = vadd.f32 %v5429, %v5283
        %v5490 = vadd.f32 %v5430, %v5285
        %v5491 = vadd.f32 %v5431, %v5289
        %v5492 = vadd.f32 %v5432, %v5291
        %v5493 = vadd.f32 %v5433, %v5293
        %v5494 = vadd.f32 %v5434, %v5295
        %v5495 = vadd.f32 %v5435, %v5299
        %v5496 = vadd.f32 %v5436, %v5301
        %v5497 = vadd.f32 %v5437, %v5303
        %v5498 = vadd.f32 %v5438, %v5305
        %v5499 = vadd.f32 %v5439, %v5309
        %v5500 = vadd.f32 %v5440, %v5311
        %v5501 = vadd.f32 %v5441, %v5313
        %v5502 = vadd.f32 %v5442, %v5315
        %v5503 = vadd.f32 %v5443, %v5319
        %v5504 = vadd.f32 %v5444, %v5321
        %v5505 = vadd.f32 %v5445, %v5323
        %v5506 = vadd.f32 %v5446, %v5325
        %v5507 = vadd.f32 %v5447, %v5329
        %v5508 = vadd.f32 %v5448, %v5331
        %v5509 = vadd.f32 %v5449, %v5333
        %v5510 = vadd.f32 %v5450, %v5335
        %v5511 = vadd.f32 %v5451, %v5339
        %v5512 = vadd.f32 %v5452, %v5341
        %v5513 = vadd.f32 %v5453, %v5343
        %v5514 = vadd.f32 %v5454, %v5345
        %v5515 = vadd.f32 %v5455, %v5349
        %v5516 = vadd.f32 %v5456, %v5351
        %v5517 = vadd.f32 %v5457, %v5353
        %v5518 = vadd.f32 %v5458, %v5355
        %v5519 = vadd.f32 %v5459, %v5359
        %v5520 = vadd.f32 %v5460, %v5361
        %v5521 = vadd.f32 %v5461, %v5363
        %v5522 = vadd.f32 %v5462, %v5365
        %v5523 = vadd.f32 %v5463, %v5369
        %v5524 = vadd.f32 %v5464, %v5371
        %v5525 = vadd.f32 %v5465, %v5373
        %v5526 = vadd.f32 %v5466, %v5375
        %v5527 = vadd.f32 %v5467, %v5379
        %v5528 = vadd.f32 %v5468, %v5381
        %v5529 = vadd.f32 %v5469, %v5383
        %v5530 = vadd.f32 %v5470, %v5385
        %v5531 = vadd.f32 %v5471, %v5389
        %v5532 = vadd.f32 %v5472, %v5391
        %v5533 = vadd.f32 %v5473, %v5393
        %v5534 = vadd.f32 %v5474, %v5395
        %v5535 = vadd.f32 %v5475, %v5399
        %v5536 = vadd.f32 %v5476, %v5401
        %v5537 = vadd.f32 %v5477, %v5403
        %v5538 = vadd.f32 %v5478, %v5405
        %v5539 = vadd.f32 %v5479, %v5409
        %v5540 = vadd.f32 %v5480, %v5411
        %v5541 = vadd.f32 %v5481, %v5413
        %v5542 = vadd.f32 %v5482, %v5415
        %v5543 = vadd.f32 %v5483, %v5419
        %v5544 = vadd.f32 %v5484, %v5421
        %v5545 = vadd.f32 %v5485, %v5423
        %v5546 = vadd.f32 %v5486, %v5425
        %5547 = vst [vmem:[#allocation3] sm:$0xff] %v5487
        %5548 = vst [vmem:[#allocation3 + $0x8] sm:$0xff] %v5488
        %5549 = vst [vmem:[#allocation3 + $0x10] sm:$0xff] %v5489
        %5550 = vst [vmem:[#allocation3 + $0x18] sm:$0xff] %v5490
        %5551 = vst [vmem:[#allocation3 + $0x20] sm:$0xff] %v5491
        %5552 = vst [vmem:[#allocation3 + $0x28] sm:$0xff] %v5492
        %5553 = vst [vmem:[#allocation3 + $0x30] sm:$0xff] %v5493
        %5554 = vst [vmem:[#allocation3 + $0x38] sm:$0xff] %v5494
        %5555 = vst [vmem:[#allocation3 + $0x40] sm:$0xff] %v5495
        %5556 = vst [vmem:[#allocation3 + $0x48] sm:$0xff] %v5496
        %5557 = vst [vmem:[#allocation3 + $0x50] sm:$0xff] %v5497
        %5558 = vst [vmem:[#allocation3 + $0x58] sm:$0xff] %v5498
        %5559 = vst [vmem:[#allocation3 + $0x60] sm:$0xff] %v5499
        %5560 = vst [vmem:[#allocation3 + $0x68] sm:$0xff] %v5500
        %5561 = vst [vmem:[#allocation3 + $0x70] sm:$0xff] %v5501
        %5562 = vst [vmem:[#allocation3 + $0x78] sm:$0xff] %v5502
        %5563 = vst [vmem:[#allocation3 + $0x80] sm:$0xff] %v5503
        %5564 = vst [vmem:[#allocation3 + $0x88] sm:$0xff] %v5504
        %5565 = vst [vmem:[#allocation3 + $0x90] sm:$0xff] %v5505
        %5566 = vst [vmem:[#allocation3 + $0x98] sm:$0xff] %v5506
        %5567 = vst [vmem:[#allocation3 + $0xa0] sm:$0xff] %v5507
        %5568 = vst [vmem:[#allocation3 + $0xa8] sm:$0xff] %v5508
        %5569 = vst [vmem:[#allocation3 + $0xb0] sm:$0xff] %v5509
        %5570 = vst [vmem:[#allocation3 + $0xb8] sm:$0xff] %v5510
        %5571 = vst [vmem:[#allocation3 + $0xc0] sm:$0xff] %v5511
        %5572 = vst [vmem:[#allocation3 + $0xc8] sm:$0xff] %v5512
        %5573 = vst [vmem:[#allocation3 + $0xd0] sm:$0xff] %v5513
        %5574 = vst [vmem:[#allocation3 + $0xd8] sm:$0xff] %v5514
        %5575 = vst [vmem:[#allocation3 + $0xe0] sm:$0xff] %v5515
        %5576 = vst [vmem:[#allocation3 + $0xe8] sm:$0xff] %v5516
        %5577 = vst [vmem:[#allocation3 + $0xf0] sm:$0xff] %v5517
        %5578 = vst [vmem:[#allocation3 + $0xf8] sm:$0xff] %v5518
        %5579 = vst [vmem:[#allocation3 + $0x100] sm:$0xff] %v5519
        %5580 = vst [vmem:[#allocation3 + $0x108] sm:$0xff] %v5520
        %5581 = vst [vmem:[#allocation3 + $0x110] sm:$0xff] %v5521
        %5582 = vst [vmem:[#allocation3 + $0x118] sm:$0xff] %v5522
        %5583 = vst [vmem:[#allocation3 + $0x120] sm:$0xff] %v5523
        %5584 = vst [vmem:[#allocation3 + $0x128] sm:$0xff] %v5524
        %5585 = vst [vmem:[#allocation3 + $0x130] sm:$0xff] %v5525
        %5586 = vst [vmem:[#allocation3 + $0x138] sm:$0xff] %v5526
        %5587 = vst [vmem:[#allocation3 + $0x140] sm:$0xff] %v5527
        %5588 = vst [vmem:[#allocation3 + $0x148] sm:$0xff] %v5528
        %5589 = vst [vmem:[#allocation3 + $0x150] sm:$0xff] %v5529
        %5590 = vst [vmem:[#allocation3 + $0x158] sm:$0xff] %v5530
        %5591 = vst [vmem:[#allocation3 + $0x160] sm:$0xff] %v5531
        %5592 = vst [vmem:[#allocation3 + $0x168] sm:$0xff] %v5532
        %5593 = vst [vmem:[#allocation3 + $0x170] sm:$0xff] %v5533
        %5594 = vst [vmem:[#allocation3 + $0x178] sm:$0xff] %v5534
        %5595 = vst [vmem:[#allocation3 + $0x180] sm:$0xff] %v5535
        %5596 = vst [vmem:[#allocation3 + $0x188] sm:$0xff] %v5536
        %5597 = vst [vmem:[#allocation3 + $0x190] sm:$0xff] %v5537
        %5598 = vst [vmem:[#allocation3 + $0x198] sm:$0xff] %v5538
        %5599 = vst [vmem:[#allocation3 + $0x1a0] sm:$0xff] %v5539
        %5600 = vst [vmem:[#allocation3 + $0x1a8] sm:$0xff] %v5540
        %5601 = vst [vmem:[#allocation3 + $0x1b0] sm:$0xff] %v5541
        %5602 = vst [vmem:[#allocation3 + $0x1b8] sm:$0xff] %v5542
        %5603 = vst [vmem:[#allocation3 + $0x1c0] sm:$0xff] %v5543
        %5604 = vst [vmem:[#allocation3 + $0x1c8] sm:$0xff] %v5544
        %5605 = vst [vmem:[#allocation3 + $0x1d0] sm:$0xff] %v5545
        %5606 = vst [vmem:[#allocation3 + $0x1d8] sm:$0xff] %v5546
        %v5607 = vld [vmem:[#allocation2 + $0x18] sm:$0xee]
        %v5608 = vld [vmem:[#allocation2 + $0x20] sm:$0xff]
        %v5609 = vld [vmem:[#allocation2 + $0x28] sm:$0xff]
        %v5610 = vld [vmem:[#allocation2 + $0x30] sm:$0xff]
        %v5611 = vld [vmem:[#allocation2 + $0x38] sm:$0xff]
        %v5612 = vld [vmem:[#allocation2 + $0x40] sm:$0xff]
        %v5613 = vld [vmem:[#allocation2 + $0x48] sm:$0xff]
        %v5614 = vld [vmem:[#allocation2 + $0x50] sm:$0xff]
        %v5615 = vld [vmem:[#allocation2 + $0x58] sm:$0xff]
        %v5616 = vld [vmem:[#allocation2 + $0x60] sm:$0xff]
        %v5617 = vld [vmem:[#allocation2 + $0x68] sm:$0xff]
        %v5618 = vld [vmem:[#allocation2 + $0x70] sm:$0xff]
        %v5619 = vld [vmem:[#allocation2 + $0x78] sm:$0xff]
        %v5620 = vld [vmem:[#allocation2 + $0x80] sm:$0xff]
        %v5621 = vld [vmem:[#allocation2 + $0x88] sm:$0xff]
        %v5622 = vld [vmem:[#allocation2 + $0x90] sm:$0xff]
        %v5623 = vld [vmem:[#allocation2 + $0x98] sm:$0xff]
        %v5624 = vld [vmem:[#allocation2 + $0xa0] sm:$0xff]
        %v5625 = vld [vmem:[#allocation2 + $0xa8] sm:$0xff]
        %v5626 = vld [vmem:[#allocation2 + $0xb0] sm:$0xff]
        %v5627 = vld [vmem:[#allocation2 + $0xb8] sm:$0xff]
        %v5628 = vld [vmem:[#allocation2 + $0xc0] sm:$0xff]
        %v5629 = vld [vmem:[#allocation2 + $0xc8] sm:$0xff]
        %v5630 = vld [vmem:[#allocation2 + $0xd0] sm:$0xff]
        %v5631 = vld [vmem:[#allocation2 + $0xd8] sm:$0xff]
        %v5632 = vld [vmem:[#allocation2 + $0xe0] sm:$0xff]
        %v5633 = vld [vmem:[#allocation2 + $0xe8] sm:$0xff]
        %v5634 = vld [vmem:[#allocation2 + $0xf0] sm:$0xff]
        %v5635 = vld [vmem:[#allocation2 + $0xf8] sm:$0xff]
        %v5636 = vld [vmem:[#allocation2 + $0x100] sm:$0xff]
        %v5637 = vld [vmem:[#allocation2 + $0x108] sm:$0x11]
        %s5638 = scalar_lea.vmem [#allocation12], 1280
        %v5639 = vld [vmem:[%s5638] sm:$0xff]
        %v5640 = vld [vmem:[%s5638 + $0x8] sm:$0xff]
        %v5641 = vld [vmem:[%s5638 + $0x10] sm:$0xff]
        %v5642 = vld [vmem:[%s5638 + $0x18] sm:$0xff]
        %v5643 = vld [vmem:[%s5638 + $0x20] sm:$0xff]
        %v5644 = vld [vmem:[%s5638 + $0x28] sm:$0xff]
        %v5645 = vld [vmem:[%s5638 + $0x30] sm:$0xff]
        %v5646 = vld [vmem:[%s5638 + $0x38] sm:$0xff]
        %v5647 = vld [vmem:[%s5638 + $0x40] sm:$0xff]
        %v5648 = vld [vmem:[%s5638 + $0x48] sm:$0xff]
        %v5649 = vld [vmem:[%s5638 + $0x50] sm:$0xff]
        %v5650 = vld [vmem:[%s5638 + $0x58] sm:$0xff]
        %v5651 = vld [vmem:[%s5638 + $0x60] sm:$0xff]
        %v5652 = vld [vmem:[%s5638 + $0x68] sm:$0xff]
        %v5653 = vld [vmem:[%s5638 + $0x70] sm:$0xff]
        %v5654 = vld [vmem:[%s5638 + $0x78] sm:$0xff]
        %v5655 = vld [vmem:[%s5638 + $0x80] sm:$0xff]
        %v5656 = vld [vmem:[%s5638 + $0x88] sm:$0xff]
        %v5657 = vld [vmem:[%s5638 + $0x90] sm:$0xff]
        %v5658 = vld [vmem:[%s5638 + $0x98] sm:$0xff]
        %v5659 = vld [vmem:[%s5638 + $0xa0] sm:$0xff]
        %v5660 = vld [vmem:[%s5638 + $0xa8] sm:$0xff]
        %v5661 = vld [vmem:[%s5638 + $0xb0] sm:$0xff]
        %v5662 = vld [vmem:[%s5638 + $0xb8] sm:$0xff]
        %v5663 = vld [vmem:[%s5638 + $0xc0] sm:$0xff]
        %v5664 = vld [vmem:[%s5638 + $0xc8] sm:$0xff]
        %v5665 = vld [vmem:[%s5638 + $0xd0] sm:$0xff]
        %v5666 = vld [vmem:[%s5638 + $0xd8] sm:$0xff]
        %v5667 = vld [vmem:[%s5638 + $0xe0] sm:$0xff]
        %v5668 = vld [vmem:[%s5638 + $0xe8] sm:$0xff]
        %v5669 = vld [vmem:[%s5638 + $0xf0] sm:$0xff]
        %v5670 = vld [vmem:[%s5638 + $0xf8] sm:$0xff]
        %v5702 = vunpack.c.l.b16 %v5607
        %v5703 = vunpack.c.h.b16 %v5607
        %v5704 = vunpack.c.l.b16 %v5608
        %v5705 = vunpack.c.h.b16 %v5608
        %v5706 = vunpack.c.l.b16 %v5609
        %v5707 = vunpack.c.h.b16 %v5609
        %v5708 = vunpack.c.l.b16 %v5610
        %v5709 = vunpack.c.h.b16 %v5610
        %v5710 = vunpack.c.l.b16 %v5611
        %v5711 = vunpack.c.h.b16 %v5611
        %v5712 = vunpack.c.l.b16 %v5612
        %v5713 = vunpack.c.h.b16 %v5612
        %v5714 = vunpack.c.l.b16 %v5613
        %v5715 = vunpack.c.h.b16 %v5613
        %v5716 = vunpack.c.l.b16 %v5614
        %v5717 = vunpack.c.h.b16 %v5614
        %v5718 = vunpack.c.l.b16 %v5615
        %v5719 = vunpack.c.h.b16 %v5615
        %v5720 = vunpack.c.l.b16 %v5616
        %v5721 = vunpack.c.h.b16 %v5616
        %v5722 = vunpack.c.l.b16 %v5617
        %v5723 = vunpack.c.h.b16 %v5617
        %v5724 = vunpack.c.l.b16 %v5618
        %v5725 = vunpack.c.h.b16 %v5618
        %v5726 = vunpack.c.l.b16 %v5619
        %v5727 = vunpack.c.h.b16 %v5619
        %v5728 = vunpack.c.l.b16 %v5620
        %v5729 = vunpack.c.h.b16 %v5620
        %v5730 = vunpack.c.l.b16 %v5621
        %v5731 = vunpack.c.h.b16 %v5621
        %v5732 = vunpack.c.l.b16 %v5622
        %v5733 = vunpack.c.h.b16 %v5622
        %v5734 = vunpack.c.l.b16 %v5623
        %v5735 = vunpack.c.h.b16 %v5623
        %v5736 = vunpack.c.l.b16 %v5624
        %v5737 = vunpack.c.h.b16 %v5624
        %v5738 = vunpack.c.l.b16 %v5625
        %v5739 = vunpack.c.h.b16 %v5625
        %v5740 = vunpack.c.l.b16 %v5626
        %v5741 = vunpack.c.h.b16 %v5626
        %v5742 = vunpack.c.l.b16 %v5627
        %v5743 = vunpack.c.h.b16 %v5627
        %v5744 = vunpack.c.l.b16 %v5628
        %v5745 = vunpack.c.h.b16 %v5628
        %v5746 = vunpack.c.l.b16 %v5629
        %v5747 = vunpack.c.h.b16 %v5629
        %v5748 = vunpack.c.l.b16 %v5630
        %v5749 = vunpack.c.h.b16 %v5630
        %v5750 = vunpack.c.l.b16 %v5631
        %v5751 = vunpack.c.h.b16 %v5631
        %v5752 = vunpack.c.l.b16 %v5632
        %v5753 = vunpack.c.h.b16 %v5632
        %v5754 = vunpack.c.l.b16 %v5633
        %v5755 = vunpack.c.h.b16 %v5633
        %v5756 = vunpack.c.l.b16 %v5634
        %v5757 = vunpack.c.h.b16 %v5634
        %v5758 = vunpack.c.l.b16 %v5635
        %v5759 = vunpack.c.h.b16 %v5635
        %v5760 = vunpack.c.l.b16 %v5636
        %v5761 = vunpack.c.h.b16 %v5636
        %v5762 = vunpack.c.l.b16 %v5637
        %v5763 = vunpack.c.h.b16 %v5637
        %v5764 = vpack.c.b16 %v5704, %v5702
        %v5765 = vpack.c.b16 %v5705, %v5703
        %v5766 = vpack.c.b16 %v5708, %v5706
        %v5767 = vpack.c.b16 %v5709, %v5707
        %v5768 = vpack.c.b16 %v5712, %v5710
        %v5769 = vpack.c.b16 %v5713, %v5711
        %v5770 = vpack.c.b16 %v5716, %v5714
        %v5771 = vpack.c.b16 %v5717, %v5715
        %v5772 = vpack.c.b16 %v5720, %v5718
        %v5773 = vpack.c.b16 %v5721, %v5719
        %v5774 = vpack.c.b16 %v5724, %v5722
        %v5775 = vpack.c.b16 %v5725, %v5723
        %v5776 = vpack.c.b16 %v5728, %v5726
        %v5777 = vpack.c.b16 %v5729, %v5727
        %v5778 = vpack.c.b16 %v5732, %v5730
        %v5779 = vpack.c.b16 %v5733, %v5731
        %v5780 = vpack.c.b16 %v5736, %v5734
        %v5781 = vpack.c.b16 %v5737, %v5735
        %v5782 = vpack.c.b16 %v5740, %v5738
        %v5783 = vpack.c.b16 %v5741, %v5739
        %v5784 = vpack.c.b16 %v5744, %v5742
        %v5785 = vpack.c.b16 %v5745, %v5743
        %v5786 = vpack.c.b16 %v5748, %v5746
        %v5787 = vpack.c.b16 %v5749, %v5747
        %v5788 = vpack.c.b16 %v5752, %v5750
        %v5789 = vpack.c.b16 %v5753, %v5751
        %v5790 = vpack.c.b16 %v5756, %v5754
        %v5791 = vpack.c.b16 %v5757, %v5755
        %v5792 = vpack.c.b16 %v5760, %v5758
        %v5793 = vpack.c.b16 %v5761, %v5759
        %v5794 = vpack.c.b16 %v5762, %v5762
        %v5795 = vpack.c.b16 %v5763, %v5763
        %v5796 = vrot.slane %v5764, 1
        %v5797 = vrot.slane %v5766, 1
        %v5798 = vsel %vm3265, %v5796, %v5797
        %v5799 = vrot.slane %v5765, 1
        %v5800 = vrot.slane %v5767, 1
        %v5801 = vsel %vm3265, %v5799, %v5800
        %v5802 = vrot.slane %v5768, 1
        %v5803 = vsel %vm3265, %v5797, %v5802
        %v5804 = vrot.slane %v5769, 1
        %v5805 = vsel %vm3265, %v5800, %v5804
        %v5806 = vrot.slane %v5770, 1
        %v5807 = vsel %vm3265, %v5802, %v5806
        %v5808 = vrot.slane %v5771, 1
        %v5809 = vsel %vm3265, %v5804, %v5808
        %v5810 = vrot.slane %v5772, 1
        %v5811 = vsel %vm3265, %v5806, %v5810
        %v5812 = vrot.slane %v5773, 1
        %v5813 = vsel %vm3265, %v5808, %v5812
        %v5814 = vrot.slane %v5774, 1
        %v5815 = vsel %vm3265, %v5810, %v5814
        %v5816 = vrot.slane %v5775, 1
        %v5817 = vsel %vm3265, %v5812, %v5816
        %v5818 = vrot.slane %v5776, 1
        %v5819 = vsel %vm3265, %v5814, %v5818
        %v5820 = vrot.slane %v5777, 1
        %v5821 = vsel %vm3265, %v5816, %v5820
        %v5822 = vrot.slane %v5778, 1
        %v5823 = vsel %vm3265, %v5818, %v5822
        %v5824 = vrot.slane %v5779, 1
        %v5825 = vsel %vm3265, %v5820, %v5824
        %v5826 = vrot.slane %v5780, 1
        %v5827 = vsel %vm3265, %v5822, %v5826
        %v5828 = vrot.slane %v5781, 1
        %v5829 = vsel %vm3265, %v5824, %v5828
        %v5830 = vrot.slane %v5782, 1
        %v5831 = vsel %vm3265, %v5826, %v5830
        %v5832 = vrot.slane %v5783, 1
        %v5833 = vsel %vm3265, %v5828, %v5832
        %v5834 = vrot.slane %v5784, 1
        %v5835 = vsel %vm3265, %v5830, %v5834
        %v5836 = vrot.slane %v5785, 1
        %v5837 = vsel %vm3265, %v5832, %v5836
        %v5838 = vrot.slane %v5786, 1
        %v5839 = vsel %vm3265, %v5834, %v5838
        %v5840 = vrot.slane %v5787, 1
        %v5841 = vsel %vm3265, %v5836, %v5840
        %v5842 = vrot.slane %v5788, 1
        %v5843 = vsel %vm3265, %v5838, %v5842
        %v5844 = vrot.slane %v5789, 1
        %v5845 = vsel %vm3265, %v5840, %v5844
        %v5846 = vrot.slane %v5790, 1
        %v5847 = vsel %vm3265, %v5842, %v5846
        %v5848 = vrot.slane %v5791, 1
        %v5849 = vsel %vm3265, %v5844, %v5848
        %v5850 = vrot.slane %v5792, 1
        %v5851 = vsel %vm3265, %v5846, %v5850
        %v5852 = vrot.slane %v5793, 1
        %v5853 = vsel %vm3265, %v5848, %v5852
        %v5854 = vrot.slane %v5794, 1
        %v5855 = vsel %vm3265, %v5850, %v5854
        %v5856 = vrot.slane %v5795, 1
        %v5857 = vsel %vm3265, %v5852, %v5856
        %v5920 = vunpack.c.l.b16 %v5639
        %v5921 = vunpack.c.h.b16 %v5639
        %v5922 = vunpack.c.l.b16 %v5640
        %v5923 = vunpack.c.h.b16 %v5640
        %v5924 = vunpack.c.l.b16 %v5641
        %v5925 = vunpack.c.h.b16 %v5641
        %v5926 = vunpack.c.l.b16 %v5642
        %v5927 = vunpack.c.h.b16 %v5642
        %v5928 = vunpack.c.l.b16 %v5643
        %v5929 = vunpack.c.h.b16 %v5643
        %v5930 = vunpack.c.l.b16 %v5644
        %v5931 = vunpack.c.h.b16 %v5644
        %v5932 = vunpack.c.l.b16 %v5645
        %v5933 = vunpack.c.h.b16 %v5645
        %v5934 = vunpack.c.l.b16 %v5646
        %v5935 = vunpack.c.h.b16 %v5646
        %v5936 = vunpack.c.l.b16 %v5647
        %v5937 = vunpack.c.h.b16 %v5647
        %v5938 = vunpack.c.l.b16 %v5648
        %v5939 = vunpack.c.h.b16 %v5648
        %v5940 = vunpack.c.l.b16 %v5649
        %v5941 = vunpack.c.h.b16 %v5649
        %v5942 = vunpack.c.l.b16 %v5650
        %v5943 = vunpack.c.h.b16 %v5650
        %v5944 = vunpack.c.l.b16 %v5651
        %v5945 = vunpack.c.h.b16 %v5651
        %v5946 = vunpack.c.l.b16 %v5652
        %v5947 = vunpack.c.h.b16 %v5652
        %v5948 = vunpack.c.l.b16 %v5653
        %v5949 = vunpack.c.h.b16 %v5653
        %v5950 = vunpack.c.l.b16 %v5654
        %v5951 = vunpack.c.h.b16 %v5654
        %v5952 = vunpack.c.l.b16 %v5655
        %v5953 = vunpack.c.h.b16 %v5655
        %v5954 = vunpack.c.l.b16 %v5656
        %v5955 = vunpack.c.h.b16 %v5656
        %v5956 = vunpack.c.l.b16 %v5657
        %v5957 = vunpack.c.h.b16 %v5657
        %v5958 = vunpack.c.l.b16 %v5658
        %v5959 = vunpack.c.h.b16 %v5658
        %v5960 = vunpack.c.l.b16 %v5659
        %v5961 = vunpack.c.h.b16 %v5659
        %v5962 = vunpack.c.l.b16 %v5660
        %v5963 = vunpack.c.h.b16 %v5660
        %v5964 = vunpack.c.l.b16 %v5661
        %v5965 = vunpack.c.h.b16 %v5661
        %v5966 = vunpack.c.l.b16 %v5662
        %v5967 = vunpack.c.h.b16 %v5662
        %v5968 = vunpack.c.l.b16 %v5663
        %v5969 = vunpack.c.h.b16 %v5663
        %v5970 = vunpack.c.l.b16 %v5664
        %v5971 = vunpack.c.h.b16 %v5664
        %v5972 = vunpack.c.l.b16 %v5665
        %v5973 = vunpack.c.h.b16 %v5665
        %v5974 = vunpack.c.l.b16 %v5666
        %v5975 = vunpack.c.h.b16 %v5666
        %v5976 = vunpack.c.l.b16 %v5667
        %v5977 = vunpack.c.h.b16 %v5667
        %v5978 = vunpack.c.l.b16 %v5668
        %v5979 = vunpack.c.h.b16 %v5668
        %v5980 = vunpack.c.l.b16 %v5669
        %v5981 = vunpack.c.h.b16 %v5669
        %v5982 = vunpack.c.l.b16 %v5670
        %v5983 = vunpack.c.h.b16 %v5670
        %v5984 = vpack.c.b16 %v5922, %v5920
        %v5985 = vpack.c.b16 %v5923, %v5921
        %v5986 = vpack.c.b16 %v5926, %v5924
        %v5987 = vpack.c.b16 %v5927, %v5925
        %v5988 = vpack.c.b16 %v5930, %v5928
        %v5989 = vpack.c.b16 %v5931, %v5929
        %v5990 = vpack.c.b16 %v5934, %v5932
        %v5991 = vpack.c.b16 %v5935, %v5933
        %v5992 = vpack.c.b16 %v5938, %v5936
        %v5993 = vpack.c.b16 %v5939, %v5937
        %v5994 = vpack.c.b16 %v5942, %v5940
        %v5995 = vpack.c.b16 %v5943, %v5941
        %v5996 = vpack.c.b16 %v5946, %v5944
        %v5997 = vpack.c.b16 %v5947, %v5945
        %v5998 = vpack.c.b16 %v5950, %v5948
        %v5999 = vpack.c.b16 %v5951, %v5949
        %v6000 = vpack.c.b16 %v5954, %v5952
        %v6001 = vpack.c.b16 %v5955, %v5953
        %v6002 = vpack.c.b16 %v5958, %v5956
        %v6003 = vpack.c.b16 %v5959, %v5957
        %v6004 = vpack.c.b16 %v5962, %v5960
        %v6005 = vpack.c.b16 %v5963, %v5961
        %v6006 = vpack.c.b16 %v5966, %v5964
        %v6007 = vpack.c.b16 %v5967, %v5965
        %v6008 = vpack.c.b16 %v5970, %v5968
        %v6009 = vpack.c.b16 %v5971, %v5969
        %v6010 = vpack.c.b16 %v5974, %v5972
        %v6011 = vpack.c.b16 %v5975, %v5973
        %v6012 = vpack.c.b16 %v5978, %v5976
        %v6013 = vpack.c.b16 %v5979, %v5977
        %v6014 = vpack.c.b16 %v5982, %v5980
        %v6015 = vpack.c.b16 %v5983, %v5981
        %6048 = vmatprep.subr.bf16.mxu0 %v5985
        %6049 = vmatpush1.bf16.msra.mxu0 %v5984
        %6050 = vmatprep.subr.bf16.mxu0 %v5987
        %6051 = vmatpush1.bf16.msra.mxu0 %v5986
        %6052 = vmatprep.subr.bf16.mxu0 %v5989
        %6053 = vmatpush1.bf16.msra.mxu0 %v5988
        %6054 = vmatprep.subr.bf16.mxu0 %v5991
        %6055 = vmatpush1.bf16.msra.mxu0 %v5990
        %6056 = vmatprep.subr.bf16.mxu0 %v5993
        %6057 = vmatpush1.bf16.msra.mxu0 %v5992
        %6058 = vmatprep.subr.bf16.mxu0 %v5995
        %6059 = vmatpush1.bf16.msra.mxu0 %v5994
        %6060 = vmatprep.subr.bf16.mxu0 %v5997
        %6061 = vmatpush1.bf16.msra.mxu0 %v5996
        %6062 = vmatprep.subr.bf16.mxu0 %v5999
        %6063 = vmatpush1.bf16.msra.mxu0 %v5998
        %6064 = vmatprep.subr.bf16.mxu0 %v6001
        %6065 = vmatpush1.bf16.msra.mxu0 %v6000
        %6066 = vmatprep.subr.bf16.mxu0 %v6003
        %6067 = vmatpush1.bf16.msra.mxu0 %v6002
        %6068 = vmatprep.subr.bf16.mxu0 %v6005
        %6069 = vmatpush1.bf16.msra.mxu0 %v6004
        %6070 = vmatprep.subr.bf16.mxu0 %v6007
        %6071 = vmatpush1.bf16.msra.mxu0 %v6006
        %6072 = vmatprep.subr.bf16.mxu0 %v6009
        %6073 = vmatpush1.bf16.msra.mxu0 %v6008
        %6074 = vmatprep.subr.bf16.mxu0 %v6011
        %6075 = vmatpush1.bf16.msra.mxu0 %v6010
        %6076 = vmatprep.subr.bf16.mxu0 %v6013
        %6077 = vmatpush1.bf16.msra.mxu0 %v6012
        %6078 = vmatprep.subr.bf16.mxu0 %v6015
        %6079 = vmatpush1.bf16.msra.mxu0 %v6014
        %6080 = vmatprep.mubr.bf16.mxu0 %v5801
        %6081 = vmatmul.mubr.bf16.gmra.mrb[0].mxu0 %v5798
        %v6082 = vpop.f32.mrb[0].mxu0
        %v6083 = vadd.f32 0.0, %v6082
        %v6084 = vpop.f32.mrb[0].mxu0
        %v6085 = vadd.f32 0.0, %v6084
        %v6086 = vpop.f32.mrb[0].mxu0
        %v6087 = vadd.f32 0.0, %v6086
        %v6088 = vpop.f32.mrb[0].mxu0
        %v6089 = vadd.f32 0.0, %v6088
        %6090 = vmatprep.mubr.bf16.mxu0 %v5805
        %6091 = vmatmul.mubr.bf16.gmra.mrb[0].mxu0 %v5803
        %v6092 = vpop.f32.mrb[0].mxu0
        %v6093 = vadd.f32 0.0, %v6092
        %v6094 = vpop.f32.mrb[0].mxu0
        %v6095 = vadd.f32 0.0, %v6094
        %v6096 = vpop.f32.mrb[0].mxu0
        %v6097 = vadd.f32 0.0, %v6096
        %v6098 = vpop.f32.mrb[0].mxu0
        %v6099 = vadd.f32 0.0, %v6098
        %6100 = vmatprep.mubr.bf16.mxu0 %v5809
        %6101 = vmatmul.mubr.bf16.gmra.mrb[0].mxu0 %v5807
        %v6102 = vpop.f32.mrb[0].mxu0
        %v6103 = vadd.f32 0.0, %v6102
        %v6104 = vpop.f32.mrb[0].mxu0
        %v6105 = vadd.f32 0.0, %v6104
        %v6106 = vpop.f32.mrb[0].mxu0
        %v6107 = vadd.f32 0.0, %v6106
        %v6108 = vpop.f32.mrb[0].mxu0
        %v6109 = vadd.f32 0.0, %v6108
        %6110 = vmatprep.mubr.bf16.mxu0 %v5813
        %6111 = vmatmul.mubr.bf16.gmra.mrb[0].mxu0 %v5811
        %v6112 = vpop.f32.mrb[0].mxu0
        %v6113 = vadd.f32 0.0, %v6112
        %v6114 = vpop.f32.mrb[0].mxu0
        %v6115 = vadd.f32 0.0, %v6114
        %v6116 = vpop.f32.mrb[0].mxu0
        %v6117 = vadd.f32 0.0, %v6116
        %v6118 = vpop.f32.mrb[0].mxu0
        %v6119 = vadd.f32 0.0, %v6118
        %6120 = vmatprep.mubr.bf16.mxu0 %v5817
        %6121 = vmatmul.mubr.bf16.gmra.mrb[0].mxu0 %v5815
        %v6122 = vpop.f32.mrb[0].mxu0
        %v6123 = vadd.f32 0.0, %v6122
        %v6124 = vpop.f32.mrb[0].mxu0
        %v6125 = vadd.f32 0.0, %v6124
        %v6126 = vpop.f32.mrb[0].mxu0
        %v6127 = vadd.f32 0.0, %v6126
        %v6128 = vpop.f32.mrb[0].mxu0
        %v6129 = vadd.f32 0.0, %v6128
        %6130 = vmatprep.mubr.bf16.mxu0 %v5821
        %6131 = vmatmul.mubr.bf16.gmra.mrb[0].mxu0 %v5819
        %v6132 = vpop.f32.mrb[0].mxu0
        %v6133 = vadd.f32 0.0, %v6132
        %v6134 = vpop.f32.mrb[0].mxu0
        %v6135 = vadd.f32 0.0, %v6134
        %v6136 = vpop.f32.mrb[0].mxu0
        %v6137 = vadd.f32 0.0, %v6136
        %v6138 = vpop.f32.mrb[0].mxu0
        %v6139 = vadd.f32 0.0, %v6138
        %6140 = vmatprep.mubr.bf16.mxu0 %v5825
        %6141 = vmatmul.mubr.bf16.gmra.mrb[0].mxu0 %v5823
        %v6142 = vpop.f32.mrb[0].mxu0
        %v6143 = vadd.f32 0.0, %v6142
        %v6144 = vpop.f32.mrb[0].mxu0
        %v6145 = vadd.f32 0.0, %v6144
        %v6146 = vpop.f32.mrb[0].mxu0
        %v6147 = vadd.f32 0.0, %v6146
        %v6148 = vpop.f32.mrb[0].mxu0
        %v6149 = vadd.f32 0.0, %v6148
        %6150 = vmatprep.mubr.bf16.mxu0 %v5829
        %6151 = vmatmul.mubr.bf16.gmra.mrb[0].mxu0 %v5827
        %v6152 = vpop.f32.mrb[0].mxu0
        %v6153 = vadd.f32 0.0, %v6152
        %v6154 = vpop.f32.mrb[0].mxu0
        %v6155 = vadd.f32 0.0, %v6154
        %v6156 = vpop.f32.mrb[0].mxu0
        %v6157 = vadd.f32 0.0, %v6156
        %v6158 = vpop.f32.mrb[0].mxu0
        %v6159 = vadd.f32 0.0, %v6158
        %6160 = vmatprep.mubr.bf16.mxu0 %v5833
        %6161 = vmatmul.mubr.bf16.gmra.mrb[0].mxu0 %v5831
        %v6162 = vpop.f32.mrb[0].mxu0
        %v6163 = vadd.f32 0.0, %v6162
        %v6164 = vpop.f32.mrb[0].mxu0
        %v6165 = vadd.f32 0.0, %v6164
        %v6166 = vpop.f32.mrb[0].mxu0
        %v6167 = vadd.f32 0.0, %v6166
        %v6168 = vpop.f32.mrb[0].mxu0
        %v6169 = vadd.f32 0.0, %v6168
        %6170 = vmatprep.mubr.bf16.mxu0 %v5837
        %6171 = vmatmul.mubr.bf16.gmra.mrb[0].mxu0 %v5835
        %v6172 = vpop.f32.mrb[0].mxu0
        %v6173 = vadd.f32 0.0, %v6172
        %v6174 = vpop.f32.mrb[0].mxu0
        %v6175 = vadd.f32 0.0, %v6174
        %v6176 = vpop.f32.mrb[0].mxu0
        %v6177 = vadd.f32 0.0, %v6176
        %v6178 = vpop.f32.mrb[0].mxu0
        %v6179 = vadd.f32 0.0, %v6178
        %6180 = vmatprep.mubr.bf16.mxu0 %v5841
        %6181 = vmatmul.mubr.bf16.gmra.mrb[0].mxu0 %v5839
        %v6182 = vpop.f32.mrb[0].mxu0
        %v6183 = vadd.f32 0.0, %v6182
        %v6184 = vpop.f32.mrb[0].mxu0
        %v6185 = vadd.f32 0.0, %v6184
        %v6186 = vpop.f32.mrb[0].mxu0
        %v6187 = vadd.f32 0.0, %v6186
        %v6188 = vpop.f32.mrb[0].mxu0
        %v6189 = vadd.f32 0.0, %v6188
        %6190 = vmatprep.mubr.bf16.mxu0 %v5845
        %6191 = vmatmul.mubr.bf16.gmra.mrb[0].mxu0 %v5843
        %v6192 = vpop.f32.mrb[0].mxu0
        %v6193 = vadd.f32 0.0, %v6192
        %v6194 = vpop.f32.mrb[0].mxu0
        %v6195 = vadd.f32 0.0, %v6194
        %v6196 = vpop.f32.mrb[0].mxu0
        %v6197 = vadd.f32 0.0, %v6196
        %v6198 = vpop.f32.mrb[0].mxu0
        %v6199 = vadd.f32 0.0, %v6198
        %6200 = vmatprep.mubr.bf16.mxu0 %v5849
        %6201 = vmatmul.mubr.bf16.gmra.mrb[0].mxu0 %v5847
        %v6202 = vpop.f32.mrb[0].mxu0
        %v6203 = vadd.f32 0.0, %v6202
        %v6204 = vpop.f32.mrb[0].mxu0
        %v6205 = vadd.f32 0.0, %v6204
        %v6206 = vpop.f32.mrb[0].mxu0
        %v6207 = vadd.f32 0.0, %v6206
        %v6208 = vpop.f32.mrb[0].mxu0
        %v6209 = vadd.f32 0.0, %v6208
        %6210 = vmatprep.mubr.bf16.mxu0 %v5853
        %6211 = vmatmul.mubr.bf16.gmra.mrb[0].mxu0 %v5851
        %v6212 = vpop.f32.mrb[0].mxu0
        %v6213 = vadd.f32 0.0, %v6212
        %v6214 = vpop.f32.mrb[0].mxu0
        %v6215 = vadd.f32 0.0, %v6214
        %v6216 = vpop.f32.mrb[0].mxu0
        %v6217 = vadd.f32 0.0, %v6216
        %v6218 = vpop.f32.mrb[0].mxu0
        %v6219 = vadd.f32 0.0, %v6218
        %6220 = vmatprep.mubr.bf16.mxu0 %v5857
        %6221 = vmatmul.mubr.bf16.gmra.mrb[0].mxu0 %v5855
        %v6222 = vpop.f32.mrb[0].mxu0
        %v6223 = vadd.f32 0.0, %v6222
        %v6224 = vpop.f32.mrb[0].mxu0
        %v6225 = vadd.f32 0.0, %v6224
        %v6226 = vpop.f32.mrb[0].mxu0
        %v6227 = vadd.f32 0.0, %v6226
        %v6228 = vpop.f32.mrb[0].mxu0
        %v6229 = vadd.f32 0.0, %v6228
        %6230 = vdwg.mxu0
        %v6231 = vld [vmem:[#allocation3] sm:$0xff]
        %v6232 = vld [vmem:[#allocation3 + $0x8] sm:$0xff]
        %v6233 = vld [vmem:[#allocation3 + $0x10] sm:$0xff]
        %v6234 = vld [vmem:[#allocation3 + $0x18] sm:$0xff]
        %v6235 = vld [vmem:[#allocation3 + $0x20] sm:$0xff]
        %v6236 = vld [vmem:[#allocation3 + $0x28] sm:$0xff]
        %v6237 = vld [vmem:[#allocation3 + $0x30] sm:$0xff]
        %v6238 = vld [vmem:[#allocation3 + $0x38] sm:$0xff]
        %v6239 = vld [vmem:[#allocation3 + $0x40] sm:$0xff]
        %v6240 = vld [vmem:[#allocation3 + $0x48] sm:$0xff]
        %v6241 = vld [vmem:[#allocation3 + $0x50] sm:$0xff]
        %v6242 = vld [vmem:[#allocation3 + $0x58] sm:$0xff]
        %v6243 = vld [vmem:[#allocation3 + $0x60] sm:$0xff]
        %v6244 = vld [vmem:[#allocation3 + $0x68] sm:$0xff]
        %v6245 = vld [vmem:[#allocation3 + $0x70] sm:$0xff]
        %v6246 = vld [vmem:[#allocation3 + $0x78] sm:$0xff]
        %v6247 = vld [vmem:[#allocation3 + $0x80] sm:$0xff]
        %v6248 = vld [vmem:[#allocation3 + $0x88] sm:$0xff]
        %v6249 = vld [vmem:[#allocation3 + $0x90] sm:$0xff]
        %v6250 = vld [vmem:[#allocation3 + $0x98] sm:$0xff]
        %v6251 = vld [vmem:[#allocation3 + $0xa0] sm:$0xff]
        %v6252 = vld [vmem:[#allocation3 + $0xa8] sm:$0xff]
        %v6253 = vld [vmem:[#allocation3 + $0xb0] sm:$0xff]
        %v6254 = vld [vmem:[#allocation3 + $0xb8] sm:$0xff]
        %v6255 = vld [vmem:[#allocation3 + $0xc0] sm:$0xff]
        %v6256 = vld [vmem:[#allocation3 + $0xc8] sm:$0xff]
        %v6257 = vld [vmem:[#allocation3 + $0xd0] sm:$0xff]
        %v6258 = vld [vmem:[#allocation3 + $0xd8] sm:$0xff]
        %v6259 = vld [vmem:[#allocation3 + $0xe0] sm:$0xff]
        %v6260 = vld [vmem:[#allocation3 + $0xe8] sm:$0xff]
        %v6261 = vld [vmem:[#allocation3 + $0xf0] sm:$0xff]
        %v6262 = vld [vmem:[#allocation3 + $0xf8] sm:$0xff]
        %v6263 = vld [vmem:[#allocation3 + $0x100] sm:$0xff]
        %v6264 = vld [vmem:[#allocation3 + $0x108] sm:$0xff]
        %v6265 = vld [vmem:[#allocation3 + $0x110] sm:$0xff]
        %v6266 = vld [vmem:[#allocation3 + $0x118] sm:$0xff]
        %v6267 = vld [vmem:[#allocation3 + $0x120] sm:$0xff]
        %v6268 = vld [vmem:[#allocation3 + $0x128] sm:$0xff]
        %v6269 = vld [vmem:[#allocation3 + $0x130] sm:$0xff]
        %v6270 = vld [vmem:[#allocation3 + $0x138] sm:$0xff]
        %v6271 = vld [vmem:[#allocation3 + $0x140] sm:$0xff]
        %v6272 = vld [vmem:[#allocation3 + $0x148] sm:$0xff]
        %v6273 = vld [vmem:[#allocation3 + $0x150] sm:$0xff]
        %v6274 = vld [vmem:[#allocation3 + $0x158] sm:$0xff]
        %v6275 = vld [vmem:[#allocation3 + $0x160] sm:$0xff]
        %v6276 = vld [vmem:[#allocation3 + $0x168] sm:$0xff]
        %v6277 = vld [vmem:[#allocation3 + $0x170] sm:$0xff]
        %v6278 = vld [vmem:[#allocation3 + $0x178] sm:$0xff]
        %v6279 = vld [vmem:[#allocation3 + $0x180] sm:$0xff]
        %v6280 = vld [vmem:[#allocation3 + $0x188] sm:$0xff]
        %v6281 = vld [vmem:[#allocation3 + $0x190] sm:$0xff]
        %v6282 = vld [vmem:[#allocation3 + $0x198] sm:$0xff]
        %v6283 = vld [vmem:[#allocation3 + $0x1a0] sm:$0xff]
        %v6284 = vld [vmem:[#allocation3 + $0x1a8] sm:$0xff]
        %v6285 = vld [vmem:[#allocation3 + $0x1b0] sm:$0xff]
        %v6286 = vld [vmem:[#allocation3 + $0x1b8] sm:$0xff]
        %v6287 = vld [vmem:[#allocation3 + $0x1c0] sm:$0xff]
        %v6288 = vld [vmem:[#allocation3 + $0x1c8] sm:$0xff]
        %v6289 = vld [vmem:[#allocation3 + $0x1d0] sm:$0xff]
        %v6290 = vld [vmem:[#allocation3 + $0x1d8] sm:$0xff]
        %v6291 = vadd.f32 %v6231, %v6083
        %v6292 = vadd.f32 %v6232, %v6085
        %v6293 = vadd.f32 %v6233, %v6087
        %v6294 = vadd.f32 %v6234, %v6089
        %v6295 = vadd.f32 %v6235, %v6093
        %v6296 = vadd.f32 %v6236, %v6095
        %v6297 = vadd.f32 %v6237, %v6097
        %v6298 = vadd.f32 %v6238, %v6099
        %v6299 = vadd.f32 %v6239, %v6103
        %v6300 = vadd.f32 %v6240, %v6105
        %v6301 = vadd.f32 %v6241, %v6107
        %v6302 = vadd.f32 %v6242, %v6109
        %v6303 = vadd.f32 %v6243, %v6113
        %v6304 = vadd.f32 %v6244, %v6115
        %v6305 = vadd.f32 %v6245, %v6117
        %v6306 = vadd.f32 %v6246, %v6119
        %v6307 = vadd.f32 %v6247, %v6123
        %v6308 = vadd.f32 %v6248, %v6125
        %v6309 = vadd.f32 %v6249, %v6127
        %v6310 = vadd.f32 %v6250, %v6129
        %v6311 = vadd.f32 %v6251, %v6133
        %v6312 = vadd.f32 %v6252, %v6135
        %v6313 = vadd.f32 %v6253, %v6137
        %v6314 = vadd.f32 %v6254, %v6139
        %v6315 = vadd.f32 %v6255, %v6143
        %v6316 = vadd.f32 %v6256, %v6145
        %v6317 = vadd.f32 %v6257, %v6147
        %v6318 = vadd.f32 %v6258, %v6149
        %v6319 = vadd.f32 %v6259, %v6153
        %v6320 = vadd.f32 %v6260, %v6155
        %v6321 = vadd.f32 %v6261, %v6157
        %v6322 = vadd.f32 %v6262, %v6159
        %v6323 = vadd.f32 %v6263, %v6163
        %v6324 = vadd.f32 %v6264, %v6165
        %v6325 = vadd.f32 %v6265, %v6167
        %v6326 = vadd.f32 %v6266, %v6169
        %v6327 = vadd.f32 %v6267, %v6173
        %v6328 = vadd.f32 %v6268, %v6175
        %v6329 = vadd.f32 %v6269, %v6177
        %v6330 = vadd.f32 %v6270, %v6179
        %v6331 = vadd.f32 %v6271, %v6183
        %v6332 = vadd.f32 %v6272, %v6185
        %v6333 = vadd.f32 %v6273, %v6187
        %v6334 = vadd.f32 %v6274, %v6189
        %v6335 = vadd.f32 %v6275, %v6193
        %v6336 = vadd.f32 %v6276, %v6195
        %v6337 = vadd.f32 %v6277, %v6197
        %v6338 = vadd.f32 %v6278, %v6199
        %v6339 = vadd.f32 %v6279, %v6203
        %v6340 = vadd.f32 %v6280, %v6205
        %v6341 = vadd.f32 %v6281, %v6207
        %v6342 = vadd.f32 %v6282, %v6209
        %v6343 = vadd.f32 %v6283, %v6213
        %v6344 = vadd.f32 %v6284, %v6215
        %v6345 = vadd.f32 %v6285, %v6217
        %v6346 = vadd.f32 %v6286, %v6219
        %v6347 = vadd.f32 %v6287, %v6223
        %v6348 = vadd.f32 %v6288, %v6225
        %v6349 = vadd.f32 %v6289, %v6227
        %v6350 = vadd.f32 %v6290, %v6229
        %6351 = vst [vmem:[#allocation3] sm:$0xff] %v6291
        %6352 = vst [vmem:[#allocation3 + $0x8] sm:$0xff] %v6292
        %6353 = vst [vmem:[#allocation3 + $0x10] sm:$0xff] %v6293
        %6354 = vst [vmem:[#allocation3 + $0x18] sm:$0xff] %v6294
        %6355 = vst [vmem:[#allocation3 + $0x20] sm:$0xff] %v6295
        %6356 = vst [vmem:[#allocation3 + $0x28] sm:$0xff] %v6296
        %6357 = vst [vmem:[#allocation3 + $0x30] sm:$0xff] %v6297
        %6358 = vst [vmem:[#allocation3 + $0x38] sm:$0xff] %v6298
        %6359 = vst [vmem:[#allocation3 + $0x40] sm:$0xff] %v6299
        %6360 = vst [vmem:[#allocation3 + $0x48] sm:$0xff] %v6300
        %6361 = vst [vmem:[#allocation3 + $0x50] sm:$0xff] %v6301
        %6362 = vst [vmem:[#allocation3 + $0x58] sm:$0xff] %v6302
        %6363 = vst [vmem:[#allocation3 + $0x60] sm:$0xff] %v6303
        %6364 = vst [vmem:[#allocation3 + $0x68] sm:$0xff] %v6304
        %6365 = vst [vmem:[#allocation3 + $0x70] sm:$0xff] %v6305
        %6366 = vst [vmem:[#allocation3 + $0x78] sm:$0xff] %v6306
        %6367 = vst [vmem:[#allocation3 + $0x80] sm:$0xff] %v6307
        %6368 = vst [vmem:[#allocation3 + $0x88] sm:$0xff] %v6308
        %6369 = vst [vmem:[#allocation3 + $0x90] sm:$0xff] %v6309
        %6370 = vst [vmem:[#allocation3 + $0x98] sm:$0xff] %v6310
        %6371 = vst [vmem:[#allocation3 + $0xa0] sm:$0xff] %v6311
        %6372 = vst [vmem:[#allocation3 + $0xa8] sm:$0xff] %v6312
        %6373 = vst [vmem:[#allocation3 + $0xb0] sm:$0xff] %v6313
        %6374 = vst [vmem:[#allocation3 + $0xb8] sm:$0xff] %v6314
        %6375 = vst [vmem:[#allocation3 + $0xc0] sm:$0xff] %v6315
        %6376 = vst [vmem:[#allocation3 + $0xc8] sm:$0xff] %v6316
        %6377 = vst [vmem:[#allocation3 + $0xd0] sm:$0xff] %v6317
        %6378 = vst [vmem:[#allocation3 + $0xd8] sm:$0xff] %v6318
        %6379 = vst [vmem:[#allocation3 + $0xe0] sm:$0xff] %v6319
        %6380 = vst [vmem:[#allocation3 + $0xe8] sm:$0xff] %v6320
        %6381 = vst [vmem:[#allocation3 + $0xf0] sm:$0xff] %v6321
        %6382 = vst [vmem:[#allocation3 + $0xf8] sm:$0xff] %v6322
        %6383 = vst [vmem:[#allocation3 + $0x100] sm:$0xff] %v6323
        %6384 = vst [vmem:[#allocation3 + $0x108] sm:$0xff] %v6324
        %6385 = vst [vmem:[#allocation3 + $0x110] sm:$0xff] %v6325
        %6386 = vst [vmem:[#allocation3 + $0x118] sm:$0xff] %v6326
        %6387 = vst [vmem:[#allocation3 + $0x120] sm:$0xff] %v6327
        %6388 = vst [vmem:[#allocation3 + $0x128] sm:$0xff] %v6328
        %6389 = vst [vmem:[#allocation3 + $0x130] sm:$0xff] %v6329
        %6390 = vst [vmem:[#allocation3 + $0x138] sm:$0xff] %v6330
        %6391 = vst [vmem:[#allocation3 + $0x140] sm:$0xff] %v6331
        %6392 = vst [vmem:[#allocation3 + $0x148] sm:$0xff] %v6332
        %6393 = vst [vmem:[#allocation3 + $0x150] sm:$0xff] %v6333
        %6394 = vst [vmem:[#allocation3 + $0x158] sm:$0xff] %v6334
        %6395 = vst [vmem:[#allocation3 + $0x160] sm:$0xff] %v6335
        %6396 = vst [vmem:[#allocation3 + $0x168] sm:$0xff] %v6336
        %6397 = vst [vmem:[#allocation3 + $0x170] sm:$0xff] %v6337
        %6398 = vst [vmem:[#allocation3 + $0x178] sm:$0xff] %v6338
        %6399 = vst [vmem:[#allocation3 + $0x180] sm:$0xff] %v6339
        %6400 = vst [vmem:[#allocation3 + $0x188] sm:$0xff] %v6340
        %6401 = vst [vmem:[#allocation3 + $0x190] sm:$0xff] %v6341
        %6402 = vst [vmem:[#allocation3 + $0x198] sm:$0xff] %v6342
        %6403 = vst [vmem:[#allocation3 + $0x1a0] sm:$0xff] %v6343
        %6404 = vst [vmem:[#allocation3 + $0x1a8] sm:$0xff] %v6344
        %6405 = vst [vmem:[#allocation3 + $0x1b0] sm:$0xff] %v6345
        %6406 = vst [vmem:[#allocation3 + $0x1b8] sm:$0xff] %v6346
        %6407 = vst [vmem:[#allocation3 + $0x1c0] sm:$0xff] %v6347
        %6408 = vst [vmem:[#allocation3 + $0x1c8] sm:$0xff] %v6348
        %6409 = vst [vmem:[#allocation3 + $0x1d0] sm:$0xff] %v6349
        %6410 = vst [vmem:[#allocation3 + $0x1d8] sm:$0xff] %v6350
        %v6411 = vld [vmem:[#allocation2 + $0x30] sm:$0xff]
        %v6412 = vld [vmem:[#allocation2 + $0x38] sm:$0xff]
        %v6413 = vld [vmem:[#allocation2 + $0x40] sm:$0xff]
        %v6414 = vld [vmem:[#allocation2 + $0x48] sm:$0xff]
        %v6415 = vld [vmem:[#allocation2 + $0x50] sm:$0xff]
        %v6416 = vld [vmem:[#allocation2 + $0x58] sm:$0xff]
        %v6417 = vld [vmem:[#allocation2 + $0x60] sm:$0xff]
        %v6418 = vld [vmem:[#allocation2 + $0x68] sm:$0xff]
        %v6419 = vld [vmem:[#allocation2 + $0x70] sm:$0xff]
        %v6420 = vld [vmem:[#allocation2 + $0x78] sm:$0xff]
        %v6421 = vld [vmem:[#allocation2 + $0x80] sm:$0xff]
        %v6422 = vld [vmem:[#allocation2 + $0x88] sm:$0xff]
        %v6423 = vld [vmem:[#allocation2 + $0x90] sm:$0xff]
        %v6424 = vld [vmem:[#allocation2 + $0x98] sm:$0xff]
        %v6425 = vld [vmem:[#allocation2 + $0xa0] sm:$0xff]
        %v6426 = vld [vmem:[#allocation2 + $0xa8] sm:$0xff]
        %v6427 = vld [vmem:[#allocation2 + $0xb0] sm:$0xff]
        %v6428 = vld [vmem:[#allocation2 + $0xb8] sm:$0xff]
        %v6429 = vld [vmem:[#allocation2 + $0xc0] sm:$0xff]
        %v6430 = vld [vmem:[#allocation2 + $0xc8] sm:$0xff]
        %v6431 = vld [vmem:[#allocation2 + $0xd0] sm:$0xff]
        %v6432 = vld [vmem:[#allocation2 + $0xd8] sm:$0xff]
        %v6433 = vld [vmem:[#allocation2 + $0xe0] sm:$0xff]
        %v6434 = vld [vmem:[#allocation2 + $0xe8] sm:$0xff]
        %v6435 = vld [vmem:[#allocation2 + $0xf0] sm:$0xff]
        %v6436 = vld [vmem:[#allocation2 + $0xf8] sm:$0xff]
        %v6437 = vld [vmem:[#allocation2 + $0x100] sm:$0xff]
        %v6438 = vld [vmem:[#allocation2 + $0x108] sm:$0xff]
        %v6439 = vld [vmem:[#allocation2 + $0x110] sm:$0xff]
        %v6440 = vld [vmem:[#allocation2 + $0x118] sm:$0xff]
        %s6441 = scalar_lea.vmem [#allocation12], 1536
        %v6442 = vld [vmem:[%s6441] sm:$0xff]
        %v6443 = vld [vmem:[%s6441 + $0x8] sm:$0xff]
        %v6444 = vld [vmem:[%s6441 + $0x10] sm:$0xff]
        %v6445 = vld [vmem:[%s6441 + $0x18] sm:$0xff]
        %v6446 = vld [vmem:[%s6441 + $0x20] sm:$0xff]
        %v6447 = vld [vmem:[%s6441 + $0x28] sm:$0xff]
        %v6448 = vld [vmem:[%s6441 + $0x30] sm:$0xff]
        %v6449 = vld [vmem:[%s6441 + $0x38] sm:$0xff]
        %v6450 = vld [vmem:[%s6441 + $0x40] sm:$0xff]
        %v6451 = vld [vmem:[%s6441 + $0x48] sm:$0xff]
        %v6452 = vld [vmem:[%s6441 + $0x50] sm:$0xff]
        %v6453 = vld [vmem:[%s6441 + $0x58] sm:$0xff]
        %v6454 = vld [vmem:[%s6441 + $0x60] sm:$0xff]
        %v6455 = vld [vmem:[%s6441 + $0x68] sm:$0xff]
        %v6456 = vld [vmem:[%s6441 + $0x70] sm:$0xff]
        %v6457 = vld [vmem:[%s6441 + $0x78] sm:$0xff]
        %v6458 = vld [vmem:[%s6441 + $0x80] sm:$0xff]
        %v6459 = vld [vmem:[%s6441 + $0x88] sm:$0xff]
        %v6460 = vld [vmem:[%s6441 + $0x90] sm:$0xff]
        %v6461 = vld [vmem:[%s6441 + $0x98] sm:$0xff]
        %v6462 = vld [vmem:[%s6441 + $0xa0] sm:$0xff]
        %v6463 = vld [vmem:[%s6441 + $0xa8] sm:$0xff]
        %v6464 = vld [vmem:[%s6441 + $0xb0] sm:$0xff]
        %v6465 = vld [vmem:[%s6441 + $0xb8] sm:$0xff]
        %v6466 = vld [vmem:[%s6441 + $0xc0] sm:$0xff]
        %v6467 = vld [vmem:[%s6441 + $0xc8] sm:$0xff]
        %v6468 = vld [vmem:[%s6441 + $0xd0] sm:$0xff]
        %v6469 = vld [vmem:[%s6441 + $0xd8] sm:$0xff]
        %v6470 = vld [vmem:[%s6441 + $0xe0] sm:$0xff]
        %v6471 = vld [vmem:[%s6441 + $0xe8] sm:$0xff]
        %v6472 = vld [vmem:[%s6441 + $0xf0] sm:$0xff]
        %v6473 = vld [vmem:[%s6441 + $0xf8] sm:$0xff]
        %v6504 = vunpack.c.l.b16 %v6411
        %v6505 = vunpack.c.h.b16 %v6411
        %v6506 = vunpack.c.l.b16 %v6412
        %v6507 = vunpack.c.h.b16 %v6412
        %v6508 = vunpack.c.l.b16 %v6413
        %v6509 = vunpack.c.h.b16 %v6413
        %v6510 = vunpack.c.l.b16 %v6414
        %v6511 = vunpack.c.h.b16 %v6414
        %v6512 = vunpack.c.l.b16 %v6415
        %v6513 = vunpack.c.h.b16 %v6415
        %v6514 = vunpack.c.l.b16 %v6416
        %v6515 = vunpack.c.h.b16 %v6416
        %v6516 = vunpack.c.l.b16 %v6417
        %v6517 = vunpack.c.h.b16 %v6417
        %v6518 = vunpack.c.l.b16 %v6418
        %v6519 = vunpack.c.h.b16 %v6418
        %v6520 = vunpack.c.l.b16 %v6419
        %v6521 = vunpack.c.h.b16 %v6419
        %v6522 = vunpack.c.l.b16 %v6420
        %v6523 = vunpack.c.h.b16 %v6420
        %v6524 = vunpack.c.l.b16 %v6421
        %v6525 = vunpack.c.h.b16 %v6421
        %v6526 = vunpack.c.l.b16 %v6422
        %v6527 = vunpack.c.h.b16 %v6422
        %v6528 = vunpack.c.l.b16 %v6423
        %v6529 = vunpack.c.h.b16 %v6423
        %v6530 = vunpack.c.l.b16 %v6424
        %v6531 = vunpack.c.h.b16 %v6424
        %v6532 = vunpack.c.l.b16 %v6425
        %v6533 = vunpack.c.h.b16 %v6425
        %v6534 = vunpack.c.l.b16 %v6426
        %v6535 = vunpack.c.h.b16 %v6426
        %v6536 = vunpack.c.l.b16 %v6427
        %v6537 = vunpack.c.h.b16 %v6427
        %v6538 = vunpack.c.l.b16 %v6428
        %v6539 = vunpack.c.h.b16 %v6428
        %v6540 = vunpack.c.l.b16 %v6429
        %v6541 = vunpack.c.h.b16 %v6429
        %v6542 = vunpack.c.l.b16 %v6430
        %v6543 = vunpack.c.h.b16 %v6430
        %v6544 = vunpack.c.l.b16 %v6431
        %v6545 = vunpack.c.h.b16 %v6431
        %v6546 = vunpack.c.l.b16 %v6432
        %v6547 = vunpack.c.h.b16 %v6432
        %v6548 = vunpack.c.l.b16 %v6433
        %v6549 = vunpack.c.h.b16 %v6433
        %v6550 = vunpack.c.l.b16 %v6434
        %v6551 = vunpack.c.h.b16 %v6434
        %v6552 = vunpack.c.l.b16 %v6435
        %v6553 = vunpack.c.h.b16 %v6435
        %v6554 = vunpack.c.l.b16 %v6436
        %v6555 = vunpack.c.h.b16 %v6436
        %v6556 = vunpack.c.l.b16 %v6437
        %v6557 = vunpack.c.h.b16 %v6437
        %v6558 = vunpack.c.l.b16 %v6438
        %v6559 = vunpack.c.h.b16 %v6438
        %v6560 = vunpack.c.l.b16 %v6439
        %v6561 = vunpack.c.h.b16 %v6439
        %v6562 = vunpack.c.l.b16 %v6440
        %v6563 = vunpack.c.h.b16 %v6440
        %v6564 = vpack.c.b16 %v6506, %v6504
        %v6565 = vpack.c.b16 %v6507, %v6505
        %v6566 = vpack.c.b16 %v6510, %v6508
        %v6567 = vpack.c.b16 %v6511, %v6509
        %v6568 = vpack.c.b16 %v6514, %v6512
        %v6569 = vpack.c.b16 %v6515, %v6513
        %v6570 = vpack.c.b16 %v6518, %v6516
        %v6571 = vpack.c.b16 %v6519, %v6517
        %v6572 = vpack.c.b16 %v6522, %v6520
        %v6573 = vpack.c.b16 %v6523, %v6521
        %v6574 = vpack.c.b16 %v6526, %v6524
        %v6575 = vpack.c.b16 %v6527, %v6525
        %v6576 = vpack.c.b16 %v6530, %v6528
        %v6577 = vpack.c.b16 %v6531, %v6529
        %v6578 = vpack.c.b16 %v6534, %v6532
        %v6579 = vpack.c.b16 %v6535, %v6533
        %v6580 = vpack.c.b16 %v6538, %v6536
        %v6581 = vpack.c.b16 %v6539, %v6537
        %v6582 = vpack.c.b16 %v6542, %v6540
        %v6583 = vpack.c.b16 %v6543, %v6541
        %v6584 = vpack.c.b16 %v6546, %v6544
        %v6585 = vpack.c.b16 %v6547, %v6545
        %v6586 = vpack.c.b16 %v6550, %v6548
        %v6587 = vpack.c.b16 %v6551, %v6549
        %v6588 = vpack.c.b16 %v6554, %v6552
        %v6589 = vpack.c.b16 %v6555, %v6553
        %v6590 = vpack.c.b16 %v6558, %v6556
        %v6591 = vpack.c.b16 %v6559, %v6557
        %v6592 = vpack.c.b16 %v6562, %v6560
        %v6593 = vpack.c.b16 %v6563, %v6561
        %v6656 = vunpack.c.l.b16 %v6442
        %v6657 = vunpack.c.h.b16 %v6442
        %v6658 = vunpack.c.l.b16 %v6443
        %v6659 = vunpack.c.h.b16 %v6443
        %v6660 = vunpack.c.l.b16 %v6444
        %v6661 = vunpack.c.h.b16 %v6444
        %v6662 = vunpack.c.l.b16 %v6445
        %v6663 = vunpack.c.h.b16 %v6445
        %v6664 = vunpack.c.l.b16 %v6446
        %v6665 = vunpack.c.h.b16 %v6446
        %v6666 = vunpack.c.l.b16 %v6447
        %v6667 = vunpack.c.h.b16 %v6447
        %v6668 = vunpack.c.l.b16 %v6448
        %v6669 = vunpack.c.h.b16 %v6448
        %v6670 = vunpack.c.l.b16 %v6449
        %v6671 = vunpack.c.h.b16 %v6449
        %v6672 = vunpack.c.l.b16 %v6450
        %v6673 = vunpack.c.h.b16 %v6450
        %v6674 = vunpack.c.l.b16 %v6451
        %v6675 = vunpack.c.h.b16 %v6451
        %v6676 = vunpack.c.l.b16 %v6452
        %v6677 = vunpack.c.h.b16 %v6452
        %v6678 = vunpack.c.l.b16 %v6453
        %v6679 = vunpack.c.h.b16 %v6453
        %v6680 = vunpack.c.l.b16 %v6454
        %v6681 = vunpack.c.h.b16 %v6454
        %v6682 = vunpack.c.l.b16 %v6455
        %v6683 = vunpack.c.h.b16 %v6455
        %v6684 = vunpack.c.l.b16 %v6456
        %v6685 = vunpack.c.h.b16 %v6456
        %v6686 = vunpack.c.l.b16 %v6457
        %v6687 = vunpack.c.h.b16 %v6457
        %v6688 = vunpack.c.l.b16 %v6458
        %v6689 = vunpack.c.h.b16 %v6458
        %v6690 = vunpack.c.l.b16 %v6459
        %v6691 = vunpack.c.h.b16 %v6459
        %v6692 = vunpack.c.l.b16 %v6460
        %v6693 = vunpack.c.h.b16 %v6460
        %v6694 = vunpack.c.l.b16 %v6461
        %v6695 = vunpack.c.h.b16 %v6461
        %v6696 = vunpack.c.l.b16 %v6462
        %v6697 = vunpack.c.h.b16 %v6462
        %v6698 = vunpack.c.l.b16 %v6463
        %v6699 = vunpack.c.h.b16 %v6463
        %v6700 = vunpack.c.l.b16 %v6464
        %v6701 = vunpack.c.h.b16 %v6464
        %v6702 = vunpack.c.l.b16 %v6465
        %v6703 = vunpack.c.h.b16 %v6465
        %v6704 = vunpack.c.l.b16 %v6466
        %v6705 = vunpack.c.h.b16 %v6466
        %v6706 = vunpack.c.l.b16 %v6467
        %v6707 = vunpack.c.h.b16 %v6467
        %v6708 = vunpack.c.l.b16 %v6468
        %v6709 = vunpack.c.h.b16 %v6468
        %v6710 = vunpack.c.l.b16 %v6469
        %v6711 = vunpack.c.h.b16 %v6469
        %v6712 = vunpack.c.l.b16 %v6470
        %v6713 = vunpack.c.h.b16 %v6470
        %v6714 = vunpack.c.l.b16 %v6471
        %v6715 = vunpack.c.h.b16 %v6471
        %v6716 = vunpack.c.l.b16 %v6472
        %v6717 = vunpack.c.h.b16 %v6472
        %v6718 = vunpack.c.l.b16 %v6473
        %v6719 = vunpack.c.h.b16 %v6473
        %v6720 = vpack.c.b16 %v6658, %v6656
        %v6721 = vpack.c.b16 %v6659, %v6657
        %v6722 = vpack.c.b16 %v6662, %v6660
        %v6723 = vpack.c.b16 %v6663, %v6661
        %v6724 = vpack.c.b16 %v6666, %v6664
        %v6725 = vpack.c.b16 %v6667, %v6665
        %v6726 = vpack.c.b16 %v6670, %v6668
        %v6727 = vpack.c.b16 %v6671, %v6669
        %v6728 = vpack.c.b16 %v6674, %v6672
        %v6729 = vpack.c.b16 %v6675, %v6673
        %v6730 = vpack.c.b16 %v6678, %v6676
        %v6731 = vpack.c.b16 %v6679, %v6677
        %v6732 = vpack.c.b16 %v6682, %v6680
        %v6733 = vpack.c.b16 %v6683, %v6681
        %v6734 = vpack.c.b16 %v6686, %v6684
        %v6735 = vpack.c.b16 %v6687, %v6685
        %v6736 = vpack.c.b16 %v6690, %v6688
        %v6737 = vpack.c.b16 %v6691, %v6689
        %v6738 = vpack.c.b16 %v6694, %v6692
        %v6739 = vpack.c.b16 %v6695, %v6693
        %v6740 = vpack.c.b16 %v6698, %v6696
        %v6741 = vpack.c.b16 %v6699, %v6697
        %v6742 = vpack.c.b16 %v6702, %v6700
        %v6743 = vpack.c.b16 %v6703, %v6701
        %v6744 = vpack.c.b16 %v6706, %v6704
        %v6745 = vpack.c.b16 %v6707, %v6705
        %v6746 = vpack.c.b16 %v6710, %v6708
        %v6747 = vpack.c.b16 %v6711, %v6709
        %v6748 = vpack.c.b16 %v6714, %v6712
        %v6749 = vpack.c.b16 %v6715, %v6713
        %v6750 = vpack.c.b16 %v6718, %v6716
        %v6751 = vpack.c.b16 %v6719, %v6717
        %6784 = vmatprep.subr.bf16.mxu0 %v6721
        %6785 = vmatpush1.bf16.msra.mxu0 %v6720
        %6786 = vmatprep.subr.bf16.mxu0 %v6723
        %6787 = vmatpush1.bf16.msra.mxu0 %v6722
        %6788 = vmatprep.subr.bf16.mxu0 %v6725
        %6789 = vmatpush1.bf16.msra.mxu0 %v6724
        %6790 = vmatprep.subr.bf16.mxu0 %v6727
        %6791 = vmatpush1.bf16.msra.mxu0 %v6726
        %6792 = vmatprep.subr.bf16.mxu0 %v6729
        %6793 = vmatpush1.bf16.msra.mxu0 %v6728
        %6794 = vmatprep.subr.bf16.mxu0 %v6731
        %6795 = vmatpush1.bf16.msra.mxu0 %v6730
        %6796 = vmatprep.subr.bf16.mxu0 %v6733
        %6797 = vmatpush1.bf16.msra.mxu0 %v6732
        %6798 = vmatprep.subr.bf16.mxu0 %v6735
        %6799 = vmatpush1.bf16.msra.mxu0 %v6734
        %6800 = vmatprep.subr.bf16.mxu0 %v6737
        %6801 = vmatpush1.bf16.msra.mxu0 %v6736
        %6802 = vmatprep.subr.bf16.mxu0 %v6739
        %6803 = vmatpush1.bf16.msra.mxu0 %v6738
        %6804 = vmatprep.subr.bf16.mxu0 %v6741
        %6805 = vmatpush1.bf16.msra.mxu0 %v6740
        %6806 = vmatprep.subr.bf16.mxu0 %v6743
        %6807 = vmatpush1.bf16.msra.mxu0 %v6742
        %6808 = vmatprep.subr.bf16.mxu0 %v6745
        %6809 = vmatpush1.bf16.msra.mxu0 %v6744
        %6810 = vmatprep.subr.bf16.mxu0 %v6747
        %6811 = vmatpush1.bf16.msra.mxu0 %v6746
        %6812 = vmatprep.subr.bf16.mxu0 %v6749
        %6813 = vmatpush1.bf16.msra.mxu0 %v6748
        %6814 = vmatprep.subr.bf16.mxu0 %v6751
        %6815 = vmatpush1.bf16.msra.mxu0 %v6750
        %6816 = vmatprep.mubr.bf16.mxu0 %v6565
        %6817 = vmatmul.mubr.bf16.gmra.mrb[0].mxu0 %v6564
        %v6818 = vpop.f32.mrb[0].mxu0
        %v6819 = vadd.f32 0.0, %v6818
        %v6820 = vpop.f32.mrb[0].mxu0
        %v6821 = vadd.f32 0.0, %v6820
        %v6822 = vpop.f32.mrb[0].mxu0
        %v6823 = vadd.f32 0.0, %v6822
        %v6824 = vpop.f32.mrb[0].mxu0
        %v6825 = vadd.f32 0.0, %v6824
        %6826 = vmatprep.mubr.bf16.mxu0 %v6567
        %6827 = vmatmul.mubr.bf16.gmra.mrb[0].mxu0 %v6566
        %v6828 = vpop.f32.mrb[0].mxu0
        %v6829 = vadd.f32 0.0, %v6828
        %v6830 = vpop.f32.mrb[0].mxu0
        %v6831 = vadd.f32 0.0, %v6830
        %v6832 = vpop.f32.mrb[0].mxu0
        %v6833 = vadd.f32 0.0, %v6832
        %v6834 = vpop.f32.mrb[0].mxu0
        %v6835 = vadd.f32 0.0, %v6834
        %6836 = vmatprep.mubr.bf16.mxu0 %v6569
        %6837 = vmatmul.mubr.bf16.gmra.mrb[0].mxu0 %v6568
        %v6838 = vpop.f32.mrb[0].mxu0
        %v6839 = vadd.f32 0.0, %v6838
        %v6840 = vpop.f32.mrb[0].mxu0
        %v6841 = vadd.f32 0.0, %v6840
        %v6842 = vpop.f32.mrb[0].mxu0
        %v6843 = vadd.f32 0.0, %v6842
        %v6844 = vpop.f32.mrb[0].mxu0
        %v6845 = vadd.f32 0.0, %v6844
        %6846 = vmatprep.mubr.bf16.mxu0 %v6571
        %6847 = vmatmul.mubr.bf16.gmra.mrb[0].mxu0 %v6570
        %v6848 = vpop.f32.mrb[0].mxu0
        %v6849 = vadd.f32 0.0, %v6848
        %v6850 = vpop.f32.mrb[0].mxu0
        %v6851 = vadd.f32 0.0, %v6850
        %v6852 = vpop.f32.mrb[0].mxu0
        %v6853 = vadd.f32 0.0, %v6852
        %v6854 = vpop.f32.mrb[0].mxu0
        %v6855 = vadd.f32 0.0, %v6854
        %6856 = vmatprep.mubr.bf16.mxu0 %v6573
        %6857 = vmatmul.mubr.bf16.gmra.mrb[0].mxu0 %v6572
        %v6858 = vpop.f32.mrb[0].mxu0
        %v6859 = vadd.f32 0.0, %v6858
        %v6860 = vpop.f32.mrb[0].mxu0
        %v6861 = vadd.f32 0.0, %v6860
        %v6862 = vpop.f32.mrb[0].mxu0
        %v6863 = vadd.f32 0.0, %v6862
        %v6864 = vpop.f32.mrb[0].mxu0
        %v6865 = vadd.f32 0.0, %v6864
        %6866 = vmatprep.mubr.bf16.mxu0 %v6575
        %6867 = vmatmul.mubr.bf16.gmra.mrb[0].mxu0 %v6574
        %v6868 = vpop.f32.mrb[0].mxu0
        %v6869 = vadd.f32 0.0, %v6868
        %v6870 = vpop.f32.mrb[0].mxu0
        %v6871 = vadd.f32 0.0, %v6870
        %v6872 = vpop.f32.mrb[0].mxu0
        %v6873 = vadd.f32 0.0, %v6872
        %v6874 = vpop.f32.mrb[0].mxu0
        %v6875 = vadd.f32 0.0, %v6874
        %6876 = vmatprep.mubr.bf16.mxu0 %v6577
        %6877 = vmatmul.mubr.bf16.gmra.mrb[0].mxu0 %v6576
        %v6878 = vpop.f32.mrb[0].mxu0
        %v6879 = vadd.f32 0.0, %v6878
        %v6880 = vpop.f32.mrb[0].mxu0
        %v6881 = vadd.f32 0.0, %v6880
        %v6882 = vpop.f32.mrb[0].mxu0
        %v6883 = vadd.f32 0.0, %v6882
        %v6884 = vpop.f32.mrb[0].mxu0
        %v6885 = vadd.f32 0.0, %v6884
        %6886 = vmatprep.mubr.bf16.mxu0 %v6579
        %6887 = vmatmul.mubr.bf16.gmra.mrb[0].mxu0 %v6578
        %v6888 = vpop.f32.mrb[0].mxu0
        %v6889 = vadd.f32 0.0, %v6888
        %v6890 = vpop.f32.mrb[0].mxu0
        %v6891 = vadd.f32 0.0, %v6890
        %v6892 = vpop.f32.mrb[0].mxu0
        %v6893 = vadd.f32 0.0, %v6892
        %v6894 = vpop.f32.mrb[0].mxu0
        %v6895 = vadd.f32 0.0, %v6894
        %6896 = vmatprep.mubr.bf16.mxu0 %v6581
        %6897 = vmatmul.mubr.bf16.gmra.mrb[0].mxu0 %v6580
        %v6898 = vpop.f32.mrb[0].mxu0
        %v6899 = vadd.f32 0.0, %v6898
        %v6900 = vpop.f32.mrb[0].mxu0
        %v6901 = vadd.f32 0.0, %v6900
        %v6902 = vpop.f32.mrb[0].mxu0
        %v6903 = vadd.f32 0.0, %v6902
        %v6904 = vpop.f32.mrb[0].mxu0
        %v6905 = vadd.f32 0.0, %v6904
        %6906 = vmatprep.mubr.bf16.mxu0 %v6583
        %6907 = vmatmul.mubr.bf16.gmra.mrb[0].mxu0 %v6582
        %v6908 = vpop.f32.mrb[0].mxu0
        %v6909 = vadd.f32 0.0, %v6908
        %v6910 = vpop.f32.mrb[0].mxu0
        %v6911 = vadd.f32 0.0, %v6910
        %v6912 = vpop.f32.mrb[0].mxu0
        %v6913 = vadd.f32 0.0, %v6912
        %v6914 = vpop.f32.mrb[0].mxu0
        %v6915 = vadd.f32 0.0, %v6914
        %6916 = vmatprep.mubr.bf16.mxu0 %v6585
        %6917 = vmatmul.mubr.bf16.gmra.mrb[0].mxu0 %v6584
        %v6918 = vpop.f32.mrb[0].mxu0
        %v6919 = vadd.f32 0.0, %v6918
        %v6920 = vpop.f32.mrb[0].mxu0
        %v6921 = vadd.f32 0.0, %v6920
        %v6922 = vpop.f32.mrb[0].mxu0
        %v6923 = vadd.f32 0.0, %v6922
        %v6924 = vpop.f32.mrb[0].mxu0
        %v6925 = vadd.f32 0.0, %v6924
        %6926 = vmatprep.mubr.bf16.mxu0 %v6587
        %6927 = vmatmul.mubr.bf16.gmra.mrb[0].mxu0 %v6586
        %v6928 = vpop.f32.mrb[0].mxu0
        %v6929 = vadd.f32 0.0, %v6928
        %v6930 = vpop.f32.mrb[0].mxu0
        %v6931 = vadd.f32 0.0, %v6930
        %v6932 = vpop.f32.mrb[0].mxu0
        %v6933 = vadd.f32 0.0, %v6932
        %v6934 = vpop.f32.mrb[0].mxu0
        %v6935 = vadd.f32 0.0, %v6934
        %6936 = vmatprep.mubr.bf16.mxu0 %v6589
        %6937 = vmatmul.mubr.bf16.gmra.mrb[0].mxu0 %v6588
        %v6938 = vpop.f32.mrb[0].mxu0
        %v6939 = vadd.f32 0.0, %v6938
        %v6940 = vpop.f32.mrb[0].mxu0
        %v6941 = vadd.f32 0.0, %v6940
        %v6942 = vpop.f32.mrb[0].mxu0
        %v6943 = vadd.f32 0.0, %v6942
        %v6944 = vpop.f32.mrb[0].mxu0
        %v6945 = vadd.f32 0.0, %v6944
        %6946 = vmatprep.mubr.bf16.mxu0 %v6591
        %6947 = vmatmul.mubr.bf16.gmra.mrb[0].mxu0 %v6590
        %v6948 = vpop.f32.mrb[0].mxu0
        %v6949 = vadd.f32 0.0, %v6948
        %v6950 = vpop.f32.mrb[0].mxu0
        %v6951 = vadd.f32 0.0, %v6950
        %v6952 = vpop.f32.mrb[0].mxu0
        %v6953 = vadd.f32 0.0, %v6952
        %v6954 = vpop.f32.mrb[0].mxu0
        %v6955 = vadd.f32 0.0, %v6954
        %6956 = vmatprep.mubr.bf16.mxu0 %v6593
        %6957 = vmatmul.mubr.bf16.gmra.mrb[0].mxu0 %v6592
        %v6958 = vpop.f32.mrb[0].mxu0
        %v6959 = vadd.f32 0.0, %v6958
        %v6960 = vpop.f32.mrb[0].mxu0
        %v6961 = vadd.f32 0.0, %v6960
        %v6962 = vpop.f32.mrb[0].mxu0
        %v6963 = vadd.f32 0.0, %v6962
        %v6964 = vpop.f32.mrb[0].mxu0
        %v6965 = vadd.f32 0.0, %v6964
        %6966 = vdwg.mxu0
        %v6967 = vld [vmem:[#allocation3] sm:$0xff]
        %v6968 = vld [vmem:[#allocation3 + $0x8] sm:$0xff]
        %v6969 = vld [vmem:[#allocation3 + $0x10] sm:$0xff]
        %v6970 = vld [vmem:[#allocation3 + $0x18] sm:$0xff]
        %v6971 = vld [vmem:[#allocation3 + $0x20] sm:$0xff]
        %v6972 = vld [vmem:[#allocation3 + $0x28] sm:$0xff]
        %v6973 = vld [vmem:[#allocation3 + $0x30] sm:$0xff]
        %v6974 = vld [vmem:[#allocation3 + $0x38] sm:$0xff]
        %v6975 = vld [vmem:[#allocation3 + $0x40] sm:$0xff]
        %v6976 = vld [vmem:[#allocation3 + $0x48] sm:$0xff]
        %v6977 = vld [vmem:[#allocation3 + $0x50] sm:$0xff]
        %v6978 = vld [vmem:[#allocation3 + $0x58] sm:$0xff]
        %v6979 = vld [vmem:[#allocation3 + $0x60] sm:$0xff]
        %v6980 = vld [vmem:[#allocation3 + $0x68] sm:$0xff]
        %v6981 = vld [vmem:[#allocation3 + $0x70] sm:$0xff]
        %v6982 = vld [vmem:[#allocation3 + $0x78] sm:$0xff]
        %v6983 = vld [vmem:[#allocation3 + $0x80] sm:$0xff]
        %v6984 = vld [vmem:[#allocation3 + $0x88] sm:$0xff]
        %v6985 = vld [vmem:[#allocation3 + $0x90] sm:$0xff]
        %v6986 = vld [vmem:[#allocation3 + $0x98] sm:$0xff]
        %v6987 = vld [vmem:[#allocation3 + $0xa0] sm:$0xff]
        %v6988 = vld [vmem:[#allocation3 + $0xa8] sm:$0xff]
        %v6989 = vld [vmem:[#allocation3 + $0xb0] sm:$0xff]
        %v6990 = vld [vmem:[#allocation3 + $0xb8] sm:$0xff]
        %v6991 = vld [vmem:[#allocation3 + $0xc0] sm:$0xff]
        %v6992 = vld [vmem:[#allocation3 + $0xc8] sm:$0xff]
        %v6993 = vld [vmem:[#allocation3 + $0xd0] sm:$0xff]
        %v6994 = vld [vmem:[#allocation3 + $0xd8] sm:$0xff]
        %v6995 = vld [vmem:[#allocation3 + $0xe0] sm:$0xff]
        %v6996 = vld [vmem:[#allocation3 + $0xe8] sm:$0xff]
        %v6997 = vld [vmem:[#allocation3 + $0xf0] sm:$0xff]
        %v6998 = vld [vmem:[#allocation3 + $0xf8] sm:$0xff]
        %v6999 = vld [vmem:[#allocation3 + $0x100] sm:$0xff]
        %v7000 = vld [vmem:[#allocation3 + $0x108] sm:$0xff]
        %v7001 = vld [vmem:[#allocation3 + $0x110] sm:$0xff]
        %v7002 = vld [vmem:[#allocation3 + $0x118] sm:$0xff]
        %v7003 = vld [vmem:[#allocation3 + $0x120] sm:$0xff]
        %v7004 = vld [vmem:[#allocation3 + $0x128] sm:$0xff]
        %v7005 = vld [vmem:[#allocation3 + $0x130] sm:$0xff]
        %v7006 = vld [vmem:[#allocation3 + $0x138] sm:$0xff]
        %v7007 = vld [vmem:[#allocation3 + $0x140] sm:$0xff]
        %v7008 = vld [vmem:[#allocation3 + $0x148] sm:$0xff]
        %v7009 = vld [vmem:[#allocation3 + $0x150] sm:$0xff]
        %v7010 = vld [vmem:[#allocation3 + $0x158] sm:$0xff]
        %v7011 = vld [vmem:[#allocation3 + $0x160] sm:$0xff]
        %v7012 = vld [vmem:[#allocation3 + $0x168] sm:$0xff]
        %v7013 = vld [vmem:[#allocation3 + $0x170] sm:$0xff]
        %v7014 = vld [vmem:[#allocation3 + $0x178] sm:$0xff]
        %v7015 = vld [vmem:[#allocation3 + $0x180] sm:$0xff]
        %v7016 = vld [vmem:[#allocation3 + $0x188] sm:$0xff]
        %v7017 = vld [vmem:[#allocation3 + $0x190] sm:$0xff]
        %v7018 = vld [vmem:[#allocation3 + $0x198] sm:$0xff]
        %v7019 = vld [vmem:[#allocation3 + $0x1a0] sm:$0xff]
        %v7020 = vld [vmem:[#allocation3 + $0x1a8] sm:$0xff]
        %v7021 = vld [vmem:[#allocation3 + $0x1b0] sm:$0xff]
        %v7022 = vld [vmem:[#allocation3 + $0x1b8] sm:$0xff]
        %v7023 = vld [vmem:[#allocation3 + $0x1c0] sm:$0xff]
        %v7024 = vld [vmem:[#allocation3 + $0x1c8] sm:$0xff]
        %v7025 = vld [vmem:[#allocation3 + $0x1d0] sm:$0xff]
        %v7026 = vld [vmem:[#allocation3 + $0x1d8] sm:$0xff]
        %v7027 = vadd.f32 %v6967, %v6819
        %v7028 = vadd.f32 %v6968, %v6821
        %v7029 = vadd.f32 %v6969, %v6823
        %v7030 = vadd.f32 %v6970, %v6825
        %v7031 = vadd.f32 %v6971, %v6829
        %v7032 = vadd.f32 %v6972, %v6831
        %v7033 = vadd.f32 %v6973, %v6833
        %v7034 = vadd.f32 %v6974, %v6835
        %v7035 = vadd.f32 %v6975, %v6839
        %v7036 = vadd.f32 %v6976, %v6841
        %v7037 = vadd.f32 %v6977, %v6843
        %v7038 = vadd.f32 %v6978, %v6845
        %v7039 = vadd.f32 %v6979, %v6849
        %v7040 = vadd.f32 %v6980, %v6851
        %v7041 = vadd.f32 %v6981, %v6853
        %v7042 = vadd.f32 %v6982, %v6855
        %v7043 = vadd.f32 %v6983, %v6859
        %v7044 = vadd.f32 %v6984, %v6861
        %v7045 = vadd.f32 %v6985, %v6863
        %v7046 = vadd.f32 %v6986, %v6865
        %v7047 = vadd.f32 %v6987, %v6869
        %v7048 = vadd.f32 %v6988, %v6871
        %v7049 = vadd.f32 %v6989, %v6873
        %v7050 = vadd.f32 %v6990, %v6875
        %v7051 = vadd.f32 %v6991, %v6879
        %v7052 = vadd.f32 %v6992, %v6881
        %v7053 = vadd.f32 %v6993, %v6883
        %v7054 = vadd.f32 %v6994, %v6885
        %v7055 = vadd.f32 %v6995, %v6889
        %v7056 = vadd.f32 %v6996, %v6891
        %v7057 = vadd.f32 %v6997, %v6893
        %v7058 = vadd.f32 %v6998, %v6895
        %v7059 = vadd.f32 %v6999, %v6899
        %v7060 = vadd.f32 %v7000, %v6901
        %v7061 = vadd.f32 %v7001, %v6903
        %v7062 = vadd.f32 %v7002, %v6905
        %v7063 = vadd.f32 %v7003, %v6909
        %v7064 = vadd.f32 %v7004, %v6911
        %v7065 = vadd.f32 %v7005, %v6913
        %v7066 = vadd.f32 %v7006, %v6915
        %v7067 = vadd.f32 %v7007, %v6919
        %v7068 = vadd.f32 %v7008, %v6921
        %v7069 = vadd.f32 %v7009, %v6923
        %v7070 = vadd.f32 %v7010, %v6925
        %v7071 = vadd.f32 %v7011, %v6929
        %v7072 = vadd.f32 %v7012, %v6931
        %v7073 = vadd.f32 %v7013, %v6933
        %v7074 = vadd.f32 %v7014, %v6935
        %v7075 = vadd.f32 %v7015, %v6939
        %v7076 = vadd.f32 %v7016, %v6941
        %v7077 = vadd.f32 %v7017, %v6943
        %v7078 = vadd.f32 %v7018, %v6945
        %v7079 = vadd.f32 %v7019, %v6949
        %v7080 = vadd.f32 %v7020, %v6951
        %v7081 = vadd.f32 %v7021, %v6953
        %v7082 = vadd.f32 %v7022, %v6955
        %v7083 = vadd.f32 %v7023, %v6959
        %v7084 = vadd.f32 %v7024, %v6961
        %v7085 = vadd.f32 %v7025, %v6963
        %v7086 = vadd.f32 %v7026, %v6965
        %7087 = vst [vmem:[#allocation3] sm:$0xff] %v7027
        %7088 = vst [vmem:[#allocation3 + $0x8] sm:$0xff] %v7028
        %7089 = vst [vmem:[#allocation3 + $0x10] sm:$0xff] %v7029
        %7090 = vst [vmem:[#allocation3 + $0x18] sm:$0xff] %v7030
        %7091 = vst [vmem:[#allocation3 + $0x20] sm:$0xff] %v7031
        %7092 = vst [vmem:[#allocation3 + $0x28] sm:$0xff] %v7032
        %7093 = vst [vmem:[#allocation3 + $0x30] sm:$0xff] %v7033
        %7094 = vst [vmem:[#allocation3 + $0x38] sm:$0xff] %v7034
        %7095 = vst [vmem:[#allocation3 + $0x40] sm:$0xff] %v7035
        %7096 = vst [vmem:[#allocation3 + $0x48] sm:$0xff] %v7036
        %7097 = vst [vmem:[#allocation3 + $0x50] sm:$0xff] %v7037
        %7098 = vst [vmem:[#allocation3 + $0x58] sm:$0xff] %v7038
        %7099 = vst [vmem:[#allocation3 + $0x60] sm:$0xff] %v7039
        %7100 = vst [vmem:[#allocation3 + $0x68] sm:$0xff] %v7040
        %7101 = vst [vmem:[#allocation3 + $0x70] sm:$0xff] %v7041
        %7102 = vst [vmem:[#allocation3 + $0x78] sm:$0xff] %v7042
        %7103 = vst [vmem:[#allocation3 + $0x80] sm:$0xff] %v7043
        %7104 = vst [vmem:[#allocation3 + $0x88] sm:$0xff] %v7044
        %7105 = vst [vmem:[#allocation3 + $0x90] sm:$0xff] %v7045
        %7106 = vst [vmem:[#allocation3 + $0x98] sm:$0xff] %v7046
        %7107 = vst [vmem:[#allocation3 + $0xa0] sm:$0xff] %v7047
        %7108 = vst [vmem:[#allocation3 + $0xa8] sm:$0xff] %v7048
        %7109 = vst [vmem:[#allocation3 + $0xb0] sm:$0xff] %v7049
        %7110 = vst [vmem:[#allocation3 + $0xb8] sm:$0xff] %v7050
        %7111 = vst [vmem:[#allocation3 + $0xc0] sm:$0xff] %v7051
        %7112 = vst [vmem:[#allocation3 + $0xc8] sm:$0xff] %v7052
        %7113 = vst [vmem:[#allocation3 + $0xd0] sm:$0xff] %v7053
        %7114 = vst [vmem:[#allocation3 + $0xd8] sm:$0xff] %v7054
        %7115 = vst [vmem:[#allocation3 + $0xe0] sm:$0xff] %v7055
        %7116 = vst [vmem:[#allocation3 + $0xe8] sm:$0xff] %v7056
        %7117 = vst [vmem:[#allocation3 + $0xf0] sm:$0xff] %v7057
        %7118 = vst [vmem:[#allocation3 + $0xf8] sm:$0xff] %v7058
        %7119 = vst [vmem:[#allocation3 + $0x100] sm:$0xff] %v7059
        %7120 = vst [vmem:[#allocation3 + $0x108] sm:$0xff] %v7060
        %7121 = vst [vmem:[#allocation3 + $0x110] sm:$0xff] %v7061
        %7122 = vst [vmem:[#allocation3 + $0x118] sm:$0xff] %v7062
        %7123 = vst [vmem:[#allocation3 + $0x120] sm:$0xff] %v7063
        %7124 = vst [vmem:[#allocation3 + $0x128] sm:$0xff] %v7064
        %7125 = vst [vmem:[#allocation3 + $0x130] sm:$0xff] %v7065
        %7126 = vst [vmem:[#allocation3 + $0x138] sm:$0xff] %v7066
        %7127 = vst [vmem:[#allocation3 + $0x140] sm:$0xff] %v7067
        %7128 = vst [vmem:[#allocation3 + $0x148] sm:$0xff] %v7068
        %7129 = vst [vmem:[#allocation3 + $0x150] sm:$0xff] %v7069
        %7130 = vst [vmem:[#allocation3 + $0x158] sm:$0xff] %v7070
        %7131 = vst [vmem:[#allocation3 + $0x160] sm:$0xff] %v7071
        %7132 = vst [vmem:[#allocation3 + $0x168] sm:$0xff] %v7072
        %7133 = vst [vmem:[#allocation3 + $0x170] sm:$0xff] %v7073
        %7134 = vst [vmem:[#allocation3 + $0x178] sm:$0xff] %v7074
        %7135 = vst [vmem:[#allocation3 + $0x180] sm:$0xff] %v7075
        %7136 = vst [vmem:[#allocation3 + $0x188] sm:$0xff] %v7076
        %7137 = vst [vmem:[#allocation3 + $0x190] sm:$0xff] %v7077
        %7138 = vst [vmem:[#allocation3 + $0x198] sm:$0xff] %v7078
        %7139 = vst [vmem:[#allocation3 + $0x1a0] sm:$0xff] %v7079
        %7140 = vst [vmem:[#allocation3 + $0x1a8] sm:$0xff] %v7080
        %7141 = vst [vmem:[#allocation3 + $0x1b0] sm:$0xff] %v7081
        %7142 = vst [vmem:[#allocation3 + $0x1b8] sm:$0xff] %v7082
        %7143 = vst [vmem:[#allocation3 + $0x1c0] sm:$0xff] %v7083
        %7144 = vst [vmem:[#allocation3 + $0x1c8] sm:$0xff] %v7084
        %7145 = vst [vmem:[#allocation3 + $0x1d0] sm:$0xff] %v7085
        %7146 = vst [vmem:[#allocation3 + $0x1d8] sm:$0xff] %v7086
        %v7147 = vld [vmem:[#allocation2 + $0x30] sm:$0xff]
        %v7148 = vld [vmem:[#allocation2 + $0x38] sm:$0xff]
        %v7149 = vld [vmem:[#allocation2 + $0x40] sm:$0xff]
        %v7150 = vld [vmem:[#allocation2 + $0x48] sm:$0xff]
        %v7151 = vld [vmem:[#allocation2 + $0x50] sm:$0xff]
        %v7152 = vld [vmem:[#allocation2 + $0x58] sm:$0xff]
        %v7153 = vld [vmem:[#allocation2 + $0x60] sm:$0xff]
        %v7154 = vld [vmem:[#allocation2 + $0x68] sm:$0xff]
        %v7155 = vld [vmem:[#allocation2 + $0x70] sm:$0xff]
        %v7156 = vld [vmem:[#allocation2 + $0x78] sm:$0xff]
        %v7157 = vld [vmem:[#allocation2 + $0x80] sm:$0xff]
        %v7158 = vld [vmem:[#allocation2 + $0x88] sm:$0xff]
        %v7159 = vld [vmem:[#allocation2 + $0x90] sm:$0xff]
        %v7160 = vld [vmem:[#allocation2 + $0x98] sm:$0xff]
        %v7161 = vld [vmem:[#allocation2 + $0xa0] sm:$0xff]
        %v7162 = vld [vmem:[#allocation2 + $0xa8] sm:$0xff]
        %v7163 = vld [vmem:[#allocation2 + $0xb0] sm:$0xff]
        %v7164 = vld [vmem:[#allocation2 + $0xb8] sm:$0xff]
        %v7165 = vld [vmem:[#allocation2 + $0xc0] sm:$0xff]
        %v7166 = vld [vmem:[#allocation2 + $0xc8] sm:$0xff]
        %v7167 = vld [vmem:[#allocation2 + $0xd0] sm:$0xff]
        %v7168 = vld [vmem:[#allocation2 + $0xd8] sm:$0xff]
        %v7169 = vld [vmem:[#allocation2 + $0xe0] sm:$0xff]
        %v7170 = vld [vmem:[#allocation2 + $0xe8] sm:$0xff]
        %v7171 = vld [vmem:[#allocation2 + $0xf0] sm:$0xff]
        %v7172 = vld [vmem:[#allocation2 + $0xf8] sm:$0xff]
        %v7173 = vld [vmem:[#allocation2 + $0x100] sm:$0xff]
        %v7174 = vld [vmem:[#allocation2 + $0x108] sm:$0xff]
        %v7175 = vld [vmem:[#allocation2 + $0x110] sm:$0xff]
        %v7176 = vld [vmem:[#allocation2 + $0x118] sm:$0xff]
        %v7177 = vld [vmem:[#allocation2 + $0x120] sm:$0x11]
        %s7178 = scalar_lea.vmem [#allocation12], 1792
        %v7179 = vld [vmem:[%s7178] sm:$0xff]
        %v7180 = vld [vmem:[%s7178 + $0x8] sm:$0xff]
        %v7181 = vld [vmem:[%s7178 + $0x10] sm:$0xff]
        %v7182 = vld [vmem:[%s7178 + $0x18] sm:$0xff]
        %v7183 = vld [vmem:[%s7178 + $0x20] sm:$0xff]
        %v7184 = vld [vmem:[%s7178 + $0x28] sm:$0xff]
        %v7185 = vld [vmem:[%s7178 + $0x30] sm:$0xff]
        %v7186 = vld [vmem:[%s7178 + $0x38] sm:$0xff]
        %v7187 = vld [vmem:[%s7178 + $0x40] sm:$0xff]
        %v7188 = vld [vmem:[%s7178 + $0x48] sm:$0xff]
        %v7189 = vld [vmem:[%s7178 + $0x50] sm:$0xff]
        %v7190 = vld [vmem:[%s7178 + $0x58] sm:$0xff]
        %v7191 = vld [vmem:[%s7178 + $0x60] sm:$0xff]
        %v7192 = vld [vmem:[%s7178 + $0x68] sm:$0xff]
        %v7193 = vld [vmem:[%s7178 + $0x70] sm:$0xff]
        %v7194 = vld [vmem:[%s7178 + $0x78] sm:$0xff]
        %v7195 = vld [vmem:[%s7178 + $0x80] sm:$0xff]
        %v7196 = vld [vmem:[%s7178 + $0x88] sm:$0xff]
        %v7197 = vld [vmem:[%s7178 + $0x90] sm:$0xff]
        %v7198 = vld [vmem:[%s7178 + $0x98] sm:$0xff]
        %v7199 = vld [vmem:[%s7178 + $0xa0] sm:$0xff]
        %v7200 = vld [vmem:[%s7178 + $0xa8] sm:$0xff]
        %v7201 = vld [vmem:[%s7178 + $0xb0] sm:$0xff]
        %v7202 = vld [vmem:[%s7178 + $0xb8] sm:$0xff]
        %v7203 = vld [vmem:[%s7178 + $0xc0] sm:$0xff]
        %v7204 = vld [vmem:[%s7178 + $0xc8] sm:$0xff]
        %v7205 = vld [vmem:[%s7178 + $0xd0] sm:$0xff]
        %v7206 = vld [vmem:[%s7178 + $0xd8] sm:$0xff]
        %v7207 = vld [vmem:[%s7178 + $0xe0] sm:$0xff]
        %v7208 = vld [vmem:[%s7178 + $0xe8] sm:$0xff]
        %v7209 = vld [vmem:[%s7178 + $0xf0] sm:$0xff]
        %v7210 = vld [vmem:[%s7178 + $0xf8] sm:$0xff]
        %v7242 = vunpack.c.l.b16 %v7147
        %v7243 = vunpack.c.h.b16 %v7147
        %v7244 = vunpack.c.l.b16 %v7148
        %v7245 = vunpack.c.h.b16 %v7148
        %v7246 = vunpack.c.l.b16 %v7149
        %v7247 = vunpack.c.h.b16 %v7149
        %v7248 = vunpack.c.l.b16 %v7150
        %v7249 = vunpack.c.h.b16 %v7150
        %v7250 = vunpack.c.l.b16 %v7151
        %v7251 = vunpack.c.h.b16 %v7151
        %v7252 = vunpack.c.l.b16 %v7152
        %v7253 = vunpack.c.h.b16 %v7152
        %v7254 = vunpack.c.l.b16 %v7153
        %v7255 = vunpack.c.h.b16 %v7153
        %v7256 = vunpack.c.l.b16 %v7154
        %v7257 = vunpack.c.h.b16 %v7154
        %v7258 = vunpack.c.l.b16 %v7155
        %v7259 = vunpack.c.h.b16 %v7155
        %v7260 = vunpack.c.l.b16 %v7156
        %v7261 = vunpack.c.h.b16 %v7156
        %v7262 = vunpack.c.l.b16 %v7157
        %v7263 = vunpack.c.h.b16 %v7157
        %v7264 = vunpack.c.l.b16 %v7158
        %v7265 = vunpack.c.h.b16 %v7158
        %v7266 = vunpack.c.l.b16 %v7159
        %v7267 = vunpack.c.h.b16 %v7159
        %v7268 = vunpack.c.l.b16 %v7160
        %v7269 = vunpack.c.h.b16 %v7160
        %v7270 = vunpack.c.l.b16 %v7161
        %v7271 = vunpack.c.h.b16 %v7161
        %v7272 = vunpack.c.l.b16 %v7162
        %v7273 = vunpack.c.h.b16 %v7162
        %v7274 = vunpack.c.l.b16 %v7163
        %v7275 = vunpack.c.h.b16 %v7163
        %v7276 = vunpack.c.l.b16 %v7164
        %v7277 = vunpack.c.h.b16 %v7164
        %v7278 = vunpack.c.l.b16 %v7165
        %v7279 = vunpack.c.h.b16 %v7165
        %v7280 = vunpack.c.l.b16 %v7166
        %v7281 = vunpack.c.h.b16 %v7166
        %v7282 = vunpack.c.l.b16 %v7167
        %v7283 = vunpack.c.h.b16 %v7167
        %v7284 = vunpack.c.l.b16 %v7168
        %v7285 = vunpack.c.h.b16 %v7168
        %v7286 = vunpack.c.l.b16 %v7169
        %v7287 = vunpack.c.h.b16 %v7169
        %v7288 = vunpack.c.l.b16 %v7170
        %v7289 = vunpack.c.h.b16 %v7170
        %v7290 = vunpack.c.l.b16 %v7171
        %v7291 = vunpack.c.h.b16 %v7171
        %v7292 = vunpack.c.l.b16 %v7172
        %v7293 = vunpack.c.h.b16 %v7172
        %v7294 = vunpack.c.l.b16 %v7173
        %v7295 = vunpack.c.h.b16 %v7173
        %v7296 = vunpack.c.l.b16 %v7174
        %v7297 = vunpack.c.h.b16 %v7174
        %v7298 = vunpack.c.l.b16 %v7175
        %v7299 = vunpack.c.h.b16 %v7175
        %v7300 = vunpack.c.l.b16 %v7176
        %v7301 = vunpack.c.h.b16 %v7176
        %v7302 = vunpack.c.l.b16 %v7177
        %v7303 = vunpack.c.h.b16 %v7177
        %v7304 = vpack.c.b16 %v7244, %v7242
        %v7305 = vpack.c.b16 %v7245, %v7243
        %v7306 = vpack.c.b16 %v7248, %v7246
        %v7307 = vpack.c.b16 %v7249, %v7247
        %v7308 = vpack.c.b16 %v7252, %v7250
        %v7309 = vpack.c.b16 %v7253, %v7251
        %v7310 = vpack.c.b16 %v7256, %v7254
        %v7311 = vpack.c.b16 %v7257, %v7255
        %v7312 = vpack.c.b16 %v7260, %v7258
        %v7313 = vpack.c.b16 %v7261, %v7259
        %v7314 = vpack.c.b16 %v7264, %v7262
        %v7315 = vpack.c.b16 %v7265, %v7263
        %v7316 = vpack.c.b16 %v7268, %v7266
        %v7317 = vpack.c.b16 %v7269, %v7267
        %v7318 = vpack.c.b16 %v7272, %v7270
        %v7319 = vpack.c.b16 %v7273, %v7271
        %v7320 = vpack.c.b16 %v7276, %v7274
        %v7321 = vpack.c.b16 %v7277, %v7275
        %v7322 = vpack.c.b16 %v7280, %v7278
        %v7323 = vpack.c.b16 %v7281, %v7279
        %v7324 = vpack.c.b16 %v7284, %v7282
        %v7325 = vpack.c.b16 %v7285, %v7283
        %v7326 = vpack.c.b16 %v7288, %v7286
        %v7327 = vpack.c.b16 %v7289, %v7287
        %v7328 = vpack.c.b16 %v7292, %v7290
        %v7329 = vpack.c.b16 %v7293, %v7291
        %v7330 = vpack.c.b16 %v7296, %v7294
        %v7331 = vpack.c.b16 %v7297, %v7295
        %v7332 = vpack.c.b16 %v7300, %v7298
        %v7333 = vpack.c.b16 %v7301, %v7299
        %v7334 = vpack.c.b16 %v7302, %v7302
        %v7335 = vpack.c.b16 %v7303, %v7303
        %v7337 = vshrl.u32 %v7304, 16
        %v7339 = vshll.u32 %v7304, 16
        %v7341 = vrot.slane %v7339, 1
        %v7342 = vor.u32 %v7337, %v7341
        %v7344 = vshll.u32 %v7306, 16
        %v7346 = vrot.slane %v7344, 1
        %v7347 = vsel %vm2274, %v7342, %v7346
        %v7349 = vshrl.u32 %v7305, 16
        %v7351 = vshll.u32 %v7305, 16
        %v7353 = vrot.slane %v7351, 1
        %v7354 = vor.u32 %v7349, %v7353
        %v7356 = vshll.u32 %v7307, 16
        %v7358 = vrot.slane %v7356, 1
        %v7359 = vsel %vm2274, %v7354, %v7358
        %v7360 = vshrl.u32 %v7306, 16
        %v7362 = vor.u32 %v7360, %v7346
        %v7364 = vshll.u32 %v7308, 16
        %v7366 = vrot.slane %v7364, 1
        %v7367 = vsel %vm2274, %v7362, %v7366
        %v7368 = vshrl.u32 %v7307, 16
        %v7370 = vor.u32 %v7368, %v7358
        %v7372 = vshll.u32 %v7309, 16
        %v7374 = vrot.slane %v7372, 1
        %v7375 = vsel %vm2274, %v7370, %v7374
        %v7376 = vshrl.u32 %v7308, 16
        %v7378 = vor.u32 %v7376, %v7366
        %v7380 = vshll.u32 %v7310, 16
        %v7382 = vrot.slane %v7380, 1
        %v7383 = vsel %vm2274, %v7378, %v7382
        %v7384 = vshrl.u32 %v7309, 16
        %v7386 = vor.u32 %v7384, %v7374
        %v7388 = vshll.u32 %v7311, 16
        %v7390 = vrot.slane %v7388, 1
        %v7391 = vsel %vm2274, %v7386, %v7390
        %v7392 = vshrl.u32 %v7310, 16
        %v7394 = vor.u32 %v7392, %v7382
        %v7396 = vshll.u32 %v7312, 16
        %v7398 = vrot.slane %v7396, 1
        %v7399 = vsel %vm2274, %v7394, %v7398
        %v7400 = vshrl.u32 %v7311, 16
        %v7402 = vor.u32 %v7400, %v7390
        %v7404 = vshll.u32 %v7313, 16
        %v7406 = vrot.slane %v7404, 1
        %v7407 = vsel %vm2274, %v7402, %v7406
        %v7408 = vshrl.u32 %v7312, 16
        %v7410 = vor.u32 %v7408, %v7398
        %v7412 = vshll.u32 %v7314, 16
        %v7414 = vrot.slane %v7412, 1
        %v7415 = vsel %vm2274, %v7410, %v7414
        %v7416 = vshrl.u32 %v7313, 16
        %v7418 = vor.u32 %v7416, %v7406
        %v7420 = vshll.u32 %v7315, 16
        %v7422 = vrot.slane %v7420, 1
        %v7423 = vsel %vm2274, %v7418, %v7422
        %v7424 = vshrl.u32 %v7314, 16
        %v7426 = vor.u32 %v7424, %v7414
        %v7428 = vshll.u32 %v7316, 16
        %v7430 = vrot.slane %v7428, 1
        %v7431 = vsel %vm2274, %v7426, %v7430
        %v7432 = vshrl.u32 %v7315, 16
        %v7434 = vor.u32 %v7432, %v7422
        %v7436 = vshll.u32 %v7317, 16
        %v7438 = vrot.slane %v7436, 1
        %v7439 = vsel %vm2274, %v7434, %v7438
        %v7440 = vshrl.u32 %v7316, 16
        %v7442 = vor.u32 %v7440, %v7430
        %v7444 = vshll.u32 %v7318, 16
        %v7446 = vrot.slane %v7444, 1
        %v7447 = vsel %vm2274, %v7442, %v7446
        %v7448 = vshrl.u32 %v7317, 16
        %v7450 = vor.u32 %v7448, %v7438
        %v7452 = vshll.u32 %v7319, 16
        %v7454 = vrot.slane %v7452, 1
        %v7455 = vsel %vm2274, %v7450, %v7454
        %v7456 = vshrl.u32 %v7318, 16
        %v7458 = vor.u32 %v7456, %v7446
        %v7460 = vshll.u32 %v7320, 16
        %v7462 = vrot.slane %v7460, 1
        %v7463 = vsel %vm2274, %v7458, %v7462
        %v7464 = vshrl.u32 %v7319, 16
        %v7466 = vor.u32 %v7464, %v7454
        %v7468 = vshll.u32 %v7321, 16
        %v7470 = vrot.slane %v7468, 1
        %v7471 = vsel %vm2274, %v7466, %v7470
        %v7472 = vshrl.u32 %v7320, 16
        %v7474 = vor.u32 %v7472, %v7462
        %v7476 = vshll.u32 %v7322, 16
        %v7478 = vrot.slane %v7476, 1
        %v7479 = vsel %vm2274, %v7474, %v7478
        %v7480 = vshrl.u32 %v7321, 16
        %v7482 = vor.u32 %v7480, %v7470
        %v7484 = vshll.u32 %v7323, 16
        %v7486 = vrot.slane %v7484, 1
        %v7487 = vsel %vm2274, %v7482, %v7486
        %v7488 = vshrl.u32 %v7322, 16
        %v7490 = vor.u32 %v7488, %v7478
        %v7492 = vshll.u32 %v7324, 16
        %v7494 = vrot.slane %v7492, 1
        %v7495 = vsel %vm2274, %v7490, %v7494
        %v7496 = vshrl.u32 %v7323, 16
        %v7498 = vor.u32 %v7496, %v7486
        %v7500 = vshll.u32 %v7325, 16
        %v7502 = vrot.slane %v7500, 1
        %v7503 = vsel %vm2274, %v7498, %v7502
        %v7504 = vshrl.u32 %v7324, 16
        %v7506 = vor.u32 %v7504, %v7494
        %v7508 = vshll.u32 %v7326, 16
        %v7510 = vrot.slane %v7508, 1
        %v7511 = vsel %vm2274, %v7506, %v7510
        %v7512 = vshrl.u32 %v7325, 16
        %v7514 = vor.u32 %v7512, %v7502
        %v7516 = vshll.u32 %v7327, 16
        %v7518 = vrot.slane %v7516, 1
        %v7519 = vsel %vm2274, %v7514, %v7518
        %v7520 = vshrl.u32 %v7326, 16
        %v7522 = vor.u32 %v7520, %v7510
        %v7524 = vshll.u32 %v7328, 16
        %v7526 = vrot.slane %v7524, 1
        %v7527 = vsel %vm2274, %v7522, %v7526
        %v7528 = vshrl.u32 %v7327, 16
        %v7530 = vor.u32 %v7528, %v7518
        %v7532 = vshll.u32 %v7329, 16
        %v7534 = vrot.slane %v7532, 1
        %v7535 = vsel %vm2274, %v7530, %v7534
        %v7536 = vshrl.u32 %v7328, 16
        %v7538 = vor.u32 %v7536, %v7526
        %v7540 = vshll.u32 %v7330, 16
        %v7542 = vrot.slane %v7540, 1
        %v7543 = vsel %vm2274, %v7538, %v7542
        %v7544 = vshrl.u32 %v7329, 16
        %v7546 = vor.u32 %v7544, %v7534
        %v7548 = vshll.u32 %v7331, 16
        %v7550 = vrot.slane %v7548, 1
        %v7551 = vsel %vm2274, %v7546, %v7550
        %v7552 = vshrl.u32 %v7330, 16
        %v7554 = vor.u32 %v7552, %v7542
        %v7556 = vshll.u32 %v7332, 16
        %v7558 = vrot.slane %v7556, 1
        %v7559 = vsel %vm2274, %v7554, %v7558
        %v7560 = vshrl.u32 %v7331, 16
        %v7562 = vor.u32 %v7560, %v7550
        %v7564 = vshll.u32 %v7333, 16
        %v7566 = vrot.slane %v7564, 1
        %v7567 = vsel %vm2274, %v7562, %v7566
        %v7568 = vshrl.u32 %v7332, 16
        %v7570 = vor.u32 %v7568, %v7558
        %v7572 = vshll.u32 %v7334, 16
        %v7574 = vrot.slane %v7572, 1
        %v7575 = vsel %vm2274, %v7570, %v7574
        %v7576 = vshrl.u32 %v7333, 16
        %v7578 = vor.u32 %v7576, %v7566
        %v7580 = vshll.u32 %v7335, 16
        %v7582 = vrot.slane %v7580, 1
        %v7583 = vsel %vm2274, %v7578, %v7582
        %v7646 = vunpack.c.l.b16 %v7179
        %v7647 = vunpack.c.h.b16 %v7179
        %v7648 = vunpack.c.l.b16 %v7180
        %v7649 = vunpack.c.h.b16 %v7180
        %v7650 = vunpack.c.l.b16 %v7181
        %v7651 = vunpack.c.h.b16 %v7181
        %v7652 = vunpack.c.l.b16 %v7182
        %v7653 = vunpack.c.h.b16 %v7182
        %v7654 = vunpack.c.l.b16 %v7183
        %v7655 = vunpack.c.h.b16 %v7183
        %v7656 = vunpack.c.l.b16 %v7184
        %v7657 = vunpack.c.h.b16 %v7184
        %v7658 = vunpack.c.l.b16 %v7185
        %v7659 = vunpack.c.h.b16 %v7185
        %v7660 = vunpack.c.l.b16 %v7186
        %v7661 = vunpack.c.h.b16 %v7186
        %v7662 = vunpack.c.l.b16 %v7187
        %v7663 = vunpack.c.h.b16 %v7187
        %v7664 = vunpack.c.l.b16 %v7188
        %v7665 = vunpack.c.h.b16 %v7188
        %v7666 = vunpack.c.l.b16 %v7189
        %v7667 = vunpack.c.h.b16 %v7189
        %v7668 = vunpack.c.l.b16 %v7190
        %v7669 = vunpack.c.h.b16 %v7190
        %v7670 = vunpack.c.l.b16 %v7191
        %v7671 = vunpack.c.h.b16 %v7191
        %v7672 = vunpack.c.l.b16 %v7192
        %v7673 = vunpack.c.h.b16 %v7192
        %v7674 = vunpack.c.l.b16 %v7193
        %v7675 = vunpack.c.h.b16 %v7193
        %v7676 = vunpack.c.l.b16 %v7194
        %v7677 = vunpack.c.h.b16 %v7194
        %v7678 = vunpack.c.l.b16 %v7195
        %v7679 = vunpack.c.h.b16 %v7195
        %v7680 = vunpack.c.l.b16 %v7196
        %v7681 = vunpack.c.h.b16 %v7196
        %v7682 = vunpack.c.l.b16 %v7197
        %v7683 = vunpack.c.h.b16 %v7197
        %v7684 = vunpack.c.l.b16 %v7198
        %v7685 = vunpack.c.h.b16 %v7198
        %v7686 = vunpack.c.l.b16 %v7199
        %v7687 = vunpack.c.h.b16 %v7199
        %v7688 = vunpack.c.l.b16 %v7200
        %v7689 = vunpack.c.h.b16 %v7200
        %v7690 = vunpack.c.l.b16 %v7201
        %v7691 = vunpack.c.h.b16 %v7201
        %v7692 = vunpack.c.l.b16 %v7202
        %v7693 = vunpack.c.h.b16 %v7202
        %v7694 = vunpack.c.l.b16 %v7203
        %v7695 = vunpack.c.h.b16 %v7203
        %v7696 = vunpack.c.l.b16 %v7204
        %v7697 = vunpack.c.h.b16 %v7204
        %v7698 = vunpack.c.l.b16 %v7205
        %v7699 = vunpack.c.h.b16 %v7205
        %v7700 = vunpack.c.l.b16 %v7206
        %v7701 = vunpack.c.h.b16 %v7206
        %v7702 = vunpack.c.l.b16 %v7207
        %v7703 = vunpack.c.h.b16 %v7207
        %v7704 = vunpack.c.l.b16 %v7208
        %v7705 = vunpack.c.h.b16 %v7208
        %v7706 = vunpack.c.l.b16 %v7209
        %v7707 = vunpack.c.h.b16 %v7209
        %v7708 = vunpack.c.l.b16 %v7210
        %v7709 = vunpack.c.h.b16 %v7210
        %v7710 = vpack.c.b16 %v7648, %v7646
        %v7711 = vpack.c.b16 %v7649, %v7647
        %v7712 = vpack.c.b16 %v7652, %v7650
        %v7713 = vpack.c.b16 %v7653, %v7651
        %v7714 = vpack.c.b16 %v7656, %v7654
        %v7715 = vpack.c.b16 %v7657, %v7655
        %v7716 = vpack.c.b16 %v7660, %v7658
        %v7717 = vpack.c.b16 %v7661, %v7659
        %v7718 = vpack.c.b16 %v7664, %v7662
        %v7719 = vpack.c.b16 %v7665, %v7663
        %v7720 = vpack.c.b16 %v7668, %v7666
        %v7721 = vpack.c.b16 %v7669, %v7667
        %v7722 = vpack.c.b16 %v7672, %v7670
        %v7723 = vpack.c.b16 %v7673, %v7671
        %v7724 = vpack.c.b16 %v7676, %v7674
        %v7725 = vpack.c.b16 %v7677, %v7675
        %v7726 = vpack.c.b16 %v7680, %v7678
        %v7727 = vpack.c.b16 %v7681, %v7679
        %v7728 = vpack.c.b16 %v7684, %v7682
        %v7729 = vpack.c.b16 %v7685, %v7683
        %v7730 = vpack.c.b16 %v7688, %v7686
        %v7731 = vpack.c.b16 %v7689, %v7687
        %v7732 = vpack.c.b16 %v7692, %v7690
        %v7733 = vpack.c.b16 %v7693, %v7691
        %v7734 = vpack.c.b16 %v7696, %v7694
        %v7735 = vpack.c.b16 %v7697, %v7695
        %v7736 = vpack.c.b16 %v7700, %v7698
        %v7737 = vpack.c.b16 %v7701, %v7699
        %v7738 = vpack.c.b16 %v7704, %v7702
        %v7739 = vpack.c.b16 %v7705, %v7703
        %v7740 = vpack.c.b16 %v7708, %v7706
        %v7741 = vpack.c.b16 %v7709, %v7707
        %7774 = vmatprep.subr.bf16.mxu0 %v7711
        %7775 = vmatpush1.bf16.msra.mxu0 %v7710
        %7776 = vmatprep.subr.bf16.mxu0 %v7713
        %7777 = vmatpush1.bf16.msra.mxu0 %v7712
        %7778 = vmatprep.subr.bf16.mxu0 %v7715
        %7779 = vmatpush1.bf16.msra.mxu0 %v7714
        %7780 = vmatprep.subr.bf16.mxu0 %v7717
        %7781 = vmatpush1.bf16.msra.mxu0 %v7716
        %7782 = vmatprep.subr.bf16.mxu0 %v7719
        %7783 = vmatpush1.bf16.msra.mxu0 %v7718
        %7784 = vmatprep.subr.bf16.mxu0 %v7721
        %7785 = vmatpush1.bf16.msra.mxu0 %v7720
        %7786 = vmatprep.subr.bf16.mxu0 %v7723
        %7787 = vmatpush1.bf16.msra.mxu0 %v7722
        %7788 = vmatprep.subr.bf16.mxu0 %v7725
        %7789 = vmatpush1.bf16.msra.mxu0 %v7724
        %7790 = vmatprep.subr.bf16.mxu0 %v7727
        %7791 = vmatpush1.bf16.msra.mxu0 %v7726
        %7792 = vmatprep.subr.bf16.mxu0 %v7729
        %7793 = vmatpush1.bf16.msra.mxu0 %v7728
        %7794 = vmatprep.subr.bf16.mxu0 %v7731
        %7795 = vmatpush1.bf16.msra.mxu0 %v7730
        %7796 = vmatprep.subr.bf16.mxu0 %v7733
        %7797 = vmatpush1.bf16.msra.mxu0 %v7732
        %7798 = vmatprep.subr.bf16.mxu0 %v7735
        %7799 = vmatpush1.bf16.msra.mxu0 %v7734
        %7800 = vmatprep.subr.bf16.mxu0 %v7737
        %7801 = vmatpush1.bf16.msra.mxu0 %v7736
        %7802 = vmatprep.subr.bf16.mxu0 %v7739
        %7803 = vmatpush1.bf16.msra.mxu0 %v7738
        %7804 = vmatprep.subr.bf16.mxu0 %v7741
        %7805 = vmatpush1.bf16.msra.mxu0 %v7740
        %7806 = vmatprep.mubr.bf16.mxu0 %v7359
        %7807 = vmatmul.mubr.bf16.gmra.mrb[0].mxu0 %v7347
        %v7808 = vpop.f32.mrb[0].mxu0
        %v7809 = vadd.f32 0.0, %v7808
        %v7810 = vpop.f32.mrb[0].mxu0
        %v7811 = vadd.f32 0.0, %v7810
        %v7812 = vpop.f32.mrb[0].mxu0
        %v7813 = vadd.f32 0.0, %v7812
        %v7814 = vpop.f32.mrb[0].mxu0
        %v7815 = vadd.f32 0.0, %v7814
        %7816 = vmatprep.mubr.bf16.mxu0 %v7375
        %7817 = vmatmul.mubr.bf16.gmra.mrb[0].mxu0 %v7367
        %v7818 = vpop.f32.mrb[0].mxu0
        %v7819 = vadd.f32 0.0, %v7818
        %v7820 = vpop.f32.mrb[0].mxu0
        %v7821 = vadd.f32 0.0, %v7820
        %v7822 = vpop.f32.mrb[0].mxu0
        %v7823 = vadd.f32 0.0, %v7822
        %v7824 = vpop.f32.mrb[0].mxu0
        %v7825 = vadd.f32 0.0, %v7824
        %7826 = vmatprep.mubr.bf16.mxu0 %v7391
        %7827 = vmatmul.mubr.bf16.gmra.mrb[0].mxu0 %v7383
        %v7828 = vpop.f32.mrb[0].mxu0
        %v7829 = vadd.f32 0.0, %v7828
        %v7830 = vpop.f32.mrb[0].mxu0
        %v7831 = vadd.f32 0.0, %v7830
        %v7832 = vpop.f32.mrb[0].mxu0
        %v7833 = vadd.f32 0.0, %v7832
        %v7834 = vpop.f32.mrb[0].mxu0
        %v7835 = vadd.f32 0.0, %v7834
        %7836 = vmatprep.mubr.bf16.mxu0 %v7407
        %7837 = vmatmul.mubr.bf16.gmra.mrb[0].mxu0 %v7399
        %v7838 = vpop.f32.mrb[0].mxu0
        %v7839 = vadd.f32 0.0, %v7838
        %v7840 = vpop.f32.mrb[0].mxu0
        %v7841 = vadd.f32 0.0, %v7840
        %v7842 = vpop.f32.mrb[0].mxu0
        %v7843 = vadd.f32 0.0, %v7842
        %v7844 = vpop.f32.mrb[0].mxu0
        %v7845 = vadd.f32 0.0, %v7844
        %7846 = vmatprep.mubr.bf16.mxu0 %v7423
        %7847 = vmatmul.mubr.bf16.gmra.mrb[0].mxu0 %v7415
        %v7848 = vpop.f32.mrb[0].mxu0
        %v7849 = vadd.f32 0.0, %v7848
        %v7850 = vpop.f32.mrb[0].mxu0
        %v7851 = vadd.f32 0.0, %v7850
        %v7852 = vpop.f32.mrb[0].mxu0
        %v7853 = vadd.f32 0.0, %v7852
        %v7854 = vpop.f32.mrb[0].mxu0
        %v7855 = vadd.f32 0.0, %v7854
        %7856 = vmatprep.mubr.bf16.mxu0 %v7439
        %7857 = vmatmul.mubr.bf16.gmra.mrb[0].mxu0 %v7431
        %v7858 = vpop.f32.mrb[0].mxu0
        %v7859 = vadd.f32 0.0, %v7858
        %v7860 = vpop.f32.mrb[0].mxu0
        %v7861 = vadd.f32 0.0, %v7860
        %v7862 = vpop.f32.mrb[0].mxu0
        %v7863 = vadd.f32 0.0, %v7862
        %v7864 = vpop.f32.mrb[0].mxu0
        %v7865 = vadd.f32 0.0, %v7864
        %7866 = vmatprep.mubr.bf16.mxu0 %v7455
        %7867 = vmatmul.mubr.bf16.gmra.mrb[0].mxu0 %v7447
        %v7868 = vpop.f32.mrb[0].mxu0
        %v7869 = vadd.f32 0.0, %v7868
        %v7870 = vpop.f32.mrb[0].mxu0
        %v7871 = vadd.f32 0.0, %v7870
        %v7872 = vpop.f32.mrb[0].mxu0
        %v7873 = vadd.f32 0.0, %v7872
        %v7874 = vpop.f32.mrb[0].mxu0
        %v7875 = vadd.f32 0.0, %v7874
        %7876 = vmatprep.mubr.bf16.mxu0 %v7471
        %7877 = vmatmul.mubr.bf16.gmra.mrb[0].mxu0 %v7463
        %v7878 = vpop.f32.mrb[0].mxu0
        %v7879 = vadd.f32 0.0, %v7878
        %v7880 = vpop.f32.mrb[0].mxu0
        %v7881 = vadd.f32 0.0, %v7880
        %v7882 = vpop.f32.mrb[0].mxu0
        %v7883 = vadd.f32 0.0, %v7882
        %v7884 = vpop.f32.mrb[0].mxu0
        %v7885 = vadd.f32 0.0, %v7884
        %7886 = vmatprep.mubr.bf16.mxu0 %v7487
        %7887 = vmatmul.mubr.bf16.gmra.mrb[0].mxu0 %v7479
        %v7888 = vpop.f32.mrb[0].mxu0
        %v7889 = vadd.f32 0.0, %v7888
        %v7890 = vpop.f32.mrb[0].mxu0
        %v7891 = vadd.f32 0.0, %v7890
        %v7892 = vpop.f32.mrb[0].mxu0
        %v7893 = vadd.f32 0.0, %v7892
        %v7894 = vpop.f32.mrb[0].mxu0
        %v7895 = vadd.f32 0.0, %v7894
        %7896 = vmatprep.mubr.bf16.mxu0 %v7503
        %7897 = vmatmul.mubr.bf16.gmra.mrb[0].mxu0 %v7495
        %v7898 = vpop.f32.mrb[0].mxu0
        %v7899 = vadd.f32 0.0, %v7898
        %v7900 = vpop.f32.mrb[0].mxu0
        %v7901 = vadd.f32 0.0, %v7900
        %v7902 = vpop.f32.mrb[0].mxu0
        %v7903 = vadd.f32 0.0, %v7902
        %v7904 = vpop.f32.mrb[0].mxu0
        %v7905 = vadd.f32 0.0, %v7904
        %7906 = vmatprep.mubr.bf16.mxu0 %v7519
        %7907 = vmatmul.mubr.bf16.gmra.mrb[0].mxu0 %v7511
        %v7908 = vpop.f32.mrb[0].mxu0
        %v7909 = vadd.f32 0.0, %v7908
        %v7910 = vpop.f32.mrb[0].mxu0
        %v7911 = vadd.f32 0.0, %v7910
        %v7912 = vpop.f32.mrb[0].mxu0
        %v7913 = vadd.f32 0.0, %v7912
        %v7914 = vpop.f32.mrb[0].mxu0
        %v7915 = vadd.f32 0.0, %v7914
        %7916 = vmatprep.mubr.bf16.mxu0 %v7535
        %7917 = vmatmul.mubr.bf16.gmra.mrb[0].mxu0 %v7527
        %v7918 = vpop.f32.mrb[0].mxu0
        %v7919 = vadd.f32 0.0, %v7918
        %v7920 = vpop.f32.mrb[0].mxu0
        %v7921 = vadd.f32 0.0, %v7920
        %v7922 = vpop.f32.mrb[0].mxu0
        %v7923 = vadd.f32 0.0, %v7922
        %v7924 = vpop.f32.mrb[0].mxu0
        %v7925 = vadd.f32 0.0, %v7924
        %7926 = vmatprep.mubr.bf16.mxu0 %v7551
        %7927 = vmatmul.mubr.bf16.gmra.mrb[0].mxu0 %v7543
        %v7928 = vpop.f32.mrb[0].mxu0
        %v7929 = vadd.f32 0.0, %v7928
        %v7930 = vpop.f32.mrb[0].mxu0
        %v7931 = vadd.f32 0.0, %v7930
        %v7932 = vpop.f32.mrb[0].mxu0
        %v7933 = vadd.f32 0.0, %v7932
        %v7934 = vpop.f32.mrb[0].mxu0
        %v7935 = vadd.f32 0.0, %v7934
        %7936 = vmatprep.mubr.bf16.mxu0 %v7567
        %7937 = vmatmul.mubr.bf16.gmra.mrb[0].mxu0 %v7559
        %v7938 = vpop.f32.mrb[0].mxu0
        %v7939 = vadd.f32 0.0, %v7938
        %v7940 = vpop.f32.mrb[0].mxu0
        %v7941 = vadd.f32 0.0, %v7940
        %v7942 = vpop.f32.mrb[0].mxu0
        %v7943 = vadd.f32 0.0, %v7942
        %v7944 = vpop.f32.mrb[0].mxu0
        %v7945 = vadd.f32 0.0, %v7944
        %7946 = vmatprep.mubr.bf16.mxu0 %v7583
        %7947 = vmatmul.mubr.bf16.gmra.mrb[0].mxu0 %v7575
        %v7948 = vpop.f32.mrb[0].mxu0
        %v7949 = vadd.f32 0.0, %v7948
        %v7950 = vpop.f32.mrb[0].mxu0
        %v7951 = vadd.f32 0.0, %v7950
        %v7952 = vpop.f32.mrb[0].mxu0
        %v7953 = vadd.f32 0.0, %v7952
        %v7954 = vpop.f32.mrb[0].mxu0
        %v7955 = vadd.f32 0.0, %v7954
        %7956 = vdwg.mxu0
        %v7957 = vld [vmem:[#allocation3] sm:$0xff]
        %v7958 = vld [vmem:[#allocation3 + $0x8] sm:$0xff]
        %v7959 = vld [vmem:[#allocation3 + $0x10] sm:$0xff]
        %v7960 = vld [vmem:[#allocation3 + $0x18] sm:$0xff]
        %v7961 = vld [vmem:[#allocation3 + $0x20] sm:$0xff]
        %v7962 = vld [vmem:[#allocation3 + $0x28] sm:$0xff]
        %v7963 = vld [vmem:[#allocation3 + $0x30] sm:$0xff]
        %v7964 = vld [vmem:[#allocation3 + $0x38] sm:$0xff]
        %v7965 = vld [vmem:[#allocation3 + $0x40] sm:$0xff]
        %v7966 = vld [vmem:[#allocation3 + $0x48] sm:$0xff]
        %v7967 = vld [vmem:[#allocation3 + $0x50] sm:$0xff]
        %v7968 = vld [vmem:[#allocation3 + $0x58] sm:$0xff]
        %v7969 = vld [vmem:[#allocation3 + $0x60] sm:$0xff]
        %v7970 = vld [vmem:[#allocation3 + $0x68] sm:$0xff]
        %v7971 = vld [vmem:[#allocation3 + $0x70] sm:$0xff]
        %v7972 = vld [vmem:[#allocation3 + $0x78] sm:$0xff]
        %v7973 = vld [vmem:[#allocation3 + $0x80] sm:$0xff]
        %v7974 = vld [vmem:[#allocation3 + $0x88] sm:$0xff]
        %v7975 = vld [vmem:[#allocation3 + $0x90] sm:$0xff]
        %v7976 = vld [vmem:[#allocation3 + $0x98] sm:$0xff]
        %v7977 = vld [vmem:[#allocation3 + $0xa0] sm:$0xff]
        %v7978 = vld [vmem:[#allocation3 + $0xa8] sm:$0xff]
        %v7979 = vld [vmem:[#allocation3 + $0xb0] sm:$0xff]
        %v7980 = vld [vmem:[#allocation3 + $0xb8] sm:$0xff]
        %v7981 = vld [vmem:[#allocation3 + $0xc0] sm:$0xff]
        %v7982 = vld [vmem:[#allocation3 + $0xc8] sm:$0xff]
        %v7983 = vld [vmem:[#allocation3 + $0xd0] sm:$0xff]
        %v7984 = vld [vmem:[#allocation3 + $0xd8] sm:$0xff]
        %v7985 = vld [vmem:[#allocation3 + $0xe0] sm:$0xff]
        %v7986 = vld [vmem:[#allocation3 + $0xe8] sm:$0xff]
        %v7987 = vld [vmem:[#allocation3 + $0xf0] sm:$0xff]
        %v7988 = vld [vmem:[#allocation3 + $0xf8] sm:$0xff]
        %v7989 = vld [vmem:[#allocation3 + $0x100] sm:$0xff]
        %v7990 = vld [vmem:[#allocation3 + $0x108] sm:$0xff]
        %v7991 = vld [vmem:[#allocation3 + $0x110] sm:$0xff]
        %v7992 = vld [vmem:[#allocation3 + $0x118] sm:$0xff]
        %v7993 = vld [vmem:[#allocation3 + $0x120] sm:$0xff]
        %v7994 = vld [vmem:[#allocation3 + $0x128] sm:$0xff]
        %v7995 = vld [vmem:[#allocation3 + $0x130] sm:$0xff]
        %v7996 = vld [vmem:[#allocation3 + $0x138] sm:$0xff]
        %v7997 = vld [vmem:[#allocation3 + $0x140] sm:$0xff]
        %v7998 = vld [vmem:[#allocation3 + $0x148] sm:$0xff]
        %v7999 = vld [vmem:[#allocation3 + $0x150] sm:$0xff]
        %v8000 = vld [vmem:[#allocation3 + $0x158] sm:$0xff]
        %v8001 = vld [vmem:[#allocation3 + $0x160] sm:$0xff]
        %v8002 = vld [vmem:[#allocation3 + $0x168] sm:$0xff]
        %v8003 = vld [vmem:[#allocation3 + $0x170] sm:$0xff]
        %v8004 = vld [vmem:[#allocation3 + $0x178] sm:$0xff]
        %v8005 = vld [vmem:[#allocation3 + $0x180] sm:$0xff]
        %v8006 = vld [vmem:[#allocation3 + $0x188] sm:$0xff]
        %v8007 = vld [vmem:[#allocation3 + $0x190] sm:$0xff]
        %v8008 = vld [vmem:[#allocation3 + $0x198] sm:$0xff]
        %v8009 = vld [vmem:[#allocation3 + $0x1a0] sm:$0xff]
        %v8010 = vld [vmem:[#allocation3 + $0x1a8] sm:$0xff]
        %v8011 = vld [vmem:[#allocation3 + $0x1b0] sm:$0xff]
        %v8012 = vld [vmem:[#allocation3 + $0x1b8] sm:$0xff]
        %v8013 = vld [vmem:[#allocation3 + $0x1c0] sm:$0xff]
        %v8014 = vld [vmem:[#allocation3 + $0x1c8] sm:$0xff]
        %v8015 = vld [vmem:[#allocation3 + $0x1d0] sm:$0xff]
        %v8016 = vld [vmem:[#allocation3 + $0x1d8] sm:$0xff]
        %v8017 = vadd.f32 %v7957, %v7809
        %v8018 = vadd.f32 %v7958, %v7811
        %v8019 = vadd.f32 %v7959, %v7813
        %v8020 = vadd.f32 %v7960, %v7815
        %v8021 = vadd.f32 %v7961, %v7819
        %v8022 = vadd.f32 %v7962, %v7821
        %v8023 = vadd.f32 %v7963, %v7823
        %v8024 = vadd.f32 %v7964, %v7825
        %v8025 = vadd.f32 %v7965, %v7829
        %v8026 = vadd.f32 %v7966, %v7831
        %v8027 = vadd.f32 %v7967, %v7833
        %v8028 = vadd.f32 %v7968, %v7835
        %v8029 = vadd.f32 %v7969, %v7839
        %v8030 = vadd.f32 %v7970, %v7841
        %v8031 = vadd.f32 %v7971, %v7843
        %v8032 = vadd.f32 %v7972, %v7845
        %v8033 = vadd.f32 %v7973, %v7849
        %v8034 = vadd.f32 %v7974, %v7851
        %v8035 = vadd.f32 %v7975, %v7853
        %v8036 = vadd.f32 %v7976, %v7855
        %v8037 = vadd.f32 %v7977, %v7859
        %v8038 = vadd.f32 %v7978, %v7861
        %v8039 = vadd.f32 %v7979, %v7863
        %v8040 = vadd.f32 %v7980, %v7865
        %v8041 = vadd.f32 %v7981, %v7869
        %v8042 = vadd.f32 %v7982, %v7871
        %v8043 = vadd.f32 %v7983, %v7873
        %v8044 = vadd.f32 %v7984, %v7875
        %v8045 = vadd.f32 %v7985, %v7879
        %v8046 = vadd.f32 %v7986, %v7881
        %v8047 = vadd.f32 %v7987, %v7883
        %v8048 = vadd.f32 %v7988, %v7885
        %v8049 = vadd.f32 %v7989, %v7889
        %v8050 = vadd.f32 %v7990, %v7891
        %v8051 = vadd.f32 %v7991, %v7893
        %v8052 = vadd.f32 %v7992, %v7895
        %v8053 = vadd.f32 %v7993, %v7899
        %v8054 = vadd.f32 %v7994, %v7901
        %v8055 = vadd.f32 %v7995, %v7903
        %v8056 = vadd.f32 %v7996, %v7905
        %v8057 = vadd.f32 %v7997, %v7909
        %v8058 = vadd.f32 %v7998, %v7911
        %v8059 = vadd.f32 %v7999, %v7913
        %v8060 = vadd.f32 %v8000, %v7915
        %v8061 = vadd.f32 %v8001, %v7919
        %v8062 = vadd.f32 %v8002, %v7921
        %v8063 = vadd.f32 %v8003, %v7923
        %v8064 = vadd.f32 %v8004, %v7925
        %v8065 = vadd.f32 %v8005, %v7929
        %v8066 = vadd.f32 %v8006, %v7931
        %v8067 = vadd.f32 %v8007, %v7933
        %v8068 = vadd.f32 %v8008, %v7935
        %v8069 = vadd.f32 %v8009, %v7939
        %v8070 = vadd.f32 %v8010, %v7941
        %v8071 = vadd.f32 %v8011, %v7943
        %v8072 = vadd.f32 %v8012, %v7945
        %v8073 = vadd.f32 %v8013, %v7949
        %v8074 = vadd.f32 %v8014, %v7951
        %v8075 = vadd.f32 %v8015, %v7953
        %v8076 = vadd.f32 %v8016, %v7955
        %8077 = vst [vmem:[#allocation3] sm:$0xff] %v8017
        %8078 = vst [vmem:[#allocation3 + $0x8] sm:$0xff] %v8018
        %8079 = vst [vmem:[#allocation3 + $0x10] sm:$0xff] %v8019
        %8080 = vst [vmem:[#allocation3 + $0x18] sm:$0xff] %v8020
        %8081 = vst [vmem:[#allocation3 + $0x20] sm:$0xff] %v8021
        %8082 = vst [vmem:[#allocation3 + $0x28] sm:$0xff] %v8022
        %8083 = vst [vmem:[#allocation3 + $0x30] sm:$0xff] %v8023
        %8084 = vst [vmem:[#allocation3 + $0x38] sm:$0xff] %v8024
        %8085 = vst [vmem:[#allocation3 + $0x40] sm:$0xff] %v8025
        %8086 = vst [vmem:[#allocation3 + $0x48] sm:$0xff] %v8026
        %8087 = vst [vmem:[#allocation3 + $0x50] sm:$0xff] %v8027
        %8088 = vst [vmem:[#allocation3 + $0x58] sm:$0xff] %v8028
        %8089 = vst [vmem:[#allocation3 + $0x60] sm:$0xff] %v8029
        %8090 = vst [vmem:[#allocation3 + $0x68] sm:$0xff] %v8030
        %8091 = vst [vmem:[#allocation3 + $0x70] sm:$0xff] %v8031
        %8092 = vst [vmem:[#allocation3 + $0x78] sm:$0xff] %v8032
        %8093 = vst [vmem:[#allocation3 + $0x80] sm:$0xff] %v8033
        %8094 = vst [vmem:[#allocation3 + $0x88] sm:$0xff] %v8034
        %8095 = vst [vmem:[#allocation3 + $0x90] sm:$0xff] %v8035
        %8096 = vst [vmem:[#allocation3 + $0x98] sm:$0xff] %v8036
        %8097 = vst [vmem:[#allocation3 + $0xa0] sm:$0xff] %v8037
        %8098 = vst [vmem:[#allocation3 + $0xa8] sm:$0xff] %v8038
        %8099 = vst [vmem:[#allocation3 + $0xb0] sm:$0xff] %v8039
        %8100 = vst [vmem:[#allocation3 + $0xb8] sm:$0xff] %v8040
        %8101 = vst [vmem:[#allocation3 + $0xc0] sm:$0xff] %v8041
        %8102 = vst [vmem:[#allocation3 + $0xc8] sm:$0xff] %v8042
        %8103 = vst [vmem:[#allocation3 + $0xd0] sm:$0xff] %v8043
        %8104 = vst [vmem:[#allocation3 + $0xd8] sm:$0xff] %v8044
        %8105 = vst [vmem:[#allocation3 + $0xe0] sm:$0xff] %v8045
        %8106 = vst [vmem:[#allocation3 + $0xe8] sm:$0xff] %v8046
        %8107 = vst [vmem:[#allocation3 + $0xf0] sm:$0xff] %v8047
        %8108 = vst [vmem:[#allocation3 + $0xf8] sm:$0xff] %v8048
        %8109 = vst [vmem:[#allocation3 + $0x100] sm:$0xff] %v8049
        %8110 = vst [vmem:[#allocation3 + $0x108] sm:$0xff] %v8050
        %8111 = vst [vmem:[#allocation3 + $0x110] sm:$0xff] %v8051
        %8112 = vst [vmem:[#allocation3 + $0x118] sm:$0xff] %v8052
        %8113 = vst [vmem:[#allocation3 + $0x120] sm:$0xff] %v8053
        %8114 = vst [vmem:[#allocation3 + $0x128] sm:$0xff] %v8054
        %8115 = vst [vmem:[#allocation3 + $0x130] sm:$0xff] %v8055
        %8116 = vst [vmem:[#allocation3 + $0x138] sm:$0xff] %v8056
        %8117 = vst [vmem:[#allocation3 + $0x140] sm:$0xff] %v8057
        %8118 = vst [vmem:[#allocation3 + $0x148] sm:$0xff] %v8058
        %8119 = vst [vmem:[#allocation3 + $0x150] sm:$0xff] %v8059
        %8120 = vst [vmem:[#allocation3 + $0x158] sm:$0xff] %v8060
        %8121 = vst [vmem:[#allocation3 + $0x160] sm:$0xff] %v8061
        %8122 = vst [vmem:[#allocation3 + $0x168] sm:$0xff] %v8062
        %8123 = vst [vmem:[#allocation3 + $0x170] sm:$0xff] %v8063
        %8124 = vst [vmem:[#allocation3 + $0x178] sm:$0xff] %v8064
        %8125 = vst [vmem:[#allocation3 + $0x180] sm:$0xff] %v8065
        %8126 = vst [vmem:[#allocation3 + $0x188] sm:$0xff] %v8066
        %8127 = vst [vmem:[#allocation3 + $0x190] sm:$0xff] %v8067
        %8128 = vst [vmem:[#allocation3 + $0x198] sm:$0xff] %v8068
        %8129 = vst [vmem:[#allocation3 + $0x1a0] sm:$0xff] %v8069
        %8130 = vst [vmem:[#allocation3 + $0x1a8] sm:$0xff] %v8070
        %8131 = vst [vmem:[#allocation3 + $0x1b0] sm:$0xff] %v8071
        %8132 = vst [vmem:[#allocation3 + $0x1b8] sm:$0xff] %v8072
        %8133 = vst [vmem:[#allocation3 + $0x1c0] sm:$0xff] %v8073
        %8134 = vst [vmem:[#allocation3 + $0x1c8] sm:$0xff] %v8074
        %8135 = vst [vmem:[#allocation3 + $0x1d0] sm:$0xff] %v8075
        %8136 = vst [vmem:[#allocation3 + $0x1d8] sm:$0xff] %v8076
        %v8137 = vld [vmem:[#allocation2 + $0x30] sm:$0xee]
        %v8138 = vld [vmem:[#allocation2 + $0x38] sm:$0xff]
        %v8139 = vld [vmem:[#allocation2 + $0x40] sm:$0xff]
        %v8140 = vld [vmem:[#allocation2 + $0x48] sm:$0xff]
        %v8141 = vld [vmem:[#allocation2 + $0x50] sm:$0xff]
        %v8142 = vld [vmem:[#allocation2 + $0x58] sm:$0xff]
        %v8143 = vld [vmem:[#allocation2 + $0x60] sm:$0xff]
        %v8144 = vld [vmem:[#allocation2 + $0x68] sm:$0xff]
        %v8145 = vld [vmem:[#allocation2 + $0x70] sm:$0xff]
        %v8146 = vld [vmem:[#allocation2 + $0x78] sm:$0xff]
        %v8147 = vld [vmem:[#allocation2 + $0x80] sm:$0xff]
        %v8148 = vld [vmem:[#allocation2 + $0x88] sm:$0xff]
        %v8149 = vld [vmem:[#allocation2 + $0x90] sm:$0xff]
        %v8150 = vld [vmem:[#allocation2 + $0x98] sm:$0xff]
        %v8151 = vld [vmem:[#allocation2 + $0xa0] sm:$0xff]
        %v8152 = vld [vmem:[#allocation2 + $0xa8] sm:$0xff]
        %v8153 = vld [vmem:[#allocation2 + $0xb0] sm:$0xff]
        %v8154 = vld [vmem:[#allocation2 + $0xb8] sm:$0xff]
        %v8155 = vld [vmem:[#allocation2 + $0xc0] sm:$0xff]
        %v8156 = vld [vmem:[#allocation2 + $0xc8] sm:$0xff]
        %v8157 = vld [vmem:[#allocation2 + $0xd0] sm:$0xff]
        %v8158 = vld [vmem:[#allocation2 + $0xd8] sm:$0xff]
        %v8159 = vld [vmem:[#allocation2 + $0xe0] sm:$0xff]
        %v8160 = vld [vmem:[#allocation2 + $0xe8] sm:$0xff]
        %v8161 = vld [vmem:[#allocation2 + $0xf0] sm:$0xff]
        %v8162 = vld [vmem:[#allocation2 + $0xf8] sm:$0xff]
        %v8163 = vld [vmem:[#allocation2 + $0x100] sm:$0xff]
        %v8164 = vld [vmem:[#allocation2 + $0x108] sm:$0xff]
        %v8165 = vld [vmem:[#allocation2 + $0x110] sm:$0xff]
        %v8166 = vld [vmem:[#allocation2 + $0x118] sm:$0xff]
        %v8167 = vld [vmem:[#allocation2 + $0x120] sm:$0x11]
        %s8168 = scalar_lea.vmem [#allocation12], 2048
        %v8169 = vld [vmem:[%s8168] sm:$0xff]
        %v8170 = vld [vmem:[%s8168 + $0x8] sm:$0xff]
        %v8171 = vld [vmem:[%s8168 + $0x10] sm:$0xff]
        %v8172 = vld [vmem:[%s8168 + $0x18] sm:$0xff]
        %v8173 = vld [vmem:[%s8168 + $0x20] sm:$0xff]
        %v8174 = vld [vmem:[%s8168 + $0x28] sm:$0xff]
        %v8175 = vld [vmem:[%s8168 + $0x30] sm:$0xff]
        %v8176 = vld [vmem:[%s8168 + $0x38] sm:$0xff]
        %v8177 = vld [vmem:[%s8168 + $0x40] sm:$0xff]
        %v8178 = vld [vmem:[%s8168 + $0x48] sm:$0xff]
        %v8179 = vld [vmem:[%s8168 + $0x50] sm:$0xff]
        %v8180 = vld [vmem:[%s8168 + $0x58] sm:$0xff]
        %v8181 = vld [vmem:[%s8168 + $0x60] sm:$0xff]
        %v8182 = vld [vmem:[%s8168 + $0x68] sm:$0xff]
        %v8183 = vld [vmem:[%s8168 + $0x70] sm:$0xff]
        %v8184 = vld [vmem:[%s8168 + $0x78] sm:$0xff]
        %v8185 = vld [vmem:[%s8168 + $0x80] sm:$0xff]
        %v8186 = vld [vmem:[%s8168 + $0x88] sm:$0xff]
        %v8187 = vld [vmem:[%s8168 + $0x90] sm:$0xff]
        %v8188 = vld [vmem:[%s8168 + $0x98] sm:$0xff]
        %v8189 = vld [vmem:[%s8168 + $0xa0] sm:$0xff]
        %v8190 = vld [vmem:[%s8168 + $0xa8] sm:$0xff]
        %v8191 = vld [vmem:[%s8168 + $0xb0] sm:$0xff]
        %v8192 = vld [vmem:[%s8168 + $0xb8] sm:$0xff]
        %v8193 = vld [vmem:[%s8168 + $0xc0] sm:$0xff]
        %v8194 = vld [vmem:[%s8168 + $0xc8] sm:$0xff]
        %v8195 = vld [vmem:[%s8168 + $0xd0] sm:$0xff]
        %v8196 = vld [vmem:[%s8168 + $0xd8] sm:$0xff]
        %v8197 = vld [vmem:[%s8168 + $0xe0] sm:$0xff]
        %v8198 = vld [vmem:[%s8168 + $0xe8] sm:$0xff]
        %v8199 = vld [vmem:[%s8168 + $0xf0] sm:$0xff]
        %v8200 = vld [vmem:[%s8168 + $0xf8] sm:$0xff]
        %v8232 = vunpack.c.l.b16 %v8137
        %v8233 = vunpack.c.h.b16 %v8137
        %v8234 = vunpack.c.l.b16 %v8138
        %v8235 = vunpack.c.h.b16 %v8138
        %v8236 = vunpack.c.l.b16 %v8139
        %v8237 = vunpack.c.h.b16 %v8139
        %v8238 = vunpack.c.l.b16 %v8140
        %v8239 = vunpack.c.h.b16 %v8140
        %v8240 = vunpack.c.l.b16 %v8141
        %v8241 = vunpack.c.h.b16 %v8141
        %v8242 = vunpack.c.l.b16 %v8142
        %v8243 = vunpack.c.h.b16 %v8142
        %v8244 = vunpack.c.l.b16 %v8143
        %v8245 = vunpack.c.h.b16 %v8143
        %v8246 = vunpack.c.l.b16 %v8144
        %v8247 = vunpack.c.h.b16 %v8144
        %v8248 = vunpack.c.l.b16 %v8145
        %v8249 = vunpack.c.h.b16 %v8145
        %v8250 = vunpack.c.l.b16 %v8146
        %v8251 = vunpack.c.h.b16 %v8146
        %v8252 = vunpack.c.l.b16 %v8147
        %v8253 = vunpack.c.h.b16 %v8147
        %v8254 = vunpack.c.l.b16 %v8148
        %v8255 = vunpack.c.h.b16 %v8148
        %v8256 = vunpack.c.l.b16 %v8149
        %v8257 = vunpack.c.h.b16 %v8149
        %v8258 = vunpack.c.l.b16 %v8150
        %v8259 = vunpack.c.h.b16 %v8150
        %v8260 = vunpack.c.l.b16 %v8151
        %v8261 = vunpack.c.h.b16 %v8151
        %v8262 = vunpack.c.l.b16 %v8152
        %v8263 = vunpack.c.h.b16 %v8152
        %v8264 = vunpack.c.l.b16 %v8153
        %v8265 = vunpack.c.h.b16 %v8153
        %v8266 = vunpack.c.l.b16 %v8154
        %v8267 = vunpack.c.h.b16 %v8154
        %v8268 = vunpack.c.l.b16 %v8155
        %v8269 = vunpack.c.h.b16 %v8155
        %v8270 = vunpack.c.l.b16 %v8156
        %v8271 = vunpack.c.h.b16 %v8156
        %v8272 = vunpack.c.l.b16 %v8157
        %v8273 = vunpack.c.h.b16 %v8157
        %v8274 = vunpack.c.l.b16 %v8158
        %v8275 = vunpack.c.h.b16 %v8158
        %v8276 = vunpack.c.l.b16 %v8159
        %v8277 = vunpack.c.h.b16 %v8159
        %v8278 = vunpack.c.l.b16 %v8160
        %v8279 = vunpack.c.h.b16 %v8160
        %v8280 = vunpack.c.l.b16 %v8161
        %v8281 = vunpack.c.h.b16 %v8161
        %v8282 = vunpack.c.l.b16 %v8162
        %v8283 = vunpack.c.h.b16 %v8162
        %v8284 = vunpack.c.l.b16 %v8163
        %v8285 = vunpack.c.h.b16 %v8163
        %v8286 = vunpack.c.l.b16 %v8164
        %v8287 = vunpack.c.h.b16 %v8164
        %v8288 = vunpack.c.l.b16 %v8165
        %v8289 = vunpack.c.h.b16 %v8165
        %v8290 = vunpack.c.l.b16 %v8166
        %v8291 = vunpack.c.h.b16 %v8166
        %v8292 = vunpack.c.l.b16 %v8167
        %v8293 = vunpack.c.h.b16 %v8167
        %v8294 = vpack.c.b16 %v8234, %v8232
        %v8295 = vpack.c.b16 %v8235, %v8233
        %v8296 = vpack.c.b16 %v8238, %v8236
        %v8297 = vpack.c.b16 %v8239, %v8237
        %v8298 = vpack.c.b16 %v8242, %v8240
        %v8299 = vpack.c.b16 %v8243, %v8241
        %v8300 = vpack.c.b16 %v8246, %v8244
        %v8301 = vpack.c.b16 %v8247, %v8245
        %v8302 = vpack.c.b16 %v8250, %v8248
        %v8303 = vpack.c.b16 %v8251, %v8249
        %v8304 = vpack.c.b16 %v8254, %v8252
        %v8305 = vpack.c.b16 %v8255, %v8253
        %v8306 = vpack.c.b16 %v8258, %v8256
        %v8307 = vpack.c.b16 %v8259, %v8257
        %v8308 = vpack.c.b16 %v8262, %v8260
        %v8309 = vpack.c.b16 %v8263, %v8261
        %v8310 = vpack.c.b16 %v8266, %v8264
        %v8311 = vpack.c.b16 %v8267, %v8265
        %v8312 = vpack.c.b16 %v8270, %v8268
        %v8313 = vpack.c.b16 %v8271, %v8269
        %v8314 = vpack.c.b16 %v8274, %v8272
        %v8315 = vpack.c.b16 %v8275, %v8273
        %v8316 = vpack.c.b16 %v8278, %v8276
        %v8317 = vpack.c.b16 %v8279, %v8277
        %v8318 = vpack.c.b16 %v8282, %v8280
        %v8319 = vpack.c.b16 %v8283, %v8281
        %v8320 = vpack.c.b16 %v8286, %v8284
        %v8321 = vpack.c.b16 %v8287, %v8285
        %v8322 = vpack.c.b16 %v8290, %v8288
        %v8323 = vpack.c.b16 %v8291, %v8289
        %v8324 = vpack.c.b16 %v8292, %v8292
        %v8325 = vpack.c.b16 %v8293, %v8293
        %v8326 = vrot.slane %v8294, 1
        %v8327 = vrot.slane %v8296, 1
        %v8328 = vsel %vm3265, %v8326, %v8327
        %v8329 = vrot.slane %v8295, 1
        %v8330 = vrot.slane %v8297, 1
        %v8331 = vsel %vm3265, %v8329, %v8330
        %v8332 = vrot.slane %v8298, 1
        %v8333 = vsel %vm3265, %v8327, %v8332
        %v8334 = vrot.slane %v8299, 1
        %v8335 = vsel %vm3265, %v8330, %v8334
        %v8336 = vrot.slane %v8300, 1
        %v8337 = vsel %vm3265, %v8332, %v8336
        %v8338 = vrot.slane %v8301, 1
        %v8339 = vsel %vm3265, %v8334, %v8338
        %v8340 = vrot.slane %v8302, 1
        %v8341 = vsel %vm3265, %v8336, %v8340
        %v8342 = vrot.slane %v8303, 1
        %v8343 = vsel %vm3265, %v8338, %v8342
        %v8344 = vrot.slane %v8304, 1
        %v8345 = vsel %vm3265, %v8340, %v8344
        %v8346 = vrot.slane %v8305, 1
        %v8347 = vsel %vm3265, %v8342, %v8346
        %v8348 = vrot.slane %v8306, 1
        %v8349 = vsel %vm3265, %v8344, %v8348
        %v8350 = vrot.slane %v8307, 1
        %v8351 = vsel %vm3265, %v8346, %v8350
        %v8352 = vrot.slane %v8308, 1
        %v8353 = vsel %vm3265, %v8348, %v8352
        %v8354 = vrot.slane %v8309, 1
        %v8355 = vsel %vm3265, %v8350, %v8354
        %v8356 = vrot.slane %v8310, 1
        %v8357 = vsel %vm3265, %v8352, %v8356
        %v8358 = vrot.slane %v8311, 1
        %v8359 = vsel %vm3265, %v8354, %v8358
        %v8360 = vrot.slane %v8312, 1
        %v8361 = vsel %vm3265, %v8356, %v8360
        %v8362 = vrot.slane %v8313, 1
        %v8363 = vsel %vm3265, %v8358, %v8362
        %v8364 = vrot.slane %v8314, 1
        %v8365 = vsel %vm3265, %v8360, %v8364
        %v8366 = vrot.slane %v8315, 1
        %v8367 = vsel %vm3265, %v8362, %v8366
        %v8368 = vrot.slane %v8316, 1
        %v8369 = vsel %vm3265, %v8364, %v8368
        %v8370 = vrot.slane %v8317, 1
        %v8371 = vsel %vm3265, %v8366, %v8370
        %v8372 = vrot.slane %v8318, 1
        %v8373 = vsel %vm3265, %v8368, %v8372
        %v8374 = vrot.slane %v8319, 1
        %v8375 = vsel %vm3265, %v8370, %v8374
        %v8376 = vrot.slane %v8320, 1
        %v8377 = vsel %vm3265, %v8372, %v8376
        %v8378 = vrot.slane %v8321, 1
        %v8379 = vsel %vm3265, %v8374, %v8378
        %v8380 = vrot.slane %v8322, 1
        %v8381 = vsel %vm3265, %v8376, %v8380
        %v8382 = vrot.slane %v8323, 1
        %v8383 = vsel %vm3265, %v8378, %v8382
        %v8384 = vrot.slane %v8324, 1
        %v8385 = vsel %vm3265, %v8380, %v8384
        %v8386 = vrot.slane %v8325, 1
        %v8387 = vsel %vm3265, %v8382, %v8386
        %v8450 = vunpack.c.l.b16 %v8169
        %v8451 = vunpack.c.h.b16 %v8169
        %v8452 = vunpack.c.l.b16 %v8170
        %v8453 = vunpack.c.h.b16 %v8170
        %v8454 = vunpack.c.l.b16 %v8171
        %v8455 = vunpack.c.h.b16 %v8171
        %v8456 = vunpack.c.l.b16 %v8172
        %v8457 = vunpack.c.h.b16 %v8172
        %v8458 = vunpack.c.l.b16 %v8173
        %v8459 = vunpack.c.h.b16 %v8173
        %v8460 = vunpack.c.l.b16 %v8174
        %v8461 = vunpack.c.h.b16 %v8174
        %v8462 = vunpack.c.l.b16 %v8175
        %v8463 = vunpack.c.h.b16 %v8175
        %v8464 = vunpack.c.l.b16 %v8176
        %v8465 = vunpack.c.h.b16 %v8176
        %v8466 = vunpack.c.l.b16 %v8177
        %v8467 = vunpack.c.h.b16 %v8177
        %v8468 = vunpack.c.l.b16 %v8178
        %v8469 = vunpack.c.h.b16 %v8178
        %v8470 = vunpack.c.l.b16 %v8179
        %v8471 = vunpack.c.h.b16 %v8179
        %v8472 = vunpack.c.l.b16 %v8180
        %v8473 = vunpack.c.h.b16 %v8180
        %v8474 = vunpack.c.l.b16 %v8181
        %v8475 = vunpack.c.h.b16 %v8181
        %v8476 = vunpack.c.l.b16 %v8182
        %v8477 = vunpack.c.h.b16 %v8182
        %v8478 = vunpack.c.l.b16 %v8183
        %v8479 = vunpack.c.h.b16 %v8183
        %v8480 = vunpack.c.l.b16 %v8184
        %v8481 = vunpack.c.h.b16 %v8184
        %v8482 = vunpack.c.l.b16 %v8185
        %v8483 = vunpack.c.h.b16 %v8185
        %v8484 = vunpack.c.l.b16 %v8186
        %v8485 = vunpack.c.h.b16 %v8186
        %v8486 = vunpack.c.l.b16 %v8187
        %v8487 = vunpack.c.h.b16 %v8187
        %v8488 = vunpack.c.l.b16 %v8188
        %v8489 = vunpack.c.h.b16 %v8188
        %v8490 = vunpack.c.l.b16 %v8189
        %v8491 = vunpack.c.h.b16 %v8189
        %v8492 = vunpack.c.l.b16 %v8190
        %v8493 = vunpack.c.h.b16 %v8190
        %v8494 = vunpack.c.l.b16 %v8191
        %v8495 = vunpack.c.h.b16 %v8191
        %v8496 = vunpack.c.l.b16 %v8192
        %v8497 = vunpack.c.h.b16 %v8192
        %v8498 = vunpack.c.l.b16 %v8193
        %v8499 = vunpack.c.h.b16 %v8193
        %v8500 = vunpack.c.l.b16 %v8194
        %v8501 = vunpack.c.h.b16 %v8194
        %v8502 = vunpack.c.l.b16 %v8195
        %v8503 = vunpack.c.h.b16 %v8195
        %v8504 = vunpack.c.l.b16 %v8196
        %v8505 = vunpack.c.h.b16 %v8196
        %v8506 = vunpack.c.l.b16 %v8197
        %v8507 = vunpack.c.h.b16 %v8197
        %v8508 = vunpack.c.l.b16 %v8198
        %v8509 = vunpack.c.h.b16 %v8198
        %v8510 = vunpack.c.l.b16 %v8199
        %v8511 = vunpack.c.h.b16 %v8199
        %v8512 = vunpack.c.l.b16 %v8200
        %v8513 = vunpack.c.h.b16 %v8200
        %v8514 = vpack.c.b16 %v8452, %v8450
        %v8515 = vpack.c.b16 %v8453, %v8451
        %v8516 = vpack.c.b16 %v8456, %v8454
        %v8517 = vpack.c.b16 %v8457, %v8455
        %v8518 = vpack.c.b16 %v8460, %v8458
        %v8519 = vpack.c.b16 %v8461, %v8459
        %v8520 = vpack.c.b16 %v8464, %v8462
        %v8521 = vpack.c.b16 %v8465, %v8463
        %v8522 = vpack.c.b16 %v8468, %v8466
        %v8523 = vpack.c.b16 %v8469, %v8467
        %v8524 = vpack.c.b16 %v8472, %v8470
        %v8525 = vpack.c.b16 %v8473, %v8471
        %v8526 = vpack.c.b16 %v8476, %v8474
        %v8527 = vpack.c.b16 %v8477, %v8475
        %v8528 = vpack.c.b16 %v8480, %v8478
        %v8529 = vpack.c.b16 %v8481, %v8479
        %v8530 = vpack.c.b16 %v8484, %v8482
        %v8531 = vpack.c.b16 %v8485, %v8483
        %v8532 = vpack.c.b16 %v8488, %v8486
        %v8533 = vpack.c.b16 %v8489, %v8487
        %v8534 = vpack.c.b16 %v8492, %v8490
        %v8535 = vpack.c.b16 %v8493, %v8491
        %v8536 = vpack.c.b16 %v8496, %v8494
        %v8537 = vpack.c.b16 %v8497, %v8495
        %v8538 = vpack.c.b16 %v8500, %v8498
        %v8539 = vpack.c.b16 %v8501, %v8499
        %v8540 = vpack.c.b16 %v8504, %v8502
        %v8541 = vpack.c.b16 %v8505, %v8503
        %v8542 = vpack.c.b16 %v8508, %v8506
        %v8543 = vpack.c.b16 %v8509, %v8507
        %v8544 = vpack.c.b16 %v8512, %v8510
        %v8545 = vpack.c.b16 %v8513, %v8511
        %8578 = vmatprep.subr.bf16.mxu0 %v8515
        %8579 = vmatpush1.bf16.msra.mxu0 %v8514
        %8580 = vmatprep.subr.bf16.mxu0 %v8517
        %8581 = vmatpush1.bf16.msra.mxu0 %v8516
        %8582 = vmatprep.subr.bf16.mxu0 %v8519
        %8583 = vmatpush1.bf16.msra.mxu0 %v8518
        %8584 = vmatprep.subr.bf16.mxu0 %v8521
        %8585 = vmatpush1.bf16.msra.mxu0 %v8520
        %8586 = vmatprep.subr.bf16.mxu0 %v8523
        %8587 = vmatpush1.bf16.msra.mxu0 %v8522
        %8588 = vmatprep.subr.bf16.mxu0 %v8525
        %8589 = vmatpush1.bf16.msra.mxu0 %v8524
        %8590 = vmatprep.subr.bf16.mxu0 %v8527
        %8591 = vmatpush1.bf16.msra.mxu0 %v8526
        %8592 = vmatprep.subr.bf16.mxu0 %v8529
        %8593 = vmatpush1.bf16.msra.mxu0 %v8528
        %8594 = vmatprep.subr.bf16.mxu0 %v8531
        %8595 = vmatpush1.bf16.msra.mxu0 %v8530
        %8596 = vmatprep.subr.bf16.mxu0 %v8533
        %8597 = vmatpush1.bf16.msra.mxu0 %v8532
        %8598 = vmatprep.subr.bf16.mxu0 %v8535
        %8599 = vmatpush1.bf16.msra.mxu0 %v8534
        %8600 = vmatprep.subr.bf16.mxu0 %v8537
        %8601 = vmatpush1.bf16.msra.mxu0 %v8536
        %8602 = vmatprep.subr.bf16.mxu0 %v8539
        %8603 = vmatpush1.bf16.msra.mxu0 %v8538
        %8604 = vmatprep.subr.bf16.mxu0 %v8541
        %8605 = vmatpush1.bf16.msra.mxu0 %v8540
        %8606 = vmatprep.subr.bf16.mxu0 %v8543
        %8607 = vmatpush1.bf16.msra.mxu0 %v8542
        %8608 = vmatprep.subr.bf16.mxu0 %v8545
        %8609 = vmatpush1.bf16.msra.mxu0 %v8544
        %8610 = vmatprep.mubr.bf16.mxu0 %v8331
        %8611 = vmatmul.mubr.bf16.gmra.mrb[0].mxu0 %v8328
        %v8612 = vpop.f32.mrb[0].mxu0
        %v8613 = vadd.f32 0.0, %v8612
        %v8614 = vpop.f32.mrb[0].mxu0
        %v8615 = vadd.f32 0.0, %v8614
        %v8616 = vpop.f32.mrb[0].mxu0
        %v8617 = vadd.f32 0.0, %v8616
        %v8618 = vpop.f32.mrb[0].mxu0
        %v8619 = vadd.f32 0.0, %v8618
        %8620 = vmatprep.mubr.bf16.mxu0 %v8335
        %8621 = vmatmul.mubr.bf16.gmra.mrb[0].mxu0 %v8333
        %v8622 = vpop.f32.mrb[0].mxu0
        %v8623 = vadd.f32 0.0, %v8622
        %v8624 = vpop.f32.mrb[0].mxu0
        %v8625 = vadd.f32 0.0, %v8624
        %v8626 = vpop.f32.mrb[0].mxu0
        %v8627 = vadd.f32 0.0, %v8626
        %v8628 = vpop.f32.mrb[0].mxu0
        %v8629 = vadd.f32 0.0, %v8628
        %8630 = vmatprep.mubr.bf16.mxu0 %v8339
        %8631 = vmatmul.mubr.bf16.gmra.mrb[0].mxu0 %v8337
        %v8632 = vpop.f32.mrb[0].mxu0
        %v8633 = vadd.f32 0.0, %v8632
        %v8634 = vpop.f32.mrb[0].mxu0
        %v8635 = vadd.f32 0.0, %v8634
        %v8636 = vpop.f32.mrb[0].mxu0
        %v8637 = vadd.f32 0.0, %v8636
        %v8638 = vpop.f32.mrb[0].mxu0
        %v8639 = vadd.f32 0.0, %v8638
        %8640 = vmatprep.mubr.bf16.mxu0 %v8343
        %8641 = vmatmul.mubr.bf16.gmra.mrb[0].mxu0 %v8341
        %v8642 = vpop.f32.mrb[0].mxu0
        %v8643 = vadd.f32 0.0, %v8642
        %v8644 = vpop.f32.mrb[0].mxu0
        %v8645 = vadd.f32 0.0, %v8644
        %v8646 = vpop.f32.mrb[0].mxu0
        %v8647 = vadd.f32 0.0, %v8646
        %v8648 = vpop.f32.mrb[0].mxu0
        %v8649 = vadd.f32 0.0, %v8648
        %8650 = vmatprep.mubr.bf16.mxu0 %v8347
        %8651 = vmatmul.mubr.bf16.gmra.mrb[0].mxu0 %v8345
        %v8652 = vpop.f32.mrb[0].mxu0
        %v8653 = vadd.f32 0.0, %v8652
        %v8654 = vpop.f32.mrb[0].mxu0
        %v8655 = vadd.f32 0.0, %v8654
        %v8656 = vpop.f32.mrb[0].mxu0
        %v8657 = vadd.f32 0.0, %v8656
        %v8658 = vpop.f32.mrb[0].mxu0
        %v8659 = vadd.f32 0.0, %v8658
        %8660 = vmatprep.mubr.bf16.mxu0 %v8351
        %8661 = vmatmul.mubr.bf16.gmra.mrb[0].mxu0 %v8349
        %v8662 = vpop.f32.mrb[0].mxu0
        %v8663 = vadd.f32 0.0, %v8662
        %v8664 = vpop.f32.mrb[0].mxu0
        %v8665 = vadd.f32 0.0, %v8664
        %v8666 = vpop.f32.mrb[0].mxu0
        %v8667 = vadd.f32 0.0, %v8666
        %v8668 = vpop.f32.mrb[0].mxu0
        %v8669 = vadd.f32 0.0, %v8668
        %8670 = vmatprep.mubr.bf16.mxu0 %v8355
        %8671 = vmatmul.mubr.bf16.gmra.mrb[0].mxu0 %v8353
        %v8672 = vpop.f32.mrb[0].mxu0
        %v8673 = vadd.f32 0.0, %v8672
        %v8674 = vpop.f32.mrb[0].mxu0
        %v8675 = vadd.f32 0.0, %v8674
        %v8676 = vpop.f32.mrb[0].mxu0
        %v8677 = vadd.f32 0.0, %v8676
        %v8678 = vpop.f32.mrb[0].mxu0
        %v8679 = vadd.f32 0.0, %v8678
        %8680 = vmatprep.mubr.bf16.mxu0 %v8359
        %8681 = vmatmul.mubr.bf16.gmra.mrb[0].mxu0 %v8357
        %v8682 = vpop.f32.mrb[0].mxu0
        %v8683 = vadd.f32 0.0, %v8682
        %v8684 = vpop.f32.mrb[0].mxu0
        %v8685 = vadd.f32 0.0, %v8684
        %v8686 = vpop.f32.mrb[0].mxu0
        %v8687 = vadd.f32 0.0, %v8686
        %v8688 = vpop.f32.mrb[0].mxu0
        %v8689 = vadd.f32 0.0, %v8688
        %8690 = vmatprep.mubr.bf16.mxu0 %v8363
        %8691 = vmatmul.mubr.bf16.gmra.mrb[0].mxu0 %v8361
        %v8692 = vpop.f32.mrb[0].mxu0
        %v8693 = vadd.f32 0.0, %v8692
        %v8694 = vpop.f32.mrb[0].mxu0
        %v8695 = vadd.f32 0.0, %v8694
        %v8696 = vpop.f32.mrb[0].mxu0
        %v8697 = vadd.f32 0.0, %v8696
        %v8698 = vpop.f32.mrb[0].mxu0
        %v8699 = vadd.f32 0.0, %v8698
        %8700 = vmatprep.mubr.bf16.mxu0 %v8367
        %8701 = vmatmul.mubr.bf16.gmra.mrb[0].mxu0 %v8365
        %v8702 = vpop.f32.mrb[0].mxu0
        %v8703 = vadd.f32 0.0, %v8702
        %v8704 = vpop.f32.mrb[0].mxu0
        %v8705 = vadd.f32 0.0, %v8704
        %v8706 = vpop.f32.mrb[0].mxu0
        %v8707 = vadd.f32 0.0, %v8706
        %v8708 = vpop.f32.mrb[0].mxu0
        %v8709 = vadd.f32 0.0, %v8708
        %8710 = vmatprep.mubr.bf16.mxu0 %v8371
        %8711 = vmatmul.mubr.bf16.gmra.mrb[0].mxu0 %v8369
        %v8712 = vpop.f32.mrb[0].mxu0
        %v8713 = vadd.f32 0.0, %v8712
        %v8714 = vpop.f32.mrb[0].mxu0
        %v8715 = vadd.f32 0.0, %v8714
        %v8716 = vpop.f32.mrb[0].mxu0
        %v8717 = vadd.f32 0.0, %v8716
        %v8718 = vpop.f32.mrb[0].mxu0
        %v8719 = vadd.f32 0.0, %v8718
        %8720 = vmatprep.mubr.bf16.mxu0 %v8375
        %8721 = vmatmul.mubr.bf16.gmra.mrb[0].mxu0 %v8373
        %v8722 = vpop.f32.mrb[0].mxu0
        %v8723 = vadd.f32 0.0, %v8722
        %v8724 = vpop.f32.mrb[0].mxu0
        %v8725 = vadd.f32 0.0, %v8724
        %v8726 = vpop.f32.mrb[0].mxu0
        %v8727 = vadd.f32 0.0, %v8726
        %v8728 = vpop.f32.mrb[0].mxu0
        %v8729 = vadd.f32 0.0, %v8728
        %8730 = vmatprep.mubr.bf16.mxu0 %v8379
        %8731 = vmatmul.mubr.bf16.gmra.mrb[0].mxu0 %v8377
        %v8732 = vpop.f32.mrb[0].mxu0
        %v8733 = vadd.f32 0.0, %v8732
        %v8734 = vpop.f32.mrb[0].mxu0
        %v8735 = vadd.f32 0.0, %v8734
        %v8736 = vpop.f32.mrb[0].mxu0
        %v8737 = vadd.f32 0.0, %v8736
        %v8738 = vpop.f32.mrb[0].mxu0
        %v8739 = vadd.f32 0.0, %v8738
        %8740 = vmatprep.mubr.bf16.mxu0 %v8383
        %8741 = vmatmul.mubr.bf16.gmra.mrb[0].mxu0 %v8381
        %v8742 = vpop.f32.mrb[0].mxu0
        %v8743 = vadd.f32 0.0, %v8742
        %v8744 = vpop.f32.mrb[0].mxu0
        %v8745 = vadd.f32 0.0, %v8744
        %v8746 = vpop.f32.mrb[0].mxu0
        %v8747 = vadd.f32 0.0, %v8746
        %v8748 = vpop.f32.mrb[0].mxu0
        %v8749 = vadd.f32 0.0, %v8748
        %8750 = vmatprep.mubr.bf16.mxu0 %v8387
        %8751 = vmatmul.mubr.bf16.gmra.mrb[0].mxu0 %v8385
        %v8752 = vpop.f32.mrb[0].mxu0
        %v8753 = vadd.f32 0.0, %v8752
        %v8754 = vpop.f32.mrb[0].mxu0
        %v8755 = vadd.f32 0.0, %v8754
        %v8756 = vpop.f32.mrb[0].mxu0
        %v8757 = vadd.f32 0.0, %v8756
        %v8758 = vpop.f32.mrb[0].mxu0
        %v8759 = vadd.f32 0.0, %v8758
        %8760 = vdwg.mxu0
        %v8761 = vld [vmem:[#allocation3] sm:$0xff]
        %v8762 = vld [vmem:[#allocation3 + $0x8] sm:$0xff]
        %v8763 = vld [vmem:[#allocation3 + $0x10] sm:$0xff]
        %v8764 = vld [vmem:[#allocation3 + $0x18] sm:$0xff]
        %v8765 = vld [vmem:[#allocation3 + $0x20] sm:$0xff]
        %v8766 = vld [vmem:[#allocation3 + $0x28] sm:$0xff]
        %v8767 = vld [vmem:[#allocation3 + $0x30] sm:$0xff]
        %v8768 = vld [vmem:[#allocation3 + $0x38] sm:$0xff]
        %v8769 = vld [vmem:[#allocation3 + $0x40] sm:$0xff]
        %v8770 = vld [vmem:[#allocation3 + $0x48] sm:$0xff]
        %v8771 = vld [vmem:[#allocation3 + $0x50] sm:$0xff]
        %v8772 = vld [vmem:[#allocation3 + $0x58] sm:$0xff]
        %v8773 = vld [vmem:[#allocation3 + $0x60] sm:$0xff]
        %v8774 = vld [vmem:[#allocation3 + $0x68] sm:$0xff]
        %v8775 = vld [vmem:[#allocation3 + $0x70] sm:$0xff]
        %v8776 = vld [vmem:[#allocation3 + $0x78] sm:$0xff]
        %v8777 = vld [vmem:[#allocation3 + $0x80] sm:$0xff]
        %v8778 = vld [vmem:[#allocation3 + $0x88] sm:$0xff]
        %v8779 = vld [vmem:[#allocation3 + $0x90] sm:$0xff]
        %v8780 = vld [vmem:[#allocation3 + $0x98] sm:$0xff]
        %v8781 = vld [vmem:[#allocation3 + $0xa0] sm:$0xff]
        %v8782 = vld [vmem:[#allocation3 + $0xa8] sm:$0xff]
        %v8783 = vld [vmem:[#allocation3 + $0xb0] sm:$0xff]
        %v8784 = vld [vmem:[#allocation3 + $0xb8] sm:$0xff]
        %v8785 = vld [vmem:[#allocation3 + $0xc0] sm:$0xff]
        %v8786 = vld [vmem:[#allocation3 + $0xc8] sm:$0xff]
        %v8787 = vld [vmem:[#allocation3 + $0xd0] sm:$0xff]
        %v8788 = vld [vmem:[#allocation3 + $0xd8] sm:$0xff]
        %v8789 = vld [vmem:[#allocation3 + $0xe0] sm:$0xff]
        %v8790 = vld [vmem:[#allocation3 + $0xe8] sm:$0xff]
        %v8791 = vld [vmem:[#allocation3 + $0xf0] sm:$0xff]
        %v8792 = vld [vmem:[#allocation3 + $0xf8] sm:$0xff]
        %v8793 = vld [vmem:[#allocation3 + $0x100] sm:$0xff]
        %v8794 = vld [vmem:[#allocation3 + $0x108] sm:$0xff]
        %v8795 = vld [vmem:[#allocation3 + $0x110] sm:$0xff]
        %v8796 = vld [vmem:[#allocation3 + $0x118] sm:$0xff]
        %v8797 = vld [vmem:[#allocation3 + $0x120] sm:$0xff]
        %v8798 = vld [vmem:[#allocation3 + $0x128] sm:$0xff]
        %v8799 = vld [vmem:[#allocation3 + $0x130] sm:$0xff]
        %v8800 = vld [vmem:[#allocation3 + $0x138] sm:$0xff]
        %v8801 = vld [vmem:[#allocation3 + $0x140] sm:$0xff]
        %v8802 = vld [vmem:[#allocation3 + $0x148] sm:$0xff]
        %v8803 = vld [vmem:[#allocation3 + $0x150] sm:$0xff]
        %v8804 = vld [vmem:[#allocation3 + $0x158] sm:$0xff]
        %v8805 = vld [vmem:[#allocation3 + $0x160] sm:$0xff]
        %v8806 = vld [vmem:[#allocation3 + $0x168] sm:$0xff]
        %v8807 = vld [vmem:[#allocation3 + $0x170] sm:$0xff]
        %v8808 = vld [vmem:[#allocation3 + $0x178] sm:$0xff]
        %v8809 = vld [vmem:[#allocation3 + $0x180] sm:$0xff]
        %v8810 = vld [vmem:[#allocation3 + $0x188] sm:$0xff]
        %v8811 = vld [vmem:[#allocation3 + $0x190] sm:$0xff]
        %v8812 = vld [vmem:[#allocation3 + $0x198] sm:$0xff]
        %v8813 = vld [vmem:[#allocation3 + $0x1a0] sm:$0xff]
        %v8814 = vld [vmem:[#allocation3 + $0x1a8] sm:$0xff]
        %v8815 = vld [vmem:[#allocation3 + $0x1b0] sm:$0xff]
        %v8816 = vld [vmem:[#allocation3 + $0x1b8] sm:$0xff]
        %v8817 = vld [vmem:[#allocation3 + $0x1c0] sm:$0xff]
        %v8818 = vld [vmem:[#allocation3 + $0x1c8] sm:$0xff]
        %v8819 = vld [vmem:[#allocation3 + $0x1d0] sm:$0xff]
        %v8820 = vld [vmem:[#allocation3 + $0x1d8] sm:$0xff]
        %v8821 = vadd.f32 %v8761, %v8613
        %v8822 = vadd.f32 %v8762, %v8615
        %v8823 = vadd.f32 %v8763, %v8617
        %v8824 = vadd.f32 %v8764, %v8619
        %v8825 = vadd.f32 %v8765, %v8623
        %v8826 = vadd.f32 %v8766, %v8625
        %v8827 = vadd.f32 %v8767, %v8627
        %v8828 = vadd.f32 %v8768, %v8629
        %v8829 = vadd.f32 %v8769, %v8633
        %v8830 = vadd.f32 %v8770, %v8635
        %v8831 = vadd.f32 %v8771, %v8637
        %v8832 = vadd.f32 %v8772, %v8639
        %v8833 = vadd.f32 %v8773, %v8643
        %v8834 = vadd.f32 %v8774, %v8645
        %v8835 = vadd.f32 %v8775, %v8647
        %v8836 = vadd.f32 %v8776, %v8649
        %v8837 = vadd.f32 %v8777, %v8653
        %v8838 = vadd.f32 %v8778, %v8655
        %v8839 = vadd.f32 %v8779, %v8657
        %v8840 = vadd.f32 %v8780, %v8659
        %v8841 = vadd.f32 %v8781, %v8663
        %v8842 = vadd.f32 %v8782, %v8665
        %v8843 = vadd.f32 %v8783, %v8667
        %v8844 = vadd.f32 %v8784, %v8669
        %v8845 = vadd.f32 %v8785, %v8673
        %v8846 = vadd.f32 %v8786, %v8675
        %v8847 = vadd.f32 %v8787, %v8677
        %v8848 = vadd.f32 %v8788, %v8679
        %v8849 = vadd.f32 %v8789, %v8683
        %v8850 = vadd.f32 %v8790, %v8685
        %v8851 = vadd.f32 %v8791, %v8687
        %v8852 = vadd.f32 %v8792, %v8689
        %v8853 = vadd.f32 %v8793, %v8693
        %v8854 = vadd.f32 %v8794, %v8695
        %v8855 = vadd.f32 %v8795, %v8697
        %v8856 = vadd.f32 %v8796, %v8699
        %v8857 = vadd.f32 %v8797, %v8703
        %v8858 = vadd.f32 %v8798, %v8705
        %v8859 = vadd.f32 %v8799, %v8707
        %v8860 = vadd.f32 %v8800, %v8709
        %v8861 = vadd.f32 %v8801, %v8713
        %v8862 = vadd.f32 %v8802, %v8715
        %v8863 = vadd.f32 %v8803, %v8717
        %v8864 = vadd.f32 %v8804, %v8719
        %v8865 = vadd.f32 %v8805, %v8723
        %v8866 = vadd.f32 %v8806, %v8725
        %v8867 = vadd.f32 %v8807, %v8727
        %v8868 = vadd.f32 %v8808, %v8729
        %v8869 = vadd.f32 %v8809, %v8733
        %v8870 = vadd.f32 %v8810, %v8735
        %v8871 = vadd.f32 %v8811, %v8737
        %v8872 = vadd.f32 %v8812, %v8739
        %v8873 = vadd.f32 %v8813, %v8743
        %v8874 = vadd.f32 %v8814, %v8745
        %v8875 = vadd.f32 %v8815, %v8747
        %v8876 = vadd.f32 %v8816, %v8749
        %v8877 = vadd.f32 %v8817, %v8753
        %v8878 = vadd.f32 %v8818, %v8755
        %v8879 = vadd.f32 %v8819, %v8757
        %v8880 = vadd.f32 %v8820, %v8759
        %8881 = vst [vmem:[#allocation3] sm:$0xff] %v8821
        %8882 = vst [vmem:[#allocation3 + $0x8] sm:$0xff] %v8822
        %8883 = vst [vmem:[#allocation3 + $0x10] sm:$0xff] %v8823
        %8884 = vst [vmem:[#allocation3 + $0x18] sm:$0xff] %v8824
        %8885 = vst [vmem:[#allocation3 + $0x20] sm:$0xff] %v8825
        %8886 = vst [vmem:[#allocation3 + $0x28] sm:$0xff] %v8826
        %8887 = vst [vmem:[#allocation3 + $0x30] sm:$0xff] %v8827
        %8888 = vst [vmem:[#allocation3 + $0x38] sm:$0xff] %v8828
        %8889 = vst [vmem:[#allocation3 + $0x40] sm:$0xff] %v8829
        %8890 = vst [vmem:[#allocation3 + $0x48] sm:$0xff] %v8830
        %8891 = vst [vmem:[#allocation3 + $0x50] sm:$0xff] %v8831
        %8892 = vst [vmem:[#allocation3 + $0x58] sm:$0xff] %v8832
        %8893 = vst [vmem:[#allocation3 + $0x60] sm:$0xff] %v8833
        %8894 = vst [vmem:[#allocation3 + $0x68] sm:$0xff] %v8834
        %8895 = vst [vmem:[#allocation3 + $0x70] sm:$0xff] %v8835
        %8896 = vst [vmem:[#allocation3 + $0x78] sm:$0xff] %v8836
        %8897 = vst [vmem:[#allocation3 + $0x80] sm:$0xff] %v8837
        %8898 = vst [vmem:[#allocation3 + $0x88] sm:$0xff] %v8838
        %8899 = vst [vmem:[#allocation3 + $0x90] sm:$0xff] %v8839
        %8900 = vst [vmem:[#allocation3 + $0x98] sm:$0xff] %v8840
        %8901 = vst [vmem:[#allocation3 + $0xa0] sm:$0xff] %v8841
        %8902 = vst [vmem:[#allocation3 + $0xa8] sm:$0xff] %v8842
        %8903 = vst [vmem:[#allocation3 + $0xb0] sm:$0xff] %v8843
        %8904 = vst [vmem:[#allocation3 + $0xb8] sm:$0xff] %v8844
        %8905 = vst [vmem:[#allocation3 + $0xc0] sm:$0xff] %v8845
        %8906 = vst [vmem:[#allocation3 + $0xc8] sm:$0xff] %v8846
        %8907 = vst [vmem:[#allocation3 + $0xd0] sm:$0xff] %v8847
        %8908 = vst [vmem:[#allocation3 + $0xd8] sm:$0xff] %v8848
        %8909 = vst [vmem:[#allocation3 + $0xe0] sm:$0xff] %v8849
        %8910 = vst [vmem:[#allocation3 + $0xe8] sm:$0xff] %v8850
        %8911 = vst [vmem:[#allocation3 + $0xf0] sm:$0xff] %v8851
        %8912 = vst [vmem:[#allocation3 + $0xf8] sm:$0xff] %v8852
        %8913 = vst [vmem:[#allocation3 + $0x100] sm:$0xff] %v8853
        %8914 = vst [vmem:[#allocation3 + $0x108] sm:$0xff] %v8854
        %8915 = vst [vmem:[#allocation3 + $0x110] sm:$0xff] %v8855
        %8916 = vst [vmem:[#allocation3 + $0x118] sm:$0xff] %v8856
        %8917 = vst [vmem:[#allocation3 + $0x120] sm:$0xff] %v8857
        %8918 = vst [vmem:[#allocation3 + $0x128] sm:$0xff] %v8858
        %8919 = vst [vmem:[#allocation3 + $0x130] sm:$0xff] %v8859
        %8920 = vst [vmem:[#allocation3 + $0x138] sm:$0xff] %v8860
        %8921 = vst [vmem:[#allocation3 + $0x140] sm:$0xff] %v8861
        %8922 = vst [vmem:[#allocation3 + $0x148] sm:$0xff] %v8862
        %8923 = vst [vmem:[#allocation3 + $0x150] sm:$0xff] %v8863
        %8924 = vst [vmem:[#allocation3 + $0x158] sm:$0xff] %v8864
        %8925 = vst [vmem:[#allocation3 + $0x160] sm:$0xff] %v8865
        %8926 = vst [vmem:[#allocation3 + $0x168] sm:$0xff] %v8866
        %8927 = vst [vmem:[#allocation3 + $0x170] sm:$0xff] %v8867
        %8928 = vst [vmem:[#allocation3 + $0x178] sm:$0xff] %v8868
        %8929 = vst [vmem:[#allocation3 + $0x180] sm:$0xff] %v8869
        %8930 = vst [vmem:[#allocation3 + $0x188] sm:$0xff] %v8870
        %8931 = vst [vmem:[#allocation3 + $0x190] sm:$0xff] %v8871
        %8932 = vst [vmem:[#allocation3 + $0x198] sm:$0xff] %v8872
        %8933 = vst [vmem:[#allocation3 + $0x1a0] sm:$0xff] %v8873
        %8934 = vst [vmem:[#allocation3 + $0x1a8] sm:$0xff] %v8874
        %8935 = vst [vmem:[#allocation3 + $0x1b0] sm:$0xff] %v8875
        %8936 = vst [vmem:[#allocation3 + $0x1b8] sm:$0xff] %v8876
        %8937 = vst [vmem:[#allocation3 + $0x1c0] sm:$0xff] %v8877
        %8938 = vst [vmem:[#allocation3 + $0x1c8] sm:$0xff] %v8878
        %8939 = vst [vmem:[#allocation3 + $0x1d0] sm:$0xff] %v8879
        %8940 = vst [vmem:[#allocation3 + $0x1d8] sm:$0xff] %v8880
        %v8941 = vld [vmem:[#allocation3] sm:$0xff]
        %v8942 = vld [vmem:[#allocation3 + $0x10] sm:$0xff]
        %v8943 = vld [vmem:[#allocation3 + $0x20] sm:$0xff]
        %v8944 = vld [vmem:[#allocation3 + $0x30] sm:$0xff]
        %v8945 = vld [vmem:[#allocation3 + $0x40] sm:$0xff]
        %v8946 = vld [vmem:[#allocation3 + $0x50] sm:$0xff]
        %v8947 = vld [vmem:[#allocation3 + $0x60] sm:$0xff]
        %v8948 = vld [vmem:[#allocation3 + $0x70] sm:$0xff]
        %v8949 = vld [vmem:[#allocation3 + $0x80] sm:$0xff]
        %v8950 = vld [vmem:[#allocation3 + $0x90] sm:$0xff]
        %v8951 = vld [vmem:[#allocation3 + $0xa0] sm:$0xff]
        %v8952 = vld [vmem:[#allocation3 + $0xb0] sm:$0xff]
        %v8953 = vld [vmem:[#allocation3 + $0xc0] sm:$0xff]
        %v8954 = vld [vmem:[#allocation3 + $0xd0] sm:$0xff]
        %v8955 = vld [vmem:[#allocation3 + $0xe0] sm:$0xff]
        %v8956 = vld [vmem:[#allocation3 + $0xf0] sm:$0xff]
        %v8957 = vld [vmem:[#allocation3 + $0x100] sm:$0xff]
        %v8958 = vld [vmem:[#allocation3 + $0x110] sm:$0xff]
        %v8959 = vld [vmem:[#allocation3 + $0x120] sm:$0xff]
        %v8960 = vld [vmem:[#allocation3 + $0x130] sm:$0xff]
        %v8961 = vld [vmem:[#allocation3 + $0x140] sm:$0xff]
        %v8962 = vld [vmem:[#allocation3 + $0x150] sm:$0xff]
        %v8963 = vld [vmem:[#allocation3 + $0x160] sm:$0xff]
        %v8964 = vld [vmem:[#allocation3 + $0x170] sm:$0xff]
        %v8965 = vld [vmem:[#allocation3 + $0x180] sm:$0xff]
        %v8966 = vld [vmem:[#allocation3 + $0x190] sm:$0xff]
        %v8967 = vld [vmem:[#allocation3 + $0x1a0] sm:$0xff]
        %v8968 = vld [vmem:[#allocation3 + $0x1b0] sm:$0xff]
        %v8969 = vld [vmem:[#allocation3 + $0x1c0] sm:$0xff]
        %v8970 = vld [vmem:[#allocation3 + $0x1d0] sm:$0xff]
        %v8971 = vld [vmem:[#allocation3 + $0x8] sm:$0xff]
        %v8972 = vld [vmem:[#allocation3 + $0x18] sm:$0xff]
        %v8973 = vld [vmem:[#allocation3 + $0x28] sm:$0xff]
        %v8974 = vld [vmem:[#allocation3 + $0x38] sm:$0xff]
        %v8975 = vld [vmem:[#allocation3 + $0x48] sm:$0xff]
        %v8976 = vld [vmem:[#allocation3 + $0x58] sm:$0xff]
        %v8977 = vld [vmem:[#allocation3 + $0x68] sm:$0xff]
        %v8978 = vld [vmem:[#allocation3 + $0x78] sm:$0xff]
        %v8979 = vld [vmem:[#allocation3 + $0x88] sm:$0xff]
        %v8980 = vld [vmem:[#allocation3 + $0x98] sm:$0xff]
        %v8981 = vld [vmem:[#allocation3 + $0xa8] sm:$0xff]
        %v8982 = vld [vmem:[#allocation3 + $0xb8] sm:$0xff]
        %v8983 = vld [vmem:[#allocation3 + $0xc8] sm:$0xff]
        %v8984 = vld [vmem:[#allocation3 + $0xd8] sm:$0xff]
        %v8985 = vld [vmem:[#allocation3 + $0xe8] sm:$0xff]
        %v8986 = vld [vmem:[#allocation3 + $0xf8] sm:$0xff]
        %v8987 = vld [vmem:[#allocation3 + $0x108] sm:$0xff]
        %v8988 = vld [vmem:[#allocation3 + $0x118] sm:$0xff]
        %v8989 = vld [vmem:[#allocation3 + $0x128] sm:$0xff]
        %v8990 = vld [vmem:[#allocation3 + $0x138] sm:$0xff]
        %v8991 = vld [vmem:[#allocation3 + $0x148] sm:$0xff]
        %v8992 = vld [vmem:[#allocation3 + $0x158] sm:$0xff]
        %v8993 = vld [vmem:[#allocation3 + $0x168] sm:$0xff]
        %v8994 = vld [vmem:[#allocation3 + $0x178] sm:$0xff]
        %v8995 = vld [vmem:[#allocation3 + $0x188] sm:$0xff]
        %v8996 = vld [vmem:[#allocation3 + $0x198] sm:$0xff]
        %v8997 = vld [vmem:[#allocation3 + $0x1a8] sm:$0xff]
        %v8998 = vld [vmem:[#allocation3 + $0x1b8] sm:$0xff]
        %v8999 = vld [vmem:[#allocation3 + $0x1c8] sm:$0xff]
        %v9000 = vld [vmem:[#allocation3 + $0x1d8] sm:$0xff]
        %v9001 = vmul.f32 %v8941, 0.5
        %v9002 = vmul.f32 %v8942, 0.5
        %v9003 = vmul.f32 %v8943, 0.5
        %v9004 = vmul.f32 %v8944, 0.5
        %v9005 = vmul.f32 %v8945, 0.5
        %v9006 = vmul.f32 %v8946, 0.5
        %v9007 = vmul.f32 %v8947, 0.5
        %v9008 = vmul.f32 %v8948, 0.5
        %v9009 = vmul.f32 %v8949, 0.5
        %v9010 = vmul.f32 %v8950, 0.5
        %v9011 = vmul.f32 %v8951, 0.5
        %v9012 = vmul.f32 %v8952, 0.5
        %v9013 = vmul.f32 %v8953, 0.5
        %v9014 = vmul.f32 %v8954, 0.5
        %v9015 = vmul.f32 %v8955, 0.5
        %v9016 = vmul.f32 %v8956, 0.5
        %v9017 = vmul.f32 %v8957, 0.5
        %v9018 = vmul.f32 %v8958, 0.5
        %v9019 = vmul.f32 %v8959, 0.5
        %v9020 = vmul.f32 %v8960, 0.5
        %v9021 = vmul.f32 %v8961, 0.5
        %v9022 = vmul.f32 %v8962, 0.5
        %v9023 = vmul.f32 %v8963, 0.5
        %v9024 = vmul.f32 %v8964, 0.5
        %v9025 = vmul.f32 %v8965, 0.5
        %v9026 = vmul.f32 %v8966, 0.5
        %v9027 = vmul.f32 %v8967, 0.5
        %v9028 = vmul.f32 %v8968, 0.5
        %v9029 = vmul.f32 %v8969, 0.5
        %v9030 = vmul.f32 %v8970, 0.5
        %v9031 = vmul.f32 %v8941, 0.70710677
        %v9032 = vmul.f32 %v8942, 0.70710677
        %v9033 = vmul.f32 %v8943, 0.70710677
        %v9034 = vmul.f32 %v8944, 0.70710677
        %v9035 = vmul.f32 %v8945, 0.70710677
        %v9036 = vmul.f32 %v8946, 0.70710677
        %v9037 = vmul.f32 %v8947, 0.70710677
        %v9038 = vmul.f32 %v8948, 0.70710677
        %v9039 = vmul.f32 %v8949, 0.70710677
        %v9040 = vmul.f32 %v8950, 0.70710677
        %v9041 = vmul.f32 %v8951, 0.70710677
        %v9042 = vmul.f32 %v8952, 0.70710677
        %v9043 = vmul.f32 %v8953, 0.70710677
        %v9044 = vmul.f32 %v8954, 0.70710677
        %v9045 = vmul.f32 %v8955, 0.70710677
        %v9046 = vmul.f32 %v8956, 0.70710677
        %v9047 = vmul.f32 %v8957, 0.70710677
        %v9048 = vmul.f32 %v8958, 0.70710677
        %v9049 = vmul.f32 %v8959, 0.70710677
        %v9050 = vmul.f32 %v8960, 0.70710677
        %v9051 = vmul.f32 %v8961, 0.70710677
        %v9052 = vmul.f32 %v8962, 0.70710677
        %v9053 = vmul.f32 %v8963, 0.70710677
        %v9054 = vmul.f32 %v8964, 0.70710677
        %v9055 = vmul.f32 %v8965, 0.70710677
        %v9056 = vmul.f32 %v8966, 0.70710677
        %v9057 = vmul.f32 %v8967, 0.70710677
        %v9058 = vmul.f32 %v8968, 0.70710677
        %v9059 = vmul.f32 %v8969, 0.70710677
        %v9060 = vmul.f32 %v8970, 0.70710677
        %vm9061 = vcmp.ge.f32.partialorder %v9031, 0.0
        %vm9062 = vcmp.ge.f32.partialorder %v9032, 0.0
        %vm9063 = vcmp.ge.f32.partialorder %v9033, 0.0
        %vm9064 = vcmp.ge.f32.partialorder %v9034, 0.0
        %vm9065 = vcmp.ge.f32.partialorder %v9035, 0.0
        %vm9066 = vcmp.ge.f32.partialorder %v9036, 0.0
        %vm9067 = vcmp.ge.f32.partialorder %v9037, 0.0
        %vm9068 = vcmp.ge.f32.partialorder %v9038, 0.0
        %vm9069 = vcmp.ge.f32.partialorder %v9039, 0.0
        %vm9070 = vcmp.ge.f32.partialorder %v9040, 0.0
        %vm9071 = vcmp.ge.f32.partialorder %v9041, 0.0
        %vm9072 = vcmp.ge.f32.partialorder %v9042, 0.0
        %vm9073 = vcmp.ge.f32.partialorder %v9043, 0.0
        %vm9074 = vcmp.ge.f32.partialorder %v9044, 0.0
        %vm9075 = vcmp.ge.f32.partialorder %v9045, 0.0
        %vm9076 = vcmp.ge.f32.partialorder %v9046, 0.0
        %vm9077 = vcmp.ge.f32.partialorder %v9047, 0.0
        %vm9078 = vcmp.ge.f32.partialorder %v9048, 0.0
        %vm9079 = vcmp.ge.f32.partialorder %v9049, 0.0
        %vm9080 = vcmp.ge.f32.partialorder %v9050, 0.0
        %vm9081 = vcmp.ge.f32.partialorder %v9051, 0.0
        %vm9082 = vcmp.ge.f32.partialorder %v9052, 0.0
        %vm9083 = vcmp.ge.f32.partialorder %v9053, 0.0
        %vm9084 = vcmp.ge.f32.partialorder %v9054, 0.0
        %vm9085 = vcmp.ge.f32.partialorder %v9055, 0.0
        %vm9086 = vcmp.ge.f32.partialorder %v9056, 0.0
        %vm9087 = vcmp.ge.f32.partialorder %v9057, 0.0
        %vm9088 = vcmp.ge.f32.partialorder %v9058, 0.0
        %vm9089 = vcmp.ge.f32.partialorder %v9059, 0.0
        %vm9090 = vcmp.ge.f32.partialorder %v9060, 0.0
        %v9091 = vsel %vm9061, 1.0, -1.0
        %v9092 = vsel %vm9062, 1.0, -1.0
        %v9093 = vsel %vm9063, 1.0, -1.0
        %v9094 = vsel %vm9064, 1.0, -1.0
        %v9095 = vsel %vm9065, 1.0, -1.0
        %v9096 = vsel %vm9066, 1.0, -1.0
        %v9097 = vsel %vm9067, 1.0, -1.0
        %v9098 = vsel %vm9068, 1.0, -1.0
        %v9099 = vsel %vm9069, 1.0, -1.0
        %v9100 = vsel %vm9070, 1.0, -1.0
        %v9101 = vsel %vm9071, 1.0, -1.0
        %v9102 = vsel %vm9072, 1.0, -1.0
        %v9103 = vsel %vm9073, 1.0, -1.0
        %v9104 = vsel %vm9074, 1.0, -1.0
        %v9105 = vsel %vm9075, 1.0, -1.0
        %v9106 = vsel %vm9076, 1.0, -1.0
        %v9107 = vsel %vm9077, 1.0, -1.0
        %v9108 = vsel %vm9078, 1.0, -1.0
        %v9109 = vsel %vm9079, 1.0, -1.0
        %v9110 = vsel %vm9080, 1.0, -1.0
        %v9111 = vsel %vm9081, 1.0, -1.0
        %v9112 = vsel %vm9082, 1.0, -1.0
        %v9113 = vsel %vm9083, 1.0, -1.0
        %v9114 = vsel %vm9084, 1.0, -1.0
        %v9115 = vsel %vm9085, 1.0, -1.0
        %v9116 = vsel %vm9086, 1.0, -1.0
        %v9117 = vsel %vm9087, 1.0, -1.0
        %v9118 = vsel %vm9088, 1.0, -1.0
        %v9119 = vsel %vm9089, 1.0, -1.0
        %v9120 = vsel %vm9090, 1.0, -1.0
        %v9121 = vand.u32 2147483647, %v9031
        %v9122 = vand.u32 2147483647, %v9032
        %v9123 = vand.u32 2147483647, %v9033
        %v9124 = vand.u32 2147483647, %v9034
        %v9125 = vand.u32 2147483647, %v9035
        %v9126 = vand.u32 2147483647, %v9036
        %v9127 = vand.u32 2147483647, %v9037
        %v9128 = vand.u32 2147483647, %v9038
        %v9129 = vand.u32 2147483647, %v9039
        %v9130 = vand.u32 2147483647, %v9040
        %v9131 = vand.u32 2147483647, %v9041
        %v9132 = vand.u32 2147483647, %v9042
        %v9133 = vand.u32 2147483647, %v9043
        %v9134 = vand.u32 2147483647, %v9044
        %v9135 = vand.u32 2147483647, %v9045
        %v9136 = vand.u32 2147483647, %v9046
        %v9137 = vand.u32 2147483647, %v9047
        %v9138 = vand.u32 2147483647, %v9048
        %v9139 = vand.u32 2147483647, %v9049
        %v9140 = vand.u32 2147483647, %v9050
        %v9141 = vand.u32 2147483647, %v9051
        %v9142 = vand.u32 2147483647, %v9052
        %v9143 = vand.u32 2147483647, %v9053
        %v9144 = vand.u32 2147483647, %v9054
        %v9145 = vand.u32 2147483647, %v9055
        %v9146 = vand.u32 2147483647, %v9056
        %v9147 = vand.u32 2147483647, %v9057
        %v9148 = vand.u32 2147483647, %v9058
        %v9149 = vand.u32 2147483647, %v9059
        %v9150 = vand.u32 2147483647, %v9060
        %v9151 = vmul.f32 %v9121, 0.3275911
        %v9152 = vmul.f32 %v9122, 0.3275911
        %v9153 = vmul.f32 %v9123, 0.3275911
        %v9154 = vmul.f32 %v9124, 0.3275911
        %v9155 = vmul.f32 %v9125, 0.3275911
        %v9156 = vmul.f32 %v9126, 0.3275911
        %v9157 = vmul.f32 %v9127, 0.3275911
        %v9158 = vmul.f32 %v9128, 0.3275911
        %v9159 = vmul.f32 %v9129, 0.3275911
        %v9160 = vmul.f32 %v9130, 0.3275911
        %v9161 = vmul.f32 %v9131, 0.3275911
        %v9162 = vmul.f32 %v9132, 0.3275911
        %v9163 = vmul.f32 %v9133, 0.3275911
        %v9164 = vmul.f32 %v9134, 0.3275911
        %v9165 = vmul.f32 %v9135, 0.3275911
        %v9166 = vmul.f32 %v9136, 0.3275911
        %v9167 = vmul.f32 %v9137, 0.3275911
        %v9168 = vmul.f32 %v9138, 0.3275911
        %v9169 = vmul.f32 %v9139, 0.3275911
        %v9170 = vmul.f32 %v9140, 0.3275911
        %v9171 = vmul.f32 %v9141, 0.3275911
        %v9172 = vmul.f32 %v9142, 0.3275911
        %v9173 = vmul.f32 %v9143, 0.3275911
        %v9174 = vmul.f32 %v9144, 0.3275911
        %v9175 = vmul.f32 %v9145, 0.3275911
        %v9176 = vmul.f32 %v9146, 0.3275911
        %v9177 = vmul.f32 %v9147, 0.3275911
        %v9178 = vmul.f32 %v9148, 0.3275911
        %v9179 = vmul.f32 %v9149, 0.3275911
        %v9180 = vmul.f32 %v9150, 0.3275911
        %v9181 = vadd.f32 %v9151, 1.0
        %v9182 = vadd.f32 %v9152, 1.0
        %v9183 = vadd.f32 %v9153, 1.0
        %v9184 = vadd.f32 %v9154, 1.0
        %v9185 = vadd.f32 %v9155, 1.0
        %v9186 = vadd.f32 %v9156, 1.0
        %v9187 = vadd.f32 %v9157, 1.0
        %v9188 = vadd.f32 %v9158, 1.0
        %v9189 = vadd.f32 %v9159, 1.0
        %v9190 = vadd.f32 %v9160, 1.0
        %v9191 = vadd.f32 %v9161, 1.0
        %v9192 = vadd.f32 %v9162, 1.0
        %v9193 = vadd.f32 %v9163, 1.0
        %v9194 = vadd.f32 %v9164, 1.0
        %v9195 = vadd.f32 %v9165, 1.0
        %v9196 = vadd.f32 %v9166, 1.0
        %v9197 = vadd.f32 %v9167, 1.0
        %v9198 = vadd.f32 %v9168, 1.0
        %v9199 = vadd.f32 %v9169, 1.0
        %v9200 = vadd.f32 %v9170, 1.0
        %v9201 = vadd.f32 %v9171, 1.0
        %v9202 = vadd.f32 %v9172, 1.0
        %v9203 = vadd.f32 %v9173, 1.0
        %v9204 = vadd.f32 %v9174, 1.0
        %v9205 = vadd.f32 %v9175, 1.0
        %v9206 = vadd.f32 %v9176, 1.0
        %v9207 = vadd.f32 %v9177, 1.0
        %v9208 = vadd.f32 %v9178, 1.0
        %v9209 = vadd.f32 %v9179, 1.0
        %v9210 = vadd.f32 %v9180, 1.0
        %v9211 = vrcp.pop %v9181
        %v9212 = vrcp.pop %v9182
        %v9213 = vrcp.pop %v9183
        %v9214 = vrcp.pop %v9184
        %v9215 = vrcp.pop %v9185
        %v9216 = vrcp.pop %v9186
        %v9217 = vrcp.pop %v9187
        %v9218 = vrcp.pop %v9188
        %v9219 = vrcp.pop %v9189
        %v9220 = vrcp.pop %v9190
        %v9221 = vrcp.pop %v9191
        %v9222 = vrcp.pop %v9192
        %v9223 = vrcp.pop %v9193
        %v9224 = vrcp.pop %v9194
        %v9225 = vrcp.pop %v9195
        %v9226 = vrcp.pop %v9196
        %v9227 = vrcp.pop %v9197
        %v9228 = vrcp.pop %v9198
        %v9229 = vrcp.pop %v9199
        %v9230 = vrcp.pop %v9200
        %v9231 = vrcp.pop %v9201
        %v9232 = vrcp.pop %v9202
        %v9233 = vrcp.pop %v9203
        %v9234 = vrcp.pop %v9204
        %v9235 = vrcp.pop %v9205
        %v9236 = vrcp.pop %v9206
        %v9237 = vrcp.pop %v9207
        %v9238 = vrcp.pop %v9208
        %v9239 = vrcp.pop %v9209
        %v9240 = vrcp.pop %v9210
        %v9241 = vmul.f32 %v9211, 1.0614054
        %v9242 = vmul.f32 %v9212, 1.0614054
        %v9243 = vmul.f32 %v9213, 1.0614054
        %v9244 = vmul.f32 %v9214, 1.0614054
        %v9245 = vmul.f32 %v9215, 1.0614054
        %v9246 = vmul.f32 %v9216, 1.0614054
        %v9247 = vmul.f32 %v9217, 1.0614054
        %v9248 = vmul.f32 %v9218, 1.0614054
        %v9249 = vmul.f32 %v9219, 1.0614054
        %v9250 = vmul.f32 %v9220, 1.0614054
        %v9251 = vmul.f32 %v9221, 1.0614054
        %v9252 = vmul.f32 %v9222, 1.0614054
        %v9253 = vmul.f32 %v9223, 1.0614054
        %v9254 = vmul.f32 %v9224, 1.0614054
        %v9255 = vmul.f32 %v9225, 1.0614054
        %v9256 = vmul.f32 %v9226, 1.0614054
        %v9257 = vmul.f32 %v9227, 1.0614054
        %v9258 = vmul.f32 %v9228, 1.0614054
        %v9259 = vmul.f32 %v9229, 1.0614054
        %v9260 = vmul.f32 %v9230, 1.0614054
        %v9261 = vmul.f32 %v9231, 1.0614054
        %v9262 = vmul.f32 %v9232, 1.0614054
        %v9263 = vmul.f32 %v9233, 1.0614054
        %v9264 = vmul.f32 %v9234, 1.0614054
        %v9265 = vmul.f32 %v9235, 1.0614054
        %v9266 = vmul.f32 %v9236, 1.0614054
        %v9267 = vmul.f32 %v9237, 1.0614054
        %v9268 = vmul.f32 %v9238, 1.0614054
        %v9269 = vmul.f32 %v9239, 1.0614054
        %v9270 = vmul.f32 %v9240, 1.0614054
        %v9271 = vadd.f32 %v9241, -1.4531521
        %v9272 = vadd.f32 %v9242, -1.4531521
        %v9273 = vadd.f32 %v9243, -1.4531521
        %v9274 = vadd.f32 %v9244, -1.4531521
        %v9275 = vadd.f32 %v9245, -1.4531521
        %v9276 = vadd.f32 %v9246, -1.4531521
        %v9277 = vadd.f32 %v9247, -1.4531521
        %v9278 = vadd.f32 %v9248, -1.4531521
        %v9279 = vadd.f32 %v9249, -1.4531521
        %v9280 = vadd.f32 %v9250, -1.4531521
        %v9281 = vadd.f32 %v9251, -1.4531521
        %v9282 = vadd.f32 %v9252, -1.4531521
        %v9283 = vadd.f32 %v9253, -1.4531521
        %v9284 = vadd.f32 %v9254, -1.4531521
        %v9285 = vadd.f32 %v9255, -1.4531521
        %v9286 = vadd.f32 %v9256, -1.4531521
        %v9287 = vadd.f32 %v9257, -1.4531521
        %v9288 = vadd.f32 %v9258, -1.4531521
        %v9289 = vadd.f32 %v9259, -1.4531521
        %v9290 = vadd.f32 %v9260, -1.4531521
        %v9291 = vadd.f32 %v9261, -1.4531521
        %v9292 = vadd.f32 %v9262, -1.4531521
        %v9293 = vadd.f32 %v9263, -1.4531521
        %v9294 = vadd.f32 %v9264, -1.4531521
        %v9295 = vadd.f32 %v9265, -1.4531521
        %v9296 = vadd.f32 %v9266, -1.4531521
        %v9297 = vadd.f32 %v9267, -1.4531521
        %v9298 = vadd.f32 %v9268, -1.4531521
        %v9299 = vadd.f32 %v9269, -1.4531521
        %v9300 = vadd.f32 %v9270, -1.4531521
        %v9301 = vmul.f32 %v9271, %v9211
        %v9302 = vmul.f32 %v9272, %v9212
        %v9303 = vmul.f32 %v9273, %v9213
        %v9304 = vmul.f32 %v9274, %v9214
        %v9305 = vmul.f32 %v9275, %v9215
        %v9306 = vmul.f32 %v9276, %v9216
        %v9307 = vmul.f32 %v9277, %v9217
        %v9308 = vmul.f32 %v9278, %v9218
        %v9309 = vmul.f32 %v9279, %v9219
        %v9310 = vmul.f32 %v9280, %v9220
        %v9311 = vmul.f32 %v9281, %v9221
        %v9312 = vmul.f32 %v9282, %v9222
        %v9313 = vmul.f32 %v9283, %v9223
        %v9314 = vmul.f32 %v9284, %v9224
        %v9315 = vmul.f32 %v9285, %v9225
        %v9316 = vmul.f32 %v9286, %v9226
        %v9317 = vmul.f32 %v9287, %v9227
        %v9318 = vmul.f32 %v9288, %v9228
        %v9319 = vmul.f32 %v9289, %v9229
        %v9320 = vmul.f32 %v9290, %v9230
        %v9321 = vmul.f32 %v9291, %v9231
        %v9322 = vmul.f32 %v9292, %v9232
        %v9323 = vmul.f32 %v9293, %v9233
        %v9324 = vmul.f32 %v9294, %v9234
        %v9325 = vmul.f32 %v9295, %v9235
        %v9326 = vmul.f32 %v9296, %v9236
        %v9327 = vmul.f32 %v9297, %v9237
        %v9328 = vmul.f32 %v9298, %v9238
        %v9329 = vmul.f32 %v9299, %v9239
        %v9330 = vmul.f32 %v9300, %v9240
        %v9331 = vadd.f32 %v9301, 1.4214138
        %v9332 = vadd.f32 %v9302, 1.4214138
        %v9333 = vadd.f32 %v9303, 1.4214138
        %v9334 = vadd.f32 %v9304, 1.4214138
        %v9335 = vadd.f32 %v9305, 1.4214138
        %v9336 = vadd.f32 %v9306, 1.4214138
        %v9337 = vadd.f32 %v9307, 1.4214138
        %v9338 = vadd.f32 %v9308, 1.4214138
        %v9339 = vadd.f32 %v9309, 1.4214138
        %v9340 = vadd.f32 %v9310, 1.4214138
        %v9341 = vadd.f32 %v9311, 1.4214138
        %v9342 = vadd.f32 %v9312, 1.4214138
        %v9343 = vadd.f32 %v9313, 1.4214138
        %v9344 = vadd.f32 %v9314, 1.4214138
        %v9345 = vadd.f32 %v9315, 1.4214138
        %v9346 = vadd.f32 %v9316, 1.4214138
        %v9347 = vadd.f32 %v9317, 1.4214138
        %v9348 = vadd.f32 %v9318, 1.4214138
        %v9349 = vadd.f32 %v9319, 1.4214138
        %v9350 = vadd.f32 %v9320, 1.4214138
        %v9351 = vadd.f32 %v9321, 1.4214138
        %v9352 = vadd.f32 %v9322, 1.4214138
        %v9353 = vadd.f32 %v9323, 1.4214138
        %v9354 = vadd.f32 %v9324, 1.4214138
        %v9355 = vadd.f32 %v9325, 1.4214138
        %v9356 = vadd.f32 %v9326, 1.4214138
        %v9357 = vadd.f32 %v9327, 1.4214138
        %v9358 = vadd.f32 %v9328, 1.4214138
        %v9359 = vadd.f32 %v9329, 1.4214138
        %v9360 = vadd.f32 %v9330, 1.4214138
        %v9361 = vmul.f32 %v9331, %v9211
        %v9362 = vmul.f32 %v9332, %v9212
        %v9363 = vmul.f32 %v9333, %v9213
        %v9364 = vmul.f32 %v9334, %v9214
        %v9365 = vmul.f32 %v9335, %v9215
        %v9366 = vmul.f32 %v9336, %v9216
        %v9367 = vmul.f32 %v9337, %v9217
        %v9368 = vmul.f32 %v9338, %v9218
        %v9369 = vmul.f32 %v9339, %v9219
        %v9370 = vmul.f32 %v9340, %v9220
        %v9371 = vmul.f32 %v9341, %v9221
        %v9372 = vmul.f32 %v9342, %v9222
        %v9373 = vmul.f32 %v9343, %v9223
        %v9374 = vmul.f32 %v9344, %v9224
        %v9375 = vmul.f32 %v9345, %v9225
        %v9376 = vmul.f32 %v9346, %v9226
        %v9377 = vmul.f32 %v9347, %v9227
        %v9378 = vmul.f32 %v9348, %v9228
        %v9379 = vmul.f32 %v9349, %v9229
        %v9380 = vmul.f32 %v9350, %v9230
        %v9381 = vmul.f32 %v9351, %v9231
        %v9382 = vmul.f32 %v9352, %v9232
        %v9383 = vmul.f32 %v9353, %v9233
        %v9384 = vmul.f32 %v9354, %v9234
        %v9385 = vmul.f32 %v9355, %v9235
        %v9386 = vmul.f32 %v9356, %v9236
        %v9387 = vmul.f32 %v9357, %v9237
        %v9388 = vmul.f32 %v9358, %v9238
        %v9389 = vmul.f32 %v9359, %v9239
        %v9390 = vmul.f32 %v9360, %v9240
        %v9391 = vadd.f32 %v9361, -0.28449672
        %v9392 = vadd.f32 %v9362, -0.28449672
        %v9393 = vadd.f32 %v9363, -0.28449672
        %v9394 = vadd.f32 %v9364, -0.28449672
        %v9395 = vadd.f32 %v9365, -0.28449672
        %v9396 = vadd.f32 %v9366, -0.28449672
        %v9397 = vadd.f32 %v9367, -0.28449672
        %v9398 = vadd.f32 %v9368, -0.28449672
        %v9399 = vadd.f32 %v9369, -0.28449672
        %v9400 = vadd.f32 %v9370, -0.28449672
        %v9401 = vadd.f32 %v9371, -0.28449672
        %v9402 = vadd.f32 %v9372, -0.28449672
        %v9403 = vadd.f32 %v9373, -0.28449672
        %v9404 = vadd.f32 %v9374, -0.28449672
        %v9405 = vadd.f32 %v9375, -0.28449672
        %v9406 = vadd.f32 %v9376, -0.28449672
        %v9407 = vadd.f32 %v9377, -0.28449672
        %v9408 = vadd.f32 %v9378, -0.28449672
        %v9409 = vadd.f32 %v9379, -0.28449672
        %v9410 = vadd.f32 %v9380, -0.28449672
        %v9411 = vadd.f32 %v9381, -0.28449672
        %v9412 = vadd.f32 %v9382, -0.28449672
        %v9413 = vadd.f32 %v9383, -0.28449672
        %v9414 = vadd.f32 %v9384, -0.28449672
        %v9415 = vadd.f32 %v9385, -0.28449672
        %v9416 = vadd.f32 %v9386, -0.28449672
        %v9417 = vadd.f32 %v9387, -0.28449672
        %v9418 = vadd.f32 %v9388, -0.28449672
        %v9419 = vadd.f32 %v9389, -0.28449672
        %v9420 = vadd.f32 %v9390, -0.28449672
        %v9421 = vmul.f32 %v9391, %v9211
        %v9422 = vmul.f32 %v9392, %v9212
        %v9423 = vmul.f32 %v9393, %v9213
        %v9424 = vmul.f32 %v9394, %v9214
        %v9425 = vmul.f32 %v9395, %v9215
        %v9426 = vmul.f32 %v9396, %v9216
        %v9427 = vmul.f32 %v9397, %v9217
        %v9428 = vmul.f32 %v9398, %v9218
        %v9429 = vmul.f32 %v9399, %v9219
        %v9430 = vmul.f32 %v9400, %v9220
        %v9431 = vmul.f32 %v9401, %v9221
        %v9432 = vmul.f32 %v9402, %v9222
        %v9433 = vmul.f32 %v9403, %v9223
        %v9434 = vmul.f32 %v9404, %v9224
        %v9435 = vmul.f32 %v9405, %v9225
        %v9436 = vmul.f32 %v9406, %v9226
        %v9437 = vmul.f32 %v9407, %v9227
        %v9438 = vmul.f32 %v9408, %v9228
        %v9439 = vmul.f32 %v9409, %v9229
        %v9440 = vmul.f32 %v9410, %v9230
        %v9441 = vmul.f32 %v9411, %v9231
        %v9442 = vmul.f32 %v9412, %v9232
        %v9443 = vmul.f32 %v9413, %v9233
        %v9444 = vmul.f32 %v9414, %v9234
        %v9445 = vmul.f32 %v9415, %v9235
        %v9446 = vmul.f32 %v9416, %v9236
        %v9447 = vmul.f32 %v9417, %v9237
        %v9448 = vmul.f32 %v9418, %v9238
        %v9449 = vmul.f32 %v9419, %v9239
        %v9450 = vmul.f32 %v9420, %v9240
        %v9451 = vadd.f32 %v9421, 0.2548296
        %v9452 = vadd.f32 %v9422, 0.2548296
        %v9453 = vadd.f32 %v9423, 0.2548296
        %v9454 = vadd.f32 %v9424, 0.2548296
        %v9455 = vadd.f32 %v9425, 0.2548296
        %v9456 = vadd.f32 %v9426, 0.2548296
        %v9457 = vadd.f32 %v9427, 0.2548296
        %v9458 = vadd.f32 %v9428, 0.2548296
        %v9459 = vadd.f32 %v9429, 0.2548296
        %v9460 = vadd.f32 %v9430, 0.2548296
        %v9461 = vadd.f32 %v9431, 0.2548296
        %v9462 = vadd.f32 %v9432, 0.2548296
        %v9463 = vadd.f32 %v9433, 0.2548296
        %v9464 = vadd.f32 %v9434, 0.2548296
        %v9465 = vadd.f32 %v9435, 0.2548296
        %v9466 = vadd.f32 %v9436, 0.2548296
        %v9467 = vadd.f32 %v9437, 0.2548296
        %v9468 = vadd.f32 %v9438, 0.2548296
        %v9469 = vadd.f32 %v9439, 0.2548296
        %v9470 = vadd.f32 %v9440, 0.2548296
        %v9471 = vadd.f32 %v9441, 0.2548296
        %v9472 = vadd.f32 %v9442, 0.2548296
        %v9473 = vadd.f32 %v9443, 0.2548296
        %v9474 = vadd.f32 %v9444, 0.2548296
        %v9475 = vadd.f32 %v9445, 0.2548296
        %v9476 = vadd.f32 %v9446, 0.2548296
        %v9477 = vadd.f32 %v9447, 0.2548296
        %v9478 = vadd.f32 %v9448, 0.2548296
        %v9479 = vadd.f32 %v9449, 0.2548296
        %v9480 = vadd.f32 %v9450, 0.2548296
        %v9481 = vmul.f32 %v9451, %v9211
        %v9482 = vmul.f32 %v9452, %v9212
        %v9483 = vmul.f32 %v9453, %v9213
        %v9484 = vmul.f32 %v9454, %v9214
        %v9485 = vmul.f32 %v9455, %v9215
        %v9486 = vmul.f32 %v9456, %v9216
        %v9487 = vmul.f32 %v9457, %v9217
        %v9488 = vmul.f32 %v9458, %v9218
        %v9489 = vmul.f32 %v9459, %v9219
        %v9490 = vmul.f32 %v9460, %v9220
        %v9491 = vmul.f32 %v9461, %v9221
        %v9492 = vmul.f32 %v9462, %v9222
        %v9493 = vmul.f32 %v9463, %v9223
        %v9494 = vmul.f32 %v9464, %v9224
        %v9495 = vmul.f32 %v9465, %v9225
        %v9496 = vmul.f32 %v9466, %v9226
        %v9497 = vmul.f32 %v9467, %v9227
        %v9498 = vmul.f32 %v9468, %v9228
        %v9499 = vmul.f32 %v9469, %v9229
        %v9500 = vmul.f32 %v9470, %v9230
        %v9501 = vmul.f32 %v9471, %v9231
        %v9502 = vmul.f32 %v9472, %v9232
        %v9503 = vmul.f32 %v9473, %v9233
        %v9504 = vmul.f32 %v9474, %v9234
        %v9505 = vmul.f32 %v9475, %v9235
        %v9506 = vmul.f32 %v9476, %v9236
        %v9507 = vmul.f32 %v9477, %v9237
        %v9508 = vmul.f32 %v9478, %v9238
        %v9509 = vmul.f32 %v9479, %v9239
        %v9510 = vmul.f32 %v9480, %v9240
        %v9511 = vsub.f32 0.0, %v9121
        %v9512 = vsub.f32 0.0, %v9122
        %v9513 = vsub.f32 0.0, %v9123
        %v9514 = vsub.f32 0.0, %v9124
        %v9515 = vsub.f32 0.0, %v9125
        %v9516 = vsub.f32 0.0, %v9126
        %v9517 = vsub.f32 0.0, %v9127
        %v9518 = vsub.f32 0.0, %v9128
        %v9519 = vsub.f32 0.0, %v9129
        %v9520 = vsub.f32 0.0, %v9130
        %v9521 = vsub.f32 0.0, %v9131
        %v9522 = vsub.f32 0.0, %v9132
        %v9523 = vsub.f32 0.0, %v9133
        %v9524 = vsub.f32 0.0, %v9134
        %v9525 = vsub.f32 0.0, %v9135
        %v9526 = vsub.f32 0.0, %v9136
        %v9527 = vsub.f32 0.0, %v9137
        %v9528 = vsub.f32 0.0, %v9138
        %v9529 = vsub.f32 0.0, %v9139
        %v9530 = vsub.f32 0.0, %v9140
        %v9531 = vsub.f32 0.0, %v9141
        %v9532 = vsub.f32 0.0, %v9142
        %v9533 = vsub.f32 0.0, %v9143
        %v9534 = vsub.f32 0.0, %v9144
        %v9535 = vsub.f32 0.0, %v9145
        %v9536 = vsub.f32 0.0, %v9146
        %v9537 = vsub.f32 0.0, %v9147
        %v9538 = vsub.f32 0.0, %v9148
        %v9539 = vsub.f32 0.0, %v9149
        %v9540 = vsub.f32 0.0, %v9150
        %v9541 = vmul.f32 %v9511, %v9121
        %v9542 = vmul.f32 %v9512, %v9122
        %v9543 = vmul.f32 %v9513, %v9123
        %v9544 = vmul.f32 %v9514, %v9124
        %v9545 = vmul.f32 %v9515, %v9125
        %v9546 = vmul.f32 %v9516, %v9126
        %v9547 = vmul.f32 %v9517, %v9127
        %v9548 = vmul.f32 %v9518, %v9128
        %v9549 = vmul.f32 %v9519, %v9129
        %v9550 = vmul.f32 %v9520, %v9130
        %v9551 = vmul.f32 %v9521, %v9131
        %v9552 = vmul.f32 %v9522, %v9132
        %v9553 = vmul.f32 %v9523, %v9133
        %v9554 = vmul.f32 %v9524, %v9134
        %v9555 = vmul.f32 %v9525, %v9135
        %v9556 = vmul.f32 %v9526, %v9136
        %v9557 = vmul.f32 %v9527, %v9137
        %v9558 = vmul.f32 %v9528, %v9138
        %v9559 = vmul.f32 %v9529, %v9139
        %v9560 = vmul.f32 %v9530, %v9140
        %v9561 = vmul.f32 %v9531, %v9141
        %v9562 = vmul.f32 %v9532, %v9142
        %v9563 = vmul.f32 %v9533, %v9143
        %v9564 = vmul.f32 %v9534, %v9144
        %v9565 = vmul.f32 %v9535, %v9145
        %v9566 = vmul.f32 %v9536, %v9146
        %v9567 = vmul.f32 %v9537, %v9147
        %v9568 = vmul.f32 %v9538, %v9148
        %v9569 = vmul.f32 %v9539, %v9149
        %v9570 = vmul.f32 %v9540, %v9150
        %v9571 = vmul.f32 %v9541, 1.442695
        %v9572 = vpow.pop %v9571
        %v9573 = vmul.f32 %v9542, 1.442695
        %v9574 = vpow.pop %v9573
        %v9575 = vmul.f32 %v9543, 1.442695
        %v9576 = vpow.pop %v9575
        %v9577 = vmul.f32 %v9544, 1.442695
        %v9578 = vpow.pop %v9577
        %v9579 = vmul.f32 %v9545, 1.442695
        %v9580 = vpow.pop %v9579
        %v9581 = vmul.f32 %v9546, 1.442695
        %v9582 = vpow.pop %v9581
        %v9583 = vmul.f32 %v9547, 1.442695
        %v9584 = vpow.pop %v9583
        %v9585 = vmul.f32 %v9548, 1.442695
        %v9586 = vpow.pop %v9585
        %v9587 = vmul.f32 %v9549, 1.442695
        %v9588 = vpow.pop %v9587
        %v9589 = vmul.f32 %v9550, 1.442695
        %v9590 = vpow.pop %v9589
        %v9591 = vmul.f32 %v9551, 1.442695
        %v9592 = vpow.pop %v9591
        %v9593 = vmul.f32 %v9552, 1.442695
        %v9594 = vpow.pop %v9593
        %v9595 = vmul.f32 %v9553, 1.442695
        %v9596 = vpow.pop %v9595
        %v9597 = vmul.f32 %v9554, 1.442695
        %v9598 = vpow.pop %v9597
        %v9599 = vmul.f32 %v9555, 1.442695
        %v9600 = vpow.pop %v9599
        %v9601 = vmul.f32 %v9556, 1.442695
        %v9602 = vpow.pop %v9601
        %v9603 = vmul.f32 %v9557, 1.442695
        %v9604 = vpow.pop %v9603
        %v9605 = vmul.f32 %v9558, 1.442695
        %v9606 = vpow.pop %v9605
        %v9607 = vmul.f32 %v9559, 1.442695
        %v9608 = vpow.pop %v9607
        %v9609 = vmul.f32 %v9560, 1.442695
        %v9610 = vpow.pop %v9609
        %v9611 = vmul.f32 %v9561, 1.442695
        %v9612 = vpow.pop %v9611
        %v9613 = vmul.f32 %v9562, 1.442695
        %v9614 = vpow.pop %v9613
        %v9615 = vmul.f32 %v9563, 1.442695
        %v9616 = vpow.pop %v9615
        %v9617 = vmul.f32 %v9564, 1.442695
        %v9618 = vpow.pop %v9617
        %v9619 = vmul.f32 %v9565, 1.442695
        %v9620 = vpow.pop %v9619
        %v9621 = vmul.f32 %v9566, 1.442695
        %v9622 = vpow.pop %v9621
        %v9623 = vmul.f32 %v9567, 1.442695
        %v9624 = vpow.pop %v9623
        %v9625 = vmul.f32 %v9568, 1.442695
        %v9626 = vpow.pop %v9625
        %v9627 = vmul.f32 %v9569, 1.442695
        %v9628 = vpow.pop %v9627
        %v9629 = vmul.f32 %v9570, 1.442695
        %v9630 = vpow.pop %v9629
        %v9631 = vmul.f32 %v9481, %v9572
        %v9632 = vmul.f32 %v9482, %v9574
        %v9633 = vmul.f32 %v9483, %v9576
        %v9634 = vmul.f32 %v9484, %v9578
        %v9635 = vmul.f32 %v9485, %v9580
        %v9636 = vmul.f32 %v9486, %v9582
        %v9637 = vmul.f32 %v9487, %v9584
        %v9638 = vmul.f32 %v9488, %v9586
        %v9639 = vmul.f32 %v9489, %v9588
        %v9640 = vmul.f32 %v9490, %v9590
        %v9641 = vmul.f32 %v9491, %v9592
        %v9642 = vmul.f32 %v9492, %v9594
        %v9643 = vmul.f32 %v9493, %v9596
        %v9644 = vmul.f32 %v9494, %v9598
        %v9645 = vmul.f32 %v9495, %v9600
        %v9646 = vmul.f32 %v9496, %v9602
        %v9647 = vmul.f32 %v9497, %v9604
        %v9648 = vmul.f32 %v9498, %v9606
        %v9649 = vmul.f32 %v9499, %v9608
        %v9650 = vmul.f32 %v9500, %v9610
        %v9651 = vmul.f32 %v9501, %v9612
        %v9652 = vmul.f32 %v9502, %v9614
        %v9653 = vmul.f32 %v9503, %v9616
        %v9654 = vmul.f32 %v9504, %v9618
        %v9655 = vmul.f32 %v9505, %v9620
        %v9656 = vmul.f32 %v9506, %v9622
        %v9657 = vmul.f32 %v9507, %v9624
        %v9658 = vmul.f32 %v9508, %v9626
        %v9659 = vmul.f32 %v9509, %v9628
        %v9660 = vmul.f32 %v9510, %v9630
        %v9661 = vsub.f32 1.0, %v9631
        %v9662 = vsub.f32 1.0, %v9632
        %v9663 = vsub.f32 1.0, %v9633
        %v9664 = vsub.f32 1.0, %v9634
        %v9665 = vsub.f32 1.0, %v9635
        %v9666 = vsub.f32 1.0, %v9636
        %v9667 = vsub.f32 1.0, %v9637
        %v9668 = vsub.f32 1.0, %v9638
        %v9669 = vsub.f32 1.0, %v9639
        %v9670 = vsub.f32 1.0, %v9640
        %v9671 = vsub.f32 1.0, %v9641
        %v9672 = vsub.f32 1.0, %v9642
        %v9673 = vsub.f32 1.0, %v9643
        %v9674 = vsub.f32 1.0, %v9644
        %v9675 = vsub.f32 1.0, %v9645
        %v9676 = vsub.f32 1.0, %v9646
        %v9677 = vsub.f32 1.0, %v9647
        %v9678 = vsub.f32 1.0, %v9648
        %v9679 = vsub.f32 1.0, %v9649
        %v9680 = vsub.f32 1.0, %v9650
        %v9681 = vsub.f32 1.0, %v9651
        %v9682 = vsub.f32 1.0, %v9652
        %v9683 = vsub.f32 1.0, %v9653
        %v9684 = vsub.f32 1.0, %v9654
        %v9685 = vsub.f32 1.0, %v9655
        %v9686 = vsub.f32 1.0, %v9656
        %v9687 = vsub.f32 1.0, %v9657
        %v9688 = vsub.f32 1.0, %v9658
        %v9689 = vsub.f32 1.0, %v9659
        %v9690 = vsub.f32 1.0, %v9660
        %v9691 = vmul.f32 %v9091, %v9661
        %v9692 = vmul.f32 %v9092, %v9662
        %v9693 = vmul.f32 %v9093, %v9663
        %v9694 = vmul.f32 %v9094, %v9664
        %v9695 = vmul.f32 %v9095, %v9665
        %v9696 = vmul.f32 %v9096, %v9666
        %v9697 = vmul.f32 %v9097, %v9667
        %v9698 = vmul.f32 %v9098, %v9668
        %v9699 = vmul.f32 %v9099, %v9669
        %v9700 = vmul.f32 %v9100, %v9670
        %v9701 = vmul.f32 %v9101, %v9671
        %v9702 = vmul.f32 %v9102, %v9672
        %v9703 = vmul.f32 %v9103, %v9673
        %v9704 = vmul.f32 %v9104, %v9674
        %v9705 = vmul.f32 %v9105, %v9675
        %v9706 = vmul.f32 %v9106, %v9676
        %v9707 = vmul.f32 %v9107, %v9677
        %v9708 = vmul.f32 %v9108, %v9678
        %v9709 = vmul.f32 %v9109, %v9679
        %v9710 = vmul.f32 %v9110, %v9680
        %v9711 = vmul.f32 %v9111, %v9681
        %v9712 = vmul.f32 %v9112, %v9682
        %v9713 = vmul.f32 %v9113, %v9683
        %v9714 = vmul.f32 %v9114, %v9684
        %v9715 = vmul.f32 %v9115, %v9685
        %v9716 = vmul.f32 %v9116, %v9686
        %v9717 = vmul.f32 %v9117, %v9687
        %v9718 = vmul.f32 %v9118, %v9688
        %v9719 = vmul.f32 %v9119, %v9689
        %v9720 = vmul.f32 %v9120, %v9690
        %v9721 = vadd.f32 %v9691, 1.0
        %v9722 = vadd.f32 %v9692, 1.0
        %v9723 = vadd.f32 %v9693, 1.0
        %v9724 = vadd.f32 %v9694, 1.0
        %v9725 = vadd.f32 %v9695, 1.0
        %v9726 = vadd.f32 %v9696, 1.0
        %v9727 = vadd.f32 %v9697, 1.0
        %v9728 = vadd.f32 %v9698, 1.0
        %v9729 = vadd.f32 %v9699, 1.0
        %v9730 = vadd.f32 %v9700, 1.0
        %v9731 = vadd.f32 %v9701, 1.0
        %v9732 = vadd.f32 %v9702, 1.0
        %v9733 = vadd.f32 %v9703, 1.0
        %v9734 = vadd.f32 %v9704, 1.0
        %v9735 = vadd.f32 %v9705, 1.0
        %v9736 = vadd.f32 %v9706, 1.0
        %v9737 = vadd.f32 %v9707, 1.0
        %v9738 = vadd.f32 %v9708, 1.0
        %v9739 = vadd.f32 %v9709, 1.0
        %v9740 = vadd.f32 %v9710, 1.0
        %v9741 = vadd.f32 %v9711, 1.0
        %v9742 = vadd.f32 %v9712, 1.0
        %v9743 = vadd.f32 %v9713, 1.0
        %v9744 = vadd.f32 %v9714, 1.0
        %v9745 = vadd.f32 %v9715, 1.0
        %v9746 = vadd.f32 %v9716, 1.0
        %v9747 = vadd.f32 %v9717, 1.0
        %v9748 = vadd.f32 %v9718, 1.0
        %v9749 = vadd.f32 %v9719, 1.0
        %v9750 = vadd.f32 %v9720, 1.0
        %v9751 = vmul.f32 %v9001, %v9721
        %v9752 = vmul.f32 %v9002, %v9722
        %v9753 = vmul.f32 %v9003, %v9723
        %v9754 = vmul.f32 %v9004, %v9724
        %v9755 = vmul.f32 %v9005, %v9725
        %v9756 = vmul.f32 %v9006, %v9726
        %v9757 = vmul.f32 %v9007, %v9727
        %v9758 = vmul.f32 %v9008, %v9728
        %v9759 = vmul.f32 %v9009, %v9729
        %v9760 = vmul.f32 %v9010, %v9730
        %v9761 = vmul.f32 %v9011, %v9731
        %v9762 = vmul.f32 %v9012, %v9732
        %v9763 = vmul.f32 %v9013, %v9733
        %v9764 = vmul.f32 %v9014, %v9734
        %v9765 = vmul.f32 %v9015, %v9735
        %v9766 = vmul.f32 %v9016, %v9736
        %v9767 = vmul.f32 %v9017, %v9737
        %v9768 = vmul.f32 %v9018, %v9738
        %v9769 = vmul.f32 %v9019, %v9739
        %v9770 = vmul.f32 %v9020, %v9740
        %v9771 = vmul.f32 %v9021, %v9741
        %v9772 = vmul.f32 %v9022, %v9742
        %v9773 = vmul.f32 %v9023, %v9743
        %v9774 = vmul.f32 %v9024, %v9744
        %v9775 = vmul.f32 %v9025, %v9745
        %v9776 = vmul.f32 %v9026, %v9746
        %v9777 = vmul.f32 %v9027, %v9747
        %v9778 = vmul.f32 %v9028, %v9748
        %v9779 = vmul.f32 %v9029, %v9749
        %v9780 = vmul.f32 %v9030, %v9750
        %v9781 = vmul.f32 %v9751, %v8971
        %v9782 = vmul.f32 %v9752, %v8972
        %v9783 = vmul.f32 %v9753, %v8973
        %v9784 = vmul.f32 %v9754, %v8974
        %v9785 = vmul.f32 %v9755, %v8975
        %v9786 = vmul.f32 %v9756, %v8976
        %v9787 = vmul.f32 %v9757, %v8977
        %v9788 = vmul.f32 %v9758, %v8978
        %v9789 = vmul.f32 %v9759, %v8979
        %v9790 = vmul.f32 %v9760, %v8980
        %v9791 = vmul.f32 %v9761, %v8981
        %v9792 = vmul.f32 %v9762, %v8982
        %v9793 = vmul.f32 %v9763, %v8983
        %v9794 = vmul.f32 %v9764, %v8984
        %v9795 = vmul.f32 %v9765, %v8985
        %v9796 = vmul.f32 %v9766, %v8986
        %v9797 = vmul.f32 %v9767, %v8987
        %v9798 = vmul.f32 %v9768, %v8988
        %v9799 = vmul.f32 %v9769, %v8989
        %v9800 = vmul.f32 %v9770, %v8990
        %v9801 = vmul.f32 %v9771, %v8991
        %v9802 = vmul.f32 %v9772, %v8992
        %v9803 = vmul.f32 %v9773, %v8993
        %v9804 = vmul.f32 %v9774, %v8994
        %v9805 = vmul.f32 %v9775, %v8995
        %v9806 = vmul.f32 %v9776, %v8996
        %v9807 = vmul.f32 %v9777, %v8997
        %v9808 = vmul.f32 %v9778, %v8998
        %v9809 = vmul.f32 %v9779, %v8999
        %v9810 = vmul.f32 %v9780, %v9000
        %v9811 = vpack.c.bf16 %v9782, %v9781
        %v9812 = vpack.c.bf16 %v9784, %v9783
        %v9813 = vpack.c.bf16 %v9786, %v9785
        %v9814 = vpack.c.bf16 %v9788, %v9787
        %v9815 = vpack.c.bf16 %v9790, %v9789
        %v9816 = vpack.c.bf16 %v9792, %v9791
        %v9817 = vpack.c.bf16 %v9794, %v9793
        %v9818 = vpack.c.bf16 %v9796, %v9795
        %v9819 = vpack.c.bf16 %v9798, %v9797
        %v9820 = vpack.c.bf16 %v9800, %v9799
        %v9821 = vpack.c.bf16 %v9802, %v9801
        %v9822 = vpack.c.bf16 %v9804, %v9803
        %v9823 = vpack.c.bf16 %v9806, %v9805
        %v9824 = vpack.c.bf16 %v9808, %v9807
        %v9825 = vpack.c.bf16 %v9810, %v9809
        %v9826 = vld [vmem:[#allocation13] sm:$0xf]
        %v9827 = vld [vmem:[#allocation13 + $0x4] sm:$0xf]
        %v9828 = vld [vmem:[#allocation13 + $0x8] sm:$0xf]
        %v9829 = vld [vmem:[#allocation13 + $0xc] sm:$0xf]
        %v9830 = vld [vmem:[#allocation13 + $0x10] sm:$0xf]
        %v9831 = vld [vmem:[#allocation13 + $0x14] sm:$0xf]
        %v9832 = vld [vmem:[#allocation13 + $0x18] sm:$0xf]
        %v9833 = vld [vmem:[#allocation13 + $0x1c] sm:$0xf]
        %v9834 = vld [vmem:[#allocation13 + $0x20] sm:$0xf]
        %v9835 = vld [vmem:[#allocation13 + $0x24] sm:$0xf]
        %v9836 = vld [vmem:[#allocation13 + $0x28] sm:$0xf]
        %v9837 = vld [vmem:[#allocation13 + $0x2c] sm:$0xf]
        %v9838 = vld [vmem:[#allocation13 + $0x30] sm:$0xf]
        %v9839 = vld [vmem:[#allocation13 + $0x34] sm:$0xf]
        %v9840 = vld [vmem:[#allocation13 + $0x38] sm:$0xf]
        %v9841 = vld [vmem:[#allocation13 + $0x3c] sm:$0xf]
        %v9858 = vunpack.c.l.b16 %v9826
        %v9859 = vunpack.c.l.b16 %v9827
        %v9860 = vunpack.c.l.b16 %v9828
        %v9861 = vunpack.c.l.b16 %v9829
        %v9862 = vunpack.c.l.b16 %v9830
        %v9863 = vunpack.c.l.b16 %v9831
        %v9864 = vunpack.c.l.b16 %v9832
        %v9865 = vunpack.c.l.b16 %v9833
        %v9866 = vunpack.c.l.b16 %v9834
        %v9867 = vunpack.c.l.b16 %v9835
        %v9868 = vunpack.c.l.b16 %v9836
        %v9869 = vunpack.c.l.b16 %v9837
        %v9870 = vunpack.c.l.b16 %v9838
        %v9871 = vunpack.c.l.b16 %v9839
        %v9872 = vunpack.c.l.b16 %v9840
        %v9873 = vunpack.c.l.b16 %v9841
        %v9874 = vpack.c.b16 %v9859, %v9858
        %v9875 = vpack.c.b16 %v9861, %v9860
        %v9876 = vpack.c.b16 %v9863, %v9862
        %v9877 = vpack.c.b16 %v9865, %v9864
        %v9878 = vpack.c.b16 %v9867, %v9866
        %v9879 = vpack.c.b16 %v9869, %v9868
        %v9880 = vpack.c.b16 %v9871, %v9870
        %v9881 = vpack.c.b16 %v9873, %v9872
        %9890 = vmatprep.subr.bf16.mxu0 0
        %9891 = vmatpush1.bf16.msra.mxu0 %v9874
        %9892 = vmatprep.subr.bf16.mxu0 0
        %9893 = vmatpush1.bf16.msra.mxu0 %v9875
        %9894 = vmatprep.subr.bf16.mxu0 0
        %9895 = vmatpush1.bf16.msra.mxu0 %v9876
        %9896 = vmatprep.subr.bf16.mxu0 0
        %9897 = vmatpush1.bf16.msra.mxu0 %v9877
        %9898 = vmatprep.subr.bf16.mxu0 0
        %9899 = vmatpush1.bf16.msra.mxu0 %v9878
        %9900 = vmatprep.subr.bf16.mxu0 0
        %9901 = vmatpush1.bf16.msra.mxu0 %v9879
        %9902 = vmatprep.subr.bf16.mxu0 0
        %9903 = vmatpush1.bf16.msra.mxu0 %v9880
        %9904 = vmatprep.subr.bf16.mxu0 0
        %9905 = vmatpush1.bf16.msra.mxu0 %v9881
        %9906 = vmatprep.subr.bf16.mxu0 0
        %9907 = vmatpush1.bf16.msra.mxu0 0
        %9908 = vmatprep.subr.bf16.mxu0 0
        %9909 = vmatpush1.bf16.msra.mxu0 0
        %9910 = vmatprep.subr.bf16.mxu0 0
        %9911 = vmatpush1.bf16.msra.mxu0 0
        %9912 = vmatprep.subr.bf16.mxu0 0
        %9913 = vmatpush1.bf16.msra.mxu0 0
        %9914 = vmatprep.subr.bf16.mxu0 0
        %9915 = vmatpush1.bf16.msra.mxu0 0
        %9916 = vmatprep.subr.bf16.mxu0 0
        %9917 = vmatpush1.bf16.msra.mxu0 0
        %9918 = vmatprep.subr.bf16.mxu0 0
        %9919 = vmatpush1.bf16.msra.mxu0 0
        %9920 = vmatprep.subr.bf16.mxu0 0
        %9921 = vmatpush1.bf16.msra.mxu0 0
        %9922 = vmatprep.mubr.bf16.mxu0 0
        %9923 = vmatmul.mubr.bf16.gmra.mrb[0].mxu0 %v9811
        %v9924 = vpop.f32.mrb[0].mxu0
        %v9925 = vadd.f32 0.0, %v9924
        %v9926 = vpop.f32.mrb[0].mxu0
        %v9927 = vpop.f32.mrb[0].mxu0
        %v9928 = vadd.f32 0.0, %v9927
        %v9929 = vpop.f32.mrb[0].mxu0
        %9930 = vmatprep.mubr.bf16.mxu0 0
        %9931 = vmatmul.mubr.bf16.gmra.mrb[0].mxu0 %v9812
        %v9932 = vpop.f32.mrb[0].mxu0
        %v9933 = vadd.f32 0.0, %v9932
        %v9934 = vpop.f32.mrb[0].mxu0
        %v9935 = vpop.f32.mrb[0].mxu0
        %v9936 = vadd.f32 0.0, %v9935
        %v9937 = vpop.f32.mrb[0].mxu0
        %9938 = vmatprep.mubr.bf16.mxu0 0
        %9939 = vmatmul.mubr.bf16.gmra.mrb[0].mxu0 %v9813
        %v9940 = vpop.f32.mrb[0].mxu0
        %v9941 = vadd.f32 0.0, %v9940
        %v9942 = vpop.f32.mrb[0].mxu0
        %v9943 = vpop.f32.mrb[0].mxu0
        %v9944 = vadd.f32 0.0, %v9943
        %v9945 = vpop.f32.mrb[0].mxu0
        %9946 = vmatprep.mubr.bf16.mxu0 0
        %9947 = vmatmul.mubr.bf16.gmra.mrb[0].mxu0 %v9814
        %v9948 = vpop.f32.mrb[0].mxu0
        %v9949 = vadd.f32 0.0, %v9948
        %v9950 = vpop.f32.mrb[0].mxu0
        %v9951 = vpop.f32.mrb[0].mxu0
        %v9952 = vadd.f32 0.0, %v9951
        %v9953 = vpop.f32.mrb[0].mxu0
        %9954 = vmatprep.mubr.bf16.mxu0 0
        %9955 = vmatmul.mubr.bf16.gmra.mrb[0].mxu0 %v9815
        %v9956 = vpop.f32.mrb[0].mxu0
        %v9957 = vadd.f32 0.0, %v9956
        %v9958 = vpop.f32.mrb[0].mxu0
        %v9959 = vpop.f32.mrb[0].mxu0
        %v9960 = vadd.f32 0.0, %v9959
        %v9961 = vpop.f32.mrb[0].mxu0
        %9962 = vmatprep.mubr.bf16.mxu0 0
        %9963 = vmatmul.mubr.bf16.gmra.mrb[0].mxu0 %v9816
        %v9964 = vpop.f32.mrb[0].mxu0
        %v9965 = vadd.f32 0.0, %v9964
        %v9966 = vpop.f32.mrb[0].mxu0
        %v9967 = vpop.f32.mrb[0].mxu0
        %v9968 = vadd.f32 0.0, %v9967
        %v9969 = vpop.f32.mrb[0].mxu0
        %9970 = vmatprep.mubr.bf16.mxu0 0
        %9971 = vmatmul.mubr.bf16.gmra.mrb[0].mxu0 %v9817
        %v9972 = vpop.f32.mrb[0].mxu0
        %v9973 = vadd.f32 0.0, %v9972
        %v9974 = vpop.f32.mrb[0].mxu0
        %v9975 = vpop.f32.mrb[0].mxu0
        %v9976 = vadd.f32 0.0, %v9975
        %v9977 = vpop.f32.mrb[0].mxu0
        %9978 = vmatprep.mubr.bf16.mxu0 0
        %9979 = vmatmul.mubr.bf16.gmra.mrb[0].mxu0 %v9818
        %v9980 = vpop.f32.mrb[0].mxu0
        %v9981 = vadd.f32 0.0, %v9980
        %v9982 = vpop.f32.mrb[0].mxu0
        %v9983 = vpop.f32.mrb[0].mxu0
        %v9984 = vadd.f32 0.0, %v9983
        %v9985 = vpop.f32.mrb[0].mxu0
        %9986 = vmatprep.mubr.bf16.mxu0 0
        %9987 = vmatmul.mubr.bf16.gmra.mrb[0].mxu0 %v9819
        %v9988 = vpop.f32.mrb[0].mxu0
        %v9989 = vadd.f32 0.0, %v9988
        %v9990 = vpop.f32.mrb[0].mxu0
        %v9991 = vpop.f32.mrb[0].mxu0
        %v9992 = vadd.f32 0.0, %v9991
        %v9993 = vpop.f32.mrb[0].mxu0
        %9994 = vmatprep.mubr.bf16.mxu0 0
        %9995 = vmatmul.mubr.bf16.gmra.mrb[0].mxu0 %v9820
        %v9996 = vpop.f32.mrb[0].mxu0
        %v9997 = vadd.f32 0.0, %v9996
        %v9998 = vpop.f32.mrb[0].mxu0
        %v9999 = vpop.f32.mrb[0].mxu0
        %v10000 = vadd.f32 0.0, %v9999
        %v10001 = vpop.f32.mrb[0].mxu0
        %10002 = vmatprep.mubr.bf16.mxu0 0
        %10003 = vmatmul.mubr.bf16.gmra.mrb[0].mxu0 %v9821
        %v10004 = vpop.f32.mrb[0].mxu0
        %v10005 = vadd.f32 0.0, %v10004
        %v10006 = vpop.f32.mrb[0].mxu0
        %v10007 = vpop.f32.mrb[0].mxu0
        %v10008 = vadd.f32 0.0, %v10007
        %v10009 = vpop.f32.mrb[0].mxu0
        %10010 = vmatprep.mubr.bf16.mxu0 0
        %10011 = vmatmul.mubr.bf16.gmra.mrb[0].mxu0 %v9822
        %v10012 = vpop.f32.mrb[0].mxu0
        %v10013 = vadd.f32 0.0, %v10012
        %v10014 = vpop.f32.mrb[0].mxu0
        %v10015 = vpop.f32.mrb[0].mxu0
        %v10016 = vadd.f32 0.0, %v10015
        %v10017 = vpop.f32.mrb[0].mxu0
        %10018 = vmatprep.mubr.bf16.mxu0 0
        %10019 = vmatmul.mubr.bf16.gmra.mrb[0].mxu0 %v9823
        %v10020 = vpop.f32.mrb[0].mxu0
        %v10021 = vadd.f32 0.0, %v10020
        %v10022 = vpop.f32.mrb[0].mxu0
        %v10023 = vpop.f32.mrb[0].mxu0
        %v10024 = vadd.f32 0.0, %v10023
        %v10025 = vpop.f32.mrb[0].mxu0
        %10026 = vmatprep.mubr.bf16.mxu0 0
        %10027 = vmatmul.mubr.bf16.gmra.mrb[0].mxu0 %v9824
        %v10028 = vpop.f32.mrb[0].mxu0
        %v10029 = vadd.f32 0.0, %v10028
        %v10030 = vpop.f32.mrb[0].mxu0
        %v10031 = vpop.f32.mrb[0].mxu0
        %v10032 = vadd.f32 0.0, %v10031
        %v10033 = vpop.f32.mrb[0].mxu0
        %10034 = vmatprep.mubr.bf16.mxu0 0
        %10035 = vmatmul.mubr.bf16.gmra.mrb[0].mxu0 %v9825
        %v10036 = vpop.f32.mrb[0].mxu0
        %v10037 = vadd.f32 0.0, %v10036
        %v10038 = vpop.f32.mrb[0].mxu0
        %v10039 = vpop.f32.mrb[0].mxu0
        %v10040 = vadd.f32 0.0, %v10039
        %v10041 = vpop.f32.mrb[0].mxu0
        %10042 = vdwg.mxu0
        %10043 = vst [vmem:[%s398] sm:$0xff] %v9925
        %10044 = vst [vmem:[%s398 + $0x8] sm:$0xff] %v9928
        %10045 = vst [vmem:[%s398 + $0x10] sm:$0xff] %v9933
        %10046 = vst [vmem:[%s398 + $0x18] sm:$0xff] %v9936
        %10047 = vst [vmem:[%s398 + $0x20] sm:$0xff] %v9941
        %10048 = vst [vmem:[%s398 + $0x28] sm:$0xff] %v9944
        %10049 = vst [vmem:[%s398 + $0x30] sm:$0xff] %v9949
        %10050 = vst [vmem:[%s398 + $0x38] sm:$0xff] %v9952
        %10051 = vst [vmem:[%s398 + $0x40] sm:$0xff] %v9957
        %10052 = vst [vmem:[%s398 + $0x48] sm:$0xff] %v9960
        %10053 = vst [vmem:[%s398 + $0x50] sm:$0xff] %v9965
        %10054 = vst [vmem:[%s398 + $0x58] sm:$0xff] %v9968
        %10055 = vst [vmem:[%s398 + $0x60] sm:$0xff] %v9973
        %10056 = vst [vmem:[%s398 + $0x68] sm:$0xff] %v9976
        %10057 = vst [vmem:[%s398 + $0x70] sm:$0xff] %v9981
        %10058 = vst [vmem:[%s398 + $0x78] sm:$0xff] %v9984
        %10059 = vst [vmem:[%s398 + $0x80] sm:$0xff] %v9989
        %10060 = vst [vmem:[%s398 + $0x88] sm:$0xff] %v9992
        %10061 = vst [vmem:[%s398 + $0x90] sm:$0xff] %v9997
        %10062 = vst [vmem:[%s398 + $0x98] sm:$0xff] %v10000
        %10063 = vst [vmem:[%s398 + $0xa0] sm:$0xff] %v10005
        %10064 = vst [vmem:[%s398 + $0xa8] sm:$0xff] %v10008
        %10065 = vst [vmem:[%s398 + $0xb0] sm:$0xff] %v10013
        %10066 = vst [vmem:[%s398 + $0xb8] sm:$0xff] %v10016
        %10067 = vst [vmem:[%s398 + $0xc0] sm:$0xff] %v10021
        %10068 = vst [vmem:[%s398 + $0xc8] sm:$0xff] %v10024
        %10069 = vst [vmem:[%s398 + $0xd0] sm:$0xff] %v10029
        %10070 = vst [vmem:[%s398 + $0xd8] sm:$0xff] %v10032
        %10071 = vst [vmem:[%s398 + $0xe0] sm:$0xff] %v10037
        %10072 = vst [vmem:[%s398 + $0xe8] sm:$0xff] %v10040
        %s10073 = sand.u32 %s208, 1
        %s10074 = scalar_lea.sflag [#allocation6], %s10073
        %s10075 = sand.u32 %s208, 1
        %s10076 = smul.addr %s10075, 240
        %s10077 = scalar_lea.vmem [#allocation15], %s10076
        // Predicated region
        $region73: #{tpu_custom_call.1} parent=47 // pred_check
          %p10078 = pneg %p218
        $region74: #{tpu_custom_call.1} parent=47 // pred_check_branch
          %10080 = sbr.rel (%p10078) target = $region76
        $region75: #{tpu_custom_call.1} parent=47 // pred_region
          %s10082 = ssub.s32 3840, 3840
          %10083 = vsyncadd %s10074, %s10082
          %s10084 = smul.addr %s32, 30
          %s10085 = smul.addr %s31, 60
          %s10086 = sadd.s32 %s10084, %s10085
          %s10087 = smul.addr %s10086, 128
          %s10088 = scalar_lea.hbm %s7, %s10087
          %s10089 = sshll.u32 %s10077, 4
          %s10090 = int_to_ptr.vmem [resolvable:$true] %s10089
          %10095 = dma.vmem_to_hbm [thread:$0]  %s10090, 3840, %s10088, %s10074, 128, 128, 8
        $region76: #{tpu_custom_call.1} parent=47 // pred_fallthru
          _
      $region48: #{tpu_custom_call.1} parent=5 // pred_fallthru
        _
      %p10096 = scmp.le.s32.totalorder 2, %s22
      // Predicated region
      $region77: #{tpu_custom_call.1} parent=5 // pred_check
        %p10097 = pneg %p10096
      $region78: #{tpu_custom_call.1} parent=5 // pred_check_branch
        %10099 = sbr.rel (%p10097) target = $region80
      $region79: #{tpu_custom_call.1} parent=5 // pred_region
        %s10100 = ssub.s32 %s22, 2
        // Predicated region
        $region81: #{tpu_custom_call.1} parent=79 // pred_check
          %p10101 = pneg %p224
        $region82: #{tpu_custom_call.1} parent=79 // pred_check_branch
          %10103 = sbr.rel (%p10101) target = $region84
        $region83: #{tpu_custom_call.1} parent=79 // pred_region
          %s10104 = sand.u32 %s209, 1
          %s10105 = scalar_lea.sflag [#allocation6], %s10104
          %s10106 = sand.u32 %s209, 1
          %s10107 = smul.addr %s10106, 240
          %s10108 = scalar_lea.vmem [#allocation15], %s10107
          %10109 = dma.done %s10105, 3840
        $region84: #{tpu_custom_call.1} parent=79 // pred_fallthru
          _
      $region80: #{tpu_custom_call.1} parent=5 // pred_fallthru
        _
    $region6: #{tpu_custom_call.1} parent=1 // loop_footer
      %s26 = sadd.s32 1, %s22
    $region7: #{tpu_custom_call.1} parent=1 // loop_footer_branch
      %21 = sbr.rel target = $region3
    $region8: #{tpu_custom_call.1} parent=1 // loop_exit
      _
    %10110 = vsyncpa [#allocation5], 1
    %s10111 = scalar_lea.sflag [#allocation5], 1
    %10112 = vsyncpa %s10111, 1
    %10113 = vsyncpa [#allocation8], 1
    %10114 = vsyncpa [#allocation11], 1
    %10115 = vsyncpa [#allocation14], 1
    %10116 = vsyncpa [#allocation6], 1
    %s10117 = scalar_lea.sflag [#allocation6], 1
    %10118 = vsyncpa %s10117, 1

</llo_original>
